<compile_context>
chip_gen: v7x
topology: tpu7x:2x2x1
jax: 0.10.0
libtpu: 0.0.40
codegen_flags: <defaults>
</compile_context>

<pallas_src>
import functools

import numpy as np
import jax
import jax.numpy as jnp
from jax.experimental import pallas as pl
from jax.experimental.pallas import tpu as pltpu

_fft_size = 32
_hop_size = 16
_n_freq = _fft_size // 2 + 1      # 17
_kp = 128                         # frequency axis zero-padded to one lane width
_syn_p = 128                      # synthesis frame axis zero-padded to one lane width

assert _fft_size == 2 * _hop_size  # structured framing / overlap-add relies on 50% overlap


# ---------------------------------------------------------------------------
# Fused Pallas kernel
# ---------------------------------------------------------------------------
def _grunet_kernel(frames_ref, cosb_ref, sinb_ref,
                   w1p_ref, b1p_ref, wh1p_ref, bh1n_ref,
                   w2p_ref, b2p_ref, wh2p_ref, bh2n_ref,
                   wout_ref, bout_ref, syn_cos_ref, syn_sin_ref,
                   synth_ref,
                   re_s, im_s, gi1_s, h2_s, *, batch_p, hidden):
    f32 = jnp.float32
    Bp, H = batch_p, hidden
    R = re_s.shape[0]
    T = R // Bp

    # ---- Phase 1: windowed DFT + layer-1 GRU input projection, batched over all rows.
    f = frames_ref[...]                                                # (R, N)
    re = jnp.dot(f, cosb_ref[...], preferred_element_type=f32)         # (R, Kp)
    im = jnp.dot(f, sinb_ref[...], preferred_element_type=f32)
    re_s[...] = re
    im_s[...] = im
    mag = jnp.sqrt(re * re + im * im)
    # x@W_ih for all timesteps at once; b_ih (+ folded b_hh for r/z) already packed.
    gi1_s[...] = jnp.dot(mag, w1p_ref[...], preferred_element_type=f32) + b1p_ref[...]

    # ---- Phase 2: two-layer GRU recurrence as one wavefront loop.
    wh1p = wh1p_ref[...]        # (H, Gp)  packed [r|z|n|pad]
    bh1n = bh1n_ref[...]        # (1, H)
    w2p = w2p_ref[...]          # (H, Gp)
    b2p = b2p_ref[...]          # (1, Gp)
    wh2p = wh2p_ref[...]        # (H, Gp)
    bh2n = bh2n_ref[...]        # (1, H)

    def cell(gi, gh, h_prev, bhn):
        r = jax.nn.sigmoid(gi[:, 0:H] + gh[:, 0:H])
        z = jax.nn.sigmoid(gi[:, H:2 * H] + gh[:, H:2 * H])
        n = jnp.tanh(gi[:, 2 * H:3 * H] + r * (gh[:, 2 * H:3 * H] + bhn))
        return (1.0 - z) * n + z * h_prev

    h1 = jnp.zeros((Bp, H), f32)   # h1[t-1] entering iteration t
    h2 = jnp.zeros((Bp, H), f32)   # h2[t-2] entering iteration t
    # At iteration t: layer-1 processes step t, layer-2 processes step t-1 (its input
    # is h1[t-1], already in registers) -> the two chains are independent and the
    # LLO scheduler can overlap their matmul/EUP latency.
    for t in range(T + 1):
        h1_in = h1
        if t < T:
            lo = t * Bp
            gh1 = jnp.dot(h1_in, wh1p, preferred_element_type=f32)      # (Bp, Gp)
            h1 = cell(gi1_s[lo:lo + Bp, :], gh1, h1_in, bh1n)
        if t >= 1:
            lo2 = (t - 1) * Bp
            gi2 = jnp.dot(h1_in, w2p, preferred_element_type=f32) + b2p
            gh2 = jnp.dot(h2, wh2p, preferred_element_type=f32)
            h2 = cell(gi2, gh2, h2, bh2n)
            h2_s[lo2:lo2 + Bp, :] = h2                                   # aligned 8-row store

    # ---- Phase 3: Linear/sigmoid mask, mask apply, ISTFT frame synthesis (batched).
    y = jax.nn.sigmoid(
        jnp.dot(h2_s[...], wout_ref[...], preferred_element_type=f32) + bout_ref[...])
    mre = re_s[...] * y          # padded freq lanes: re/im are exactly 0 there
    mim = im_s[...] * y
    # syn bases have irfft coefficients AND the synthesis window folded in,
    # and are zero-padded to 128 output columns -> lane-dense unmasked store.
    synth_ref[...] = (jnp.dot(mre, syn_cos_ref[...], preferred_element_type=f32)
                      + jnp.dot(mim, syn_sin_ref[...], preferred_element_type=f32))


# ---------------------------------------------------------------------------
# Host-side constants (input independent, cached per signal length)
# ---------------------------------------------------------------------------
@functools.lru_cache(maxsize=None)
def _ola_constants(length):
    N, hop = _fft_size, _hop_size
    pad = N // 2
    padded = length + 2 * pad
    T = 1 + (padded - N) // hop
    n = np.arange(N)
    win = 0.5 - 0.5 * np.cos(2.0 * np.pi * n / N)                      # periodic Hann
    den = np.zeros(padded, np.float64)
    for t in range(T):
        den[t * hop:t * hop + N] += win * win
    den = den[pad:pad + length]
    # torch.istft asserts a nonzero window envelope; guard instead of dividing by ~0.
    den = np.where(np.abs(den) > 1e-11, den, 1.0)
    return T, jnp.asarray(den, jnp.float32)


# ---------------------------------------------------------------------------
# Parameters (deterministic init, PyTorch-default uniform ranges)
# ---------------------------------------------------------------------------
def init_params(key, hidden):
    N, K, Kp, H = _fft_size, _n_freq, _kp, hidden
    Gp = -(-3 * H // 128) * 128                                        # packed gate width

    n = np.arange(N, dtype=np.float64)
    k = np.arange(K, dtype=np.float64)
    win = 0.5 - 0.5 * np.cos(2.0 * np.pi * n / N)                      # periodic Hann

    # Analysis (STFT) basis, window folded; freq axis zero-padded to Kp lanes.
    ang_nk = 2.0 * np.pi * np.outer(n, k) / N                          # (N, K)
    cosb = np.zeros((N, Kp)); cosb[:, :K] = win[:, None] * np.cos(ang_nk)
    sinb = np.zeros((N, Kp)); sinb[:, :K] = -win[:, None] * np.sin(ang_nk)

    # Synthesis (irfft) basis for the one-sided spectrum, synthesis window folded,
    # zero-padded to _syn_p output columns (lane-dense synth store).
    coef = np.where((k == 0) | (k == N // 2), 1.0, 2.0)
    ang_kn = 2.0 * np.pi * np.outer(k, n) / N                          # (K, N)
    syn_cos = np.zeros((Kp, _syn_p))
    syn_sin = np.zeros((Kp, _syn_p))
    syn_cos[:K, :N] = (coef[:, None] * np.cos(ang_kn) / N) * win[None, :]
    syn_sin[:K, :N] = (-coef[:, None] * np.sin(ang_kn) / N) * win[None, :]

    std = 1.0 / float(H) ** 0.5
    it = iter(jax.random.split(key, 26))

    def u(shape):
        return jax.random.uniform(next(it), shape, jnp.float32, -std, std)

    def pack_w(w_r, w_z, w_n, in_rows, in_pad):
        w = jnp.zeros((in_pad, Gp), jnp.float32)
        w = w.at[:in_rows, 0 * H:1 * H].set(w_r)
        w = w.at[:in_rows, 1 * H:2 * H].set(w_z)
        w = w.at[:in_rows, 2 * H:3 * H].set(w_n)
        return w

    def pack_b(b_r, b_z, b_n):
        b = jnp.zeros((1, Gp), jnp.float32)
        b = b.at[:, 0 * H:1 * H].set(b_r)
        b = b.at[:, 1 * H:2 * H].set(b_z)
        b = b.at[:, 2 * H:3 * H].set(b_n)
        return b

    # ---- GRU layer 1 (input = magnitude spectrogram, K bins padded to Kp) ----
    w1p = pack_w(u((K, H)), u((K, H)), u((K, H)), K, Kp)
    bih1 = {g: u((1, H)) for g in "rzn"}
    bhh1 = {g: u((1, H)) for g in "rzn"}
    wh1p = pack_w(u((H, H)), u((H, H)), u((H, H)), H, H)
    # b_ih + b_hh folded for r/z; b_hh_n kept separate (it sits inside r * (.)).
    b1p = pack_b(bih1["r"] + bhh1["r"], bih1["z"] + bhh1["z"], bih1["n"])

    # ---- GRU layer 2 (input = layer-1 hidden) ----
    w2p = pack_w(u((H, H)), u((H, H)), u((H, H)), H, H)
    bih2 = {g: u((1, H)) for g in "rzn"}
    bhh2 = {g: u((1, H)) for g in "rzn"}
    wh2p = pack_w(u((H, H)), u((H, H)), u((H, H)), H, H)
    b2p = pack_b(bih2["r"] + bhh2["r"], bih2["z"] + bhh2["z"], bih2["n"])

    # ---- output linear (hidden -> K, padded to Kp) ----
    wout = jnp.zeros((H, Kp), jnp.float32).at[:, :K].set(u((H, K)))
    bout = jnp.zeros((1, Kp), jnp.float32).at[:, :K].set(u((1, K)))

    return dict(
        cosb=jnp.asarray(cosb, jnp.float32), sinb=jnp.asarray(sinb, jnp.float32),
        syn_cos=jnp.asarray(syn_cos, jnp.float32), syn_sin=jnp.asarray(syn_sin, jnp.float32),
        w1p=w1p, b1p=b1p, wh1p=wh1p, bh1n=bhh1["n"],
        w2p=w2p, b2p=b2p, wh2p=wh2p, bh2n=bhh2["n"],
        wout=wout, bout=bout,
    )


# ---------------------------------------------------------------------------
# Forward pass
# ---------------------------------------------------------------------------
def grunet_forward(waveform, params):
    B, L = waveform.shape
    N, hop = _fft_size, _hop_size
    pad = N // 2
    f32 = jnp.float32
    Kp = params["cosb"].shape[1]
    Gp = params["w1p"].shape[1]
    H = params["bh1n"].shape[1]
    Bp = -(-B // 8) * 8                                                # batch padded to 8 rows

    T, den = _ola_constants(L)
    R = T * Bp

    # --- framing glue (no gather): reflect pad, split into hop-chunks,
    #     frame t = [chunk t | chunk t+1]; time-major rows, batch padded to Bp.
    wav_p = jnp.pad(waveform, ((0, 0), (pad, pad)), mode="reflect")    # (B, L+2*pad)
    usable = (T + 1) * hop
    chunks = wav_p[:, :usable].reshape(B, T + 1, hop)
    frames = jnp.concatenate([chunks[:, :T, :], chunks[:, 1:T + 1, :]], axis=-1)  # (B, T, N)
    frames = frames.transpose(1, 0, 2)                                 # (T, B, N)
    frames = jnp.pad(frames, ((0, 0), (0, Bp - B), (0, 0))).reshape(R, N)

    # --- everything else fused into one Pallas kernel
    synth = pl.pallas_call(
        functools.partial(_grunet_kernel, batch_p=Bp, hidden=H),
        out_shape=jax.ShapeDtypeStruct((R, _syn_p), f32),
        scratch_shapes=[pltpu.VMEM((R, Kp), f32),    # re
                        pltpu.VMEM((R, Kp), f32),    # im
                        pltpu.VMEM((R, Gp), f32),    # gi1 (packed gates)
                        pltpu.VMEM((R, H), f32)],    # h2 (all timesteps)
    )(frames, params["cosb"], params["sinb"],
      params["w1p"], params["b1p"], params["wh1p"], params["bh1n"],
      params["w2p"], params["b2p"], params["wh2p"], params["bh2n"],
      params["wout"], params["bout"], params["syn_cos"], params["syn_sin"])

    # --- overlap-add glue (no scatter): with hop = N/2, output chunk m is
    #     first_half[frame m] + second_half[frame m-1]; then window-envelope divide.
    synth = synth[:, :N].reshape(T, Bp, N)[:, :B].transpose(1, 0, 2)   # (B, T, N), pad rows dropped
    first = synth[:, :, :hop]
    second = synth[:, :, hop:]
    ola = (jnp.pad(first, ((0, 0), (0, 1), (0, 0)))
           + jnp.pad(second, ((0, 0), (1, 0), (0, 0)))).reshape(B, usable)
    return ola[:, pad:pad + L] / den[None, :]


# ---------------------------------------------------------------------------
if __name__ == "__main__":
    B, L = 2, 256
    hidden = 32

    waveform = jax.random.normal(jax.random.PRNGKey(0), (B, L), jnp.float32)
    params = init_params(jax.random.PRNGKey(1), hidden)

    out = jax.jit(grunet_forward)(waveform, params)
    out = jax.block_until_ready(out)
    assert out.shape == (B, L), out.shape
    assert bool(jnp.all(jnp.isfinite(out)))
    print("KERNEL_OK")
</pallas_src>

<mosaic_0001>
module attributes {stable_mosaic.version = 11 : i64} {
  func.func @_grunet_kernel(%arg0: memref<136x32xf32, #tpu.memory_space<vmem>>, %arg1: memref<32x128xf32, #tpu.memory_space<vmem>>, %arg2: memref<32x128xf32, #tpu.memory_space<vmem>>, %arg3: memref<128x128xf32, #tpu.memory_space<vmem>>, %arg4: memref<1x128xf32, #tpu.memory_space<vmem>>, %arg5: memref<32x128xf32, #tpu.memory_space<vmem>>, %arg6: memref<1x32xf32, #tpu.memory_space<vmem>>, %arg7: memref<32x128xf32, #tpu.memory_space<vmem>>, %arg8: memref<1x128xf32, #tpu.memory_space<vmem>>, %arg9: memref<32x128xf32, #tpu.memory_space<vmem>>, %arg10: memref<1x32xf32, #tpu.memory_space<vmem>>, %arg11: memref<32x128xf32, #tpu.memory_space<vmem>>, %arg12: memref<1x128xf32, #tpu.memory_space<vmem>>, %arg13: memref<128x128xf32, #tpu.memory_space<vmem>>, %arg14: memref<128x128xf32, #tpu.memory_space<vmem>>, %arg15: memref<136x128xf32, #tpu.memory_space<vmem>>, %arg16: memref<136x128xf32, #tpu.memory_space<vmem>>, %arg17: memref<136x128xf32, #tpu.memory_space<vmem>>, %arg18: memref<136x128xf32, #tpu.memory_space<vmem>>, %arg19: memref<136x32xf32, #tpu.memory_space<vmem>>) attributes {dimension_semantics = [], scalar_prefetch = 0 : i64, scratch_operands = 4 : i64, tpu.core_type = #tpu.core_type<tc>} {
    %c0 = arith.constant 0 : index
    %c0_0 = arith.constant 0 : index
    %0 = vector.load %arg0[%c0, %c0_0] : memref<136x32xf32, #tpu.memory_space<vmem>>, vector<136x32xf32>
    %c0_1 = arith.constant 0 : index
    %c0_2 = arith.constant 0 : index
    %1 = vector.load %arg1[%c0_1, %c0_2] : memref<32x128xf32, #tpu.memory_space<vmem>>, vector<32x128xf32>
    %cst = arith.constant dense<0.000000e+00> : vector<136x128xf32>
    %2 = tpu.matmul %0, %1, %cst {dimension_numbers = #tpu.dot_dimension_numbers<[1], [0], [0], [1], [0, 0, 1, 1], [], []>} : vector<136x32xf32>, vector<32x128xf32>, vector<136x128xf32> -> vector<136x128xf32>
    %c0_3 = arith.constant 0 : index
    %c0_4 = arith.constant 0 : index
    %3 = vector.load %arg2[%c0_3, %c0_4] : memref<32x128xf32, #tpu.memory_space<vmem>>, vector<32x128xf32>
    %cst_5 = arith.constant dense<0.000000e+00> : vector<136x128xf32>
    %4 = tpu.matmul %0, %3, %cst_5 {dimension_numbers = #tpu.dot_dimension_numbers<[1], [0], [0], [1], [0, 0, 1, 1], [], []>} : vector<136x32xf32>, vector<32x128xf32>, vector<136x128xf32> -> vector<136x128xf32>
    %c0_6 = arith.constant 0 : index
    %c0_7 = arith.constant 0 : index
    %5 = vector.load %arg16[%c0_6, %c0_7] : memref<136x128xf32, #tpu.memory_space<vmem>>, vector<136x128xf32>
    tpu.vector_store %arg16[%c0_6, %c0_7], %2 {strides = array<i32>} : memref<136x128xf32, #tpu.memory_space<vmem>>, vector<136x128xf32>,
    %c0_8 = arith.constant 0 : index
    %c0_9 = arith.constant 0 : index
    %6 = vector.load %arg17[%c0_8, %c0_9] : memref<136x128xf32, #tpu.memory_space<vmem>>, vector<136x128xf32>
    tpu.vector_store %arg17[%c0_8, %c0_9], %4 {strides = array<i32>} : memref<136x128xf32, #tpu.memory_space<vmem>>, vector<136x128xf32>,
    %7 = arith.mulf %2, %2 : vector<136x128xf32>
    %8 = arith.mulf %4, %4 : vector<136x128xf32>
    %9 = arith.addf %7, %8 : vector<136x128xf32>
    %10 = math.sqrt %9 : vector<136x128xf32>
    %c0_10 = arith.constant 0 : index
    %c0_11 = arith.constant 0 : index
    %11 = vector.load %arg3[%c0_10, %c0_11] : memref<128x128xf32, #tpu.memory_space<vmem>>, vector<128x128xf32>
    %cst_12 = arith.constant dense<0.000000e+00> : vector<136x128xf32>
    %12 = tpu.matmul %10, %11, %cst_12 {dimension_numbers = #tpu.dot_dimension_numbers<[1], [0], [0], [1], [0, 0, 1, 1], [], []>} : vector<136x128xf32>, vector<128x128xf32>, vector<136x128xf32> -> vector<136x128xf32>
    %c0_13 = arith.constant 0 : index
    %c0_14 = arith.constant 0 : index
    %13 = vector.load %arg4[%c0_13, %c0_14] : memref<1x128xf32, #tpu.memory_space<vmem>>, vector<1x128xf32>
    %14 = vector.broadcast %13 : vector<1x128xf32> to vector<136x128xf32>
    %15 = arith.addf %12, %14 : vector<136x128xf32>
    %c0_15 = arith.constant 0 : index
    %c0_16 = arith.constant 0 : index
    %16 = vector.load %arg18[%c0_15, %c0_16] : memref<136x128xf32, #tpu.memory_space<vmem>>, vector<136x128xf32>
    tpu.vector_store %arg18[%c0_15, %c0_16], %15 {strides = array<i32>} : memref<136x128xf32, #tpu.memory_space<vmem>>, vector<136x128xf32>,
    %c0_17 = arith.constant 0 : index
    %c0_18 = arith.constant 0 : index
    %17 = vector.load %arg5[%c0_17, %c0_18] : memref<32x128xf32, #tpu.memory_space<vmem>>, vector<32x128xf32>
    %c0_19 = arith.constant 0 : index
    %c0_20 = arith.constant 0 : index
    %18 = vector.load %arg6[%c0_19, %c0_20] : memref<1x32xf32, #tpu.memory_space<vmem>>, vector<1x32xf32>
    %c0_21 = arith.constant 0 : index
    %c0_22 = arith.constant 0 : index
    %19 = vector.load %arg7[%c0_21, %c0_22] : memref<32x128xf32, #tpu.memory_space<vmem>>, vector<32x128xf32>
    %c0_23 = arith.constant 0 : index
    %c0_24 = arith.constant 0 : index
    %20 = vector.load %arg8[%c0_23, %c0_24] : memref<1x128xf32, #tpu.memory_space<vmem>>, vector<1x128xf32>
    %c0_25 = arith.constant 0 : index
    %c0_26 = arith.constant 0 : index
    %21 = vector.load %arg9[%c0_25, %c0_26] : memref<32x128xf32, #tpu.memory_space<vmem>>, vector<32x128xf32>
    %c0_27 = arith.constant 0 : index
    %c0_28 = arith.constant 0 : index
    %22 = vector.load %arg10[%c0_27, %c0_28] : memref<1x32xf32, #tpu.memory_space<vmem>>, vector<1x32xf32>
    %cst_29 = arith.constant 0.000000e+00 : f32
    %23 = vector.broadcast %cst_29 : f32 to vector<8x32xf32>
    %cst_30 = arith.constant 0.000000e+00 : f32
    %24 = vector.broadcast %cst_30 : f32 to vector<8x32xf32>
    %cst_31 = arith.constant dense<0.000000e+00> : vector<8x128xf32>
    %25 = tpu.matmul %23, %17, %cst_31 {dimension_numbers = #tpu.dot_dimension_numbers<[1], [0], [0], [1], [0, 0, 1, 1], [], []>} : vector<8x32xf32>, vector<32x128xf32>, vector<8x128xf32> -> vector<8x128xf32>
    %c0_32 = arith.constant 0 : index
    %c0_33 = arith.constant 0 : index
    %26 = vector.load %arg18[%c0_32, %c0_33] : memref<136x128xf32, #tpu.memory_space<vmem>>, vector<8x128xf32>
    %27 = vector.extract_strided_slice %26 {offsets = [0, 0], sizes = [8, 32], strides = [1, 1]} : vector<8x128xf32> to vector<8x32xf32>
    %28 = vector.extract_strided_slice %25 {offsets = [0, 0], sizes = [8, 32], strides = [1, 1]} : vector<8x128xf32> to vector<8x32xf32>
    %29 = arith.addf %27, %28 : vector<8x32xf32>
    %30 = arith.negf %29 : vector<8x32xf32>
    %31 = math.exp %30 : vector<8x32xf32>
    %cst_34 = arith.constant 1.000000e+00 : f32
    %32 = vector.broadcast %cst_34 : f32 to vector<8x32xf32>
    %33 = arith.addf %32, %31 : vector<8x32xf32>
    %34 = arith.divf %32, %33 : vector<8x32xf32>
    %35 = vector.extract_strided_slice %26 {offsets = [0, 32], sizes = [8, 32], strides = [1, 1]} : vector<8x128xf32> to vector<8x32xf32>
    %36 = vector.extract_strided_slice %25 {offsets = [0, 32], sizes = [8, 32], strides = [1, 1]} : vector<8x128xf32> to vector<8x32xf32>
    %37 = arith.addf %35, %36 : vector<8x32xf32>
    %38 = arith.negf %37 : vector<8x32xf32>
    %39 = math.exp %38 : vector<8x32xf32>
    %cst_35 = arith.constant 1.000000e+00 : f32
    %40 = vector.broadcast %cst_35 : f32 to vector<8x32xf32>
    %41 = arith.addf %40, %39 : vector<8x32xf32>
    %42 = arith.divf %40, %41 : vector<8x32xf32>
    %43 = vector.extract_strided_slice %26 {offsets = [0, 64], sizes = [8, 32], strides = [1, 1]} : vector<8x128xf32> to vector<8x32xf32>
    %44 = vector.extract_strided_slice %25 {offsets = [0, 64], sizes = [8, 32], strides = [1, 1]} : vector<8x128xf32> to vector<8x32xf32>
    %45 = vector.broadcast %18 : vector<1x32xf32> to vector<8x32xf32>
    %46 = arith.addf %44, %45 : vector<8x32xf32>
    %47 = arith.mulf %34, %46 : vector<8x32xf32>
    %48 = arith.addf %43, %47 : vector<8x32xf32>
    %49 = math.tanh %48 : vector<8x32xf32>
    %cst_36 = arith.constant 1.000000e+00 : f32
    %50 = vector.broadcast %cst_36 : f32 to vector<8x32xf32>
    %51 = arith.subf %50, %42 : vector<8x32xf32>
    %52 = arith.mulf %51, %49 : vector<8x32xf32>
    %53 = arith.mulf %42, %23 : vector<8x32xf32>
    %54 = arith.addf %52, %53 : vector<8x32xf32>
    %cst_37 = arith.constant dense<0.000000e+00> : vector<8x128xf32>
    %55 = tpu.matmul %54, %17, %cst_37 {dimension_numbers = #tpu.dot_dimension_numbers<[1], [0], [0], [1], [0, 0, 1, 1], [], []>} : vector<8x32xf32>, vector<32x128xf32>, vector<8x128xf32> -> vector<8x128xf32>
    %c8 = arith.constant 8 : index
    %c0_38 = arith.constant 0 : index
    %56 = vector.load %arg18[%c8, %c0_38] : memref<136x128xf32, #tpu.memory_space<vmem>>, vector<8x128xf32>
    %57 = vector.extract_strided_slice %56 {offsets = [0, 0], sizes = [8, 32], strides = [1, 1]} : vector<8x128xf32> to vector<8x32xf32>
    %58 = vector.extract_strided_slice %55 {offsets = [0, 0], sizes = [8, 32], strides = [1, 1]} : vector<8x128xf32> to vector<8x32xf32>
    %59 = arith.addf %57, %58 : vector<8x32xf32>
    %60 = arith.negf %59 : vector<8x32xf32>
    %61 = math.exp %60 : vector<8x32xf32>
    %cst_39 = arith.constant 1.000000e+00 : f32
    %62 = vector.broadcast %cst_39 : f32 to vector<8x32xf32>
    %63 = arith.addf %62, %61 : vector<8x32xf32>
    %64 = arith.divf %62, %63 : vector<8x32xf32>
    %65 = vector.extract_strided_slice %56 {offsets = [0, 32], sizes = [8, 32], strides = [1, 1]} : vector<8x128xf32> to vector<8x32xf32>
    %66 = vector.extract_strided_slice %55 {offsets = [0, 32], sizes = [8, 32], strides = [1, 1]} : vector<8x128xf32> to vector<8x32xf32>
    %67 = arith.addf %65, %66 : vector<8x32xf32>
    %68 = arith.negf %67 : vector<8x32xf32>
    %69 = math.exp %68 : vector<8x32xf32>
    %cst_40 = arith.constant 1.000000e+00 : f32
    %70 = vector.broadcast %cst_40 : f32 to vector<8x32xf32>
    %71 = arith.addf %70, %69 : vector<8x32xf32>
    %72 = arith.divf %70, %71 : vector<8x32xf32>
    %73 = vector.extract_strided_slice %56 {offsets = [0, 64], sizes = [8, 32], strides = [1, 1]} : vector<8x128xf32> to vector<8x32xf32>
    %74 = vector.extract_strided_slice %55 {offsets = [0, 64], sizes = [8, 32], strides = [1, 1]} : vector<8x128xf32> to vector<8x32xf32>
    %75 = vector.broadcast %18 : vector<1x32xf32> to vector<8x32xf32>
    %76 = arith.addf %74, %75 : vector<8x32xf32>
    %77 = arith.mulf %64, %76 : vector<8x32xf32>
    %78 = arith.addf %73, %77 : vector<8x32xf32>
    %79 = math.tanh %78 : vector<8x32xf32>
    %cst_41 = arith.constant 1.000000e+00 : f32
    %80 = vector.broadcast %cst_41 : f32 to vector<8x32xf32>
    %81 = arith.subf %80, %72 : vector<8x32xf32>
    %82 = arith.mulf %81, %79 : vector<8x32xf32>
    %83 = arith.mulf %72, %54 : vector<8x32xf32>
    %84 = arith.addf %82, %83 : vector<8x32xf32>
    %cst_42 = arith.constant dense<0.000000e+00> : vector<8x128xf32>
    %85 = tpu.matmul %54, %19, %cst_42 {dimension_numbers = #tpu.dot_dimension_numbers<[1], [0], [0], [1], [0, 0, 1, 1], [], []>} : vector<8x32xf32>, vector<32x128xf32>, vector<8x128xf32> -> vector<8x128xf32>
    %86 = vector.broadcast %20 : vector<1x128xf32> to vector<8x128xf32>
    %87 = arith.addf %85, %86 : vector<8x128xf32>
    %cst_43 = arith.constant dense<0.000000e+00> : vector<8x128xf32>
    %88 = tpu.matmul %24, %21, %cst_43 {dimension_numbers = #tpu.dot_dimension_numbers<[1], [0], [0], [1], [0, 0, 1, 1], [], []>} : vector<8x32xf32>, vector<32x128xf32>, vector<8x128xf32> -> vector<8x128xf32>
    %89 = vector.extract_strided_slice %87 {offsets = [0, 0], sizes = [8, 32], strides = [1, 1]} : vector<8x128xf32> to vector<8x32xf32>
    %90 = vector.extract_strided_slice %88 {offsets = [0, 0], sizes = [8, 32], strides = [1, 1]} : vector<8x128xf32> to vector<8x32xf32>
    %91 = arith.addf %89, %90 : vector<8x32xf32>
    %92 = arith.negf %91 : vector<8x32xf32>
    %93 = math.exp %92 : vector<8x32xf32>
    %cst_44 = arith.constant 1.000000e+00 : f32
    %94 = vector.broadcast %cst_44 : f32 to vector<8x32xf32>
    %95 = arith.addf %94, %93 : vector<8x32xf32>
    %96 = arith.divf %94, %95 : vector<8x32xf32>
    %97 = vector.extract_strided_slice %87 {offsets = [0, 32], sizes = [8, 32], strides = [1, 1]} : vector<8x128xf32> to vector<8x32xf32>
    %98 = vector.extract_strided_slice %88 {offsets = [0, 32], sizes = [8, 32], strides = [1, 1]} : vector<8x128xf32> to vector<8x32xf32>
    %99 = arith.addf %97, %98 : vector<8x32xf32>
    %100 = arith.negf %99 : vector<8x32xf32>
    %101 = math.exp %100 : vector<8x32xf32>
    %cst_45 = arith.constant 1.000000e+00 : f32
    %102 = vector.broadcast %cst_45 : f32 to vector<8x32xf32>
    %103 = arith.addf %102, %101 : vector<8x32xf32>
    %104 = arith.divf %102, %103 : vector<8x32xf32>
    %105 = vector.extract_strided_slice %87 {offsets = [0, 64], sizes = [8, 32], strides = [1, 1]} : vector<8x128xf32> to vector<8x32xf32>
    %106 = vector.extract_strided_slice %88 {offsets = [0, 64], sizes = [8, 32], strides = [1, 1]} : vector<8x128xf32> to vector<8x32xf32>
    %107 = vector.broadcast %22 : vector<1x32xf32> to vector<8x32xf32>
    %108 = arith.addf %106, %107 : vector<8x32xf32>
    %109 = arith.mulf %96, %108 : vector<8x32xf32>
    %110 = arith.addf %105, %109 : vector<8x32xf32>
    %111 = math.tanh %110 : vector<8x32xf32>
    %cst_46 = arith.constant 1.000000e+00 : f32
    %112 = vector.broadcast %cst_46 : f32 to vector<8x32xf32>
    %113 = arith.subf %112, %104 : vector<8x32xf32>
    %114 = arith.mulf %113, %111 : vector<8x32xf32>
    %115 = arith.mulf %104, %24 : vector<8x32xf32>
    %116 = arith.addf %114, %115 : vector<8x32xf32>
    %c0_47 = arith.constant 0 : index
    %c0_48 = arith.constant 0 : index
    %117 = vector.load %arg19[%c0_47, %c0_48] : memref<136x32xf32, #tpu.memory_space<vmem>>, vector<8x32xf32>
    tpu.vector_store %arg19[%c0_47, %c0_48], %116 {strides = array<i32>} : memref<136x32xf32, #tpu.memory_space<vmem>>, vector<8x32xf32>,
    %cst_49 = arith.constant dense<0.000000e+00> : vector<8x128xf32>
    %118 = tpu.matmul %84, %17, %cst_49 {dimension_numbers = #tpu.dot_dimension_numbers<[1], [0], [0], [1], [0, 0, 1, 1], [], []>} : vector<8x32xf32>, vector<32x128xf32>, vector<8x128xf32> -> vector<8x128xf32>
    %c16 = arith.constant 16 : index
    %c0_50 = arith.constant 0 : index
    %119 = vector.load %arg18[%c16, %c0_50] : memref<136x128xf32, #tpu.memory_space<vmem>>, vector<8x128xf32>
    %120 = vector.extract_strided_slice %119 {offsets = [0, 0], sizes = [8, 32], strides = [1, 1]} : vector<8x128xf32> to vector<8x32xf32>
    %121 = vector.extract_strided_slice %118 {offsets = [0, 0], sizes = [8, 32], strides = [1, 1]} : vector<8x128xf32> to vector<8x32xf32>
    %122 = arith.addf %120, %121 : vector<8x32xf32>
    %123 = arith.negf %122 : vector<8x32xf32>
    %124 = math.exp %123 : vector<8x32xf32>
    %cst_51 = arith.constant 1.000000e+00 : f32
    %125 = vector.broadcast %cst_51 : f32 to vector<8x32xf32>
    %126 = arith.addf %125, %124 : vector<8x32xf32>
    %127 = arith.divf %125, %126 : vector<8x32xf32>
    %128 = vector.extract_strided_slice %119 {offsets = [0, 32], sizes = [8, 32], strides = [1, 1]} : vector<8x128xf32> to vector<8x32xf32>
    %129 = vector.extract_strided_slice %118 {offsets = [0, 32], sizes = [8, 32], strides = [1, 1]} : vector<8x128xf32> to vector<8x32xf32>
    %130 = arith.addf %128, %129 : vector<8x32xf32>
    %131 = arith.negf %130 : vector<8x32xf32>
    %132 = math.exp %131 : vector<8x32xf32>
    %cst_52 = arith.constant 1.000000e+00 : f32
    %133 = vector.broadcast %cst_52 : f32 to vector<8x32xf32>
    %134 = arith.addf %133, %132 : vector<8x32xf32>
    %135 = arith.divf %133, %134 : vector<8x32xf32>
    %136 = vector.extract_strided_slice %119 {offsets = [0, 64], sizes = [8, 32], strides = [1, 1]} : vector<8x128xf32> to vector<8x32xf32>
    %137 = vector.extract_strided_slice %118 {offsets = [0, 64], sizes = [8, 32], strides = [1, 1]} : vector<8x128xf32> to vector<8x32xf32>
    %138 = vector.broadcast %18 : vector<1x32xf32> to vector<8x32xf32>
    %139 = arith.addf %137, %138 : vector<8x32xf32>
    %140 = arith.mulf %127, %139 : vector<8x32xf32>
    %141 = arith.addf %136, %140 : vector<8x32xf32>
    %142 = math.tanh %141 : vector<8x32xf32>
    %cst_53 = arith.constant 1.000000e+00 : f32
    %143 = vector.broadcast %cst_53 : f32 to vector<8x32xf32>
    %144 = arith.subf %143, %135 : vector<8x32xf32>
    %145 = arith.mulf %144, %142 : vector<8x32xf32>
    %146 = arith.mulf %135, %84 : vector<8x32xf32>
    %147 = arith.addf %145, %146 : vector<8x32xf32>
    %cst_54 = arith.constant dense<0.000000e+00> : vector<8x128xf32>
    %148 = tpu.matmul %84, %19, %cst_54 {dimension_numbers = #tpu.dot_dimension_numbers<[1], [0], [0], [1], [0, 0, 1, 1], [], []>} : vector<8x32xf32>, vector<32x128xf32>, vector<8x128xf32> -> vector<8x128xf32>
    %149 = vector.broadcast %20 : vector<1x128xf32> to vector<8x128xf32>
    %150 = arith.addf %148, %149 : vector<8x128xf32>
    %cst_55 = arith.constant dense<0.000000e+00> : vector<8x128xf32>
    %151 = tpu.matmul %116, %21, %cst_55 {dimension_numbers = #tpu.dot_dimension_numbers<[1], [0], [0], [1], [0, 0, 1, 1], [], []>} : vector<8x32xf32>, vector<32x128xf32>, vector<8x128xf32> -> vector<8x128xf32>
    %152 = vector.extract_strided_slice %150 {offsets = [0, 0], sizes = [8, 32], strides = [1, 1]} : vector<8x128xf32> to vector<8x32xf32>
    %153 = vector.extract_strided_slice %151 {offsets = [0, 0], sizes = [8, 32], strides = [1, 1]} : vector<8x128xf32> to vector<8x32xf32>
    %154 = arith.addf %152, %153 : vector<8x32xf32>
    %155 = arith.negf %154 : vector<8x32xf32>
    %156 = math.exp %155 : vector<8x32xf32>
    %cst_56 = arith.constant 1.000000e+00 : f32
    %157 = vector.broadcast %cst_56 : f32 to vector<8x32xf32>
    %158 = arith.addf %157, %156 : vector<8x32xf32>
    %159 = arith.divf %157, %158 : vector<8x32xf32>
    %160 = vector.extract_strided_slice %150 {offsets = [0, 32], sizes = [8, 32], strides = [1, 1]} : vector<8x128xf32> to vector<8x32xf32>
    %161 = vector.extract_strided_slice %151 {offsets = [0, 32], sizes = [8, 32], strides = [1, 1]} : vector<8x128xf32> to vector<8x32xf32>
    %162 = arith.addf %160, %161 : vector<8x32xf32>
    %163 = arith.negf %162 : vector<8x32xf32>
    %164 = math.exp %163 : vector<8x32xf32>
    %cst_57 = arith.constant 1.000000e+00 : f32
    %165 = vector.broadcast %cst_57 : f32 to vector<8x32xf32>
    %166 = arith.addf %165, %164 : vector<8x32xf32>
    %167 = arith.divf %165, %166 : vector<8x32xf32>
    %168 = vector.extract_strided_slice %150 {offsets = [0, 64], sizes = [8, 32], strides = [1, 1]} : vector<8x128xf32> to vector<8x32xf32>
    %169 = vector.extract_strided_slice %151 {offsets = [0, 64], sizes = [8, 32], strides = [1, 1]} : vector<8x128xf32> to vector<8x32xf32>
    %170 = vector.broadcast %22 : vector<1x32xf32> to vector<8x32xf32>
    %171 = arith.addf %169, %170 : vector<8x32xf32>
    %172 = arith.mulf %159, %171 : vector<8x32xf32>
    %173 = arith.addf %168, %172 : vector<8x32xf32>
    %174 = math.tanh %173 : vector<8x32xf32>
    %cst_58 = arith.constant 1.000000e+00 : f32
    %175 = vector.broadcast %cst_58 : f32 to vector<8x32xf32>
    %176 = arith.subf %175, %167 : vector<8x32xf32>
    %177 = arith.mulf %176, %174 : vector<8x32xf32>
    %178 = arith.mulf %167, %116 : vector<8x32xf32>
    %179 = arith.addf %177, %178 : vector<8x32xf32>
    %c8_59 = arith.constant 8 : index
    %c0_60 = arith.constant 0 : index
    %180 = vector.load %arg19[%c8_59, %c0_60] : memref<136x32xf32, #tpu.memory_space<vmem>>, vector<8x32xf32>
    tpu.vector_store %arg19[%c8_59, %c0_60], %179 {strides = array<i32>} : memref<136x32xf32, #tpu.memory_space<vmem>>, vector<8x32xf32>,
    %cst_61 = arith.constant dense<0.000000e+00> : vector<8x128xf32>
    %181 = tpu.matmul %147, %17, %cst_61 {dimension_numbers = #tpu.dot_dimension_numbers<[1], [0], [0], [1], [0, 0, 1, 1], [], []>} : vector<8x32xf32>, vector<32x128xf32>, vector<8x128xf32> -> vector<8x128xf32>
    %c24 = arith.constant 24 : index
    %c0_62 = arith.constant 0 : index
    %182 = vector.load %arg18[%c24, %c0_62] : memref<136x128xf32, #tpu.memory_space<vmem>>, vector<8x128xf32>
    %183 = vector.extract_strided_slice %182 {offsets = [0, 0], sizes = [8, 32], strides = [1, 1]} : vector<8x128xf32> to vector<8x32xf32>
    %184 = vector.extract_strided_slice %181 {offsets = [0, 0], sizes = [8, 32], strides = [1, 1]} : vector<8x128xf32> to vector<8x32xf32>
    %185 = arith.addf %183, %184 : vector<8x32xf32>
    %186 = arith.negf %185 : vector<8x32xf32>
    %187 = math.exp %186 : vector<8x32xf32>
    %cst_63 = arith.constant 1.000000e+00 : f32
    %188 = vector.broadcast %cst_63 : f32 to vector<8x32xf32>
    %189 = arith.addf %188, %187 : vector<8x32xf32>
    %190 = arith.divf %188, %189 : vector<8x32xf32>
    %191 = vector.extract_strided_slice %182 {offsets = [0, 32], sizes = [8, 32], strides = [1, 1]} : vector<8x128xf32> to vector<8x32xf32>
    %192 = vector.extract_strided_slice %181 {offsets = [0, 32], sizes = [8, 32], strides = [1, 1]} : vector<8x128xf32> to vector<8x32xf32>
    %193 = arith.addf %191, %192 : vector<8x32xf32>
    %194 = arith.negf %193 : vector<8x32xf32>
    %195 = math.exp %194 : vector<8x32xf32>
    %cst_64 = arith.constant 1.000000e+00 : f32
    %196 = vector.broadcast %cst_64 : f32 to vector<8x32xf32>
    %197 = arith.addf %196, %195 : vector<8x32xf32>
    %198 = arith.divf %196, %197 : vector<8x32xf32>
    %199 = vector.extract_strided_slice %182 {offsets = [0, 64], sizes = [8, 32], strides = [1, 1]} : vector<8x128xf32> to vector<8x32xf32>
    %200 = vector.extract_strided_slice %181 {offsets = [0, 64], sizes = [8, 32], strides = [1, 1]} : vector<8x128xf32> to vector<8x32xf32>
    %201 = vector.broadcast %18 : vector<1x32xf32> to vector<8x32xf32>
    %202 = arith.addf %200, %201 : vector<8x32xf32>
    %203 = arith.mulf %190, %202 : vector<8x32xf32>
    %204 = arith.addf %199, %203 : vector<8x32xf32>
    %205 = math.tanh %204 : vector<8x32xf32>
    %cst_65 = arith.constant 1.000000e+00 : f32
    %206 = vector.broadcast %cst_65 : f32 to vector<8x32xf32>
    %207 = arith.subf %206, %198 : vector<8x32xf32>
    %208 = arith.mulf %207, %205 : vector<8x32xf32>
    %209 = arith.mulf %198, %147 : vector<8x32xf32>
    %210 = arith.addf %208, %209 : vector<8x32xf32>
    %cst_66 = arith.constant dense<0.000000e+00> : vector<8x128xf32>
    %211 = tpu.matmul %147, %19, %cst_66 {dimension_numbers = #tpu.dot_dimension_numbers<[1], [0], [0], [1], [0, 0, 1, 1], [], []>} : vector<8x32xf32>, vector<32x128xf32>, vector<8x128xf32> -> vector<8x128xf32>
    %212 = vector.broadcast %20 : vector<1x128xf32> to vector<8x128xf32>
    %213 = arith.addf %211, %212 : vector<8x128xf32>
    %cst_67 = arith.constant dense<0.000000e+00> : vector<8x128xf32>
    %214 = tpu.matmul %179, %21, %cst_67 {dimension_numbers = #tpu.dot_dimension_numbers<[1], [0], [0], [1], [0, 0, 1, 1], [], []>} : vector<8x32xf32>, vector<32x128xf32>, vector<8x128xf32> -> vector<8x128xf32>
    %215 = vector.extract_strided_slice %213 {offsets = [0, 0], sizes = [8, 32], strides = [1, 1]} : vector<8x128xf32> to vector<8x32xf32>
    %216 = vector.extract_strided_slice %214 {offsets = [0, 0], sizes = [8, 32], strides = [1, 1]} : vector<8x128xf32> to vector<8x32xf32>
    %217 = arith.addf %215, %216 : vector<8x32xf32>
    %218 = arith.negf %217 : vector<8x32xf32>
    %219 = math.exp %218 : vector<8x32xf32>
    %cst_68 = arith.constant 1.000000e+00 : f32
    %220 = vector.broadcast %cst_68 : f32 to vector<8x32xf32>
    %221 = arith.addf %220, %219 : vector<8x32xf32>
    %222 = arith.divf %220, %221 : vector<8x32xf32>
    %223 = vector.extract_strided_slice %213 {offsets = [0, 32], sizes = [8, 32], strides = [1, 1]} : vector<8x128xf32> to vector<8x32xf32>
    %224 = vector.extract_strided_slice %214 {offsets = [0, 32], sizes = [8, 32], strides = [1, 1]} : vector<8x128xf32> to vector<8x32xf32>
    %225 = arith.addf %223, %224 : vector<8x32xf32>
    %226 = arith.negf %225 : vector<8x32xf32>
    %227 = math.exp %226 : vector<8x32xf32>
    %cst_69 = arith.constant 1.000000e+00 : f32
    %228 = vector.broadcast %cst_69 : f32 to vector<8x32xf32>
    %229 = arith.addf %228, %227 : vector<8x32xf32>
    %230 = arith.divf %228, %229 : vector<8x32xf32>
    %231 = vector.extract_strided_slice %213 {offsets = [0, 64], sizes = [8, 32], strides = [1, 1]} : vector<8x128xf32> to vector<8x32xf32>
    %232 = vector.extract_strided_slice %214 {offsets = [0, 64], sizes = [8, 32], strides = [1, 1]} : vector<8x128xf32> to vector<8x32xf32>
    %233 = vector.broadcast %22 : vector<1x32xf32> to vector<8x32xf32>
    %234 = arith.addf %232, %233 : vector<8x32xf32>
    %235 = arith.mulf %222, %234 : vector<8x32xf32>
    %236 = arith.addf %231, %235 : vector<8x32xf32>
    %237 = math.tanh %236 : vector<8x32xf32>
    %cst_70 = arith.constant 1.000000e+00 : f32
    %238 = vector.broadcast %cst_70 : f32 to vector<8x32xf32>
    %239 = arith.subf %238, %230 : vector<8x32xf32>
    %240 = arith.mulf %239, %237 : vector<8x32xf32>
    %241 = arith.mulf %230, %179 : vector<8x32xf32>
    %242 = arith.addf %240, %241 : vector<8x32xf32>
    %c16_71 = arith.constant 16 : index
    %c0_72 = arith.constant 0 : index
    %243 = vector.load %arg19[%c16_71, %c0_72] : memref<136x32xf32, #tpu.memory_space<vmem>>, vector<8x32xf32>
    tpu.vector_store %arg19[%c16_71, %c0_72], %242 {strides = array<i32>} : memref<136x32xf32, #tpu.memory_space<vmem>>, vector<8x32xf32>,
    %cst_73 = arith.constant dense<0.000000e+00> : vector<8x128xf32>
    %244 = tpu.matmul %210, %17, %cst_73 {dimension_numbers = #tpu.dot_dimension_numbers<[1], [0], [0], [1], [0, 0, 1, 1], [], []>} : vector<8x32xf32>, vector<32x128xf32>, vector<8x128xf32> -> vector<8x128xf32>
    %c32 = arith.constant 32 : index
    %c0_74 = arith.constant 0 : index
    %245 = vector.load %arg18[%c32, %c0_74] : memref<136x128xf32, #tpu.memory_space<vmem>>, vector<8x128xf32>
    %246 = vector.extract_strided_slice %245 {offsets = [0, 0], sizes = [8, 32], strides = [1, 1]} : vector<8x128xf32> to vector<8x32xf32>
    %247 = vector.extract_strided_slice %244 {offsets = [0, 0], sizes = [8, 32], strides = [1, 1]} : vector<8x128xf32> to vector<8x32xf32>
    %248 = arith.addf %246, %247 : vector<8x32xf32>
    %249 = arith.negf %248 : vector<8x32xf32>
    %250 = math.exp %249 : vector<8x32xf32>
    %cst_75 = arith.constant 1.000000e+00 : f32
    %251 = vector.broadcast %cst_75 : f32 to vector<8x32xf32>
    %252 = arith.addf %251, %250 : vector<8x32xf32>
    %253 = arith.divf %251, %252 : vector<8x32xf32>
    %254 = vector.extract_strided_slice %245 {offsets = [0, 32], sizes = [8, 32], strides = [1, 1]} : vector<8x128xf32> to vector<8x32xf32>
    %255 = vector.extract_strided_slice %244 {offsets = [0, 32], sizes = [8, 32], strides = [1, 1]} : vector<8x128xf32> to vector<8x32xf32>
    %256 = arith.addf %254, %255 : vector<8x32xf32>
    %257 = arith.negf %256 : vector<8x32xf32>
    %258 = math.exp %257 : vector<8x32xf32>
    %cst_76 = arith.constant 1.000000e+00 : f32
    %259 = vector.broadcast %cst_76 : f32 to vector<8x32xf32>
    %260 = arith.addf %259, %258 : vector<8x32xf32>
    %261 = arith.divf %259, %260 : vector<8x32xf32>
    %262 = vector.extract_strided_slice %245 {offsets = [0, 64], sizes = [8, 32], strides = [1, 1]} : vector<8x128xf32> to vector<8x32xf32>
    %263 = vector.extract_strided_slice %244 {offsets = [0, 64], sizes = [8, 32], strides = [1, 1]} : vector<8x128xf32> to vector<8x32xf32>
    %264 = vector.broadcast %18 : vector<1x32xf32> to vector<8x32xf32>
    %265 = arith.addf %263, %264 : vector<8x32xf32>
    %266 = arith.mulf %253, %265 : vector<8x32xf32>
    %267 = arith.addf %262, %266 : vector<8x32xf32>
    %268 = math.tanh %267 : vector<8x32xf32>
    %cst_77 = arith.constant 1.000000e+00 : f32
    %269 = vector.broadcast %cst_77 : f32 to vector<8x32xf32>
    %270 = arith.subf %269, %261 : vector<8x32xf32>
    %271 = arith.mulf %270, %268 : vector<8x32xf32>
    %272 = arith.mulf %261, %210 : vector<8x32xf32>
    %273 = arith.addf %271, %272 : vector<8x32xf32>
    %cst_78 = arith.constant dense<0.000000e+00> : vector<8x128xf32>
    %274 = tpu.matmul %210, %19, %cst_78 {dimension_numbers = #tpu.dot_dimension_numbers<[1], [0], [0], [1], [0, 0, 1, 1], [], []>} : vector<8x32xf32>, vector<32x128xf32>, vector<8x128xf32> -> vector<8x128xf32>
    %275 = vector.broadcast %20 : vector<1x128xf32> to vector<8x128xf32>
    %276 = arith.addf %274, %275 : vector<8x128xf32>
    %cst_79 = arith.constant dense<0.000000e+00> : vector<8x128xf32>
    %277 = tpu.matmul %242, %21, %cst_79 {dimension_numbers = #tpu.dot_dimension_numbers<[1], [0], [0], [1], [0, 0, 1, 1], [], []>} : vector<8x32xf32>, vector<32x128xf32>, vector<8x128xf32> -> vector<8x128xf32>
    %278 = vector.extract_strided_slice %276 {offsets = [0, 0], sizes = [8, 32], strides = [1, 1]} : vector<8x128xf32> to vector<8x32xf32>
    %279 = vector.extract_strided_slice %277 {offsets = [0, 0], sizes = [8, 32], strides = [1, 1]} : vector<8x128xf32> to vector<8x32xf32>
    %280 = arith.addf %278, %279 : vector<8x32xf32>
    %281 = arith.negf %280 : vector<8x32xf32>
    %282 = math.exp %281 : vector<8x32xf32>
    %cst_80 = arith.constant 1.000000e+00 : f32
    %283 = vector.broadcast %cst_80 : f32 to vector<8x32xf32>
    %284 = arith.addf %283, %282 : vector<8x32xf32>
    %285 = arith.divf %283, %284 : vector<8x32xf32>
    %286 = vector.extract_strided_slice %276 {offsets = [0, 32], sizes = [8, 32], strides = [1, 1]} : vector<8x128xf32> to vector<8x32xf32>
    %287 = vector.extract_strided_slice %277 {offsets = [0, 32], sizes = [8, 32], strides = [1, 1]} : vector<8x128xf32> to vector<8x32xf32>
    %288 = arith.addf %286, %287 : vector<8x32xf32>
    %289 = arith.negf %288 : vector<8x32xf32>
    %290 = math.exp %289 : vector<8x32xf32>
    %cst_81 = arith.constant 1.000000e+00 : f32
    %291 = vector.broadcast %cst_81 : f32 to vector<8x32xf32>
    %292 = arith.addf %291, %290 : vector<8x32xf32>
    %293 = arith.divf %291, %292 : vector<8x32xf32>
    %294 = vector.extract_strided_slice %276 {offsets = [0, 64], sizes = [8, 32], strides = [1, 1]} : vector<8x128xf32> to vector<8x32xf32>
    %295 = vector.extract_strided_slice %277 {offsets = [0, 64], sizes = [8, 32], strides = [1, 1]} : vector<8x128xf32> to vector<8x32xf32>
    %296 = vector.broadcast %22 : vector<1x32xf32> to vector<8x32xf32>
    %297 = arith.addf %295, %296 : vector<8x32xf32>
    %298 = arith.mulf %285, %297 : vector<8x32xf32>
    %299 = arith.addf %294, %298 : vector<8x32xf32>
    %300 = math.tanh %299 : vector<8x32xf32>
    %cst_82 = arith.constant 1.000000e+00 : f32
    %301 = vector.broadcast %cst_82 : f32 to vector<8x32xf32>
    %302 = arith.subf %301, %293 : vector<8x32xf32>
    %303 = arith.mulf %302, %300 : vector<8x32xf32>
    %304 = arith.mulf %293, %242 : vector<8x32xf32>
    %305 = arith.addf %303, %304 : vector<8x32xf32>
    %c24_83 = arith.constant 24 : index
    %c0_84 = arith.constant 0 : index
    %306 = vector.load %arg19[%c24_83, %c0_84] : memref<136x32xf32, #tpu.memory_space<vmem>>, vector<8x32xf32>
    tpu.vector_store %arg19[%c24_83, %c0_84], %305 {strides = array<i32>} : memref<136x32xf32, #tpu.memory_space<vmem>>, vector<8x32xf32>,
    %cst_85 = arith.constant dense<0.000000e+00> : vector<8x128xf32>
    %307 = tpu.matmul %273, %17, %cst_85 {dimension_numbers = #tpu.dot_dimension_numbers<[1], [0], [0], [1], [0, 0, 1, 1], [], []>} : vector<8x32xf32>, vector<32x128xf32>, vector<8x128xf32> -> vector<8x128xf32>
    %c40 = arith.constant 40 : index
    %c0_86 = arith.constant 0 : index
    %308 = vector.load %arg18[%c40, %c0_86] : memref<136x128xf32, #tpu.memory_space<vmem>>, vector<8x128xf32>
    %309 = vector.extract_strided_slice %308 {offsets = [0, 0], sizes = [8, 32], strides = [1, 1]} : vector<8x128xf32> to vector<8x32xf32>
    %310 = vector.extract_strided_slice %307 {offsets = [0, 0], sizes = [8, 32], strides = [1, 1]} : vector<8x128xf32> to vector<8x32xf32>
    %311 = arith.addf %309, %310 : vector<8x32xf32>
    %312 = arith.negf %311 : vector<8x32xf32>
    %313 = math.exp %312 : vector<8x32xf32>
    %cst_87 = arith.constant 1.000000e+00 : f32
    %314 = vector.broadcast %cst_87 : f32 to vector<8x32xf32>
    %315 = arith.addf %314, %313 : vector<8x32xf32>
    %316 = arith.divf %314, %315 : vector<8x32xf32>
    %317 = vector.extract_strided_slice %308 {offsets = [0, 32], sizes = [8, 32], strides = [1, 1]} : vector<8x128xf32> to vector<8x32xf32>
    %318 = vector.extract_strided_slice %307 {offsets = [0, 32], sizes = [8, 32], strides = [1, 1]} : vector<8x128xf32> to vector<8x32xf32>
    %319 = arith.addf %317, %318 : vector<8x32xf32>
    %320 = arith.negf %319 : vector<8x32xf32>
    %321 = math.exp %320 : vector<8x32xf32>
    %cst_88 = arith.constant 1.000000e+00 : f32
    %322 = vector.broadcast %cst_88 : f32 to vector<8x32xf32>
    %323 = arith.addf %322, %321 : vector<8x32xf32>
    %324 = arith.divf %322, %323 : vector<8x32xf32>
    %325 = vector.extract_strided_slice %308 {offsets = [0, 64], sizes = [8, 32], strides = [1, 1]} : vector<8x128xf32> to vector<8x32xf32>
    %326 = vector.extract_strided_slice %307 {offsets = [0, 64], sizes = [8, 32], strides = [1, 1]} : vector<8x128xf32> to vector<8x32xf32>
    %327 = vector.broadcast %18 : vector<1x32xf32> to vector<8x32xf32>
    %328 = arith.addf %326, %327 : vector<8x32xf32>
    %329 = arith.mulf %316, %328 : vector<8x32xf32>
    %330 = arith.addf %325, %329 : vector<8x32xf32>
    %331 = math.tanh %330 : vector<8x32xf32>
    %cst_89 = arith.constant 1.000000e+00 : f32
    %332 = vector.broadcast %cst_89 : f32 to vector<8x32xf32>
    %333 = arith.subf %332, %324 : vector<8x32xf32>
    %334 = arith.mulf %333, %331 : vector<8x32xf32>
    %335 = arith.mulf %324, %273 : vector<8x32xf32>
    %336 = arith.addf %334, %335 : vector<8x32xf32>
    %cst_90 = arith.constant dense<0.000000e+00> : vector<8x128xf32>
    %337 = tpu.matmul %273, %19, %cst_90 {dimension_numbers = #tpu.dot_dimension_numbers<[1], [0], [0], [1], [0, 0, 1, 1], [], []>} : vector<8x32xf32>, vector<32x128xf32>, vector<8x128xf32> -> vector<8x128xf32>
    %338 = vector.broadcast %20 : vector<1x128xf32> to vector<8x128xf32>
    %339 = arith.addf %337, %338 : vector<8x128xf32>
    %cst_91 = arith.constant dense<0.000000e+00> : vector<8x128xf32>
    %340 = tpu.matmul %305, %21, %cst_91 {dimension_numbers = #tpu.dot_dimension_numbers<[1], [0], [0], [1], [0, 0, 1, 1], [], []>} : vector<8x32xf32>, vector<32x128xf32>, vector<8x128xf32> -> vector<8x128xf32>
    %341 = vector.extract_strided_slice %339 {offsets = [0, 0], sizes = [8, 32], strides = [1, 1]} : vector<8x128xf32> to vector<8x32xf32>
    %342 = vector.extract_strided_slice %340 {offsets = [0, 0], sizes = [8, 32], strides = [1, 1]} : vector<8x128xf32> to vector<8x32xf32>
    %343 = arith.addf %341, %342 : vector<8x32xf32>
    %344 = arith.negf %343 : vector<8x32xf32>
    %345 = math.exp %344 : vector<8x32xf32>
    %cst_92 = arith.constant 1.000000e+00 : f32
    %346 = vector.broadcast %cst_92 : f32 to vector<8x32xf32>
    %347 = arith.addf %346, %345 : vector<8x32xf32>
    %348 = arith.divf %346, %347 : vector<8x32xf32>
    %349 = vector.extract_strided_slice %339 {offsets = [0, 32], sizes = [8, 32], strides = [1, 1]} : vector<8x128xf32> to vector<8x32xf32>
    %350 = vector.extract_strided_slice %340 {offsets = [0, 32], sizes = [8, 32], strides = [1, 1]} : vector<8x128xf32> to vector<8x32xf32>
    %351 = arith.addf %349, %350 : vector<8x32xf32>
    %352 = arith.negf %351 : vector<8x32xf32>
    %353 = math.exp %352 : vector<8x32xf32>
    %cst_93 = arith.constant 1.000000e+00 : f32
    %354 = vector.broadcast %cst_93 : f32 to vector<8x32xf32>
    %355 = arith.addf %354, %353 : vector<8x32xf32>
    %356 = arith.divf %354, %355 : vector<8x32xf32>
    %357 = vector.extract_strided_slice %339 {offsets = [0, 64], sizes = [8, 32], strides = [1, 1]} : vector<8x128xf32> to vector<8x32xf32>
    %358 = vector.extract_strided_slice %340 {offsets = [0, 64], sizes = [8, 32], strides = [1, 1]} : vector<8x128xf32> to vector<8x32xf32>
    %359 = vector.broadcast %22 : vector<1x32xf32> to vector<8x32xf32>
    %360 = arith.addf %358, %359 : vector<8x32xf32>
    %361 = arith.mulf %348, %360 : vector<8x32xf32>
    %362 = arith.addf %357, %361 : vector<8x32xf32>
    %363 = math.tanh %362 : vector<8x32xf32>
    %cst_94 = arith.constant 1.000000e+00 : f32
    %364 = vector.broadcast %cst_94 : f32 to vector<8x32xf32>
    %365 = arith.subf %364, %356 : vector<8x32xf32>
    %366 = arith.mulf %365, %363 : vector<8x32xf32>
    %367 = arith.mulf %356, %305 : vector<8x32xf32>
    %368 = arith.addf %366, %367 : vector<8x32xf32>
    %c32_95 = arith.constant 32 : index
    %c0_96 = arith.constant 0 : index
    %369 = vector.load %arg19[%c32_95, %c0_96] : memref<136x32xf32, #tpu.memory_space<vmem>>, vector<8x32xf32>
    tpu.vector_store %arg19[%c32_95, %c0_96], %368 {strides = array<i32>} : memref<136x32xf32, #tpu.memory_space<vmem>>, vector<8x32xf32>,
    %cst_97 = arith.constant dense<0.000000e+00> : vector<8x128xf32>
    %370 = tpu.matmul %336, %17, %cst_97 {dimension_numbers = #tpu.dot_dimension_numbers<[1], [0], [0], [1], [0, 0, 1, 1], [], []>} : vector<8x32xf32>, vector<32x128xf32>, vector<8x128xf32> -> vector<8x128xf32>
    %c48 = arith.constant 48 : index
    %c0_98 = arith.constant 0 : index
    %371 = vector.load %arg18[%c48, %c0_98] : memref<136x128xf32, #tpu.memory_space<vmem>>, vector<8x128xf32>
    %372 = vector.extract_strided_slice %371 {offsets = [0, 0], sizes = [8, 32], strides = [1, 1]} : vector<8x128xf32> to vector<8x32xf32>
    %373 = vector.extract_strided_slice %370 {offsets = [0, 0], sizes = [8, 32], strides = [1, 1]} : vector<8x128xf32> to vector<8x32xf32>
    %374 = arith.addf %372, %373 : vector<8x32xf32>
    %375 = arith.negf %374 : vector<8x32xf32>
    %376 = math.exp %375 : vector<8x32xf32>
    %cst_99 = arith.constant 1.000000e+00 : f32
    %377 = vector.broadcast %cst_99 : f32 to vector<8x32xf32>
    %378 = arith.addf %377, %376 : vector<8x32xf32>
    %379 = arith.divf %377, %378 : vector<8x32xf32>
    %380 = vector.extract_strided_slice %371 {offsets = [0, 32], sizes = [8, 32], strides = [1, 1]} : vector<8x128xf32> to vector<8x32xf32>
    %381 = vector.extract_strided_slice %370 {offsets = [0, 32], sizes = [8, 32], strides = [1, 1]} : vector<8x128xf32> to vector<8x32xf32>
    %382 = arith.addf %380, %381 : vector<8x32xf32>
    %383 = arith.negf %382 : vector<8x32xf32>
    %384 = math.exp %383 : vector<8x32xf32>
    %cst_100 = arith.constant 1.000000e+00 : f32
    %385 = vector.broadcast %cst_100 : f32 to vector<8x32xf32>
    %386 = arith.addf %385, %384 : vector<8x32xf32>
    %387 = arith.divf %385, %386 : vector<8x32xf32>
    %388 = vector.extract_strided_slice %371 {offsets = [0, 64], sizes = [8, 32], strides = [1, 1]} : vector<8x128xf32> to vector<8x32xf32>
    %389 = vector.extract_strided_slice %370 {offsets = [0, 64], sizes = [8, 32], strides = [1, 1]} : vector<8x128xf32> to vector<8x32xf32>
    %390 = vector.broadcast %18 : vector<1x32xf32> to vector<8x32xf32>
    %391 = arith.addf %389, %390 : vector<8x32xf32>
    %392 = arith.mulf %379, %391 : vector<8x32xf32>
    %393 = arith.addf %388, %392 : vector<8x32xf32>
    %394 = math.tanh %393 : vector<8x32xf32>
    %cst_101 = arith.constant 1.000000e+00 : f32
    %395 = vector.broadcast %cst_101 : f32 to vector<8x32xf32>
    %396 = arith.subf %395, %387 : vector<8x32xf32>
    %397 = arith.mulf %396, %394 : vector<8x32xf32>
    %398 = arith.mulf %387, %336 : vector<8x32xf32>
    %399 = arith.addf %397, %398 : vector<8x32xf32>
    %cst_102 = arith.constant dense<0.000000e+00> : vector<8x128xf32>
    %400 = tpu.matmul %336, %19, %cst_102 {dimension_numbers = #tpu.dot_dimension_numbers<[1], [0], [0], [1], [0, 0, 1, 1], [], []>} : vector<8x32xf32>, vector<32x128xf32>, vector<8x128xf32> -> vector<8x128xf32>
    %401 = vector.broadcast %20 : vector<1x128xf32> to vector<8x128xf32>
    %402 = arith.addf %400, %401 : vector<8x128xf32>
    %cst_103 = arith.constant dense<0.000000e+00> : vector<8x128xf32>
    %403 = tpu.matmul %368, %21, %cst_103 {dimension_numbers = #tpu.dot_dimension_numbers<[1], [0], [0], [1], [0, 0, 1, 1], [], []>} : vector<8x32xf32>, vector<32x128xf32>, vector<8x128xf32> -> vector<8x128xf32>
    %404 = vector.extract_strided_slice %402 {offsets = [0, 0], sizes = [8, 32], strides = [1, 1]} : vector<8x128xf32> to vector<8x32xf32>
    %405 = vector.extract_strided_slice %403 {offsets = [0, 0], sizes = [8, 32], strides = [1, 1]} : vector<8x128xf32> to vector<8x32xf32>
    %406 = arith.addf %404, %405 : vector<8x32xf32>
    %407 = arith.negf %406 : vector<8x32xf32>
    %408 = math.exp %407 : vector<8x32xf32>
    %cst_104 = arith.constant 1.000000e+00 : f32
    %409 = vector.broadcast %cst_104 : f32 to vector<8x32xf32>
    %410 = arith.addf %409, %408 : vector<8x32xf32>
    %411 = arith.divf %409, %410 : vector<8x32xf32>
    %412 = vector.extract_strided_slice %402 {offsets = [0, 32], sizes = [8, 32], strides = [1, 1]} : vector<8x128xf32> to vector<8x32xf32>
    %413 = vector.extract_strided_slice %403 {offsets = [0, 32], sizes = [8, 32], strides = [1, 1]} : vector<8x128xf32> to vector<8x32xf32>
    %414 = arith.addf %412, %413 : vector<8x32xf32>
    %415 = arith.negf %414 : vector<8x32xf32>
    %416 = math.exp %415 : vector<8x32xf32>
    %cst_105 = arith.constant 1.000000e+00 : f32
    %417 = vector.broadcast %cst_105 : f32 to vector<8x32xf32>
    %418 = arith.addf %417, %416 : vector<8x32xf32>
    %419 = arith.divf %417, %418 : vector<8x32xf32>
    %420 = vector.extract_strided_slice %402 {offsets = [0, 64], sizes = [8, 32], strides = [1, 1]} : vector<8x128xf32> to vector<8x32xf32>
    %421 = vector.extract_strided_slice %403 {offsets = [0, 64], sizes = [8, 32], strides = [1, 1]} : vector<8x128xf32> to vector<8x32xf32>
    %422 = vector.broadcast %22 : vector<1x32xf32> to vector<8x32xf32>
    %423 = arith.addf %421, %422 : vector<8x32xf32>
    %424 = arith.mulf %411, %423 : vector<8x32xf32>
    %425 = arith.addf %420, %424 : vector<8x32xf32>
    %426 = math.tanh %425 : vector<8x32xf32>
    %cst_106 = arith.constant 1.000000e+00 : f32
    %427 = vector.broadcast %cst_106 : f32 to vector<8x32xf32>
    %428 = arith.subf %427, %419 : vector<8x32xf32>
    %429 = arith.mulf %428, %426 : vector<8x32xf32>
    %430 = arith.mulf %419, %368 : vector<8x32xf32>
    %431 = arith.addf %429, %430 : vector<8x32xf32>
    %c40_107 = arith.constant 40 : index
    %c0_108 = arith.constant 0 : index
    %432 = vector.load %arg19[%c40_107, %c0_108] : memref<136x32xf32, #tpu.memory_space<vmem>>, vector<8x32xf32>
    tpu.vector_store %arg19[%c40_107, %c0_108], %431 {strides = array<i32>} : memref<136x32xf32, #tpu.memory_space<vmem>>, vector<8x32xf32>,
    %cst_109 = arith.constant dense<0.000000e+00> : vector<8x128xf32>
    %433 = tpu.matmul %399, %17, %cst_109 {dimension_numbers = #tpu.dot_dimension_numbers<[1], [0], [0], [1], [0, 0, 1, 1], [], []>} : vector<8x32xf32>, vector<32x128xf32>, vector<8x128xf32> -> vector<8x128xf32>
    %c56 = arith.constant 56 : index
    %c0_110 = arith.constant 0 : index
    %434 = vector.load %arg18[%c56, %c0_110] : memref<136x128xf32, #tpu.memory_space<vmem>>, vector<8x128xf32>
    %435 = vector.extract_strided_slice %434 {offsets = [0, 0], sizes = [8, 32], strides = [1, 1]} : vector<8x128xf32> to vector<8x32xf32>
    %436 = vector.extract_strided_slice %433 {offsets = [0, 0], sizes = [8, 32], strides = [1, 1]} : vector<8x128xf32> to vector<8x32xf32>
    %437 = arith.addf %435, %436 : vector<8x32xf32>
    %438 = arith.negf %437 : vector<8x32xf32>
    %439 = math.exp %438 : vector<8x32xf32>
    %cst_111 = arith.constant 1.000000e+00 : f32
    %440 = vector.broadcast %cst_111 : f32 to vector<8x32xf32>
    %441 = arith.addf %440, %439 : vector<8x32xf32>
    %442 = arith.divf %440, %441 : vector<8x32xf32>
    %443 = vector.extract_strided_slice %434 {offsets = [0, 32], sizes = [8, 32], strides = [1, 1]} : vector<8x128xf32> to vector<8x32xf32>
    %444 = vector.extract_strided_slice %433 {offsets = [0, 32], sizes = [8, 32], strides = [1, 1]} : vector<8x128xf32> to vector<8x32xf32>
    %445 = arith.addf %443, %444 : vector<8x32xf32>
    %446 = arith.negf %445 : vector<8x32xf32>
    %447 = math.exp %446 : vector<8x32xf32>
    %cst_112 = arith.constant 1.000000e+00 : f32
    %448 = vector.broadcast %cst_112 : f32 to vector<8x32xf32>
    %449 = arith.addf %448, %447 : vector<8x32xf32>
    %450 = arith.divf %448, %449 : vector<8x32xf32>
    %451 = vector.extract_strided_slice %434 {offsets = [0, 64], sizes = [8, 32], strides = [1, 1]} : vector<8x128xf32> to vector<8x32xf32>
    %452 = vector.extract_strided_slice %433 {offsets = [0, 64], sizes = [8, 32], strides = [1, 1]} : vector<8x128xf32> to vector<8x32xf32>
    %453 = vector.broadcast %18 : vector<1x32xf32> to vector<8x32xf32>
    %454 = arith.addf %452, %453 : vector<8x32xf32>
    %455 = arith.mulf %442, %454 : vector<8x32xf32>
    %456 = arith.addf %451, %455 : vector<8x32xf32>
    %457 = math.tanh %456 : vector<8x32xf32>
    %cst_113 = arith.constant 1.000000e+00 : f32
    %458 = vector.broadcast %cst_113 : f32 to vector<8x32xf32>
    %459 = arith.subf %458, %450 : vector<8x32xf32>
    %460 = arith.mulf %459, %457 : vector<8x32xf32>
    %461 = arith.mulf %450, %399 : vector<8x32xf32>
    %462 = arith.addf %460, %461 : vector<8x32xf32>
    %cst_114 = arith.constant dense<0.000000e+00> : vector<8x128xf32>
    %463 = tpu.matmul %399, %19, %cst_114 {dimension_numbers = #tpu.dot_dimension_numbers<[1], [0], [0], [1], [0, 0, 1, 1], [], []>} : vector<8x32xf32>, vector<32x128xf32>, vector<8x128xf32> -> vector<8x128xf32>
    %464 = vector.broadcast %20 : vector<1x128xf32> to vector<8x128xf32>
    %465 = arith.addf %463, %464 : vector<8x128xf32>
    %cst_115 = arith.constant dense<0.000000e+00> : vector<8x128xf32>
    %466 = tpu.matmul %431, %21, %cst_115 {dimension_numbers = #tpu.dot_dimension_numbers<[1], [0], [0], [1], [0, 0, 1, 1], [], []>} : vector<8x32xf32>, vector<32x128xf32>, vector<8x128xf32> -> vector<8x128xf32>
    %467 = vector.extract_strided_slice %465 {offsets = [0, 0], sizes = [8, 32], strides = [1, 1]} : vector<8x128xf32> to vector<8x32xf32>
    %468 = vector.extract_strided_slice %466 {offsets = [0, 0], sizes = [8, 32], strides = [1, 1]} : vector<8x128xf32> to vector<8x32xf32>
    %469 = arith.addf %467, %468 : vector<8x32xf32>
    %470 = arith.negf %469 : vector<8x32xf32>
    %471 = math.exp %470 : vector<8x32xf32>
    %cst_116 = arith.constant 1.000000e+00 : f32
    %472 = vector.broadcast %cst_116 : f32 to vector<8x32xf32>
    %473 = arith.addf %472, %471 : vector<8x32xf32>
    %474 = arith.divf %472, %473 : vector<8x32xf32>
    %475 = vector.extract_strided_slice %465 {offsets = [0, 32], sizes = [8, 32], strides = [1, 1]} : vector<8x128xf32> to vector<8x32xf32>
    %476 = vector.extract_strided_slice %466 {offsets = [0, 32], sizes = [8, 32], strides = [1, 1]} : vector<8x128xf32> to vector<8x32xf32>
    %477 = arith.addf %475, %476 : vector<8x32xf32>
    %478 = arith.negf %477 : vector<8x32xf32>
    %479 = math.exp %478 : vector<8x32xf32>
    %cst_117 = arith.constant 1.000000e+00 : f32
    %480 = vector.broadcast %cst_117 : f32 to vector<8x32xf32>
    %481 = arith.addf %480, %479 : vector<8x32xf32>
    %482 = arith.divf %480, %481 : vector<8x32xf32>
    %483 = vector.extract_strided_slice %465 {offsets = [0, 64], sizes = [8, 32], strides = [1, 1]} : vector<8x128xf32> to vector<8x32xf32>
    %484 = vector.extract_strided_slice %466 {offsets = [0, 64], sizes = [8, 32], strides = [1, 1]} : vector<8x128xf32> to vector<8x32xf32>
    %485 = vector.broadcast %22 : vector<1x32xf32> to vector<8x32xf32>
    %486 = arith.addf %484, %485 : vector<8x32xf32>
    %487 = arith.mulf %474, %486 : vector<8x32xf32>
    %488 = arith.addf %483, %487 : vector<8x32xf32>
    %489 = math.tanh %488 : vector<8x32xf32>
    %cst_118 = arith.constant 1.000000e+00 : f32
    %490 = vector.broadcast %cst_118 : f32 to vector<8x32xf32>
    %491 = arith.subf %490, %482 : vector<8x32xf32>
    %492 = arith.mulf %491, %489 : vector<8x32xf32>
    %493 = arith.mulf %482, %431 : vector<8x32xf32>
    %494 = arith.addf %492, %493 : vector<8x32xf32>
    %c48_119 = arith.constant 48 : index
    %c0_120 = arith.constant 0 : index
    %495 = vector.load %arg19[%c48_119, %c0_120] : memref<136x32xf32, #tpu.memory_space<vmem>>, vector<8x32xf32>
    tpu.vector_store %arg19[%c48_119, %c0_120], %494 {strides = array<i32>} : memref<136x32xf32, #tpu.memory_space<vmem>>, vector<8x32xf32>,
    %cst_121 = arith.constant dense<0.000000e+00> : vector<8x128xf32>
    %496 = tpu.matmul %462, %17, %cst_121 {dimension_numbers = #tpu.dot_dimension_numbers<[1], [0], [0], [1], [0, 0, 1, 1], [], []>} : vector<8x32xf32>, vector<32x128xf32>, vector<8x128xf32> -> vector<8x128xf32>
    %c64 = arith.constant 64 : index
    %c0_122 = arith.constant 0 : index
    %497 = vector.load %arg18[%c64, %c0_122] : memref<136x128xf32, #tpu.memory_space<vmem>>, vector<8x128xf32>
    %498 = vector.extract_strided_slice %497 {offsets = [0, 0], sizes = [8, 32], strides = [1, 1]} : vector<8x128xf32> to vector<8x32xf32>
    %499 = vector.extract_strided_slice %496 {offsets = [0, 0], sizes = [8, 32], strides = [1, 1]} : vector<8x128xf32> to vector<8x32xf32>
    %500 = arith.addf %498, %499 : vector<8x32xf32>
    %501 = arith.negf %500 : vector<8x32xf32>
    %502 = math.exp %501 : vector<8x32xf32>
    %cst_123 = arith.constant 1.000000e+00 : f32
    %503 = vector.broadcast %cst_123 : f32 to vector<8x32xf32>
    %504 = arith.addf %503, %502 : vector<8x32xf32>
    %505 = arith.divf %503, %504 : vector<8x32xf32>
    %506 = vector.extract_strided_slice %497 {offsets = [0, 32], sizes = [8, 32], strides = [1, 1]} : vector<8x128xf32> to vector<8x32xf32>
    %507 = vector.extract_strided_slice %496 {offsets = [0, 32], sizes = [8, 32], strides = [1, 1]} : vector<8x128xf32> to vector<8x32xf32>
    %508 = arith.addf %506, %507 : vector<8x32xf32>
    %509 = arith.negf %508 : vector<8x32xf32>
    %510 = math.exp %509 : vector<8x32xf32>
    %cst_124 = arith.constant 1.000000e+00 : f32
    %511 = vector.broadcast %cst_124 : f32 to vector<8x32xf32>
    %512 = arith.addf %511, %510 : vector<8x32xf32>
    %513 = arith.divf %511, %512 : vector<8x32xf32>
    %514 = vector.extract_strided_slice %497 {offsets = [0, 64], sizes = [8, 32], strides = [1, 1]} : vector<8x128xf32> to vector<8x32xf32>
    %515 = vector.extract_strided_slice %496 {offsets = [0, 64], sizes = [8, 32], strides = [1, 1]} : vector<8x128xf32> to vector<8x32xf32>
    %516 = vector.broadcast %18 : vector<1x32xf32> to vector<8x32xf32>
    %517 = arith.addf %515, %516 : vector<8x32xf32>
    %518 = arith.mulf %505, %517 : vector<8x32xf32>
    %519 = arith.addf %514, %518 : vector<8x32xf32>
    %520 = math.tanh %519 : vector<8x32xf32>
    %cst_125 = arith.constant 1.000000e+00 : f32
    %521 = vector.broadcast %cst_125 : f32 to vector<8x32xf32>
    %522 = arith.subf %521, %513 : vector<8x32xf32>
    %523 = arith.mulf %522, %520 : vector<8x32xf32>
    %524 = arith.mulf %513, %462 : vector<8x32xf32>
    %525 = arith.addf %523, %524 : vector<8x32xf32>
    %cst_126 = arith.constant dense<0.000000e+00> : vector<8x128xf32>
    %526 = tpu.matmul %462, %19, %cst_126 {dimension_numbers = #tpu.dot_dimension_numbers<[1], [0], [0], [1], [0, 0, 1, 1], [], []>} : vector<8x32xf32>, vector<32x128xf32>, vector<8x128xf32> -> vector<8x128xf32>
    %527 = vector.broadcast %20 : vector<1x128xf32> to vector<8x128xf32>
    %528 = arith.addf %526, %527 : vector<8x128xf32>
    %cst_127 = arith.constant dense<0.000000e+00> : vector<8x128xf32>
    %529 = tpu.matmul %494, %21, %cst_127 {dimension_numbers = #tpu.dot_dimension_numbers<[1], [0], [0], [1], [0, 0, 1, 1], [], []>} : vector<8x32xf32>, vector<32x128xf32>, vector<8x128xf32> -> vector<8x128xf32>
    %530 = vector.extract_strided_slice %528 {offsets = [0, 0], sizes = [8, 32], strides = [1, 1]} : vector<8x128xf32> to vector<8x32xf32>
    %531 = vector.extract_strided_slice %529 {offsets = [0, 0], sizes = [8, 32], strides = [1, 1]} : vector<8x128xf32> to vector<8x32xf32>
    %532 = arith.addf %530, %531 : vector<8x32xf32>
    %533 = arith.negf %532 : vector<8x32xf32>
    %534 = math.exp %533 : vector<8x32xf32>
    %cst_128 = arith.constant 1.000000e+00 : f32
    %535 = vector.broadcast %cst_128 : f32 to vector<8x32xf32>
    %536 = arith.addf %535, %534 : vector<8x32xf32>
    %537 = arith.divf %535, %536 : vector<8x32xf32>
    %538 = vector.extract_strided_slice %528 {offsets = [0, 32], sizes = [8, 32], strides = [1, 1]} : vector<8x128xf32> to vector<8x32xf32>
    %539 = vector.extract_strided_slice %529 {offsets = [0, 32], sizes = [8, 32], strides = [1, 1]} : vector<8x128xf32> to vector<8x32xf32>
    %540 = arith.addf %538, %539 : vector<8x32xf32>
    %541 = arith.negf %540 : vector<8x32xf32>
    %542 = math.exp %541 : vector<8x32xf32>
    %cst_129 = arith.constant 1.000000e+00 : f32
    %543 = vector.broadcast %cst_129 : f32 to vector<8x32xf32>
    %544 = arith.addf %543, %542 : vector<8x32xf32>
    %545 = arith.divf %543, %544 : vector<8x32xf32>
    %546 = vector.extract_strided_slice %528 {offsets = [0, 64], sizes = [8, 32], strides = [1, 1]} : vector<8x128xf32> to vector<8x32xf32>
    %547 = vector.extract_strided_slice %529 {offsets = [0, 64], sizes = [8, 32], strides = [1, 1]} : vector<8x128xf32> to vector<8x32xf32>
    %548 = vector.broadcast %22 : vector<1x32xf32> to vector<8x32xf32>
    %549 = arith.addf %547, %548 : vector<8x32xf32>
    %550 = arith.mulf %537, %549 : vector<8x32xf32>
    %551 = arith.addf %546, %550 : vector<8x32xf32>
    %552 = math.tanh %551 : vector<8x32xf32>
    %cst_130 = arith.constant 1.000000e+00 : f32
    %553 = vector.broadcast %cst_130 : f32 to vector<8x32xf32>
    %554 = arith.subf %553, %545 : vector<8x32xf32>
    %555 = arith.mulf %554, %552 : vector<8x32xf32>
    %556 = arith.mulf %545, %494 : vector<8x32xf32>
    %557 = arith.addf %555, %556 : vector<8x32xf32>
    %c56_131 = arith.constant 56 : index
    %c0_132 = arith.constant 0 : index
    %558 = vector.load %arg19[%c56_131, %c0_132] : memref<136x32xf32, #tpu.memory_space<vmem>>, vector<8x32xf32>
    tpu.vector_store %arg19[%c56_131, %c0_132], %557 {strides = array<i32>} : memref<136x32xf32, #tpu.memory_space<vmem>>, vector<8x32xf32>,
    %cst_133 = arith.constant dense<0.000000e+00> : vector<8x128xf32>
    %559 = tpu.matmul %525, %17, %cst_133 {dimension_numbers = #tpu.dot_dimension_numbers<[1], [0], [0], [1], [0, 0, 1, 1], [], []>} : vector<8x32xf32>, vector<32x128xf32>, vector<8x128xf32> -> vector<8x128xf32>
    %c72 = arith.constant 72 : index
    %c0_134 = arith.constant 0 : index
    %560 = vector.load %arg18[%c72, %c0_134] : memref<136x128xf32, #tpu.memory_space<vmem>>, vector<8x128xf32>
    %561 = vector.extract_strided_slice %560 {offsets = [0, 0], sizes = [8, 32], strides = [1, 1]} : vector<8x128xf32> to vector<8x32xf32>
    %562 = vector.extract_strided_slice %559 {offsets = [0, 0], sizes = [8, 32], strides = [1, 1]} : vector<8x128xf32> to vector<8x32xf32>
    %563 = arith.addf %561, %562 : vector<8x32xf32>
    %564 = arith.negf %563 : vector<8x32xf32>
    %565 = math.exp %564 : vector<8x32xf32>
    %cst_135 = arith.constant 1.000000e+00 : f32
    %566 = vector.broadcast %cst_135 : f32 to vector<8x32xf32>
    %567 = arith.addf %566, %565 : vector<8x32xf32>
    %568 = arith.divf %566, %567 : vector<8x32xf32>
    %569 = vector.extract_strided_slice %560 {offsets = [0, 32], sizes = [8, 32], strides = [1, 1]} : vector<8x128xf32> to vector<8x32xf32>
    %570 = vector.extract_strided_slice %559 {offsets = [0, 32], sizes = [8, 32], strides = [1, 1]} : vector<8x128xf32> to vector<8x32xf32>
    %571 = arith.addf %569, %570 : vector<8x32xf32>
    %572 = arith.negf %571 : vector<8x32xf32>
    %573 = math.exp %572 : vector<8x32xf32>
    %cst_136 = arith.constant 1.000000e+00 : f32
    %574 = vector.broadcast %cst_136 : f32 to vector<8x32xf32>
    %575 = arith.addf %574, %573 : vector<8x32xf32>
    %576 = arith.divf %574, %575 : vector<8x32xf32>
    %577 = vector.extract_strided_slice %560 {offsets = [0, 64], sizes = [8, 32], strides = [1, 1]} : vector<8x128xf32> to vector<8x32xf32>
    %578 = vector.extract_strided_slice %559 {offsets = [0, 64], sizes = [8, 32], strides = [1, 1]} : vector<8x128xf32> to vector<8x32xf32>
    %579 = vector.broadcast %18 : vector<1x32xf32> to vector<8x32xf32>
    %580 = arith.addf %578, %579 : vector<8x32xf32>
    %581 = arith.mulf %568, %580 : vector<8x32xf32>
    %582 = arith.addf %577, %581 : vector<8x32xf32>
    %583 = math.tanh %582 : vector<8x32xf32>
    %cst_137 = arith.constant 1.000000e+00 : f32
    %584 = vector.broadcast %cst_137 : f32 to vector<8x32xf32>
    %585 = arith.subf %584, %576 : vector<8x32xf32>
    %586 = arith.mulf %585, %583 : vector<8x32xf32>
    %587 = arith.mulf %576, %525 : vector<8x32xf32>
    %588 = arith.addf %586, %587 : vector<8x32xf32>
    %cst_138 = arith.constant dense<0.000000e+00> : vector<8x128xf32>
    %589 = tpu.matmul %525, %19, %cst_138 {dimension_numbers = #tpu.dot_dimension_numbers<[1], [0], [0], [1], [0, 0, 1, 1], [], []>} : vector<8x32xf32>, vector<32x128xf32>, vector<8x128xf32> -> vector<8x128xf32>
    %590 = vector.broadcast %20 : vector<1x128xf32> to vector<8x128xf32>
    %591 = arith.addf %589, %590 : vector<8x128xf32>
    %cst_139 = arith.constant dense<0.000000e+00> : vector<8x128xf32>
    %592 = tpu.matmul %557, %21, %cst_139 {dimension_numbers = #tpu.dot_dimension_numbers<[1], [0], [0], [1], [0, 0, 1, 1], [], []>} : vector<8x32xf32>, vector<32x128xf32>, vector<8x128xf32> -> vector<8x128xf32>
    %593 = vector.extract_strided_slice %591 {offsets = [0, 0], sizes = [8, 32], strides = [1, 1]} : vector<8x128xf32> to vector<8x32xf32>
    %594 = vector.extract_strided_slice %592 {offsets = [0, 0], sizes = [8, 32], strides = [1, 1]} : vector<8x128xf32> to vector<8x32xf32>
    %595 = arith.addf %593, %594 : vector<8x32xf32>
    %596 = arith.negf %595 : vector<8x32xf32>
    %597 = math.exp %596 : vector<8x32xf32>
    %cst_140 = arith.constant 1.000000e+00 : f32
    %598 = vector.broadcast %cst_140 : f32 to vector<8x32xf32>
    %599 = arith.addf %598, %597 : vector<8x32xf32>
    %600 = arith.divf %598, %599 : vector<8x32xf32>
    %601 = vector.extract_strided_slice %591 {offsets = [0, 32], sizes = [8, 32], strides = [1, 1]} : vector<8x128xf32> to vector<8x32xf32>
    %602 = vector.extract_strided_slice %592 {offsets = [0, 32], sizes = [8, 32], strides = [1, 1]} : vector<8x128xf32> to vector<8x32xf32>
    %603 = arith.addf %601, %602 : vector<8x32xf32>
    %604 = arith.negf %603 : vector<8x32xf32>
    %605 = math.exp %604 : vector<8x32xf32>
    %cst_141 = arith.constant 1.000000e+00 : f32
    %606 = vector.broadcast %cst_141 : f32 to vector<8x32xf32>
    %607 = arith.addf %606, %605 : vector<8x32xf32>
    %608 = arith.divf %606, %607 : vector<8x32xf32>
    %609 = vector.extract_strided_slice %591 {offsets = [0, 64], sizes = [8, 32], strides = [1, 1]} : vector<8x128xf32> to vector<8x32xf32>
    %610 = vector.extract_strided_slice %592 {offsets = [0, 64], sizes = [8, 32], strides = [1, 1]} : vector<8x128xf32> to vector<8x32xf32>
    %611 = vector.broadcast %22 : vector<1x32xf32> to vector<8x32xf32>
    %612 = arith.addf %610, %611 : vector<8x32xf32>
    %613 = arith.mulf %600, %612 : vector<8x32xf32>
    %614 = arith.addf %609, %613 : vector<8x32xf32>
    %615 = math.tanh %614 : vector<8x32xf32>
    %cst_142 = arith.constant 1.000000e+00 : f32
    %616 = vector.broadcast %cst_142 : f32 to vector<8x32xf32>
    %617 = arith.subf %616, %608 : vector<8x32xf32>
    %618 = arith.mulf %617, %615 : vector<8x32xf32>
    %619 = arith.mulf %608, %557 : vector<8x32xf32>
    %620 = arith.addf %618, %619 : vector<8x32xf32>
    %c64_143 = arith.constant 64 : index
    %c0_144 = arith.constant 0 : index
    %621 = vector.load %arg19[%c64_143, %c0_144] : memref<136x32xf32, #tpu.memory_space<vmem>>, vector<8x32xf32>
    tpu.vector_store %arg19[%c64_143, %c0_144], %620 {strides = array<i32>} : memref<136x32xf32, #tpu.memory_space<vmem>>, vector<8x32xf32>,
    %cst_145 = arith.constant dense<0.000000e+00> : vector<8x128xf32>
    %622 = tpu.matmul %588, %17, %cst_145 {dimension_numbers = #tpu.dot_dimension_numbers<[1], [0], [0], [1], [0, 0, 1, 1], [], []>} : vector<8x32xf32>, vector<32x128xf32>, vector<8x128xf32> -> vector<8x128xf32>
    %c80 = arith.constant 80 : index
    %c0_146 = arith.constant 0 : index
    %623 = vector.load %arg18[%c80, %c0_146] : memref<136x128xf32, #tpu.memory_space<vmem>>, vector<8x128xf32>
    %624 = vector.extract_strided_slice %623 {offsets = [0, 0], sizes = [8, 32], strides = [1, 1]} : vector<8x128xf32> to vector<8x32xf32>
    %625 = vector.extract_strided_slice %622 {offsets = [0, 0], sizes = [8, 32], strides = [1, 1]} : vector<8x128xf32> to vector<8x32xf32>
    %626 = arith.addf %624, %625 : vector<8x32xf32>
    %627 = arith.negf %626 : vector<8x32xf32>
    %628 = math.exp %627 : vector<8x32xf32>
    %cst_147 = arith.constant 1.000000e+00 : f32
    %629 = vector.broadcast %cst_147 : f32 to vector<8x32xf32>
    %630 = arith.addf %629, %628 : vector<8x32xf32>
    %631 = arith.divf %629, %630 : vector<8x32xf32>
    %632 = vector.extract_strided_slice %623 {offsets = [0, 32], sizes = [8, 32], strides = [1, 1]} : vector<8x128xf32> to vector<8x32xf32>
    %633 = vector.extract_strided_slice %622 {offsets = [0, 32], sizes = [8, 32], strides = [1, 1]} : vector<8x128xf32> to vector<8x32xf32>
    %634 = arith.addf %632, %633 : vector<8x32xf32>
    %635 = arith.negf %634 : vector<8x32xf32>
    %636 = math.exp %635 : vector<8x32xf32>
    %cst_148 = arith.constant 1.000000e+00 : f32
    %637 = vector.broadcast %cst_148 : f32 to vector<8x32xf32>
    %638 = arith.addf %637, %636 : vector<8x32xf32>
    %639 = arith.divf %637, %638 : vector<8x32xf32>
    %640 = vector.extract_strided_slice %623 {offsets = [0, 64], sizes = [8, 32], strides = [1, 1]} : vector<8x128xf32> to vector<8x32xf32>
    %641 = vector.extract_strided_slice %622 {offsets = [0, 64], sizes = [8, 32], strides = [1, 1]} : vector<8x128xf32> to vector<8x32xf32>
    %642 = vector.broadcast %18 : vector<1x32xf32> to vector<8x32xf32>
    %643 = arith.addf %641, %642 : vector<8x32xf32>
    %644 = arith.mulf %631, %643 : vector<8x32xf32>
    %645 = arith.addf %640, %644 : vector<8x32xf32>
    %646 = math.tanh %645 : vector<8x32xf32>
    %cst_149 = arith.constant 1.000000e+00 : f32
    %647 = vector.broadcast %cst_149 : f32 to vector<8x32xf32>
    %648 = arith.subf %647, %639 : vector<8x32xf32>
    %649 = arith.mulf %648, %646 : vector<8x32xf32>
    %650 = arith.mulf %639, %588 : vector<8x32xf32>
    %651 = arith.addf %649, %650 : vector<8x32xf32>
    %cst_150 = arith.constant dense<0.000000e+00> : vector<8x128xf32>
    %652 = tpu.matmul %588, %19, %cst_150 {dimension_numbers = #tpu.dot_dimension_numbers<[1], [0], [0], [1], [0, 0, 1, 1], [], []>} : vector<8x32xf32>, vector<32x128xf32>, vector<8x128xf32> -> vector<8x128xf32>
    %653 = vector.broadcast %20 : vector<1x128xf32> to vector<8x128xf32>
    %654 = arith.addf %652, %653 : vector<8x128xf32>
    %cst_151 = arith.constant dense<0.000000e+00> : vector<8x128xf32>
    %655 = tpu.matmul %620, %21, %cst_151 {dimension_numbers = #tpu.dot_dimension_numbers<[1], [0], [0], [1], [0, 0, 1, 1], [], []>} : vector<8x32xf32>, vector<32x128xf32>, vector<8x128xf32> -> vector<8x128xf32>
    %656 = vector.extract_strided_slice %654 {offsets = [0, 0], sizes = [8, 32], strides = [1, 1]} : vector<8x128xf32> to vector<8x32xf32>
    %657 = vector.extract_strided_slice %655 {offsets = [0, 0], sizes = [8, 32], strides = [1, 1]} : vector<8x128xf32> to vector<8x32xf32>
    %658 = arith.addf %656, %657 : vector<8x32xf32>
    %659 = arith.negf %658 : vector<8x32xf32>
    %660 = math.exp %659 : vector<8x32xf32>
    %cst_152 = arith.constant 1.000000e+00 : f32
    %661 = vector.broadcast %cst_152 : f32 to vector<8x32xf32>
    %662 = arith.addf %661, %660 : vector<8x32xf32>
    %663 = arith.divf %661, %662 : vector<8x32xf32>
    %664 = vector.extract_strided_slice %654 {offsets = [0, 32], sizes = [8, 32], strides = [1, 1]} : vector<8x128xf32> to vector<8x32xf32>
    %665 = vector.extract_strided_slice %655 {offsets = [0, 32], sizes = [8, 32], strides = [1, 1]} : vector<8x128xf32> to vector<8x32xf32>
    %666 = arith.addf %664, %665 : vector<8x32xf32>
    %667 = arith.negf %666 : vector<8x32xf32>
    %668 = math.exp %667 : vector<8x32xf32>
    %cst_153 = arith.constant 1.000000e+00 : f32
    %669 = vector.broadcast %cst_153 : f32 to vector<8x32xf32>
    %670 = arith.addf %669, %668 : vector<8x32xf32>
    %671 = arith.divf %669, %670 : vector<8x32xf32>
    %672 = vector.extract_strided_slice %654 {offsets = [0, 64], sizes = [8, 32], strides = [1, 1]} : vector<8x128xf32> to vector<8x32xf32>
    %673 = vector.extract_strided_slice %655 {offsets = [0, 64], sizes = [8, 32], strides = [1, 1]} : vector<8x128xf32> to vector<8x32xf32>
    %674 = vector.broadcast %22 : vector<1x32xf32> to vector<8x32xf32>
    %675 = arith.addf %673, %674 : vector<8x32xf32>
    %676 = arith.mulf %663, %675 : vector<8x32xf32>
    %677 = arith.addf %672, %676 : vector<8x32xf32>
    %678 = math.tanh %677 : vector<8x32xf32>
    %cst_154 = arith.constant 1.000000e+00 : f32
    %679 = vector.broadcast %cst_154 : f32 to vector<8x32xf32>
    %680 = arith.subf %679, %671 : vector<8x32xf32>
    %681 = arith.mulf %680, %678 : vector<8x32xf32>
    %682 = arith.mulf %671, %620 : vector<8x32xf32>
    %683 = arith.addf %681, %682 : vector<8x32xf32>
    %c72_155 = arith.constant 72 : index
    %c0_156 = arith.constant 0 : index
    %684 = vector.load %arg19[%c72_155, %c0_156] : memref<136x32xf32, #tpu.memory_space<vmem>>, vector<8x32xf32>
    tpu.vector_store %arg19[%c72_155, %c0_156], %683 {strides = array<i32>} : memref<136x32xf32, #tpu.memory_space<vmem>>, vector<8x32xf32>,
    %cst_157 = arith.constant dense<0.000000e+00> : vector<8x128xf32>
    %685 = tpu.matmul %651, %17, %cst_157 {dimension_numbers = #tpu.dot_dimension_numbers<[1], [0], [0], [1], [0, 0, 1, 1], [], []>} : vector<8x32xf32>, vector<32x128xf32>, vector<8x128xf32> -> vector<8x128xf32>
    %c88 = arith.constant 88 : index
    %c0_158 = arith.constant 0 : index
    %686 = vector.load %arg18[%c88, %c0_158] : memref<136x128xf32, #tpu.memory_space<vmem>>, vector<8x128xf32>
    %687 = vector.extract_strided_slice %686 {offsets = [0, 0], sizes = [8, 32], strides = [1, 1]} : vector<8x128xf32> to vector<8x32xf32>
    %688 = vector.extract_strided_slice %685 {offsets = [0, 0], sizes = [8, 32], strides = [1, 1]} : vector<8x128xf32> to vector<8x32xf32>
    %689 = arith.addf %687, %688 : vector<8x32xf32>
    %690 = arith.negf %689 : vector<8x32xf32>
    %691 = math.exp %690 : vector<8x32xf32>
    %cst_159 = arith.constant 1.000000e+00 : f32
    %692 = vector.broadcast %cst_159 : f32 to vector<8x32xf32>
    %693 = arith.addf %692, %691 : vector<8x32xf32>
    %694 = arith.divf %692, %693 : vector<8x32xf32>
    %695 = vector.extract_strided_slice %686 {offsets = [0, 32], sizes = [8, 32], strides = [1, 1]} : vector<8x128xf32> to vector<8x32xf32>
    %696 = vector.extract_strided_slice %685 {offsets = [0, 32], sizes = [8, 32], strides = [1, 1]} : vector<8x128xf32> to vector<8x32xf32>
    %697 = arith.addf %695, %696 : vector<8x32xf32>
    %698 = arith.negf %697 : vector<8x32xf32>
    %699 = math.exp %698 : vector<8x32xf32>
    %cst_160 = arith.constant 1.000000e+00 : f32
    %700 = vector.broadcast %cst_160 : f32 to vector<8x32xf32>
    %701 = arith.addf %700, %699 : vector<8x32xf32>
    %702 = arith.divf %700, %701 : vector<8x32xf32>
    %703 = vector.extract_strided_slice %686 {offsets = [0, 64], sizes = [8, 32], strides = [1, 1]} : vector<8x128xf32> to vector<8x32xf32>
    %704 = vector.extract_strided_slice %685 {offsets = [0, 64], sizes = [8, 32], strides = [1, 1]} : vector<8x128xf32> to vector<8x32xf32>
    %705 = vector.broadcast %18 : vector<1x32xf32> to vector<8x32xf32>
    %706 = arith.addf %704, %705 : vector<8x32xf32>
    %707 = arith.mulf %694, %706 : vector<8x32xf32>
    %708 = arith.addf %703, %707 : vector<8x32xf32>
    %709 = math.tanh %708 : vector<8x32xf32>
    %cst_161 = arith.constant 1.000000e+00 : f32
    %710 = vector.broadcast %cst_161 : f32 to vector<8x32xf32>
    %711 = arith.subf %710, %702 : vector<8x32xf32>
    %712 = arith.mulf %711, %709 : vector<8x32xf32>
    %713 = arith.mulf %702, %651 : vector<8x32xf32>
    %714 = arith.addf %712, %713 : vector<8x32xf32>
    %cst_162 = arith.constant dense<0.000000e+00> : vector<8x128xf32>
    %715 = tpu.matmul %651, %19, %cst_162 {dimension_numbers = #tpu.dot_dimension_numbers<[1], [0], [0], [1], [0, 0, 1, 1], [], []>} : vector<8x32xf32>, vector<32x128xf32>, vector<8x128xf32> -> vector<8x128xf32>
    %716 = vector.broadcast %20 : vector<1x128xf32> to vector<8x128xf32>
    %717 = arith.addf %715, %716 : vector<8x128xf32>
    %cst_163 = arith.constant dense<0.000000e+00> : vector<8x128xf32>
    %718 = tpu.matmul %683, %21, %cst_163 {dimension_numbers = #tpu.dot_dimension_numbers<[1], [0], [0], [1], [0, 0, 1, 1], [], []>} : vector<8x32xf32>, vector<32x128xf32>, vector<8x128xf32> -> vector<8x128xf32>
    %719 = vector.extract_strided_slice %717 {offsets = [0, 0], sizes = [8, 32], strides = [1, 1]} : vector<8x128xf32> to vector<8x32xf32>
    %720 = vector.extract_strided_slice %718 {offsets = [0, 0], sizes = [8, 32], strides = [1, 1]} : vector<8x128xf32> to vector<8x32xf32>
    %721 = arith.addf %719, %720 : vector<8x32xf32>
    %722 = arith.negf %721 : vector<8x32xf32>
    %723 = math.exp %722 : vector<8x32xf32>
    %cst_164 = arith.constant 1.000000e+00 : f32
    %724 = vector.broadcast %cst_164 : f32 to vector<8x32xf32>
    %725 = arith.addf %724, %723 : vector<8x32xf32>
    %726 = arith.divf %724, %725 : vector<8x32xf32>
    %727 = vector.extract_strided_slice %717 {offsets = [0, 32], sizes = [8, 32], strides = [1, 1]} : vector<8x128xf32> to vector<8x32xf32>
    %728 = vector.extract_strided_slice %718 {offsets = [0, 32], sizes = [8, 32], strides = [1, 1]} : vector<8x128xf32> to vector<8x32xf32>
    %729 = arith.addf %727, %728 : vector<8x32xf32>
    %730 = arith.negf %729 : vector<8x32xf32>
    %731 = math.exp %730 : vector<8x32xf32>
    %cst_165 = arith.constant 1.000000e+00 : f32
    %732 = vector.broadcast %cst_165 : f32 to vector<8x32xf32>
    %733 = arith.addf %732, %731 : vector<8x32xf32>
    %734 = arith.divf %732, %733 : vector<8x32xf32>
    %735 = vector.extract_strided_slice %717 {offsets = [0, 64], sizes = [8, 32], strides = [1, 1]} : vector<8x128xf32> to vector<8x32xf32>
    %736 = vector.extract_strided_slice %718 {offsets = [0, 64], sizes = [8, 32], strides = [1, 1]} : vector<8x128xf32> to vector<8x32xf32>
    %737 = vector.broadcast %22 : vector<1x32xf32> to vector<8x32xf32>
    %738 = arith.addf %736, %737 : vector<8x32xf32>
    %739 = arith.mulf %726, %738 : vector<8x32xf32>
    %740 = arith.addf %735, %739 : vector<8x32xf32>
    %741 = math.tanh %740 : vector<8x32xf32>
    %cst_166 = arith.constant 1.000000e+00 : f32
    %742 = vector.broadcast %cst_166 : f32 to vector<8x32xf32>
    %743 = arith.subf %742, %734 : vector<8x32xf32>
    %744 = arith.mulf %743, %741 : vector<8x32xf32>
    %745 = arith.mulf %734, %683 : vector<8x32xf32>
    %746 = arith.addf %744, %745 : vector<8x32xf32>
    %c80_167 = arith.constant 80 : index
    %c0_168 = arith.constant 0 : index
    %747 = vector.load %arg19[%c80_167, %c0_168] : memref<136x32xf32, #tpu.memory_space<vmem>>, vector<8x32xf32>
    tpu.vector_store %arg19[%c80_167, %c0_168], %746 {strides = array<i32>} : memref<136x32xf32, #tpu.memory_space<vmem>>, vector<8x32xf32>,
    %cst_169 = arith.constant dense<0.000000e+00> : vector<8x128xf32>
    %748 = tpu.matmul %714, %17, %cst_169 {dimension_numbers = #tpu.dot_dimension_numbers<[1], [0], [0], [1], [0, 0, 1, 1], [], []>} : vector<8x32xf32>, vector<32x128xf32>, vector<8x128xf32> -> vector<8x128xf32>
    %c96 = arith.constant 96 : index
    %c0_170 = arith.constant 0 : index
    %749 = vector.load %arg18[%c96, %c0_170] : memref<136x128xf32, #tpu.memory_space<vmem>>, vector<8x128xf32>
    %750 = vector.extract_strided_slice %749 {offsets = [0, 0], sizes = [8, 32], strides = [1, 1]} : vector<8x128xf32> to vector<8x32xf32>
    %751 = vector.extract_strided_slice %748 {offsets = [0, 0], sizes = [8, 32], strides = [1, 1]} : vector<8x128xf32> to vector<8x32xf32>
    %752 = arith.addf %750, %751 : vector<8x32xf32>
    %753 = arith.negf %752 : vector<8x32xf32>
    %754 = math.exp %753 : vector<8x32xf32>
    %cst_171 = arith.constant 1.000000e+00 : f32
    %755 = vector.broadcast %cst_171 : f32 to vector<8x32xf32>
    %756 = arith.addf %755, %754 : vector<8x32xf32>
    %757 = arith.divf %755, %756 : vector<8x32xf32>
    %758 = vector.extract_strided_slice %749 {offsets = [0, 32], sizes = [8, 32], strides = [1, 1]} : vector<8x128xf32> to vector<8x32xf32>
    %759 = vector.extract_strided_slice %748 {offsets = [0, 32], sizes = [8, 32], strides = [1, 1]} : vector<8x128xf32> to vector<8x32xf32>
    %760 = arith.addf %758, %759 : vector<8x32xf32>
    %761 = arith.negf %760 : vector<8x32xf32>
    %762 = math.exp %761 : vector<8x32xf32>
    %cst_172 = arith.constant 1.000000e+00 : f32
    %763 = vector.broadcast %cst_172 : f32 to vector<8x32xf32>
    %764 = arith.addf %763, %762 : vector<8x32xf32>
    %765 = arith.divf %763, %764 : vector<8x32xf32>
    %766 = vector.extract_strided_slice %749 {offsets = [0, 64], sizes = [8, 32], strides = [1, 1]} : vector<8x128xf32> to vector<8x32xf32>
    %767 = vector.extract_strided_slice %748 {offsets = [0, 64], sizes = [8, 32], strides = [1, 1]} : vector<8x128xf32> to vector<8x32xf32>
    %768 = vector.broadcast %18 : vector<1x32xf32> to vector<8x32xf32>
    %769 = arith.addf %767, %768 : vector<8x32xf32>
    %770 = arith.mulf %757, %769 : vector<8x32xf32>
    %771 = arith.addf %766, %770 : vector<8x32xf32>
    %772 = math.tanh %771 : vector<8x32xf32>
    %cst_173 = arith.constant 1.000000e+00 : f32
    %773 = vector.broadcast %cst_173 : f32 to vector<8x32xf32>
    %774 = arith.subf %773, %765 : vector<8x32xf32>
    %775 = arith.mulf %774, %772 : vector<8x32xf32>
    %776 = arith.mulf %765, %714 : vector<8x32xf32>
    %777 = arith.addf %775, %776 : vector<8x32xf32>
    %cst_174 = arith.constant dense<0.000000e+00> : vector<8x128xf32>
    %778 = tpu.matmul %714, %19, %cst_174 {dimension_numbers = #tpu.dot_dimension_numbers<[1], [0], [0], [1], [0, 0, 1, 1], [], []>} : vector<8x32xf32>, vector<32x128xf32>, vector<8x128xf32> -> vector<8x128xf32>
    %779 = vector.broadcast %20 : vector<1x128xf32> to vector<8x128xf32>
    %780 = arith.addf %778, %779 : vector<8x128xf32>
    %cst_175 = arith.constant dense<0.000000e+00> : vector<8x128xf32>
    %781 = tpu.matmul %746, %21, %cst_175 {dimension_numbers = #tpu.dot_dimension_numbers<[1], [0], [0], [1], [0, 0, 1, 1], [], []>} : vector<8x32xf32>, vector<32x128xf32>, vector<8x128xf32> -> vector<8x128xf32>
    %782 = vector.extract_strided_slice %780 {offsets = [0, 0], sizes = [8, 32], strides = [1, 1]} : vector<8x128xf32> to vector<8x32xf32>
    %783 = vector.extract_strided_slice %781 {offsets = [0, 0], sizes = [8, 32], strides = [1, 1]} : vector<8x128xf32> to vector<8x32xf32>
    %784 = arith.addf %782, %783 : vector<8x32xf32>
    %785 = arith.negf %784 : vector<8x32xf32>
    %786 = math.exp %785 : vector<8x32xf32>
    %cst_176 = arith.constant 1.000000e+00 : f32
    %787 = vector.broadcast %cst_176 : f32 to vector<8x32xf32>
    %788 = arith.addf %787, %786 : vector<8x32xf32>
    %789 = arith.divf %787, %788 : vector<8x32xf32>
    %790 = vector.extract_strided_slice %780 {offsets = [0, 32], sizes = [8, 32], strides = [1, 1]} : vector<8x128xf32> to vector<8x32xf32>
    %791 = vector.extract_strided_slice %781 {offsets = [0, 32], sizes = [8, 32], strides = [1, 1]} : vector<8x128xf32> to vector<8x32xf32>
    %792 = arith.addf %790, %791 : vector<8x32xf32>
    %793 = arith.negf %792 : vector<8x32xf32>
    %794 = math.exp %793 : vector<8x32xf32>
    %cst_177 = arith.constant 1.000000e+00 : f32
    %795 = vector.broadcast %cst_177 : f32 to vector<8x32xf32>
    %796 = arith.addf %795, %794 : vector<8x32xf32>
    %797 = arith.divf %795, %796 : vector<8x32xf32>
    %798 = vector.extract_strided_slice %780 {offsets = [0, 64], sizes = [8, 32], strides = [1, 1]} : vector<8x128xf32> to vector<8x32xf32>
    %799 = vector.extract_strided_slice %781 {offsets = [0, 64], sizes = [8, 32], strides = [1, 1]} : vector<8x128xf32> to vector<8x32xf32>
    %800 = vector.broadcast %22 : vector<1x32xf32> to vector<8x32xf32>
    %801 = arith.addf %799, %800 : vector<8x32xf32>
    %802 = arith.mulf %789, %801 : vector<8x32xf32>
    %803 = arith.addf %798, %802 : vector<8x32xf32>
    %804 = math.tanh %803 : vector<8x32xf32>
    %cst_178 = arith.constant 1.000000e+00 : f32
    %805 = vector.broadcast %cst_178 : f32 to vector<8x32xf32>
    %806 = arith.subf %805, %797 : vector<8x32xf32>
    %807 = arith.mulf %806, %804 : vector<8x32xf32>
    %808 = arith.mulf %797, %746 : vector<8x32xf32>
    %809 = arith.addf %807, %808 : vector<8x32xf32>
    %c88_179 = arith.constant 88 : index
    %c0_180 = arith.constant 0 : index
    %810 = vector.load %arg19[%c88_179, %c0_180] : memref<136x32xf32, #tpu.memory_space<vmem>>, vector<8x32xf32>
    tpu.vector_store %arg19[%c88_179, %c0_180], %809 {strides = array<i32>} : memref<136x32xf32, #tpu.memory_space<vmem>>, vector<8x32xf32>,
    %cst_181 = arith.constant dense<0.000000e+00> : vector<8x128xf32>
    %811 = tpu.matmul %777, %17, %cst_181 {dimension_numbers = #tpu.dot_dimension_numbers<[1], [0], [0], [1], [0, 0, 1, 1], [], []>} : vector<8x32xf32>, vector<32x128xf32>, vector<8x128xf32> -> vector<8x128xf32>
    %c104 = arith.constant 104 : index
    %c0_182 = arith.constant 0 : index
    %812 = vector.load %arg18[%c104, %c0_182] : memref<136x128xf32, #tpu.memory_space<vmem>>, vector<8x128xf32>
    %813 = vector.extract_strided_slice %812 {offsets = [0, 0], sizes = [8, 32], strides = [1, 1]} : vector<8x128xf32> to vector<8x32xf32>
    %814 = vector.extract_strided_slice %811 {offsets = [0, 0], sizes = [8, 32], strides = [1, 1]} : vector<8x128xf32> to vector<8x32xf32>
    %815 = arith.addf %813, %814 : vector<8x32xf32>
    %816 = arith.negf %815 : vector<8x32xf32>
    %817 = math.exp %816 : vector<8x32xf32>
    %cst_183 = arith.constant 1.000000e+00 : f32
    %818 = vector.broadcast %cst_183 : f32 to vector<8x32xf32>
    %819 = arith.addf %818, %817 : vector<8x32xf32>
    %820 = arith.divf %818, %819 : vector<8x32xf32>
    %821 = vector.extract_strided_slice %812 {offsets = [0, 32], sizes = [8, 32], strides = [1, 1]} : vector<8x128xf32> to vector<8x32xf32>
    %822 = vector.extract_strided_slice %811 {offsets = [0, 32], sizes = [8, 32], strides = [1, 1]} : vector<8x128xf32> to vector<8x32xf32>
    %823 = arith.addf %821, %822 : vector<8x32xf32>
    %824 = arith.negf %823 : vector<8x32xf32>
    %825 = math.exp %824 : vector<8x32xf32>
    %cst_184 = arith.constant 1.000000e+00 : f32
    %826 = vector.broadcast %cst_184 : f32 to vector<8x32xf32>
    %827 = arith.addf %826, %825 : vector<8x32xf32>
    %828 = arith.divf %826, %827 : vector<8x32xf32>
    %829 = vector.extract_strided_slice %812 {offsets = [0, 64], sizes = [8, 32], strides = [1, 1]} : vector<8x128xf32> to vector<8x32xf32>
    %830 = vector.extract_strided_slice %811 {offsets = [0, 64], sizes = [8, 32], strides = [1, 1]} : vector<8x128xf32> to vector<8x32xf32>
    %831 = vector.broadcast %18 : vector<1x32xf32> to vector<8x32xf32>
    %832 = arith.addf %830, %831 : vector<8x32xf32>
    %833 = arith.mulf %820, %832 : vector<8x32xf32>
    %834 = arith.addf %829, %833 : vector<8x32xf32>
    %835 = math.tanh %834 : vector<8x32xf32>
    %cst_185 = arith.constant 1.000000e+00 : f32
    %836 = vector.broadcast %cst_185 : f32 to vector<8x32xf32>
    %837 = arith.subf %836, %828 : vector<8x32xf32>
    %838 = arith.mulf %837, %835 : vector<8x32xf32>
    %839 = arith.mulf %828, %777 : vector<8x32xf32>
    %840 = arith.addf %838, %839 : vector<8x32xf32>
    %cst_186 = arith.constant dense<0.000000e+00> : vector<8x128xf32>
    %841 = tpu.matmul %777, %19, %cst_186 {dimension_numbers = #tpu.dot_dimension_numbers<[1], [0], [0], [1], [0, 0, 1, 1], [], []>} : vector<8x32xf32>, vector<32x128xf32>, vector<8x128xf32> -> vector<8x128xf32>
    %842 = vector.broadcast %20 : vector<1x128xf32> to vector<8x128xf32>
    %843 = arith.addf %841, %842 : vector<8x128xf32>
    %cst_187 = arith.constant dense<0.000000e+00> : vector<8x128xf32>
    %844 = tpu.matmul %809, %21, %cst_187 {dimension_numbers = #tpu.dot_dimension_numbers<[1], [0], [0], [1], [0, 0, 1, 1], [], []>} : vector<8x32xf32>, vector<32x128xf32>, vector<8x128xf32> -> vector<8x128xf32>
    %845 = vector.extract_strided_slice %843 {offsets = [0, 0], sizes = [8, 32], strides = [1, 1]} : vector<8x128xf32> to vector<8x32xf32>
    %846 = vector.extract_strided_slice %844 {offsets = [0, 0], sizes = [8, 32], strides = [1, 1]} : vector<8x128xf32> to vector<8x32xf32>
    %847 = arith.addf %845, %846 : vector<8x32xf32>
    %848 = arith.negf %847 : vector<8x32xf32>
    %849 = math.exp %848 : vector<8x32xf32>
    %cst_188 = arith.constant 1.000000e+00 : f32
    %850 = vector.broadcast %cst_188 : f32 to vector<8x32xf32>
    %851 = arith.addf %850, %849 : vector<8x32xf32>
    %852 = arith.divf %850, %851 : vector<8x32xf32>
    %853 = vector.extract_strided_slice %843 {offsets = [0, 32], sizes = [8, 32], strides = [1, 1]} : vector<8x128xf32> to vector<8x32xf32>
    %854 = vector.extract_strided_slice %844 {offsets = [0, 32], sizes = [8, 32], strides = [1, 1]} : vector<8x128xf32> to vector<8x32xf32>
    %855 = arith.addf %853, %854 : vector<8x32xf32>
    %856 = arith.negf %855 : vector<8x32xf32>
    %857 = math.exp %856 : vector<8x32xf32>
    %cst_189 = arith.constant 1.000000e+00 : f32
    %858 = vector.broadcast %cst_189 : f32 to vector<8x32xf32>
    %859 = arith.addf %858, %857 : vector<8x32xf32>
    %860 = arith.divf %858, %859 : vector<8x32xf32>
    %861 = vector.extract_strided_slice %843 {offsets = [0, 64], sizes = [8, 32], strides = [1, 1]} : vector<8x128xf32> to vector<8x32xf32>
    %862 = vector.extract_strided_slice %844 {offsets = [0, 64], sizes = [8, 32], strides = [1, 1]} : vector<8x128xf32> to vector<8x32xf32>
    %863 = vector.broadcast %22 : vector<1x32xf32> to vector<8x32xf32>
    %864 = arith.addf %862, %863 : vector<8x32xf32>
    %865 = arith.mulf %852, %864 : vector<8x32xf32>
    %866 = arith.addf %861, %865 : vector<8x32xf32>
    %867 = math.tanh %866 : vector<8x32xf32>
    %cst_190 = arith.constant 1.000000e+00 : f32
    %868 = vector.broadcast %cst_190 : f32 to vector<8x32xf32>
    %869 = arith.subf %868, %860 : vector<8x32xf32>
    %870 = arith.mulf %869, %867 : vector<8x32xf32>
    %871 = arith.mulf %860, %809 : vector<8x32xf32>
    %872 = arith.addf %870, %871 : vector<8x32xf32>
    %c96_191 = arith.constant 96 : index
    %c0_192 = arith.constant 0 : index
    %873 = vector.load %arg19[%c96_191, %c0_192] : memref<136x32xf32, #tpu.memory_space<vmem>>, vector<8x32xf32>
    tpu.vector_store %arg19[%c96_191, %c0_192], %872 {strides = array<i32>} : memref<136x32xf32, #tpu.memory_space<vmem>>, vector<8x32xf32>,
    %cst_193 = arith.constant dense<0.000000e+00> : vector<8x128xf32>
    %874 = tpu.matmul %840, %17, %cst_193 {dimension_numbers = #tpu.dot_dimension_numbers<[1], [0], [0], [1], [0, 0, 1, 1], [], []>} : vector<8x32xf32>, vector<32x128xf32>, vector<8x128xf32> -> vector<8x128xf32>
    %c112 = arith.constant 112 : index
    %c0_194 = arith.constant 0 : index
    %875 = vector.load %arg18[%c112, %c0_194] : memref<136x128xf32, #tpu.memory_space<vmem>>, vector<8x128xf32>
    %876 = vector.extract_strided_slice %875 {offsets = [0, 0], sizes = [8, 32], strides = [1, 1]} : vector<8x128xf32> to vector<8x32xf32>
    %877 = vector.extract_strided_slice %874 {offsets = [0, 0], sizes = [8, 32], strides = [1, 1]} : vector<8x128xf32> to vector<8x32xf32>
    %878 = arith.addf %876, %877 : vector<8x32xf32>
    %879 = arith.negf %878 : vector<8x32xf32>
    %880 = math.exp %879 : vector<8x32xf32>
    %cst_195 = arith.constant 1.000000e+00 : f32
    %881 = vector.broadcast %cst_195 : f32 to vector<8x32xf32>
    %882 = arith.addf %881, %880 : vector<8x32xf32>
    %883 = arith.divf %881, %882 : vector<8x32xf32>
    %884 = vector.extract_strided_slice %875 {offsets = [0, 32], sizes = [8, 32], strides = [1, 1]} : vector<8x128xf32> to vector<8x32xf32>
    %885 = vector.extract_strided_slice %874 {offsets = [0, 32], sizes = [8, 32], strides = [1, 1]} : vector<8x128xf32> to vector<8x32xf32>
    %886 = arith.addf %884, %885 : vector<8x32xf32>
    %887 = arith.negf %886 : vector<8x32xf32>
    %888 = math.exp %887 : vector<8x32xf32>
    %cst_196 = arith.constant 1.000000e+00 : f32
    %889 = vector.broadcast %cst_196 : f32 to vector<8x32xf32>
    %890 = arith.addf %889, %888 : vector<8x32xf32>
    %891 = arith.divf %889, %890 : vector<8x32xf32>
    %892 = vector.extract_strided_slice %875 {offsets = [0, 64], sizes = [8, 32], strides = [1, 1]} : vector<8x128xf32> to vector<8x32xf32>
    %893 = vector.extract_strided_slice %874 {offsets = [0, 64], sizes = [8, 32], strides = [1, 1]} : vector<8x128xf32> to vector<8x32xf32>
    %894 = vector.broadcast %18 : vector<1x32xf32> to vector<8x32xf32>
    %895 = arith.addf %893, %894 : vector<8x32xf32>
    %896 = arith.mulf %883, %895 : vector<8x32xf32>
    %897 = arith.addf %892, %896 : vector<8x32xf32>
    %898 = math.tanh %897 : vector<8x32xf32>
    %cst_197 = arith.constant 1.000000e+00 : f32
    %899 = vector.broadcast %cst_197 : f32 to vector<8x32xf32>
    %900 = arith.subf %899, %891 : vector<8x32xf32>
    %901 = arith.mulf %900, %898 : vector<8x32xf32>
    %902 = arith.mulf %891, %840 : vector<8x32xf32>
    %903 = arith.addf %901, %902 : vector<8x32xf32>
    %cst_198 = arith.constant dense<0.000000e+00> : vector<8x128xf32>
    %904 = tpu.matmul %840, %19, %cst_198 {dimension_numbers = #tpu.dot_dimension_numbers<[1], [0], [0], [1], [0, 0, 1, 1], [], []>} : vector<8x32xf32>, vector<32x128xf32>, vector<8x128xf32> -> vector<8x128xf32>
    %905 = vector.broadcast %20 : vector<1x128xf32> to vector<8x128xf32>
    %906 = arith.addf %904, %905 : vector<8x128xf32>
    %cst_199 = arith.constant dense<0.000000e+00> : vector<8x128xf32>
    %907 = tpu.matmul %872, %21, %cst_199 {dimension_numbers = #tpu.dot_dimension_numbers<[1], [0], [0], [1], [0, 0, 1, 1], [], []>} : vector<8x32xf32>, vector<32x128xf32>, vector<8x128xf32> -> vector<8x128xf32>
    %908 = vector.extract_strided_slice %906 {offsets = [0, 0], sizes = [8, 32], strides = [1, 1]} : vector<8x128xf32> to vector<8x32xf32>
    %909 = vector.extract_strided_slice %907 {offsets = [0, 0], sizes = [8, 32], strides = [1, 1]} : vector<8x128xf32> to vector<8x32xf32>
    %910 = arith.addf %908, %909 : vector<8x32xf32>
    %911 = arith.negf %910 : vector<8x32xf32>
    %912 = math.exp %911 : vector<8x32xf32>
    %cst_200 = arith.constant 1.000000e+00 : f32
    %913 = vector.broadcast %cst_200 : f32 to vector<8x32xf32>
    %914 = arith.addf %913, %912 : vector<8x32xf32>
    %915 = arith.divf %913, %914 : vector<8x32xf32>
    %916 = vector.extract_strided_slice %906 {offsets = [0, 32], sizes = [8, 32], strides = [1, 1]} : vector<8x128xf32> to vector<8x32xf32>
    %917 = vector.extract_strided_slice %907 {offsets = [0, 32], sizes = [8, 32], strides = [1, 1]} : vector<8x128xf32> to vector<8x32xf32>
    %918 = arith.addf %916, %917 : vector<8x32xf32>
    %919 = arith.negf %918 : vector<8x32xf32>
    %920 = math.exp %919 : vector<8x32xf32>
    %cst_201 = arith.constant 1.000000e+00 : f32
    %921 = vector.broadcast %cst_201 : f32 to vector<8x32xf32>
    %922 = arith.addf %921, %920 : vector<8x32xf32>
    %923 = arith.divf %921, %922 : vector<8x32xf32>
    %924 = vector.extract_strided_slice %906 {offsets = [0, 64], sizes = [8, 32], strides = [1, 1]} : vector<8x128xf32> to vector<8x32xf32>
    %925 = vector.extract_strided_slice %907 {offsets = [0, 64], sizes = [8, 32], strides = [1, 1]} : vector<8x128xf32> to vector<8x32xf32>
    %926 = vector.broadcast %22 : vector<1x32xf32> to vector<8x32xf32>
    %927 = arith.addf %925, %926 : vector<8x32xf32>
    %928 = arith.mulf %915, %927 : vector<8x32xf32>
    %929 = arith.addf %924, %928 : vector<8x32xf32>
    %930 = math.tanh %929 : vector<8x32xf32>
    %cst_202 = arith.constant 1.000000e+00 : f32
    %931 = vector.broadcast %cst_202 : f32 to vector<8x32xf32>
    %932 = arith.subf %931, %923 : vector<8x32xf32>
    %933 = arith.mulf %932, %930 : vector<8x32xf32>
    %934 = arith.mulf %923, %872 : vector<8x32xf32>
    %935 = arith.addf %933, %934 : vector<8x32xf32>
    %c104_203 = arith.constant 104 : index
    %c0_204 = arith.constant 0 : index
    %936 = vector.load %arg19[%c104_203, %c0_204] : memref<136x32xf32, #tpu.memory_space<vmem>>, vector<8x32xf32>
    tpu.vector_store %arg19[%c104_203, %c0_204], %935 {strides = array<i32>} : memref<136x32xf32, #tpu.memory_space<vmem>>, vector<8x32xf32>,
    %cst_205 = arith.constant dense<0.000000e+00> : vector<8x128xf32>
    %937 = tpu.matmul %903, %17, %cst_205 {dimension_numbers = #tpu.dot_dimension_numbers<[1], [0], [0], [1], [0, 0, 1, 1], [], []>} : vector<8x32xf32>, vector<32x128xf32>, vector<8x128xf32> -> vector<8x128xf32>
    %c120 = arith.constant 120 : index
    %c0_206 = arith.constant 0 : index
    %938 = vector.load %arg18[%c120, %c0_206] : memref<136x128xf32, #tpu.memory_space<vmem>>, vector<8x128xf32>
    %939 = vector.extract_strided_slice %938 {offsets = [0, 0], sizes = [8, 32], strides = [1, 1]} : vector<8x128xf32> to vector<8x32xf32>
    %940 = vector.extract_strided_slice %937 {offsets = [0, 0], sizes = [8, 32], strides = [1, 1]} : vector<8x128xf32> to vector<8x32xf32>
    %941 = arith.addf %939, %940 : vector<8x32xf32>
    %942 = arith.negf %941 : vector<8x32xf32>
    %943 = math.exp %942 : vector<8x32xf32>
    %cst_207 = arith.constant 1.000000e+00 : f32
    %944 = vector.broadcast %cst_207 : f32 to vector<8x32xf32>
    %945 = arith.addf %944, %943 : vector<8x32xf32>
    %946 = arith.divf %944, %945 : vector<8x32xf32>
    %947 = vector.extract_strided_slice %938 {offsets = [0, 32], sizes = [8, 32], strides = [1, 1]} : vector<8x128xf32> to vector<8x32xf32>
    %948 = vector.extract_strided_slice %937 {offsets = [0, 32], sizes = [8, 32], strides = [1, 1]} : vector<8x128xf32> to vector<8x32xf32>
    %949 = arith.addf %947, %948 : vector<8x32xf32>
    %950 = arith.negf %949 : vector<8x32xf32>
    %951 = math.exp %950 : vector<8x32xf32>
    %cst_208 = arith.constant 1.000000e+00 : f32
    %952 = vector.broadcast %cst_208 : f32 to vector<8x32xf32>
    %953 = arith.addf %952, %951 : vector<8x32xf32>
    %954 = arith.divf %952, %953 : vector<8x32xf32>
    %955 = vector.extract_strided_slice %938 {offsets = [0, 64], sizes = [8, 32], strides = [1, 1]} : vector<8x128xf32> to vector<8x32xf32>
    %956 = vector.extract_strided_slice %937 {offsets = [0, 64], sizes = [8, 32], strides = [1, 1]} : vector<8x128xf32> to vector<8x32xf32>
    %957 = vector.broadcast %18 : vector<1x32xf32> to vector<8x32xf32>
    %958 = arith.addf %956, %957 : vector<8x32xf32>
    %959 = arith.mulf %946, %958 : vector<8x32xf32>
    %960 = arith.addf %955, %959 : vector<8x32xf32>
    %961 = math.tanh %960 : vector<8x32xf32>
    %cst_209 = arith.constant 1.000000e+00 : f32
    %962 = vector.broadcast %cst_209 : f32 to vector<8x32xf32>
    %963 = arith.subf %962, %954 : vector<8x32xf32>
    %964 = arith.mulf %963, %961 : vector<8x32xf32>
    %965 = arith.mulf %954, %903 : vector<8x32xf32>
    %966 = arith.addf %964, %965 : vector<8x32xf32>
    %cst_210 = arith.constant dense<0.000000e+00> : vector<8x128xf32>
    %967 = tpu.matmul %903, %19, %cst_210 {dimension_numbers = #tpu.dot_dimension_numbers<[1], [0], [0], [1], [0, 0, 1, 1], [], []>} : vector<8x32xf32>, vector<32x128xf32>, vector<8x128xf32> -> vector<8x128xf32>
    %968 = vector.broadcast %20 : vector<1x128xf32> to vector<8x128xf32>
    %969 = arith.addf %967, %968 : vector<8x128xf32>
    %cst_211 = arith.constant dense<0.000000e+00> : vector<8x128xf32>
    %970 = tpu.matmul %935, %21, %cst_211 {dimension_numbers = #tpu.dot_dimension_numbers<[1], [0], [0], [1], [0, 0, 1, 1], [], []>} : vector<8x32xf32>, vector<32x128xf32>, vector<8x128xf32> -> vector<8x128xf32>
    %971 = vector.extract_strided_slice %969 {offsets = [0, 0], sizes = [8, 32], strides = [1, 1]} : vector<8x128xf32> to vector<8x32xf32>
    %972 = vector.extract_strided_slice %970 {offsets = [0, 0], sizes = [8, 32], strides = [1, 1]} : vector<8x128xf32> to vector<8x32xf32>
    %973 = arith.addf %971, %972 : vector<8x32xf32>
    %974 = arith.negf %973 : vector<8x32xf32>
    %975 = math.exp %974 : vector<8x32xf32>
    %cst_212 = arith.constant 1.000000e+00 : f32
    %976 = vector.broadcast %cst_212 : f32 to vector<8x32xf32>
    %977 = arith.addf %976, %975 : vector<8x32xf32>
    %978 = arith.divf %976, %977 : vector<8x32xf32>
    %979 = vector.extract_strided_slice %969 {offsets = [0, 32], sizes = [8, 32], strides = [1, 1]} : vector<8x128xf32> to vector<8x32xf32>
    %980 = vector.extract_strided_slice %970 {offsets = [0, 32], sizes = [8, 32], strides = [1, 1]} : vector<8x128xf32> to vector<8x32xf32>
    %981 = arith.addf %979, %980 : vector<8x32xf32>
    %982 = arith.negf %981 : vector<8x32xf32>
    %983 = math.exp %982 : vector<8x32xf32>
    %cst_213 = arith.constant 1.000000e+00 : f32
    %984 = vector.broadcast %cst_213 : f32 to vector<8x32xf32>
    %985 = arith.addf %984, %983 : vector<8x32xf32>
    %986 = arith.divf %984, %985 : vector<8x32xf32>
    %987 = vector.extract_strided_slice %969 {offsets = [0, 64], sizes = [8, 32], strides = [1, 1]} : vector<8x128xf32> to vector<8x32xf32>
    %988 = vector.extract_strided_slice %970 {offsets = [0, 64], sizes = [8, 32], strides = [1, 1]} : vector<8x128xf32> to vector<8x32xf32>
    %989 = vector.broadcast %22 : vector<1x32xf32> to vector<8x32xf32>
    %990 = arith.addf %988, %989 : vector<8x32xf32>
    %991 = arith.mulf %978, %990 : vector<8x32xf32>
    %992 = arith.addf %987, %991 : vector<8x32xf32>
    %993 = math.tanh %992 : vector<8x32xf32>
    %cst_214 = arith.constant 1.000000e+00 : f32
    %994 = vector.broadcast %cst_214 : f32 to vector<8x32xf32>
    %995 = arith.subf %994, %986 : vector<8x32xf32>
    %996 = arith.mulf %995, %993 : vector<8x32xf32>
    %997 = arith.mulf %986, %935 : vector<8x32xf32>
    %998 = arith.addf %996, %997 : vector<8x32xf32>
    %c112_215 = arith.constant 112 : index
    %c0_216 = arith.constant 0 : index
    %999 = vector.load %arg19[%c112_215, %c0_216] : memref<136x32xf32, #tpu.memory_space<vmem>>, vector<8x32xf32>
    tpu.vector_store %arg19[%c112_215, %c0_216], %998 {strides = array<i32>} : memref<136x32xf32, #tpu.memory_space<vmem>>, vector<8x32xf32>,
    %cst_217 = arith.constant dense<0.000000e+00> : vector<8x128xf32>
    %1000 = tpu.matmul %966, %17, %cst_217 {dimension_numbers = #tpu.dot_dimension_numbers<[1], [0], [0], [1], [0, 0, 1, 1], [], []>} : vector<8x32xf32>, vector<32x128xf32>, vector<8x128xf32> -> vector<8x128xf32>
    %c128 = arith.constant 128 : index
    %c0_218 = arith.constant 0 : index
    %1001 = vector.load %arg18[%c128, %c0_218] : memref<136x128xf32, #tpu.memory_space<vmem>>, vector<8x128xf32>
    %1002 = vector.extract_strided_slice %1001 {offsets = [0, 0], sizes = [8, 32], strides = [1, 1]} : vector<8x128xf32> to vector<8x32xf32>
    %1003 = vector.extract_strided_slice %1000 {offsets = [0, 0], sizes = [8, 32], strides = [1, 1]} : vector<8x128xf32> to vector<8x32xf32>
    %1004 = arith.addf %1002, %1003 : vector<8x32xf32>
    %1005 = arith.negf %1004 : vector<8x32xf32>
    %1006 = math.exp %1005 : vector<8x32xf32>
    %cst_219 = arith.constant 1.000000e+00 : f32
    %1007 = vector.broadcast %cst_219 : f32 to vector<8x32xf32>
    %1008 = arith.addf %1007, %1006 : vector<8x32xf32>
    %1009 = arith.divf %1007, %1008 : vector<8x32xf32>
    %1010 = vector.extract_strided_slice %1001 {offsets = [0, 32], sizes = [8, 32], strides = [1, 1]} : vector<8x128xf32> to vector<8x32xf32>
    %1011 = vector.extract_strided_slice %1000 {offsets = [0, 32], sizes = [8, 32], strides = [1, 1]} : vector<8x128xf32> to vector<8x32xf32>
    %1012 = arith.addf %1010, %1011 : vector<8x32xf32>
    %1013 = arith.negf %1012 : vector<8x32xf32>
    %1014 = math.exp %1013 : vector<8x32xf32>
    %cst_220 = arith.constant 1.000000e+00 : f32
    %1015 = vector.broadcast %cst_220 : f32 to vector<8x32xf32>
    %1016 = arith.addf %1015, %1014 : vector<8x32xf32>
    %1017 = arith.divf %1015, %1016 : vector<8x32xf32>
    %1018 = vector.extract_strided_slice %1001 {offsets = [0, 64], sizes = [8, 32], strides = [1, 1]} : vector<8x128xf32> to vector<8x32xf32>
    %1019 = vector.extract_strided_slice %1000 {offsets = [0, 64], sizes = [8, 32], strides = [1, 1]} : vector<8x128xf32> to vector<8x32xf32>
    %1020 = vector.broadcast %18 : vector<1x32xf32> to vector<8x32xf32>
    %1021 = arith.addf %1019, %1020 : vector<8x32xf32>
    %1022 = arith.mulf %1009, %1021 : vector<8x32xf32>
    %1023 = arith.addf %1018, %1022 : vector<8x32xf32>
    %1024 = math.tanh %1023 : vector<8x32xf32>
    %cst_221 = arith.constant 1.000000e+00 : f32
    %1025 = vector.broadcast %cst_221 : f32 to vector<8x32xf32>
    %1026 = arith.subf %1025, %1017 : vector<8x32xf32>
    %1027 = arith.mulf %1026, %1024 : vector<8x32xf32>
    %1028 = arith.mulf %1017, %966 : vector<8x32xf32>
    %1029 = arith.addf %1027, %1028 : vector<8x32xf32>
    %cst_222 = arith.constant dense<0.000000e+00> : vector<8x128xf32>
    %1030 = tpu.matmul %966, %19, %cst_222 {dimension_numbers = #tpu.dot_dimension_numbers<[1], [0], [0], [1], [0, 0, 1, 1], [], []>} : vector<8x32xf32>, vector<32x128xf32>, vector<8x128xf32> -> vector<8x128xf32>
    %1031 = vector.broadcast %20 : vector<1x128xf32> to vector<8x128xf32>
    %1032 = arith.addf %1030, %1031 : vector<8x128xf32>
    %cst_223 = arith.constant dense<0.000000e+00> : vector<8x128xf32>
    %1033 = tpu.matmul %998, %21, %cst_223 {dimension_numbers = #tpu.dot_dimension_numbers<[1], [0], [0], [1], [0, 0, 1, 1], [], []>} : vector<8x32xf32>, vector<32x128xf32>, vector<8x128xf32> -> vector<8x128xf32>
    %1034 = vector.extract_strided_slice %1032 {offsets = [0, 0], sizes = [8, 32], strides = [1, 1]} : vector<8x128xf32> to vector<8x32xf32>
    %1035 = vector.extract_strided_slice %1033 {offsets = [0, 0], sizes = [8, 32], strides = [1, 1]} : vector<8x128xf32> to vector<8x32xf32>
    %1036 = arith.addf %1034, %1035 : vector<8x32xf32>
    %1037 = arith.negf %1036 : vector<8x32xf32>
    %1038 = math.exp %1037 : vector<8x32xf32>
    %cst_224 = arith.constant 1.000000e+00 : f32
    %1039 = vector.broadcast %cst_224 : f32 to vector<8x32xf32>
    %1040 = arith.addf %1039, %1038 : vector<8x32xf32>
    %1041 = arith.divf %1039, %1040 : vector<8x32xf32>
    %1042 = vector.extract_strided_slice %1032 {offsets = [0, 32], sizes = [8, 32], strides = [1, 1]} : vector<8x128xf32> to vector<8x32xf32>
    %1043 = vector.extract_strided_slice %1033 {offsets = [0, 32], sizes = [8, 32], strides = [1, 1]} : vector<8x128xf32> to vector<8x32xf32>
    %1044 = arith.addf %1042, %1043 : vector<8x32xf32>
    %1045 = arith.negf %1044 : vector<8x32xf32>
    %1046 = math.exp %1045 : vector<8x32xf32>
    %cst_225 = arith.constant 1.000000e+00 : f32
    %1047 = vector.broadcast %cst_225 : f32 to vector<8x32xf32>
    %1048 = arith.addf %1047, %1046 : vector<8x32xf32>
    %1049 = arith.divf %1047, %1048 : vector<8x32xf32>
    %1050 = vector.extract_strided_slice %1032 {offsets = [0, 64], sizes = [8, 32], strides = [1, 1]} : vector<8x128xf32> to vector<8x32xf32>
    %1051 = vector.extract_strided_slice %1033 {offsets = [0, 64], sizes = [8, 32], strides = [1, 1]} : vector<8x128xf32> to vector<8x32xf32>
    %1052 = vector.broadcast %22 : vector<1x32xf32> to vector<8x32xf32>
    %1053 = arith.addf %1051, %1052 : vector<8x32xf32>
    %1054 = arith.mulf %1041, %1053 : vector<8x32xf32>
    %1055 = arith.addf %1050, %1054 : vector<8x32xf32>
    %1056 = math.tanh %1055 : vector<8x32xf32>
    %cst_226 = arith.constant 1.000000e+00 : f32
    %1057 = vector.broadcast %cst_226 : f32 to vector<8x32xf32>
    %1058 = arith.subf %1057, %1049 : vector<8x32xf32>
    %1059 = arith.mulf %1058, %1056 : vector<8x32xf32>
    %1060 = arith.mulf %1049, %998 : vector<8x32xf32>
    %1061 = arith.addf %1059, %1060 : vector<8x32xf32>
    %c120_227 = arith.constant 120 : index
    %c0_228 = arith.constant 0 : index
    %1062 = vector.load %arg19[%c120_227, %c0_228] : memref<136x32xf32, #tpu.memory_space<vmem>>, vector<8x32xf32>
    tpu.vector_store %arg19[%c120_227, %c0_228], %1061 {strides = array<i32>} : memref<136x32xf32, #tpu.memory_space<vmem>>, vector<8x32xf32>,
    %cst_229 = arith.constant dense<0.000000e+00> : vector<8x128xf32>
    %1063 = tpu.matmul %1029, %19, %cst_229 {dimension_numbers = #tpu.dot_dimension_numbers<[1], [0], [0], [1], [0, 0, 1, 1], [], []>} : vector<8x32xf32>, vector<32x128xf32>, vector<8x128xf32> -> vector<8x128xf32>
    %1064 = vector.broadcast %20 : vector<1x128xf32> to vector<8x128xf32>
    %1065 = arith.addf %1063, %1064 : vector<8x128xf32>
    %cst_230 = arith.constant dense<0.000000e+00> : vector<8x128xf32>
    %1066 = tpu.matmul %1061, %21, %cst_230 {dimension_numbers = #tpu.dot_dimension_numbers<[1], [0], [0], [1], [0, 0, 1, 1], [], []>} : vector<8x32xf32>, vector<32x128xf32>, vector<8x128xf32> -> vector<8x128xf32>
    %1067 = vector.extract_strided_slice %1065 {offsets = [0, 0], sizes = [8, 32], strides = [1, 1]} : vector<8x128xf32> to vector<8x32xf32>
    %1068 = vector.extract_strided_slice %1066 {offsets = [0, 0], sizes = [8, 32], strides = [1, 1]} : vector<8x128xf32> to vector<8x32xf32>
    %1069 = arith.addf %1067, %1068 : vector<8x32xf32>
    %1070 = arith.negf %1069 : vector<8x32xf32>
    %1071 = math.exp %1070 : vector<8x32xf32>
    %cst_231 = arith.constant 1.000000e+00 : f32
    %1072 = vector.broadcast %cst_231 : f32 to vector<8x32xf32>
    %1073 = arith.addf %1072, %1071 : vector<8x32xf32>
    %1074 = arith.divf %1072, %1073 : vector<8x32xf32>
    %1075 = vector.extract_strided_slice %1065 {offsets = [0, 32], sizes = [8, 32], strides = [1, 1]} : vector<8x128xf32> to vector<8x32xf32>
    %1076 = vector.extract_strided_slice %1066 {offsets = [0, 32], sizes = [8, 32], strides = [1, 1]} : vector<8x128xf32> to vector<8x32xf32>
    %1077 = arith.addf %1075, %1076 : vector<8x32xf32>
    %1078 = arith.negf %1077 : vector<8x32xf32>
    %1079 = math.exp %1078 : vector<8x32xf32>
    %cst_232 = arith.constant 1.000000e+00 : f32
    %1080 = vector.broadcast %cst_232 : f32 to vector<8x32xf32>
    %1081 = arith.addf %1080, %1079 : vector<8x32xf32>
    %1082 = arith.divf %1080, %1081 : vector<8x32xf32>
    %1083 = vector.extract_strided_slice %1065 {offsets = [0, 64], sizes = [8, 32], strides = [1, 1]} : vector<8x128xf32> to vector<8x32xf32>
    %1084 = vector.extract_strided_slice %1066 {offsets = [0, 64], sizes = [8, 32], strides = [1, 1]} : vector<8x128xf32> to vector<8x32xf32>
    %1085 = vector.broadcast %22 : vector<1x32xf32> to vector<8x32xf32>
    %1086 = arith.addf %1084, %1085 : vector<8x32xf32>
    %1087 = arith.mulf %1074, %1086 : vector<8x32xf32>
    %1088 = arith.addf %1083, %1087 : vector<8x32xf32>
    %1089 = math.tanh %1088 : vector<8x32xf32>
    %cst_233 = arith.constant 1.000000e+00 : f32
    %1090 = vector.broadcast %cst_233 : f32 to vector<8x32xf32>
    %1091 = arith.subf %1090, %1082 : vector<8x32xf32>
    %1092 = arith.mulf %1091, %1089 : vector<8x32xf32>
    %1093 = arith.mulf %1082, %1061 : vector<8x32xf32>
    %1094 = arith.addf %1092, %1093 : vector<8x32xf32>
    %c128_234 = arith.constant 128 : index
    %c0_235 = arith.constant 0 : index
    %1095 = vector.load %arg19[%c128_234, %c0_235] : memref<136x32xf32, #tpu.memory_space<vmem>>, vector<8x32xf32>
    tpu.vector_store %arg19[%c128_234, %c0_235], %1094 {strides = array<i32>} : memref<136x32xf32, #tpu.memory_space<vmem>>, vector<8x32xf32>,
    %c0_236 = arith.constant 0 : index
    %c0_237 = arith.constant 0 : index
    %1096 = vector.load %arg19[%c0_236, %c0_237] : memref<136x32xf32, #tpu.memory_space<vmem>>, vector<136x32xf32>
    %c0_238 = arith.constant 0 : index
    %c0_239 = arith.constant 0 : index
    %1097 = vector.load %arg11[%c0_238, %c0_239] : memref<32x128xf32, #tpu.memory_space<vmem>>, vector<32x128xf32>
    %cst_240 = arith.constant dense<0.000000e+00> : vector<136x128xf32>
    %1098 = tpu.matmul %1096, %1097, %cst_240 {dimension_numbers = #tpu.dot_dimension_numbers<[1], [0], [0], [1], [0, 0, 1, 1], [], []>} : vector<136x32xf32>, vector<32x128xf32>, vector<136x128xf32> -> vector<136x128xf32>
    %c0_241 = arith.constant 0 : index
    %c0_242 = arith.constant 0 : index
    %1099 = vector.load %arg12[%c0_241, %c0_242] : memref<1x128xf32, #tpu.memory_space<vmem>>, vector<1x128xf32>
    %1100 = vector.broadcast %1099 : vector<1x128xf32> to vector<136x128xf32>
    %1101 = arith.addf %1098, %1100 : vector<136x128xf32>
    %1102 = arith.negf %1101 : vector<136x128xf32>
    %1103 = math.exp %1102 : vector<136x128xf32>
    %cst_243 = arith.constant 1.000000e+00 : f32
    %1104 = vector.broadcast %cst_243 : f32 to vector<136x128xf32>
    %1105 = arith.addf %1104, %1103 : vector<136x128xf32>
    %1106 = arith.divf %1104, %1105 : vector<136x128xf32>
    %c0_244 = arith.constant 0 : index
    %c0_245 = arith.constant 0 : index
    %1107 = vector.load %arg16[%c0_244, %c0_245] : memref<136x128xf32, #tpu.memory_space<vmem>>, vector<136x128xf32>
    %1108 = arith.mulf %1107, %1106 : vector<136x128xf32>
    %c0_246 = arith.constant 0 : index
    %c0_247 = arith.constant 0 : index
    %1109 = vector.load %arg17[%c0_246, %c0_247] : memref<136x128xf32, #tpu.memory_space<vmem>>, vector<136x128xf32>
    %1110 = arith.mulf %1109, %1106 : vector<136x128xf32>
    %c0_248 = arith.constant 0 : index
    %c0_249 = arith.constant 0 : index
    %1111 = vector.load %arg13[%c0_248, %c0_249] : memref<128x128xf32, #tpu.memory_space<vmem>>, vector<128x128xf32>
    %cst_250 = arith.constant dense<0.000000e+00> : vector<136x128xf32>
    %1112 = tpu.matmul %1108, %1111, %cst_250 {dimension_numbers = #tpu.dot_dimension_numbers<[1], [0], [0], [1], [0, 0, 1, 1], [], []>} : vector<136x128xf32>, vector<128x128xf32>, vector<136x128xf32> -> vector<136x128xf32>
    %c0_251 = arith.constant 0 : index
    %c0_252 = arith.constant 0 : index
    %1113 = vector.load %arg14[%c0_251, %c0_252] : memref<128x128xf32, #tpu.memory_space<vmem>>, vector<128x128xf32>
    %cst_253 = arith.constant dense<0.000000e+00> : vector<136x128xf32>
    %1114 = tpu.matmul %1110, %1113, %cst_253 {dimension_numbers = #tpu.dot_dimension_numbers<[1], [0], [0], [1], [0, 0, 1, 1], [], []>} : vector<136x128xf32>, vector<128x128xf32>, vector<136x128xf32> -> vector<136x128xf32>
    %1115 = arith.addf %1112, %1114 : vector<136x128xf32>
    %c0_254 = arith.constant 0 : index
    %c0_255 = arith.constant 0 : index
    %1116 = vector.load %arg15[%c0_254, %c0_255] : memref<136x128xf32, #tpu.memory_space<vmem>>, vector<136x128xf32>
    tpu.vector_store %arg15[%c0_254, %c0_255], %1115 {strides = array<i32>} : memref<136x128xf32, #tpu.memory_space<vmem>>, vector<136x128xf32>,
    return
  }
}

</mosaic_0001>

<llo_original>
// kernel: grunet_forward.1
$region0: #{grunet_forward.1}
  #allocation0 [shape = 'u32[]', space=smem, size = 0x4, offset = 0x4, fixed_abs, tag = 'smem constant byte address 0x4 - core index']
  #allocation1 [shape = 'u32[144,128]{1,0:T(1,128)}', space=vmem, size = 0x12000, scoped, tag = 'internal scratch']
  #allocation2 [shape = 'f32[136,128]{1,0:T(8,128)}', space=vmem, size = 0x11000, scoped, tag = 'scratch operand']
  #allocation3 [shape = 'f32[136,128]{1,0:T(8,128)}', space=vmem, size = 0x11000, scoped, tag = 'scratch operand']
  #allocation4 [shape = 'f32[136,128]{1,0:T(8,128)}', space=vmem, size = 0x11000, scoped, tag = 'scratch operand']
  #allocation5 [shape = 'f32[136,32]{1,0:T(8,128)}', space=vmem, size = 0x11000, scoped, tag = 'scratch operand']
  %s0 = inlined_call_operand.vmem [shape: f32[136,32], index: 0, kind: input, shape index: {}]
  %s1 = inlined_call_operand.vmem [shape: f32[32,128], index: 1, kind: input, shape index: {}]
  %s2 = inlined_call_operand.vmem [shape: f32[32,128], index: 2, kind: input, shape index: {}]
  %s3 = inlined_call_operand.vmem [shape: f32[128,128], index: 3, kind: input, shape index: {}]
  %s4 = inlined_call_operand.vmem [shape: f32[1,128], index: 4, kind: input, shape index: {}]
  %s5 = inlined_call_operand.vmem [shape: f32[32,128], index: 5, kind: input, shape index: {}]
  %s6 = inlined_call_operand.vmem [shape: f32[1,32], index: 6, kind: input, shape index: {}]
  %s7 = inlined_call_operand.vmem [shape: f32[32,128], index: 7, kind: input, shape index: {}]
  %s8 = inlined_call_operand.vmem [shape: f32[1,128], index: 8, kind: input, shape index: {}]
  %s9 = inlined_call_operand.vmem [shape: f32[32,128], index: 9, kind: input, shape index: {}]
  %s10 = inlined_call_operand.vmem [shape: f32[1,32], index: 10, kind: input, shape index: {}]
  %s11 = inlined_call_operand.vmem [shape: f32[32,128], index: 11, kind: input, shape index: {}]
  %s12 = inlined_call_operand.vmem [shape: f32[1,128], index: 12, kind: input, shape index: {}]
  %s13 = inlined_call_operand.vmem [shape: f32[128,128], index: 13, kind: input, shape index: {}]
  %s14 = inlined_call_operand.vmem [shape: f32[128,128], index: 14, kind: input, shape index: {}]
  %s15 = inlined_call_operand.vmem [shape: f32[136,128], index: 15, kind: output, shape index: {}]
  %s16 = sld [smem:[#allocation0]]
  $region70: #{grunet_forward.1} parent=0
    _
  %s18 = ssub.s32 1, %s16
  %s19 = scalar_select 0, %s18, %s16
  // Predicated region
  $region2: #{grunet_forward.1} parent=0 // pred_check
    _
  $region3: #{grunet_forward.1} parent=0 // pred_check_branch
    %21 = sbr.rel (0) target = $region5
  $region4: #{grunet_forward.1} parent=0 // pred_region
    _
  $region5: #{grunet_forward.1} parent=0 // pred_fallthru
    _
  // Predicated region
  $region6: #{grunet_forward.1} parent=0 // pred_check
    _
  $region7: #{grunet_forward.1} parent=0 // pred_check_branch
    %23 = sbr.rel (0) target = $region9
  $region8: #{grunet_forward.1} parent=0 // pred_region
    _
  $region9: #{grunet_forward.1} parent=0 // pred_fallthru
    _
  // Predicated region
  $region10: #{grunet_forward.1} parent=0 // pred_check
    _
  $region11: #{grunet_forward.1} parent=0 // pred_check_branch
    %25 = sbr.rel (0) target = $region13
  $region12: #{grunet_forward.1} parent=0 // pred_region
    _
  $region13: #{grunet_forward.1} parent=0 // pred_fallthru
    _
  // Predicated region
  $region14: #{grunet_forward.1} parent=0 // pred_check
    _
  $region15: #{grunet_forward.1} parent=0 // pred_check_branch
    %27 = sbr.rel (0) target = $region17
  $region16: #{grunet_forward.1} parent=0 // pred_region
    _
  $region17: #{grunet_forward.1} parent=0 // pred_fallthru
    _
  // Predicated region
  $region18: #{grunet_forward.1} parent=0 // pred_check
    _
  $region19: #{grunet_forward.1} parent=0 // pred_check_branch
    %29 = sbr.rel (0) target = $region21
  $region20: #{grunet_forward.1} parent=0 // pred_region
    _
  $region21: #{grunet_forward.1} parent=0 // pred_fallthru
    _
  // Predicated region
  $region22: #{grunet_forward.1} parent=0 // pred_check
    _
  $region23: #{grunet_forward.1} parent=0 // pred_check_branch
    %31 = sbr.rel (0) target = $region25
  $region24: #{grunet_forward.1} parent=0 // pred_region
    _
  $region25: #{grunet_forward.1} parent=0 // pred_fallthru
    _
  // Predicated region
  $region26: #{grunet_forward.1} parent=0 // pred_check
    _
  $region27: #{grunet_forward.1} parent=0 // pred_check_branch
    %33 = sbr.rel (0) target = $region29
  $region28: #{grunet_forward.1} parent=0 // pred_region
    _
  $region29: #{grunet_forward.1} parent=0 // pred_fallthru
    _
  // Predicated region
  $region30: #{grunet_forward.1} parent=0 // pred_check
    _
  $region31: #{grunet_forward.1} parent=0 // pred_check_branch
    %35 = sbr.rel (0) target = $region33
  $region32: #{grunet_forward.1} parent=0 // pred_region
    _
  $region33: #{grunet_forward.1} parent=0 // pred_fallthru
    _
  // Predicated region
  $region34: #{grunet_forward.1} parent=0 // pred_check
    _
  $region35: #{grunet_forward.1} parent=0 // pred_check_branch
    %37 = sbr.rel (0) target = $region37
  $region36: #{grunet_forward.1} parent=0 // pred_region
    _
  $region37: #{grunet_forward.1} parent=0 // pred_fallthru
    _
  // Predicated region
  $region38: #{grunet_forward.1} parent=0 // pred_check
    _
  $region39: #{grunet_forward.1} parent=0 // pred_check_branch
    %39 = sbr.rel (0) target = $region41
  $region40: #{grunet_forward.1} parent=0 // pred_region
    _
  $region41: #{grunet_forward.1} parent=0 // pred_fallthru
    _
  // Predicated region
  $region42: #{grunet_forward.1} parent=0 // pred_check
    _
  $region43: #{grunet_forward.1} parent=0 // pred_check_branch
    %41 = sbr.rel (0) target = $region45
  $region44: #{grunet_forward.1} parent=0 // pred_region
    _
  $region45: #{grunet_forward.1} parent=0 // pred_fallthru
    _
  // Predicated region
  $region46: #{grunet_forward.1} parent=0 // pred_check
    _
  $region47: #{grunet_forward.1} parent=0 // pred_check_branch
    %43 = sbr.rel (0) target = $region49
  $region48: #{grunet_forward.1} parent=0 // pred_region
    _
  $region49: #{grunet_forward.1} parent=0 // pred_fallthru
    _
  // Predicated region
  $region50: #{grunet_forward.1} parent=0 // pred_check
    _
  $region51: #{grunet_forward.1} parent=0 // pred_check_branch
    %45 = sbr.rel (0) target = $region53
  $region52: #{grunet_forward.1} parent=0 // pred_region
    _
  $region53: #{grunet_forward.1} parent=0 // pred_fallthru
    _
  // Predicated region
  $region54: #{grunet_forward.1} parent=0 // pred_check
    _
  $region55: #{grunet_forward.1} parent=0 // pred_check_branch
    %47 = sbr.rel (0) target = $region57
  $region56: #{grunet_forward.1} parent=0 // pred_region
    _
  $region57: #{grunet_forward.1} parent=0 // pred_fallthru
    _
  // Predicated region
  $region58: #{grunet_forward.1} parent=0 // pred_check
    _
  $region59: #{grunet_forward.1} parent=0 // pred_check_branch
    %49 = sbr.rel (0) target = $region61
  $region60: #{grunet_forward.1} parent=0 // pred_region
    _
  $region61: #{grunet_forward.1} parent=0 // pred_fallthru
    _
  %v50 = vld [vmem:[%s0] sm:$0xff]
  %v51 = vld [vmem:[%s0 + $0x8] sm:$0xff]
  %v52 = vld [vmem:[%s0 + $0x10] sm:$0xff]
  %v53 = vld [vmem:[%s0 + $0x18] sm:$0xff]
  %v54 = vld [vmem:[%s0 + $0x20] sm:$0xff]
  %v55 = vld [vmem:[%s0 + $0x28] sm:$0xff]
  %v56 = vld [vmem:[%s0 + $0x30] sm:$0xff]
  %v57 = vld [vmem:[%s0 + $0x38] sm:$0xff]
  %v58 = vld [vmem:[%s0 + $0x40] sm:$0xff]
  %v59 = vld [vmem:[%s0 + $0x48] sm:$0xff]
  %v60 = vld [vmem:[%s0 + $0x50] sm:$0xff]
  %v61 = vld [vmem:[%s0 + $0x58] sm:$0xff]
  %v62 = vld [vmem:[%s0 + $0x60] sm:$0xff]
  %v63 = vld [vmem:[%s0 + $0x68] sm:$0xff]
  %v64 = vld [vmem:[%s0 + $0x70] sm:$0xff]
  %v65 = vld [vmem:[%s0 + $0x78] sm:$0xff]
  %v66 = vld [vmem:[%s0 + $0x80] sm:$0xff]
  %v67 = vld [vmem:[%s1] sm:$0xff]
  %v68 = vld [vmem:[%s1 + $0x8] sm:$0xff]
  %v69 = vld [vmem:[%s1 + $0x10] sm:$0xff]
  %v70 = vld [vmem:[%s1 + $0x18] sm:$0xff]
  %vm71 = vcmask 261120
  %v73 = vsel %vm71, %v50, 0
  %v76 = vsel %vm71, %v51, 0
  %v79 = vsel %vm71, %v52, 0
  %v82 = vsel %vm71, %v53, 0
  %v85 = vsel %vm71, %v54, 0
  %v88 = vsel %vm71, %v55, 0
  %v91 = vsel %vm71, %v56, 0
  %v94 = vsel %vm71, %v57, 0
  %v97 = vsel %vm71, %v58, 0
  %v100 = vsel %vm71, %v59, 0
  %v103 = vsel %vm71, %v60, 0
  %v106 = vsel %vm71, %v61, 0
  %v109 = vsel %vm71, %v62, 0
  %v112 = vsel %vm71, %v63, 0
  %v115 = vsel %vm71, %v64, 0
  %v118 = vsel %vm71, %v65, 0
  %v121 = vsel %vm71, %v66, 0
  %123 = vmatprep.subr.mxu0 0.0
  %124 = vmatpush1.msra.mxu0 %v67
  %125 = vmatprep.subr.mxu0 0.0
  %126 = vmatpush1.msra.mxu0 %v68
  %127 = vmatprep.subr.mxu0 0.0
  %128 = vmatpush1.msra.mxu0 %v69
  %129 = vmatprep.subr.mxu0 0.0
  %130 = vmatpush1.msra.mxu0 %v70
  %131 = vmatprep.subr.mxu0 0.0
  %132 = vmatpush1.msra.mxu0 0.0
  %133 = vmatprep.subr.mxu0 0.0
  %134 = vmatpush1.msra.mxu0 0.0
  %135 = vmatprep.subr.mxu0 0.0
  %136 = vmatpush1.msra.mxu0 0.0
  %137 = vmatprep.subr.mxu0 0.0
  %138 = vmatpush1.msra.mxu0 0.0
  %139 = vmatprep.subr.mxu0 0.0
  %140 = vmatpush1.msra.mxu0 0.0
  %141 = vmatprep.subr.mxu0 0.0
  %142 = vmatpush1.msra.mxu0 0.0
  %143 = vmatprep.subr.mxu0 0.0
  %144 = vmatpush1.msra.mxu0 0.0
  %145 = vmatprep.subr.mxu0 0.0
  %146 = vmatpush1.msra.mxu0 0.0
  %147 = vmatprep.subr.mxu0 0.0
  %148 = vmatpush1.msra.mxu0 0.0
  %149 = vmatprep.subr.mxu0 0.0
  %150 = vmatpush1.msra.mxu0 0.0
  %151 = vmatprep.subr.mxu0 0.0
  %152 = vmatpush1.msra.mxu0 0.0
  %153 = vmatprep.subr.mxu0 0.0
  %154 = vmatpush1.msra.mxu0 0.0
  %155 = vmatprep.subr.mxu0 0.0
  %156 = vmatpush1.msra.mxu0 0.0
  %157 = vmatprep.subr.mxu0 0.0
  %158 = vmatpush1.msra.mxu0 0.0
  %159 = vmatprep.subr.mxu0 0.0
  %160 = vmatpush1.msra.mxu0 0.0
  %161 = vmatprep.subr.mxu0 0.0
  %162 = vmatpush1.msra.mxu0 0.0
  %163 = vmatprep.subr.mxu0 0.0
  %164 = vmatpush1.msra.mxu0 0.0
  %165 = vmatprep.subr.mxu0 0.0
  %166 = vmatpush1.msra.mxu0 0.0
  %167 = vmatprep.subr.mxu0 0.0
  %168 = vmatpush1.msra.mxu0 0.0
  %169 = vmatprep.subr.mxu0 0.0
  %170 = vmatpush1.msra.mxu0 0.0
  %171 = vmatprep.subr.mxu0 0.0
  %172 = vmatpush1.msra.mxu0 0.0
  %173 = vmatprep.subr.mxu0 0.0
  %174 = vmatpush1.msra.mxu0 0.0
  %175 = vmatprep.subr.mxu0 0.0
  %176 = vmatpush1.msra.mxu0 0.0
  %177 = vmatprep.subr.mxu0 0.0
  %178 = vmatpush1.msra.mxu0 0.0
  %179 = vmatprep.subr.mxu0 0.0
  %180 = vmatpush1.msra.mxu0 0.0
  %181 = vmatprep.subr.mxu0 0.0
  %182 = vmatpush1.msra.mxu0 0.0
  %183 = vmatprep.subr.mxu0 0.0
  %184 = vmatpush1.msra.mxu0 0.0
  %185 = vmatprep.subr.mxu0 0.0
  %186 = vmatpush1.msra.mxu0 0.0
  %187 = vmatprep.mubr.f32.mxu0 0.0
  %188 = vmatmul.mubr.f32.gmra.mrb[0].mxu0 %v73
  %v189 = vpop.f32.mrb[0].mxu0
  %v190 = vadd.f32 0.0, %v189
  %v191 = vpop.f32.mrb[0].mxu0
  %192 = vmatprep.mubr.f32.mxu0 0.0
  %193 = vmatmul.mubr.f32.gmra.mrb[0].mxu0 %v76
  %v194 = vpop.f32.mrb[0].mxu0
  %v195 = vadd.f32 0.0, %v194
  %v196 = vpop.f32.mrb[0].mxu0
  %197 = vmatprep.mubr.f32.mxu0 0.0
  %198 = vmatmul.mubr.f32.gmra.mrb[0].mxu0 %v79
  %v199 = vpop.f32.mrb[0].mxu0
  %v200 = vadd.f32 0.0, %v199
  %v201 = vpop.f32.mrb[0].mxu0
  %202 = vmatprep.mubr.f32.mxu0 0.0
  %203 = vmatmul.mubr.f32.gmra.mrb[0].mxu0 %v82
  %v204 = vpop.f32.mrb[0].mxu0
  %v205 = vadd.f32 0.0, %v204
  %v206 = vpop.f32.mrb[0].mxu0
  %207 = vmatprep.mubr.f32.mxu0 0.0
  %208 = vmatmul.mubr.f32.gmra.mrb[0].mxu0 %v85
  %v209 = vpop.f32.mrb[0].mxu0
  %v210 = vadd.f32 0.0, %v209
  %v211 = vpop.f32.mrb[0].mxu0
  %212 = vmatprep.mubr.f32.mxu0 0.0
  %213 = vmatmul.mubr.f32.gmra.mrb[0].mxu0 %v88
  %v214 = vpop.f32.mrb[0].mxu0
  %v215 = vadd.f32 0.0, %v214
  %v216 = vpop.f32.mrb[0].mxu0
  %217 = vmatprep.mubr.f32.mxu0 0.0
  %218 = vmatmul.mubr.f32.gmra.mrb[0].mxu0 %v91
  %v219 = vpop.f32.mrb[0].mxu0
  %v220 = vadd.f32 0.0, %v219
  %v221 = vpop.f32.mrb[0].mxu0
  %222 = vmatprep.mubr.f32.mxu0 0.0
  %223 = vmatmul.mubr.f32.gmra.mrb[0].mxu0 %v94
  %v224 = vpop.f32.mrb[0].mxu0
  %v225 = vadd.f32 0.0, %v224
  %v226 = vpop.f32.mrb[0].mxu0
  %227 = vmatprep.mubr.f32.mxu0 0.0
  %228 = vmatmul.mubr.f32.gmra.mrb[0].mxu0 %v97
  %v229 = vpop.f32.mrb[0].mxu0
  %v230 = vadd.f32 0.0, %v229
  %v231 = vpop.f32.mrb[0].mxu0
  %232 = vmatprep.mubr.f32.mxu0 0.0
  %233 = vmatmul.mubr.f32.gmra.mrb[0].mxu0 %v100
  %v234 = vpop.f32.mrb[0].mxu0
  %v235 = vadd.f32 0.0, %v234
  %v236 = vpop.f32.mrb[0].mxu0
  %237 = vmatprep.mubr.f32.mxu0 0.0
  %238 = vmatmul.mubr.f32.gmra.mrb[0].mxu0 %v103
  %v239 = vpop.f32.mrb[0].mxu0
  %v240 = vadd.f32 0.0, %v239
  %v241 = vpop.f32.mrb[0].mxu0
  %242 = vmatprep.mubr.f32.mxu0 0.0
  %243 = vmatmul.mubr.f32.gmra.mrb[0].mxu0 %v106
  %v244 = vpop.f32.mrb[0].mxu0
  %v245 = vadd.f32 0.0, %v244
  %v246 = vpop.f32.mrb[0].mxu0
  %247 = vmatprep.mubr.f32.mxu0 0.0
  %248 = vmatmul.mubr.f32.gmra.mrb[0].mxu0 %v109
  %v249 = vpop.f32.mrb[0].mxu0
  %v250 = vadd.f32 0.0, %v249
  %v251 = vpop.f32.mrb[0].mxu0
  %252 = vmatprep.mubr.f32.mxu0 0.0
  %253 = vmatmul.mubr.f32.gmra.mrb[0].mxu0 %v112
  %v254 = vpop.f32.mrb[0].mxu0
  %v255 = vadd.f32 0.0, %v254
  %v256 = vpop.f32.mrb[0].mxu0
  %257 = vmatprep.mubr.f32.mxu0 0.0
  %258 = vmatmul.mubr.f32.gmra.mrb[0].mxu0 %v115
  %v259 = vpop.f32.mrb[0].mxu0
  %v260 = vadd.f32 0.0, %v259
  %v261 = vpop.f32.mrb[0].mxu0
  %262 = vmatprep.mubr.f32.mxu0 0.0
  %263 = vmatmul.mubr.f32.gmra.mrb[0].mxu0 %v118
  %v264 = vpop.f32.mrb[0].mxu0
  %v265 = vadd.f32 0.0, %v264
  %v266 = vpop.f32.mrb[0].mxu0
  %267 = vmatprep.mubr.f32.mxu0 0.0
  %268 = vmatmul.mubr.f32.gmra.mrb[0].mxu0 %v121
  %v269 = vpop.f32.mrb[0].mxu0
  %v270 = vadd.f32 0.0, %v269
  %v271 = vpop.f32.mrb[0].mxu0
  %272 = vdwg.mxu0
  %v273 = vld [vmem:[%s2] sm:$0xff]
  %v274 = vld [vmem:[%s2 + $0x8] sm:$0xff]
  %v275 = vld [vmem:[%s2 + $0x10] sm:$0xff]
  %v276 = vld [vmem:[%s2 + $0x18] sm:$0xff]
  %277 = vmatprep.subr.mxu0 0.0
  %278 = vmatpush1.msra.mxu0 %v273
  %279 = vmatprep.subr.mxu0 0.0
  %280 = vmatpush1.msra.mxu0 %v274
  %281 = vmatprep.subr.mxu0 0.0
  %282 = vmatpush1.msra.mxu0 %v275
  %283 = vmatprep.subr.mxu0 0.0
  %284 = vmatpush1.msra.mxu0 %v276
  %285 = vmatprep.subr.mxu0 0.0
  %286 = vmatpush1.msra.mxu0 0.0
  %287 = vmatprep.subr.mxu0 0.0
  %288 = vmatpush1.msra.mxu0 0.0
  %289 = vmatprep.subr.mxu0 0.0
  %290 = vmatpush1.msra.mxu0 0.0
  %291 = vmatprep.subr.mxu0 0.0
  %292 = vmatpush1.msra.mxu0 0.0
  %293 = vmatprep.subr.mxu0 0.0
  %294 = vmatpush1.msra.mxu0 0.0
  %295 = vmatprep.subr.mxu0 0.0
  %296 = vmatpush1.msra.mxu0 0.0
  %297 = vmatprep.subr.mxu0 0.0
  %298 = vmatpush1.msra.mxu0 0.0
  %299 = vmatprep.subr.mxu0 0.0
  %300 = vmatpush1.msra.mxu0 0.0
  %301 = vmatprep.subr.mxu0 0.0
  %302 = vmatpush1.msra.mxu0 0.0
  %303 = vmatprep.subr.mxu0 0.0
  %304 = vmatpush1.msra.mxu0 0.0
  %305 = vmatprep.subr.mxu0 0.0
  %306 = vmatpush1.msra.mxu0 0.0
  %307 = vmatprep.subr.mxu0 0.0
  %308 = vmatpush1.msra.mxu0 0.0
  %309 = vmatprep.subr.mxu0 0.0
  %310 = vmatpush1.msra.mxu0 0.0
  %311 = vmatprep.subr.mxu0 0.0
  %312 = vmatpush1.msra.mxu0 0.0
  %313 = vmatprep.subr.mxu0 0.0
  %314 = vmatpush1.msra.mxu0 0.0
  %315 = vmatprep.subr.mxu0 0.0
  %316 = vmatpush1.msra.mxu0 0.0
  %317 = vmatprep.subr.mxu0 0.0
  %318 = vmatpush1.msra.mxu0 0.0
  %319 = vmatprep.subr.mxu0 0.0
  %320 = vmatpush1.msra.mxu0 0.0
  %321 = vmatprep.subr.mxu0 0.0
  %322 = vmatpush1.msra.mxu0 0.0
  %323 = vmatprep.subr.mxu0 0.0
  %324 = vmatpush1.msra.mxu0 0.0
  %325 = vmatprep.subr.mxu0 0.0
  %326 = vmatpush1.msra.mxu0 0.0
  %327 = vmatprep.subr.mxu0 0.0
  %328 = vmatpush1.msra.mxu0 0.0
  %329 = vmatprep.subr.mxu0 0.0
  %330 = vmatpush1.msra.mxu0 0.0
  %331 = vmatprep.subr.mxu0 0.0
  %332 = vmatpush1.msra.mxu0 0.0
  %333 = vmatprep.subr.mxu0 0.0
  %334 = vmatpush1.msra.mxu0 0.0
  %335 = vmatprep.subr.mxu0 0.0
  %336 = vmatpush1.msra.mxu0 0.0
  %337 = vmatprep.subr.mxu0 0.0
  %338 = vmatpush1.msra.mxu0 0.0
  %339 = vmatprep.subr.mxu0 0.0
  %340 = vmatpush1.msra.mxu0 0.0
  %341 = vmatprep.mubr.f32.mxu0 0.0
  %342 = vmatmul.mubr.f32.gmra.mrb[0].mxu0 %v73
  %v343 = vpop.f32.mrb[0].mxu0
  %v344 = vadd.f32 0.0, %v343
  %v345 = vpop.f32.mrb[0].mxu0
  %346 = vmatprep.mubr.f32.mxu0 0.0
  %347 = vmatmul.mubr.f32.gmra.mrb[0].mxu0 %v76
  %v348 = vpop.f32.mrb[0].mxu0
  %v349 = vadd.f32 0.0, %v348
  %v350 = vpop.f32.mrb[0].mxu0
  %351 = vmatprep.mubr.f32.mxu0 0.0
  %352 = vmatmul.mubr.f32.gmra.mrb[0].mxu0 %v79
  %v353 = vpop.f32.mrb[0].mxu0
  %v354 = vadd.f32 0.0, %v353
  %v355 = vpop.f32.mrb[0].mxu0
  %356 = vmatprep.mubr.f32.mxu0 0.0
  %357 = vmatmul.mubr.f32.gmra.mrb[0].mxu0 %v82
  %v358 = vpop.f32.mrb[0].mxu0
  %v359 = vadd.f32 0.0, %v358
  %v360 = vpop.f32.mrb[0].mxu0
  %361 = vmatprep.mubr.f32.mxu0 0.0
  %362 = vmatmul.mubr.f32.gmra.mrb[0].mxu0 %v85
  %v363 = vpop.f32.mrb[0].mxu0
  %v364 = vadd.f32 0.0, %v363
  %v365 = vpop.f32.mrb[0].mxu0
  %366 = vmatprep.mubr.f32.mxu0 0.0
  %367 = vmatmul.mubr.f32.gmra.mrb[0].mxu0 %v88
  %v368 = vpop.f32.mrb[0].mxu0
  %v369 = vadd.f32 0.0, %v368
  %v370 = vpop.f32.mrb[0].mxu0
  %371 = vmatprep.mubr.f32.mxu0 0.0
  %372 = vmatmul.mubr.f32.gmra.mrb[0].mxu0 %v91
  %v373 = vpop.f32.mrb[0].mxu0
  %v374 = vadd.f32 0.0, %v373
  %v375 = vpop.f32.mrb[0].mxu0
  %376 = vmatprep.mubr.f32.mxu0 0.0
  %377 = vmatmul.mubr.f32.gmra.mrb[0].mxu0 %v94
  %v378 = vpop.f32.mrb[0].mxu0
  %v379 = vadd.f32 0.0, %v378
  %v380 = vpop.f32.mrb[0].mxu0
  %381 = vmatprep.mubr.f32.mxu0 0.0
  %382 = vmatmul.mubr.f32.gmra.mrb[0].mxu0 %v97
  %v383 = vpop.f32.mrb[0].mxu0
  %v384 = vadd.f32 0.0, %v383
  %v385 = vpop.f32.mrb[0].mxu0
  %386 = vmatprep.mubr.f32.mxu0 0.0
  %387 = vmatmul.mubr.f32.gmra.mrb[0].mxu0 %v100
  %v388 = vpop.f32.mrb[0].mxu0
  %v389 = vadd.f32 0.0, %v388
  %v390 = vpop.f32.mrb[0].mxu0
  %391 = vmatprep.mubr.f32.mxu0 0.0
  %392 = vmatmul.mubr.f32.gmra.mrb[0].mxu0 %v103
  %v393 = vpop.f32.mrb[0].mxu0
  %v394 = vadd.f32 0.0, %v393
  %v395 = vpop.f32.mrb[0].mxu0
  %396 = vmatprep.mubr.f32.mxu0 0.0
  %397 = vmatmul.mubr.f32.gmra.mrb[0].mxu0 %v106
  %v398 = vpop.f32.mrb[0].mxu0
  %v399 = vadd.f32 0.0, %v398
  %v400 = vpop.f32.mrb[0].mxu0
  %401 = vmatprep.mubr.f32.mxu0 0.0
  %402 = vmatmul.mubr.f32.gmra.mrb[0].mxu0 %v109
  %v403 = vpop.f32.mrb[0].mxu0
  %v404 = vadd.f32 0.0, %v403
  %v405 = vpop.f32.mrb[0].mxu0
  %406 = vmatprep.mubr.f32.mxu0 0.0
  %407 = vmatmul.mubr.f32.gmra.mrb[0].mxu0 %v112
  %v408 = vpop.f32.mrb[0].mxu0
  %v409 = vadd.f32 0.0, %v408
  %v410 = vpop.f32.mrb[0].mxu0
  %411 = vmatprep.mubr.f32.mxu0 0.0
  %412 = vmatmul.mubr.f32.gmra.mrb[0].mxu0 %v115
  %v413 = vpop.f32.mrb[0].mxu0
  %v414 = vadd.f32 0.0, %v413
  %v415 = vpop.f32.mrb[0].mxu0
  %416 = vmatprep.mubr.f32.mxu0 0.0
  %417 = vmatmul.mubr.f32.gmra.mrb[0].mxu0 %v118
  %v418 = vpop.f32.mrb[0].mxu0
  %v419 = vadd.f32 0.0, %v418
  %v420 = vpop.f32.mrb[0].mxu0
  %421 = vmatprep.mubr.f32.mxu0 0.0
  %422 = vmatmul.mubr.f32.gmra.mrb[0].mxu0 %v121
  %v423 = vpop.f32.mrb[0].mxu0
  %v424 = vadd.f32 0.0, %v423
  %v425 = vpop.f32.mrb[0].mxu0
  %426 = vdwg.mxu0
  %427 = vst [vmem:[#allocation2] sm:$0xff] %v190
  %428 = vst [vmem:[#allocation2 + $0x8] sm:$0xff] %v195
  %429 = vst [vmem:[#allocation2 + $0x10] sm:$0xff] %v200
  %430 = vst [vmem:[#allocation2 + $0x18] sm:$0xff] %v205
  %431 = vst [vmem:[#allocation2 + $0x20] sm:$0xff] %v210
  %432 = vst [vmem:[#allocation2 + $0x28] sm:$0xff] %v215
  %433 = vst [vmem:[#allocation2 + $0x30] sm:$0xff] %v220
  %434 = vst [vmem:[#allocation2 + $0x38] sm:$0xff] %v225
  %435 = vst [vmem:[#allocation2 + $0x40] sm:$0xff] %v230
  %436 = vst [vmem:[#allocation2 + $0x48] sm:$0xff] %v235
  %437 = vst [vmem:[#allocation2 + $0x50] sm:$0xff] %v240
  %438 = vst [vmem:[#allocation2 + $0x58] sm:$0xff] %v245
  %439 = vst [vmem:[#allocation2 + $0x60] sm:$0xff] %v250
  %440 = vst [vmem:[#allocation2 + $0x68] sm:$0xff] %v255
  %441 = vst [vmem:[#allocation2 + $0x70] sm:$0xff] %v260
  %442 = vst [vmem:[#allocation2 + $0x78] sm:$0xff] %v265
  %443 = vst [vmem:[#allocation2 + $0x80] sm:$0xff] %v270
  %444 = vst [vmem:[#allocation3] sm:$0xff] %v344
  %445 = vst [vmem:[#allocation3 + $0x8] sm:$0xff] %v349
  %446 = vst [vmem:[#allocation3 + $0x10] sm:$0xff] %v354
  %447 = vst [vmem:[#allocation3 + $0x18] sm:$0xff] %v359
  %448 = vst [vmem:[#allocation3 + $0x20] sm:$0xff] %v364
  %449 = vst [vmem:[#allocation3 + $0x28] sm:$0xff] %v369
  %450 = vst [vmem:[#allocation3 + $0x30] sm:$0xff] %v374
  %451 = vst [vmem:[#allocation3 + $0x38] sm:$0xff] %v379
  %452 = vst [vmem:[#allocation3 + $0x40] sm:$0xff] %v384
  %453 = vst [vmem:[#allocation3 + $0x48] sm:$0xff] %v389
  %454 = vst [vmem:[#allocation3 + $0x50] sm:$0xff] %v394
  %455 = vst [vmem:[#allocation3 + $0x58] sm:$0xff] %v399
  %456 = vst [vmem:[#allocation3 + $0x60] sm:$0xff] %v404
  %457 = vst [vmem:[#allocation3 + $0x68] sm:$0xff] %v409
  %458 = vst [vmem:[#allocation3 + $0x70] sm:$0xff] %v414
  %459 = vst [vmem:[#allocation3 + $0x78] sm:$0xff] %v419
  %460 = vst [vmem:[#allocation3 + $0x80] sm:$0xff] %v424
  %v461 = vmul.f32 %v190, %v190
  %v462 = vmul.f32 %v195, %v195
  %v463 = vmul.f32 %v200, %v200
  %v464 = vmul.f32 %v205, %v205
  %v465 = vmul.f32 %v210, %v210
  %v466 = vmul.f32 %v215, %v215
  %v467 = vmul.f32 %v220, %v220
  %v468 = vmul.f32 %v225, %v225
  %v469 = vmul.f32 %v230, %v230
  %v470 = vmul.f32 %v235, %v235
  %v471 = vmul.f32 %v240, %v240
  %v472 = vmul.f32 %v245, %v245
  %v473 = vmul.f32 %v250, %v250
  %v474 = vmul.f32 %v255, %v255
  %v475 = vmul.f32 %v260, %v260
  %v476 = vmul.f32 %v265, %v265
  %v477 = vmul.f32 %v270, %v270
  %v478 = vmul.f32 %v344, %v344
  %v479 = vmul.f32 %v349, %v349
  %v480 = vmul.f32 %v354, %v354
  %v481 = vmul.f32 %v359, %v359
  %v482 = vmul.f32 %v364, %v364
  %v483 = vmul.f32 %v369, %v369
  %v484 = vmul.f32 %v374, %v374
  %v485 = vmul.f32 %v379, %v379
  %v486 = vmul.f32 %v384, %v384
  %v487 = vmul.f32 %v389, %v389
  %v488 = vmul.f32 %v394, %v394
  %v489 = vmul.f32 %v399, %v399
  %v490 = vmul.f32 %v404, %v404
  %v491 = vmul.f32 %v409, %v409
  %v492 = vmul.f32 %v414, %v414
  %v493 = vmul.f32 %v419, %v419
  %v494 = vmul.f32 %v424, %v424
  %v495 = vadd.f32 %v461, %v478
  %v496 = vadd.f32 %v462, %v479
  %v497 = vadd.f32 %v463, %v480
  %v498 = vadd.f32 %v464, %v481
  %v499 = vadd.f32 %v465, %v482
  %v500 = vadd.f32 %v466, %v483
  %v501 = vadd.f32 %v467, %v484
  %v502 = vadd.f32 %v468, %v485
  %v503 = vadd.f32 %v469, %v486
  %v504 = vadd.f32 %v470, %v487
  %v505 = vadd.f32 %v471, %v488
  %v506 = vadd.f32 %v472, %v489
  %v507 = vadd.f32 %v473, %v490
  %v508 = vadd.f32 %v474, %v491
  %v509 = vadd.f32 %v475, %v492
  %v510 = vadd.f32 %v476, %v493
  %v511 = vadd.f32 %v477, %v494
  %v512 = vrsqrt.pop %v495
  %v513 = vmul.f32 %v495, %v512
  %vm514 = vcmp.eq.f32.partialorder %v495, inf
  %v515 = vsel %vm514, %v495, %v513
  %vm516 = vcmp.eq.f32.partialorder %v495, 0.0
  %v517 = vand.u32 %v495, 2147483648
  %v518 = vsel %vm516, %v517, %v515
  %v519 = vrsqrt.pop %v496
  %v520 = vmul.f32 %v496, %v519
  %vm521 = vcmp.eq.f32.partialorder %v496, inf
  %v522 = vsel %vm521, %v496, %v520
  %vm523 = vcmp.eq.f32.partialorder %v496, 0.0
  %v524 = vand.u32 %v496, 2147483648
  %v525 = vsel %vm523, %v524, %v522
  %v526 = vrsqrt.pop %v497
  %v527 = vmul.f32 %v497, %v526
  %vm528 = vcmp.eq.f32.partialorder %v497, inf
  %v529 = vsel %vm528, %v497, %v527
  %vm530 = vcmp.eq.f32.partialorder %v497, 0.0
  %v531 = vand.u32 %v497, 2147483648
  %v532 = vsel %vm530, %v531, %v529
  %v533 = vrsqrt.pop %v498
  %v534 = vmul.f32 %v498, %v533
  %vm535 = vcmp.eq.f32.partialorder %v498, inf
  %v536 = vsel %vm535, %v498, %v534
  %vm537 = vcmp.eq.f32.partialorder %v498, 0.0
  %v538 = vand.u32 %v498, 2147483648
  %v539 = vsel %vm537, %v538, %v536
  %v540 = vrsqrt.pop %v499
  %v541 = vmul.f32 %v499, %v540
  %vm542 = vcmp.eq.f32.partialorder %v499, inf
  %v543 = vsel %vm542, %v499, %v541
  %vm544 = vcmp.eq.f32.partialorder %v499, 0.0
  %v545 = vand.u32 %v499, 2147483648
  %v546 = vsel %vm544, %v545, %v543
  %v547 = vrsqrt.pop %v500
  %v548 = vmul.f32 %v500, %v547
  %vm549 = vcmp.eq.f32.partialorder %v500, inf
  %v550 = vsel %vm549, %v500, %v548
  %vm551 = vcmp.eq.f32.partialorder %v500, 0.0
  %v552 = vand.u32 %v500, 2147483648
  %v553 = vsel %vm551, %v552, %v550
  %v554 = vrsqrt.pop %v501
  %v555 = vmul.f32 %v501, %v554
  %vm556 = vcmp.eq.f32.partialorder %v501, inf
  %v557 = vsel %vm556, %v501, %v555
  %vm558 = vcmp.eq.f32.partialorder %v501, 0.0
  %v559 = vand.u32 %v501, 2147483648
  %v560 = vsel %vm558, %v559, %v557
  %v561 = vrsqrt.pop %v502
  %v562 = vmul.f32 %v502, %v561
  %vm563 = vcmp.eq.f32.partialorder %v502, inf
  %v564 = vsel %vm563, %v502, %v562
  %vm565 = vcmp.eq.f32.partialorder %v502, 0.0
  %v566 = vand.u32 %v502, 2147483648
  %v567 = vsel %vm565, %v566, %v564
  %v568 = vrsqrt.pop %v503
  %v569 = vmul.f32 %v503, %v568
  %vm570 = vcmp.eq.f32.partialorder %v503, inf
  %v571 = vsel %vm570, %v503, %v569
  %vm572 = vcmp.eq.f32.partialorder %v503, 0.0
  %v573 = vand.u32 %v503, 2147483648
  %v574 = vsel %vm572, %v573, %v571
  %v575 = vrsqrt.pop %v504
  %v576 = vmul.f32 %v504, %v575
  %vm577 = vcmp.eq.f32.partialorder %v504, inf
  %v578 = vsel %vm577, %v504, %v576
  %vm579 = vcmp.eq.f32.partialorder %v504, 0.0
  %v580 = vand.u32 %v504, 2147483648
  %v581 = vsel %vm579, %v580, %v578
  %v582 = vrsqrt.pop %v505
  %v583 = vmul.f32 %v505, %v582
  %vm584 = vcmp.eq.f32.partialorder %v505, inf
  %v585 = vsel %vm584, %v505, %v583
  %vm586 = vcmp.eq.f32.partialorder %v505, 0.0
  %v587 = vand.u32 %v505, 2147483648
  %v588 = vsel %vm586, %v587, %v585
  %v589 = vrsqrt.pop %v506
  %v590 = vmul.f32 %v506, %v589
  %vm591 = vcmp.eq.f32.partialorder %v506, inf
  %v592 = vsel %vm591, %v506, %v590
  %vm593 = vcmp.eq.f32.partialorder %v506, 0.0
  %v594 = vand.u32 %v506, 2147483648
  %v595 = vsel %vm593, %v594, %v592
  %v596 = vrsqrt.pop %v507
  %v597 = vmul.f32 %v507, %v596
  %vm598 = vcmp.eq.f32.partialorder %v507, inf
  %v599 = vsel %vm598, %v507, %v597
  %vm600 = vcmp.eq.f32.partialorder %v507, 0.0
  %v601 = vand.u32 %v507, 2147483648
  %v602 = vsel %vm600, %v601, %v599
  %v603 = vrsqrt.pop %v508
  %v604 = vmul.f32 %v508, %v603
  %vm605 = vcmp.eq.f32.partialorder %v508, inf
  %v606 = vsel %vm605, %v508, %v604
  %vm607 = vcmp.eq.f32.partialorder %v508, 0.0
  %v608 = vand.u32 %v508, 2147483648
  %v609 = vsel %vm607, %v608, %v606
  %v610 = vrsqrt.pop %v509
  %v611 = vmul.f32 %v509, %v610
  %vm612 = vcmp.eq.f32.partialorder %v509, inf
  %v613 = vsel %vm612, %v509, %v611
  %vm614 = vcmp.eq.f32.partialorder %v509, 0.0
  %v615 = vand.u32 %v509, 2147483648
  %v616 = vsel %vm614, %v615, %v613
  %v617 = vrsqrt.pop %v510
  %v618 = vmul.f32 %v510, %v617
  %vm619 = vcmp.eq.f32.partialorder %v510, inf
  %v620 = vsel %vm619, %v510, %v618
  %vm621 = vcmp.eq.f32.partialorder %v510, 0.0
  %v622 = vand.u32 %v510, 2147483648
  %v623 = vsel %vm621, %v622, %v620
  %v624 = vrsqrt.pop %v511
  %v625 = vmul.f32 %v511, %v624
  %vm626 = vcmp.eq.f32.partialorder %v511, inf
  %v627 = vsel %vm626, %v511, %v625
  %vm628 = vcmp.eq.f32.partialorder %v511, 0.0
  %v629 = vand.u32 %v511, 2147483648
  %v630 = vsel %vm628, %v629, %v627
  %v631 = vld [vmem:[%s3] sm:$0xff]
  %v632 = vld [vmem:[%s3 + $0x8] sm:$0xff]
  %v633 = vld [vmem:[%s3 + $0x10] sm:$0xff]
  %v634 = vld [vmem:[%s3 + $0x18] sm:$0xff]
  %v635 = vld [vmem:[%s3 + $0x20] sm:$0xff]
  %v636 = vld [vmem:[%s3 + $0x28] sm:$0xff]
  %v637 = vld [vmem:[%s3 + $0x30] sm:$0xff]
  %v638 = vld [vmem:[%s3 + $0x38] sm:$0xff]
  %v639 = vld [vmem:[%s3 + $0x40] sm:$0xff]
  %v640 = vld [vmem:[%s3 + $0x48] sm:$0xff]
  %v641 = vld [vmem:[%s3 + $0x50] sm:$0xff]
  %v642 = vld [vmem:[%s3 + $0x58] sm:$0xff]
  %v643 = vld [vmem:[%s3 + $0x60] sm:$0xff]
  %v644 = vld [vmem:[%s3 + $0x68] sm:$0xff]
  %v645 = vld [vmem:[%s3 + $0x70] sm:$0xff]
  %v646 = vld [vmem:[%s3 + $0x78] sm:$0xff]
  %v647 = vld [vmem:[%s4] sm:$0x1]
  %v649 = vlaneseq
  %v650 = vshrl.u32 %v649, 7
  %v651 = vsub.s32 0, %v650
  %v652 = vrot.slane %v647, %v651
  %654 = vmatprep.subr.mxu0 0.0
  %655 = vmatpush1.msra.mxu0 %v631
  %656 = vmatprep.subr.mxu0 0.0
  %657 = vmatpush1.msra.mxu0 %v632
  %658 = vmatprep.subr.mxu0 0.0
  %659 = vmatpush1.msra.mxu0 %v633
  %660 = vmatprep.subr.mxu0 0.0
  %661 = vmatpush1.msra.mxu0 %v634
  %662 = vmatprep.subr.mxu0 0.0
  %663 = vmatpush1.msra.mxu0 %v635
  %664 = vmatprep.subr.mxu0 0.0
  %665 = vmatpush1.msra.mxu0 %v636
  %666 = vmatprep.subr.mxu0 0.0
  %667 = vmatpush1.msra.mxu0 %v637
  %668 = vmatprep.subr.mxu0 0.0
  %669 = vmatpush1.msra.mxu0 %v638
  %670 = vmatprep.subr.mxu0 0.0
  %671 = vmatpush1.msra.mxu0 %v639
  %672 = vmatprep.subr.mxu0 0.0
  %673 = vmatpush1.msra.mxu0 %v640
  %674 = vmatprep.subr.mxu0 0.0
  %675 = vmatpush1.msra.mxu0 %v641
  %676 = vmatprep.subr.mxu0 0.0
  %677 = vmatpush1.msra.mxu0 %v642
  %678 = vmatprep.subr.mxu0 0.0
  %679 = vmatpush1.msra.mxu0 %v643
  %680 = vmatprep.subr.mxu0 0.0
  %681 = vmatpush1.msra.mxu0 %v644
  %682 = vmatprep.subr.mxu0 0.0
  %683 = vmatpush1.msra.mxu0 %v645
  %684 = vmatprep.subr.mxu0 0.0
  %685 = vmatpush1.msra.mxu0 %v646
  %686 = vmatprep.subr.mxu0 0.0
  %687 = vmatpush1.msra.mxu0 0.0
  %688 = vmatprep.subr.mxu0 0.0
  %689 = vmatpush1.msra.mxu0 0.0
  %690 = vmatprep.subr.mxu0 0.0
  %691 = vmatpush1.msra.mxu0 0.0
  %692 = vmatprep.subr.mxu0 0.0
  %693 = vmatpush1.msra.mxu0 0.0
  %694 = vmatprep.subr.mxu0 0.0
  %695 = vmatpush1.msra.mxu0 0.0
  %696 = vmatprep.subr.mxu0 0.0
  %697 = vmatpush1.msra.mxu0 0.0
  %698 = vmatprep.subr.mxu0 0.0
  %699 = vmatpush1.msra.mxu0 0.0
  %700 = vmatprep.subr.mxu0 0.0
  %701 = vmatpush1.msra.mxu0 0.0
  %702 = vmatprep.subr.mxu0 0.0
  %703 = vmatpush1.msra.mxu0 0.0
  %704 = vmatprep.subr.mxu0 0.0
  %705 = vmatpush1.msra.mxu0 0.0
  %706 = vmatprep.subr.mxu0 0.0
  %707 = vmatpush1.msra.mxu0 0.0
  %708 = vmatprep.subr.mxu0 0.0
  %709 = vmatpush1.msra.mxu0 0.0
  %710 = vmatprep.subr.mxu0 0.0
  %711 = vmatpush1.msra.mxu0 0.0
  %712 = vmatprep.subr.mxu0 0.0
  %713 = vmatpush1.msra.mxu0 0.0
  %714 = vmatprep.subr.mxu0 0.0
  %715 = vmatpush1.msra.mxu0 0.0
  %716 = vmatprep.subr.mxu0 0.0
  %717 = vmatpush1.msra.mxu0 0.0
  %718 = vmatprep.mubr.f32.mxu0 0.0
  %719 = vmatmul.mubr.f32.gmra.mrb[0].mxu0 %v518
  %v720 = vpop.f32.mrb[0].mxu0
  %v721 = vadd.f32 %v652, %v720
  %v722 = vpop.f32.mrb[0].mxu0
  %723 = vmatprep.mubr.f32.mxu0 0.0
  %724 = vmatmul.mubr.f32.gmra.mrb[0].mxu0 %v525
  %v725 = vpop.f32.mrb[0].mxu0
  %v726 = vadd.f32 %v652, %v725
  %v727 = vpop.f32.mrb[0].mxu0
  %728 = vmatprep.mubr.f32.mxu0 0.0
  %729 = vmatmul.mubr.f32.gmra.mrb[0].mxu0 %v532
  %v730 = vpop.f32.mrb[0].mxu0
  %v731 = vadd.f32 %v652, %v730
  %v732 = vpop.f32.mrb[0].mxu0
  %733 = vmatprep.mubr.f32.mxu0 0.0
  %734 = vmatmul.mubr.f32.gmra.mrb[0].mxu0 %v539
  %v735 = vpop.f32.mrb[0].mxu0
  %v736 = vadd.f32 %v652, %v735
  %v737 = vpop.f32.mrb[0].mxu0
  %738 = vmatprep.mubr.f32.mxu0 0.0
  %739 = vmatmul.mubr.f32.gmra.mrb[0].mxu0 %v546
  %v740 = vpop.f32.mrb[0].mxu0
  %v741 = vadd.f32 %v652, %v740
  %v742 = vpop.f32.mrb[0].mxu0
  %743 = vmatprep.mubr.f32.mxu0 0.0
  %744 = vmatmul.mubr.f32.gmra.mrb[0].mxu0 %v553
  %v745 = vpop.f32.mrb[0].mxu0
  %v746 = vadd.f32 %v652, %v745
  %v747 = vpop.f32.mrb[0].mxu0
  %748 = vmatprep.mubr.f32.mxu0 0.0
  %749 = vmatmul.mubr.f32.gmra.mrb[0].mxu0 %v560
  %v750 = vpop.f32.mrb[0].mxu0
  %v751 = vadd.f32 %v652, %v750
  %v752 = vpop.f32.mrb[0].mxu0
  %753 = vmatprep.mubr.f32.mxu0 0.0
  %754 = vmatmul.mubr.f32.gmra.mrb[0].mxu0 %v567
  %v755 = vpop.f32.mrb[0].mxu0
  %v756 = vadd.f32 %v652, %v755
  %v757 = vpop.f32.mrb[0].mxu0
  %758 = vmatprep.mubr.f32.mxu0 0.0
  %759 = vmatmul.mubr.f32.gmra.mrb[0].mxu0 %v574
  %v760 = vpop.f32.mrb[0].mxu0
  %v761 = vadd.f32 %v652, %v760
  %v762 = vpop.f32.mrb[0].mxu0
  %763 = vmatprep.mubr.f32.mxu0 0.0
  %764 = vmatmul.mubr.f32.gmra.mrb[0].mxu0 %v581
  %v765 = vpop.f32.mrb[0].mxu0
  %v766 = vadd.f32 %v652, %v765
  %v767 = vpop.f32.mrb[0].mxu0
  %768 = vmatprep.mubr.f32.mxu0 0.0
  %769 = vmatmul.mubr.f32.gmra.mrb[0].mxu0 %v588
  %v770 = vpop.f32.mrb[0].mxu0
  %v771 = vadd.f32 %v652, %v770
  %v772 = vpop.f32.mrb[0].mxu0
  %773 = vmatprep.mubr.f32.mxu0 0.0
  %774 = vmatmul.mubr.f32.gmra.mrb[0].mxu0 %v595
  %v775 = vpop.f32.mrb[0].mxu0
  %v776 = vadd.f32 %v652, %v775
  %v777 = vpop.f32.mrb[0].mxu0
  %778 = vmatprep.mubr.f32.mxu0 0.0
  %779 = vmatmul.mubr.f32.gmra.mrb[0].mxu0 %v602
  %v780 = vpop.f32.mrb[0].mxu0
  %v781 = vadd.f32 %v652, %v780
  %v782 = vpop.f32.mrb[0].mxu0
  %783 = vmatprep.mubr.f32.mxu0 0.0
  %784 = vmatmul.mubr.f32.gmra.mrb[0].mxu0 %v609
  %v785 = vpop.f32.mrb[0].mxu0
  %v786 = vadd.f32 %v652, %v785
  %v787 = vpop.f32.mrb[0].mxu0
  %788 = vmatprep.mubr.f32.mxu0 0.0
  %789 = vmatmul.mubr.f32.gmra.mrb[0].mxu0 %v616
  %v790 = vpop.f32.mrb[0].mxu0
  %v791 = vadd.f32 %v652, %v790
  %v792 = vpop.f32.mrb[0].mxu0
  %793 = vmatprep.mubr.f32.mxu0 0.0
  %794 = vmatmul.mubr.f32.gmra.mrb[0].mxu0 %v623
  %v795 = vpop.f32.mrb[0].mxu0
  %v796 = vadd.f32 %v652, %v795
  %v797 = vpop.f32.mrb[0].mxu0
  %798 = vmatprep.mubr.f32.mxu0 0.0
  %799 = vmatmul.mubr.f32.gmra.mrb[0].mxu0 %v630
  %v800 = vpop.f32.mrb[0].mxu0
  %v801 = vadd.f32 %v652, %v800
  %v802 = vpop.f32.mrb[0].mxu0
  %803 = vdwg.mxu0
  %804 = vst [vmem:[#allocation4] sm:$0xff] %v721
  %805 = vst [vmem:[#allocation4 + $0x8] sm:$0xff] %v726
  %806 = vst [vmem:[#allocation4 + $0x10] sm:$0xff] %v731
  %807 = vst [vmem:[#allocation4 + $0x18] sm:$0xff] %v736
  %808 = vst [vmem:[#allocation4 + $0x20] sm:$0xff] %v741
  %809 = vst [vmem:[#allocation4 + $0x28] sm:$0xff] %v746
  %810 = vst [vmem:[#allocation4 + $0x30] sm:$0xff] %v751
  %811 = vst [vmem:[#allocation4 + $0x38] sm:$0xff] %v756
  %812 = vst [vmem:[#allocation4 + $0x40] sm:$0xff] %v761
  %813 = vst [vmem:[#allocation4 + $0x48] sm:$0xff] %v766
  %814 = vst [vmem:[#allocation4 + $0x50] sm:$0xff] %v771
  %815 = vst [vmem:[#allocation4 + $0x58] sm:$0xff] %v776
  %816 = vst [vmem:[#allocation4 + $0x60] sm:$0xff] %v781
  %817 = vst [vmem:[#allocation4 + $0x68] sm:$0xff] %v786
  %818 = vst [vmem:[#allocation4 + $0x70] sm:$0xff] %v791
  %819 = vst [vmem:[#allocation4 + $0x78] sm:$0xff] %v796
  %820 = vst [vmem:[#allocation4 + $0x80] sm:$0xff] %v801
  %v821 = vld [vmem:[%s5] sm:$0xff]
  %v822 = vld [vmem:[%s5 + $0x8] sm:$0xff]
  %v823 = vld [vmem:[%s5 + $0x10] sm:$0xff]
  %v824 = vld [vmem:[%s5 + $0x18] sm:$0xff]
  %v825 = vld [vmem:[%s6] sm:$0x1]
  %v826 = vld [vmem:[%s7] sm:$0xff]
  %v827 = vld [vmem:[%s7 + $0x8] sm:$0xff]
  %v828 = vld [vmem:[%s7 + $0x10] sm:$0xff]
  %v829 = vld [vmem:[%s7 + $0x18] sm:$0xff]
  %v830 = vld [vmem:[%s8] sm:$0x1]
  %v831 = vld [vmem:[%s9] sm:$0xff]
  %v832 = vld [vmem:[%s9 + $0x8] sm:$0xff]
  %v833 = vld [vmem:[%s9 + $0x10] sm:$0xff]
  %v834 = vld [vmem:[%s9 + $0x18] sm:$0xff]
  %v835 = vld [vmem:[%s10] sm:$0x1]
  %v837 = vsel %vm71, 0.0, 0
  %839 = vmatprep.subr.mxu0 0.0
  %840 = vmatpush1.msra.mxu0 %v821
  %841 = vmatprep.subr.mxu0 0.0
  %842 = vmatpush1.msra.mxu0 %v822
  %843 = vmatprep.subr.mxu0 0.0
  %844 = vmatpush1.msra.mxu0 %v823
  %845 = vmatprep.subr.mxu0 0.0
  %846 = vmatpush1.msra.mxu0 %v824
  %847 = vmatprep.subr.mxu0 0.0
  %848 = vmatpush1.msra.mxu0 0.0
  %849 = vmatprep.subr.mxu0 0.0
  %850 = vmatpush1.msra.mxu0 0.0
  %851 = vmatprep.subr.mxu0 0.0
  %852 = vmatpush1.msra.mxu0 0.0
  %853 = vmatprep.subr.mxu0 0.0
  %854 = vmatpush1.msra.mxu0 0.0
  %855 = vmatprep.subr.mxu0 0.0
  %856 = vmatpush1.msra.mxu0 0.0
  %857 = vmatprep.subr.mxu0 0.0
  %858 = vmatpush1.msra.mxu0 0.0
  %859 = vmatprep.subr.mxu0 0.0
  %860 = vmatpush1.msra.mxu0 0.0
  %861 = vmatprep.subr.mxu0 0.0
  %862 = vmatpush1.msra.mxu0 0.0
  %863 = vmatprep.subr.mxu0 0.0
  %864 = vmatpush1.msra.mxu0 0.0
  %865 = vmatprep.subr.mxu0 0.0
  %866 = vmatpush1.msra.mxu0 0.0
  %867 = vmatprep.subr.mxu0 0.0
  %868 = vmatpush1.msra.mxu0 0.0
  %869 = vmatprep.subr.mxu0 0.0
  %870 = vmatpush1.msra.mxu0 0.0
  %871 = vmatprep.subr.mxu0 0.0
  %872 = vmatpush1.msra.mxu0 0.0
  %873 = vmatprep.subr.mxu0 0.0
  %874 = vmatpush1.msra.mxu0 0.0
  %875 = vmatprep.subr.mxu0 0.0
  %876 = vmatpush1.msra.mxu0 0.0
  %877 = vmatprep.subr.mxu0 0.0
  %878 = vmatpush1.msra.mxu0 0.0
  %879 = vmatprep.subr.mxu0 0.0
  %880 = vmatpush1.msra.mxu0 0.0
  %881 = vmatprep.subr.mxu0 0.0
  %882 = vmatpush1.msra.mxu0 0.0
  %883 = vmatprep.subr.mxu0 0.0
  %884 = vmatpush1.msra.mxu0 0.0
  %885 = vmatprep.subr.mxu0 0.0
  %886 = vmatpush1.msra.mxu0 0.0
  %887 = vmatprep.subr.mxu0 0.0
  %888 = vmatpush1.msra.mxu0 0.0
  %889 = vmatprep.subr.mxu0 0.0
  %890 = vmatpush1.msra.mxu0 0.0
  %891 = vmatprep.subr.mxu0 0.0
  %892 = vmatpush1.msra.mxu0 0.0
  %893 = vmatprep.subr.mxu0 0.0
  %894 = vmatpush1.msra.mxu0 0.0
  %895 = vmatprep.subr.mxu0 0.0
  %896 = vmatpush1.msra.mxu0 0.0
  %897 = vmatprep.subr.mxu0 0.0
  %898 = vmatpush1.msra.mxu0 0.0
  %899 = vmatprep.subr.mxu0 0.0
  %900 = vmatpush1.msra.mxu0 0.0
  %901 = vmatprep.subr.mxu0 0.0
  %902 = vmatpush1.msra.mxu0 0.0
  %903 = vmatprep.mubr.f32.mxu0 0.0
  %904 = vmatmul.mubr.f32.gmra.mrb[0].mxu0 %v837
  %v905 = vpop.f32.mrb[0].mxu0
  %v906 = vadd.f32 0.0, %v905
  %v907 = vpop.f32.mrb[0].mxu0
  %908 = vdwg.mxu0
  %v909 = vld [vmem:[#allocation4] sm:$0xff]
  %v910 = vadd.f32 %v909, %v906
  %v911 = vxor.u32 %v910, 2147483648
  %v912 = vmul.f32 %v911, 1.442695
  %v913 = vpow.pop %v912
  %v914 = vadd.f32 %v913, 1.0
  %v915 = vrcp.pop %v914
  %v916 = vmul.f32 1.0, %v915
  %v918 = vlaneseq
  %v919 = vshrl.u32 %v918, 7
  %v920 = vsub.s32 0, %v919
  %v921 = vrot.slane %v825, %v920
  %922 = vrot.lane.b32.xlu0 %v921, 64
  %v923 = vpop.permute.xlu0 %922
  %v925 = vadd.f32 %v906, %v923
  %927 = vrot.lane.b32.xlu0 %v925, 64
  %v928 = vpop.permute.xlu0 %927
  %v930 = vmul.f32 %v916, %v928
  %932 = vrot.lane.b32.xlu0 %v930, 64
  %v933 = vpop.permute.xlu0 %932
  %v935 = vadd.f32 %v909, %v933
  %v936 = vtanh.pop %v935
  %v937 = vsub.f32 1.0, %v916
  %939 = vrot.lane.b32.xlu0 %v936, 96
  %v940 = vpop.permute.xlu0 %939
  %v942 = vmul.f32 %v937, %v940
  %v943 = vmul.f32 %v916, 0.0
  %v944 = vadd.f32 %v942, %v943
  %946 = vrot.lane.b32.xlu0 %v944, 96
  %v947 = vpop.permute.xlu0 %946
  %v948 = vsel %vm71, %v947, 0
  %950 = vmatprep.subr.mxu0 0.0
  %951 = vmatpush1.msra.mxu0 %v821
  %952 = vmatprep.subr.mxu0 0.0
  %953 = vmatpush1.msra.mxu0 %v822
  %954 = vmatprep.subr.mxu0 0.0
  %955 = vmatpush1.msra.mxu0 %v823
  %956 = vmatprep.subr.mxu0 0.0
  %957 = vmatpush1.msra.mxu0 %v824
  %958 = vmatprep.subr.mxu0 0.0
  %959 = vmatpush1.msra.mxu0 0.0
  %960 = vmatprep.subr.mxu0 0.0
  %961 = vmatpush1.msra.mxu0 0.0
  %962 = vmatprep.subr.mxu0 0.0
  %963 = vmatpush1.msra.mxu0 0.0
  %964 = vmatprep.subr.mxu0 0.0
  %965 = vmatpush1.msra.mxu0 0.0
  %966 = vmatprep.subr.mxu0 0.0
  %967 = vmatpush1.msra.mxu0 0.0
  %968 = vmatprep.subr.mxu0 0.0
  %969 = vmatpush1.msra.mxu0 0.0
  %970 = vmatprep.subr.mxu0 0.0
  %971 = vmatpush1.msra.mxu0 0.0
  %972 = vmatprep.subr.mxu0 0.0
  %973 = vmatpush1.msra.mxu0 0.0
  %974 = vmatprep.subr.mxu0 0.0
  %975 = vmatpush1.msra.mxu0 0.0
  %976 = vmatprep.subr.mxu0 0.0
  %977 = vmatpush1.msra.mxu0 0.0
  %978 = vmatprep.subr.mxu0 0.0
  %979 = vmatpush1.msra.mxu0 0.0
  %980 = vmatprep.subr.mxu0 0.0
  %981 = vmatpush1.msra.mxu0 0.0
  %982 = vmatprep.subr.mxu0 0.0
  %983 = vmatpush1.msra.mxu0 0.0
  %984 = vmatprep.subr.mxu0 0.0
  %985 = vmatpush1.msra.mxu0 0.0
  %986 = vmatprep.subr.mxu0 0.0
  %987 = vmatpush1.msra.mxu0 0.0
  %988 = vmatprep.subr.mxu0 0.0
  %989 = vmatpush1.msra.mxu0 0.0
  %990 = vmatprep.subr.mxu0 0.0
  %991 = vmatpush1.msra.mxu0 0.0
  %992 = vmatprep.subr.mxu0 0.0
  %993 = vmatpush1.msra.mxu0 0.0
  %994 = vmatprep.subr.mxu0 0.0
  %995 = vmatpush1.msra.mxu0 0.0
  %996 = vmatprep.subr.mxu0 0.0
  %997 = vmatpush1.msra.mxu0 0.0
  %998 = vmatprep.subr.mxu0 0.0
  %999 = vmatpush1.msra.mxu0 0.0
  %1000 = vmatprep.subr.mxu0 0.0
  %1001 = vmatpush1.msra.mxu0 0.0
  %1002 = vmatprep.subr.mxu0 0.0
  %1003 = vmatpush1.msra.mxu0 0.0
  %1004 = vmatprep.subr.mxu0 0.0
  %1005 = vmatpush1.msra.mxu0 0.0
  %1006 = vmatprep.subr.mxu0 0.0
  %1007 = vmatpush1.msra.mxu0 0.0
  %1008 = vmatprep.subr.mxu0 0.0
  %1009 = vmatpush1.msra.mxu0 0.0
  %1010 = vmatprep.subr.mxu0 0.0
  %1011 = vmatpush1.msra.mxu0 0.0
  %1012 = vmatprep.subr.mxu0 0.0
  %1013 = vmatpush1.msra.mxu0 0.0
  %1014 = vmatprep.mubr.f32.mxu0 0.0
  %1015 = vmatmul.mubr.f32.gmra.mrb[0].mxu0 %v948
  %v1016 = vpop.f32.mrb[0].mxu0
  %v1017 = vadd.f32 0.0, %v1016
  %v1018 = vpop.f32.mrb[0].mxu0
  %1019 = vdwg.mxu0
  %v1020 = vld [vmem:[#allocation4 + $0x8] sm:$0xff]
  %v1021 = vadd.f32 %v1020, %v1017
  %v1022 = vxor.u32 %v1021, 2147483648
  %v1023 = vmul.f32 %v1022, 1.442695
  %v1024 = vpow.pop %v1023
  %v1025 = vadd.f32 %v1024, 1.0
  %v1026 = vrcp.pop %v1025
  %v1027 = vmul.f32 1.0, %v1026
  %v1028 = vadd.f32 %v1017, %v923
  %1030 = vrot.lane.b32.xlu0 %v1028, 64
  %v1031 = vpop.permute.xlu0 %1030
  %v1033 = vmul.f32 %v1027, %v1031
  %1035 = vrot.lane.b32.xlu0 %v1033, 64
  %v1036 = vpop.permute.xlu0 %1035
  %v1038 = vadd.f32 %v1020, %v1036
  %v1039 = vtanh.pop %v1038
  %v1040 = vsub.f32 1.0, %v1027
  %1042 = vrot.lane.b32.xlu0 %v1039, 96
  %v1043 = vpop.permute.xlu0 %1042
  %v1045 = vmul.f32 %v1040, %v1043
  %v1046 = vmul.f32 %v1027, %v944
  %v1047 = vadd.f32 %v1045, %v1046
  %v1049 = vlaneseq
  %v1050 = vshrl.u32 %v1049, 7
  %v1051 = vsub.s32 0, %v1050
  %v1052 = vrot.slane %v830, %v1051
  %1054 = vmatprep.subr.mxu0 0.0
  %1055 = vmatpush1.msra.mxu0 %v826
  %1056 = vmatprep.subr.mxu0 0.0
  %1057 = vmatpush1.msra.mxu0 %v827
  %1058 = vmatprep.subr.mxu0 0.0
  %1059 = vmatpush1.msra.mxu0 %v828
  %1060 = vmatprep.subr.mxu0 0.0
  %1061 = vmatpush1.msra.mxu0 %v829
  %1062 = vmatprep.subr.mxu0 0.0
  %1063 = vmatpush1.msra.mxu0 0.0
  %1064 = vmatprep.subr.mxu0 0.0
  %1065 = vmatpush1.msra.mxu0 0.0
  %1066 = vmatprep.subr.mxu0 0.0
  %1067 = vmatpush1.msra.mxu0 0.0
  %1068 = vmatprep.subr.mxu0 0.0
  %1069 = vmatpush1.msra.mxu0 0.0
  %1070 = vmatprep.subr.mxu0 0.0
  %1071 = vmatpush1.msra.mxu0 0.0
  %1072 = vmatprep.subr.mxu0 0.0
  %1073 = vmatpush1.msra.mxu0 0.0
  %1074 = vmatprep.subr.mxu0 0.0
  %1075 = vmatpush1.msra.mxu0 0.0
  %1076 = vmatprep.subr.mxu0 0.0
  %1077 = vmatpush1.msra.mxu0 0.0
  %1078 = vmatprep.subr.mxu0 0.0
  %1079 = vmatpush1.msra.mxu0 0.0
  %1080 = vmatprep.subr.mxu0 0.0
  %1081 = vmatpush1.msra.mxu0 0.0
  %1082 = vmatprep.subr.mxu0 0.0
  %1083 = vmatpush1.msra.mxu0 0.0
  %1084 = vmatprep.subr.mxu0 0.0
  %1085 = vmatpush1.msra.mxu0 0.0
  %1086 = vmatprep.subr.mxu0 0.0
  %1087 = vmatpush1.msra.mxu0 0.0
  %1088 = vmatprep.subr.mxu0 0.0
  %1089 = vmatpush1.msra.mxu0 0.0
  %1090 = vmatprep.subr.mxu0 0.0
  %1091 = vmatpush1.msra.mxu0 0.0
  %1092 = vmatprep.subr.mxu0 0.0
  %1093 = vmatpush1.msra.mxu0 0.0
  %1094 = vmatprep.subr.mxu0 0.0
  %1095 = vmatpush1.msra.mxu0 0.0
  %1096 = vmatprep.subr.mxu0 0.0
  %1097 = vmatpush1.msra.mxu0 0.0
  %1098 = vmatprep.subr.mxu0 0.0
  %1099 = vmatpush1.msra.mxu0 0.0
  %1100 = vmatprep.subr.mxu0 0.0
  %1101 = vmatpush1.msra.mxu0 0.0
  %1102 = vmatprep.subr.mxu0 0.0
  %1103 = vmatpush1.msra.mxu0 0.0
  %1104 = vmatprep.subr.mxu0 0.0
  %1105 = vmatpush1.msra.mxu0 0.0
  %1106 = vmatprep.subr.mxu0 0.0
  %1107 = vmatpush1.msra.mxu0 0.0
  %1108 = vmatprep.subr.mxu0 0.0
  %1109 = vmatpush1.msra.mxu0 0.0
  %1110 = vmatprep.subr.mxu0 0.0
  %1111 = vmatpush1.msra.mxu0 0.0
  %1112 = vmatprep.subr.mxu0 0.0
  %1113 = vmatpush1.msra.mxu0 0.0
  %1114 = vmatprep.subr.mxu0 0.0
  %1115 = vmatpush1.msra.mxu0 0.0
  %1116 = vmatprep.subr.mxu0 0.0
  %1117 = vmatpush1.msra.mxu0 0.0
  %1118 = vmatprep.mubr.f32.mxu0 0.0
  %1119 = vmatmul.mubr.f32.gmra.mrb[0].mxu0 %v948
  %v1120 = vpop.f32.mrb[0].mxu0
  %v1121 = vadd.f32 %v1052, %v1120
  %v1122 = vpop.f32.mrb[0].mxu0
  %1123 = vdwg.mxu0
  %1124 = vmatprep.subr.mxu0 0.0
  %1125 = vmatpush1.msra.mxu0 %v831
  %1126 = vmatprep.subr.mxu0 0.0
  %1127 = vmatpush1.msra.mxu0 %v832
  %1128 = vmatprep.subr.mxu0 0.0
  %1129 = vmatpush1.msra.mxu0 %v833
  %1130 = vmatprep.subr.mxu0 0.0
  %1131 = vmatpush1.msra.mxu0 %v834
  %1132 = vmatprep.subr.mxu0 0.0
  %1133 = vmatpush1.msra.mxu0 0.0
  %1134 = vmatprep.subr.mxu0 0.0
  %1135 = vmatpush1.msra.mxu0 0.0
  %1136 = vmatprep.subr.mxu0 0.0
  %1137 = vmatpush1.msra.mxu0 0.0
  %1138 = vmatprep.subr.mxu0 0.0
  %1139 = vmatpush1.msra.mxu0 0.0
  %1140 = vmatprep.subr.mxu0 0.0
  %1141 = vmatpush1.msra.mxu0 0.0
  %1142 = vmatprep.subr.mxu0 0.0
  %1143 = vmatpush1.msra.mxu0 0.0
  %1144 = vmatprep.subr.mxu0 0.0
  %1145 = vmatpush1.msra.mxu0 0.0
  %1146 = vmatprep.subr.mxu0 0.0
  %1147 = vmatpush1.msra.mxu0 0.0
  %1148 = vmatprep.subr.mxu0 0.0
  %1149 = vmatpush1.msra.mxu0 0.0
  %1150 = vmatprep.subr.mxu0 0.0
  %1151 = vmatpush1.msra.mxu0 0.0
  %1152 = vmatprep.subr.mxu0 0.0
  %1153 = vmatpush1.msra.mxu0 0.0
  %1154 = vmatprep.subr.mxu0 0.0
  %1155 = vmatpush1.msra.mxu0 0.0
  %1156 = vmatprep.subr.mxu0 0.0
  %1157 = vmatpush1.msra.mxu0 0.0
  %1158 = vmatprep.subr.mxu0 0.0
  %1159 = vmatpush1.msra.mxu0 0.0
  %1160 = vmatprep.subr.mxu0 0.0
  %1161 = vmatpush1.msra.mxu0 0.0
  %1162 = vmatprep.subr.mxu0 0.0
  %1163 = vmatpush1.msra.mxu0 0.0
  %1164 = vmatprep.subr.mxu0 0.0
  %1165 = vmatpush1.msra.mxu0 0.0
  %1166 = vmatprep.subr.mxu0 0.0
  %1167 = vmatpush1.msra.mxu0 0.0
  %1168 = vmatprep.subr.mxu0 0.0
  %1169 = vmatpush1.msra.mxu0 0.0
  %1170 = vmatprep.subr.mxu0 0.0
  %1171 = vmatpush1.msra.mxu0 0.0
  %1172 = vmatprep.subr.mxu0 0.0
  %1173 = vmatpush1.msra.mxu0 0.0
  %1174 = vmatprep.subr.mxu0 0.0
  %1175 = vmatpush1.msra.mxu0 0.0
  %1176 = vmatprep.subr.mxu0 0.0
  %1177 = vmatpush1.msra.mxu0 0.0
  %1178 = vmatprep.subr.mxu0 0.0
  %1179 = vmatpush1.msra.mxu0 0.0
  %1180 = vmatprep.subr.mxu0 0.0
  %1181 = vmatpush1.msra.mxu0 0.0
  %1182 = vmatprep.subr.mxu0 0.0
  %1183 = vmatpush1.msra.mxu0 0.0
  %1184 = vmatprep.subr.mxu0 0.0
  %1185 = vmatpush1.msra.mxu0 0.0
  %1186 = vmatprep.subr.mxu0 0.0
  %1187 = vmatpush1.msra.mxu0 0.0
  %1188 = vmatprep.mubr.f32.mxu0 0.0
  %1189 = vmatmul.mubr.f32.gmra.mrb[0].mxu0 %v837
  %v1190 = vpop.f32.mrb[0].mxu0
  %v1191 = vadd.f32 0.0, %v1190
  %v1192 = vpop.f32.mrb[0].mxu0
  %1193 = vdwg.mxu0
  %v1194 = vadd.f32 %v1121, %v1191
  %v1195 = vxor.u32 %v1194, 2147483648
  %v1196 = vmul.f32 %v1195, 1.442695
  %v1197 = vpow.pop %v1196
  %v1198 = vadd.f32 %v1197, 1.0
  %v1199 = vrcp.pop %v1198
  %v1200 = vmul.f32 1.0, %v1199
  %v1202 = vlaneseq
  %v1203 = vshrl.u32 %v1202, 7
  %v1204 = vsub.s32 0, %v1203
  %v1205 = vrot.slane %v835, %v1204
  %1206 = vrot.lane.b32.xlu0 %v1205, 64
  %v1207 = vpop.permute.xlu0 %1206
  %v1209 = vadd.f32 %v1191, %v1207
  %1211 = vrot.lane.b32.xlu0 %v1209, 64
  %v1212 = vpop.permute.xlu0 %1211
  %v1214 = vmul.f32 %v1200, %v1212
  %1216 = vrot.lane.b32.xlu0 %v1214, 64
  %v1217 = vpop.permute.xlu0 %1216
  %v1219 = vadd.f32 %v1121, %v1217
  %v1220 = vtanh.pop %v1219
  %v1221 = vsub.f32 1.0, %v1200
  %1223 = vrot.lane.b32.xlu0 %v1220, 96
  %v1224 = vpop.permute.xlu0 %1223
  %v1226 = vmul.f32 %v1221, %v1224
  %v1227 = vmul.f32 %v1200, 0.0
  %v1228 = vadd.f32 %v1226, %v1227
  %1230 = vrot.lane.b32.xlu0 %v1228, 96
  %v1231 = vpop.permute.xlu0 %1230
  %1233 = vst.msk [vmem:[#allocation5] sm:$0xff] %vm71, %v1231
  %1235 = vrot.lane.b32.xlu0 %v1047, 96
  %v1236 = vpop.permute.xlu0 %1235
  %v1237 = vsel %vm71, %v1236, 0
  %1239 = vmatprep.subr.mxu0 0.0
  %1240 = vmatpush1.msra.mxu0 %v821
  %1241 = vmatprep.subr.mxu0 0.0
  %1242 = vmatpush1.msra.mxu0 %v822
  %1243 = vmatprep.subr.mxu0 0.0
  %1244 = vmatpush1.msra.mxu0 %v823
  %1245 = vmatprep.subr.mxu0 0.0
  %1246 = vmatpush1.msra.mxu0 %v824
  %1247 = vmatprep.subr.mxu0 0.0
  %1248 = vmatpush1.msra.mxu0 0.0
  %1249 = vmatprep.subr.mxu0 0.0
  %1250 = vmatpush1.msra.mxu0 0.0
  %1251 = vmatprep.subr.mxu0 0.0
  %1252 = vmatpush1.msra.mxu0 0.0
  %1253 = vmatprep.subr.mxu0 0.0
  %1254 = vmatpush1.msra.mxu0 0.0
  %1255 = vmatprep.subr.mxu0 0.0
  %1256 = vmatpush1.msra.mxu0 0.0
  %1257 = vmatprep.subr.mxu0 0.0
  %1258 = vmatpush1.msra.mxu0 0.0
  %1259 = vmatprep.subr.mxu0 0.0
  %1260 = vmatpush1.msra.mxu0 0.0
  %1261 = vmatprep.subr.mxu0 0.0
  %1262 = vmatpush1.msra.mxu0 0.0
  %1263 = vmatprep.subr.mxu0 0.0
  %1264 = vmatpush1.msra.mxu0 0.0
  %1265 = vmatprep.subr.mxu0 0.0
  %1266 = vmatpush1.msra.mxu0 0.0
  %1267 = vmatprep.subr.mxu0 0.0
  %1268 = vmatpush1.msra.mxu0 0.0
  %1269 = vmatprep.subr.mxu0 0.0
  %1270 = vmatpush1.msra.mxu0 0.0
  %1271 = vmatprep.subr.mxu0 0.0
  %1272 = vmatpush1.msra.mxu0 0.0
  %1273 = vmatprep.subr.mxu0 0.0
  %1274 = vmatpush1.msra.mxu0 0.0
  %1275 = vmatprep.subr.mxu0 0.0
  %1276 = vmatpush1.msra.mxu0 0.0
  %1277 = vmatprep.subr.mxu0 0.0
  %1278 = vmatpush1.msra.mxu0 0.0
  %1279 = vmatprep.subr.mxu0 0.0
  %1280 = vmatpush1.msra.mxu0 0.0
  %1281 = vmatprep.subr.mxu0 0.0
  %1282 = vmatpush1.msra.mxu0 0.0
  %1283 = vmatprep.subr.mxu0 0.0
  %1284 = vmatpush1.msra.mxu0 0.0
  %1285 = vmatprep.subr.mxu0 0.0
  %1286 = vmatpush1.msra.mxu0 0.0
  %1287 = vmatprep.subr.mxu0 0.0
  %1288 = vmatpush1.msra.mxu0 0.0
  %1289 = vmatprep.subr.mxu0 0.0
  %1290 = vmatpush1.msra.mxu0 0.0
  %1291 = vmatprep.subr.mxu0 0.0
  %1292 = vmatpush1.msra.mxu0 0.0
  %1293 = vmatprep.subr.mxu0 0.0
  %1294 = vmatpush1.msra.mxu0 0.0
  %1295 = vmatprep.subr.mxu0 0.0
  %1296 = vmatpush1.msra.mxu0 0.0
  %1297 = vmatprep.subr.mxu0 0.0
  %1298 = vmatpush1.msra.mxu0 0.0
  %1299 = vmatprep.subr.mxu0 0.0
  %1300 = vmatpush1.msra.mxu0 0.0
  %1301 = vmatprep.subr.mxu0 0.0
  %1302 = vmatpush1.msra.mxu0 0.0
  %1303 = vmatprep.mubr.f32.mxu0 0.0
  %1304 = vmatmul.mubr.f32.gmra.mrb[0].mxu0 %v1237
  %v1305 = vpop.f32.mrb[0].mxu0
  %v1306 = vadd.f32 0.0, %v1305
  %v1307 = vpop.f32.mrb[0].mxu0
  %1308 = vdwg.mxu0
  %v1309 = vld [vmem:[#allocation4 + $0x10] sm:$0xff]
  %v1310 = vadd.f32 %v1309, %v1306
  %v1311 = vxor.u32 %v1310, 2147483648
  %v1312 = vmul.f32 %v1311, 1.442695
  %v1313 = vpow.pop %v1312
  %v1314 = vadd.f32 %v1313, 1.0
  %v1315 = vrcp.pop %v1314
  %v1316 = vmul.f32 1.0, %v1315
  %v1317 = vadd.f32 %v1306, %v923
  %1319 = vrot.lane.b32.xlu0 %v1317, 64
  %v1320 = vpop.permute.xlu0 %1319
  %v1322 = vmul.f32 %v1316, %v1320
  %1324 = vrot.lane.b32.xlu0 %v1322, 64
  %v1325 = vpop.permute.xlu0 %1324
  %v1327 = vadd.f32 %v1309, %v1325
  %v1328 = vtanh.pop %v1327
  %v1329 = vsub.f32 1.0, %v1316
  %1331 = vrot.lane.b32.xlu0 %v1328, 96
  %v1332 = vpop.permute.xlu0 %1331
  %v1334 = vmul.f32 %v1329, %v1332
  %v1335 = vmul.f32 %v1316, %v1047
  %v1336 = vadd.f32 %v1334, %v1335
  %1337 = vmatprep.subr.mxu0 0.0
  %1338 = vmatpush1.msra.mxu0 %v826
  %1339 = vmatprep.subr.mxu0 0.0
  %1340 = vmatpush1.msra.mxu0 %v827
  %1341 = vmatprep.subr.mxu0 0.0
  %1342 = vmatpush1.msra.mxu0 %v828
  %1343 = vmatprep.subr.mxu0 0.0
  %1344 = vmatpush1.msra.mxu0 %v829
  %1345 = vmatprep.subr.mxu0 0.0
  %1346 = vmatpush1.msra.mxu0 0.0
  %1347 = vmatprep.subr.mxu0 0.0
  %1348 = vmatpush1.msra.mxu0 0.0
  %1349 = vmatprep.subr.mxu0 0.0
  %1350 = vmatpush1.msra.mxu0 0.0
  %1351 = vmatprep.subr.mxu0 0.0
  %1352 = vmatpush1.msra.mxu0 0.0
  %1353 = vmatprep.subr.mxu0 0.0
  %1354 = vmatpush1.msra.mxu0 0.0
  %1355 = vmatprep.subr.mxu0 0.0
  %1356 = vmatpush1.msra.mxu0 0.0
  %1357 = vmatprep.subr.mxu0 0.0
  %1358 = vmatpush1.msra.mxu0 0.0
  %1359 = vmatprep.subr.mxu0 0.0
  %1360 = vmatpush1.msra.mxu0 0.0
  %1361 = vmatprep.subr.mxu0 0.0
  %1362 = vmatpush1.msra.mxu0 0.0
  %1363 = vmatprep.subr.mxu0 0.0
  %1364 = vmatpush1.msra.mxu0 0.0
  %1365 = vmatprep.subr.mxu0 0.0
  %1366 = vmatpush1.msra.mxu0 0.0
  %1367 = vmatprep.subr.mxu0 0.0
  %1368 = vmatpush1.msra.mxu0 0.0
  %1369 = vmatprep.subr.mxu0 0.0
  %1370 = vmatpush1.msra.mxu0 0.0
  %1371 = vmatprep.subr.mxu0 0.0
  %1372 = vmatpush1.msra.mxu0 0.0
  %1373 = vmatprep.subr.mxu0 0.0
  %1374 = vmatpush1.msra.mxu0 0.0
  %1375 = vmatprep.subr.mxu0 0.0
  %1376 = vmatpush1.msra.mxu0 0.0
  %1377 = vmatprep.subr.mxu0 0.0
  %1378 = vmatpush1.msra.mxu0 0.0
  %1379 = vmatprep.subr.mxu0 0.0
  %1380 = vmatpush1.msra.mxu0 0.0
  %1381 = vmatprep.subr.mxu0 0.0
  %1382 = vmatpush1.msra.mxu0 0.0
  %1383 = vmatprep.subr.mxu0 0.0
  %1384 = vmatpush1.msra.mxu0 0.0
  %1385 = vmatprep.subr.mxu0 0.0
  %1386 = vmatpush1.msra.mxu0 0.0
  %1387 = vmatprep.subr.mxu0 0.0
  %1388 = vmatpush1.msra.mxu0 0.0
  %1389 = vmatprep.subr.mxu0 0.0
  %1390 = vmatpush1.msra.mxu0 0.0
  %1391 = vmatprep.subr.mxu0 0.0
  %1392 = vmatpush1.msra.mxu0 0.0
  %1393 = vmatprep.subr.mxu0 0.0
  %1394 = vmatpush1.msra.mxu0 0.0
  %1395 = vmatprep.subr.mxu0 0.0
  %1396 = vmatpush1.msra.mxu0 0.0
  %1397 = vmatprep.subr.mxu0 0.0
  %1398 = vmatpush1.msra.mxu0 0.0
  %1399 = vmatprep.subr.mxu0 0.0
  %1400 = vmatpush1.msra.mxu0 0.0
  %1401 = vmatprep.mubr.f32.mxu0 0.0
  %1402 = vmatmul.mubr.f32.gmra.mrb[0].mxu0 %v1237
  %v1403 = vpop.f32.mrb[0].mxu0
  %v1404 = vadd.f32 %v1052, %v1403
  %v1405 = vpop.f32.mrb[0].mxu0
  %1406 = vdwg.mxu0
  %v1407 = vsel %vm71, %v1231, 0
  %1409 = vmatprep.subr.mxu0 0.0
  %1410 = vmatpush1.msra.mxu0 %v831
  %1411 = vmatprep.subr.mxu0 0.0
  %1412 = vmatpush1.msra.mxu0 %v832
  %1413 = vmatprep.subr.mxu0 0.0
  %1414 = vmatpush1.msra.mxu0 %v833
  %1415 = vmatprep.subr.mxu0 0.0
  %1416 = vmatpush1.msra.mxu0 %v834
  %1417 = vmatprep.subr.mxu0 0.0
  %1418 = vmatpush1.msra.mxu0 0.0
  %1419 = vmatprep.subr.mxu0 0.0
  %1420 = vmatpush1.msra.mxu0 0.0
  %1421 = vmatprep.subr.mxu0 0.0
  %1422 = vmatpush1.msra.mxu0 0.0
  %1423 = vmatprep.subr.mxu0 0.0
  %1424 = vmatpush1.msra.mxu0 0.0
  %1425 = vmatprep.subr.mxu0 0.0
  %1426 = vmatpush1.msra.mxu0 0.0
  %1427 = vmatprep.subr.mxu0 0.0
  %1428 = vmatpush1.msra.mxu0 0.0
  %1429 = vmatprep.subr.mxu0 0.0
  %1430 = vmatpush1.msra.mxu0 0.0
  %1431 = vmatprep.subr.mxu0 0.0
  %1432 = vmatpush1.msra.mxu0 0.0
  %1433 = vmatprep.subr.mxu0 0.0
  %1434 = vmatpush1.msra.mxu0 0.0
  %1435 = vmatprep.subr.mxu0 0.0
  %1436 = vmatpush1.msra.mxu0 0.0
  %1437 = vmatprep.subr.mxu0 0.0
  %1438 = vmatpush1.msra.mxu0 0.0
  %1439 = vmatprep.subr.mxu0 0.0
  %1440 = vmatpush1.msra.mxu0 0.0
  %1441 = vmatprep.subr.mxu0 0.0
  %1442 = vmatpush1.msra.mxu0 0.0
  %1443 = vmatprep.subr.mxu0 0.0
  %1444 = vmatpush1.msra.mxu0 0.0
  %1445 = vmatprep.subr.mxu0 0.0
  %1446 = vmatpush1.msra.mxu0 0.0
  %1447 = vmatprep.subr.mxu0 0.0
  %1448 = vmatpush1.msra.mxu0 0.0
  %1449 = vmatprep.subr.mxu0 0.0
  %1450 = vmatpush1.msra.mxu0 0.0
  %1451 = vmatprep.subr.mxu0 0.0
  %1452 = vmatpush1.msra.mxu0 0.0
  %1453 = vmatprep.subr.mxu0 0.0
  %1454 = vmatpush1.msra.mxu0 0.0
  %1455 = vmatprep.subr.mxu0 0.0
  %1456 = vmatpush1.msra.mxu0 0.0
  %1457 = vmatprep.subr.mxu0 0.0
  %1458 = vmatpush1.msra.mxu0 0.0
  %1459 = vmatprep.subr.mxu0 0.0
  %1460 = vmatpush1.msra.mxu0 0.0
  %1461 = vmatprep.subr.mxu0 0.0
  %1462 = vmatpush1.msra.mxu0 0.0
  %1463 = vmatprep.subr.mxu0 0.0
  %1464 = vmatpush1.msra.mxu0 0.0
  %1465 = vmatprep.subr.mxu0 0.0
  %1466 = vmatpush1.msra.mxu0 0.0
  %1467 = vmatprep.subr.mxu0 0.0
  %1468 = vmatpush1.msra.mxu0 0.0
  %1469 = vmatprep.subr.mxu0 0.0
  %1470 = vmatpush1.msra.mxu0 0.0
  %1471 = vmatprep.subr.mxu0 0.0
  %1472 = vmatpush1.msra.mxu0 0.0
  %1473 = vmatprep.mubr.f32.mxu0 0.0
  %1474 = vmatmul.mubr.f32.gmra.mrb[0].mxu0 %v1407
  %v1475 = vpop.f32.mrb[0].mxu0
  %v1476 = vadd.f32 0.0, %v1475
  %v1477 = vpop.f32.mrb[0].mxu0
  %1478 = vdwg.mxu0
  %v1479 = vadd.f32 %v1404, %v1476
  %v1480 = vxor.u32 %v1479, 2147483648
  %v1481 = vmul.f32 %v1480, 1.442695
  %v1482 = vpow.pop %v1481
  %v1483 = vadd.f32 %v1482, 1.0
  %v1484 = vrcp.pop %v1483
  %v1485 = vmul.f32 1.0, %v1484
  %v1486 = vadd.f32 %v1476, %v1207
  %1488 = vrot.lane.b32.xlu0 %v1486, 64
  %v1489 = vpop.permute.xlu0 %1488
  %v1491 = vmul.f32 %v1485, %v1489
  %1493 = vrot.lane.b32.xlu0 %v1491, 64
  %v1494 = vpop.permute.xlu0 %1493
  %v1496 = vadd.f32 %v1404, %v1494
  %v1497 = vtanh.pop %v1496
  %v1498 = vsub.f32 1.0, %v1485
  %1500 = vrot.lane.b32.xlu0 %v1497, 96
  %v1501 = vpop.permute.xlu0 %1500
  %v1503 = vmul.f32 %v1498, %v1501
  %v1504 = vmul.f32 %v1485, %v1228
  %v1505 = vadd.f32 %v1503, %v1504
  %1507 = vrot.lane.b32.xlu0 %v1505, 96
  %v1508 = vpop.permute.xlu0 %1507
  %1510 = vst.msk [vmem:[#allocation5 + $0x8] sm:$0xff] %vm71, %v1508
  %1512 = vrot.lane.b32.xlu0 %v1336, 96
  %v1513 = vpop.permute.xlu0 %1512
  %v1514 = vsel %vm71, %v1513, 0
  %1516 = vmatprep.subr.mxu0 0.0
  %1517 = vmatpush1.msra.mxu0 %v821
  %1518 = vmatprep.subr.mxu0 0.0
  %1519 = vmatpush1.msra.mxu0 %v822
  %1520 = vmatprep.subr.mxu0 0.0
  %1521 = vmatpush1.msra.mxu0 %v823
  %1522 = vmatprep.subr.mxu0 0.0
  %1523 = vmatpush1.msra.mxu0 %v824
  %1524 = vmatprep.subr.mxu0 0.0
  %1525 = vmatpush1.msra.mxu0 0.0
  %1526 = vmatprep.subr.mxu0 0.0
  %1527 = vmatpush1.msra.mxu0 0.0
  %1528 = vmatprep.subr.mxu0 0.0
  %1529 = vmatpush1.msra.mxu0 0.0
  %1530 = vmatprep.subr.mxu0 0.0
  %1531 = vmatpush1.msra.mxu0 0.0
  %1532 = vmatprep.subr.mxu0 0.0
  %1533 = vmatpush1.msra.mxu0 0.0
  %1534 = vmatprep.subr.mxu0 0.0
  %1535 = vmatpush1.msra.mxu0 0.0
  %1536 = vmatprep.subr.mxu0 0.0
  %1537 = vmatpush1.msra.mxu0 0.0
  %1538 = vmatprep.subr.mxu0 0.0
  %1539 = vmatpush1.msra.mxu0 0.0
  %1540 = vmatprep.subr.mxu0 0.0
  %1541 = vmatpush1.msra.mxu0 0.0
  %1542 = vmatprep.subr.mxu0 0.0
  %1543 = vmatpush1.msra.mxu0 0.0
  %1544 = vmatprep.subr.mxu0 0.0
  %1545 = vmatpush1.msra.mxu0 0.0
  %1546 = vmatprep.subr.mxu0 0.0
  %1547 = vmatpush1.msra.mxu0 0.0
  %1548 = vmatprep.subr.mxu0 0.0
  %1549 = vmatpush1.msra.mxu0 0.0
  %1550 = vmatprep.subr.mxu0 0.0
  %1551 = vmatpush1.msra.mxu0 0.0
  %1552 = vmatprep.subr.mxu0 0.0
  %1553 = vmatpush1.msra.mxu0 0.0
  %1554 = vmatprep.subr.mxu0 0.0
  %1555 = vmatpush1.msra.mxu0 0.0
  %1556 = vmatprep.subr.mxu0 0.0
  %1557 = vmatpush1.msra.mxu0 0.0
  %1558 = vmatprep.subr.mxu0 0.0
  %1559 = vmatpush1.msra.mxu0 0.0
  %1560 = vmatprep.subr.mxu0 0.0
  %1561 = vmatpush1.msra.mxu0 0.0
  %1562 = vmatprep.subr.mxu0 0.0
  %1563 = vmatpush1.msra.mxu0 0.0
  %1564 = vmatprep.subr.mxu0 0.0
  %1565 = vmatpush1.msra.mxu0 0.0
  %1566 = vmatprep.subr.mxu0 0.0
  %1567 = vmatpush1.msra.mxu0 0.0
  %1568 = vmatprep.subr.mxu0 0.0
  %1569 = vmatpush1.msra.mxu0 0.0
  %1570 = vmatprep.subr.mxu0 0.0
  %1571 = vmatpush1.msra.mxu0 0.0
  %1572 = vmatprep.subr.mxu0 0.0
  %1573 = vmatpush1.msra.mxu0 0.0
  %1574 = vmatprep.subr.mxu0 0.0
  %1575 = vmatpush1.msra.mxu0 0.0
  %1576 = vmatprep.subr.mxu0 0.0
  %1577 = vmatpush1.msra.mxu0 0.0
  %1578 = vmatprep.subr.mxu0 0.0
  %1579 = vmatpush1.msra.mxu0 0.0
  %1580 = vmatprep.mubr.f32.mxu0 0.0
  %1581 = vmatmul.mubr.f32.gmra.mrb[0].mxu0 %v1514
  %v1582 = vpop.f32.mrb[0].mxu0
  %v1583 = vadd.f32 0.0, %v1582
  %v1584 = vpop.f32.mrb[0].mxu0
  %1585 = vdwg.mxu0
  %v1586 = vld [vmem:[#allocation4 + $0x18] sm:$0xff]
  %v1587 = vadd.f32 %v1586, %v1583
  %v1588 = vxor.u32 %v1587, 2147483648
  %v1589 = vmul.f32 %v1588, 1.442695
  %v1590 = vpow.pop %v1589
  %v1591 = vadd.f32 %v1590, 1.0
  %v1592 = vrcp.pop %v1591
  %v1593 = vmul.f32 1.0, %v1592
  %v1594 = vadd.f32 %v1583, %v923
  %1596 = vrot.lane.b32.xlu0 %v1594, 64
  %v1597 = vpop.permute.xlu0 %1596
  %v1599 = vmul.f32 %v1593, %v1597
  %1601 = vrot.lane.b32.xlu0 %v1599, 64
  %v1602 = vpop.permute.xlu0 %1601
  %v1604 = vadd.f32 %v1586, %v1602
  %v1605 = vtanh.pop %v1604
  %v1606 = vsub.f32 1.0, %v1593
  %1608 = vrot.lane.b32.xlu0 %v1605, 96
  %v1609 = vpop.permute.xlu0 %1608
  %v1611 = vmul.f32 %v1606, %v1609
  %v1612 = vmul.f32 %v1593, %v1336
  %v1613 = vadd.f32 %v1611, %v1612
  %1614 = vmatprep.subr.mxu0 0.0
  %1615 = vmatpush1.msra.mxu0 %v826
  %1616 = vmatprep.subr.mxu0 0.0
  %1617 = vmatpush1.msra.mxu0 %v827
  %1618 = vmatprep.subr.mxu0 0.0
  %1619 = vmatpush1.msra.mxu0 %v828
  %1620 = vmatprep.subr.mxu0 0.0
  %1621 = vmatpush1.msra.mxu0 %v829
  %1622 = vmatprep.subr.mxu0 0.0
  %1623 = vmatpush1.msra.mxu0 0.0
  %1624 = vmatprep.subr.mxu0 0.0
  %1625 = vmatpush1.msra.mxu0 0.0
  %1626 = vmatprep.subr.mxu0 0.0
  %1627 = vmatpush1.msra.mxu0 0.0
  %1628 = vmatprep.subr.mxu0 0.0
  %1629 = vmatpush1.msra.mxu0 0.0
  %1630 = vmatprep.subr.mxu0 0.0
  %1631 = vmatpush1.msra.mxu0 0.0
  %1632 = vmatprep.subr.mxu0 0.0
  %1633 = vmatpush1.msra.mxu0 0.0
  %1634 = vmatprep.subr.mxu0 0.0
  %1635 = vmatpush1.msra.mxu0 0.0
  %1636 = vmatprep.subr.mxu0 0.0
  %1637 = vmatpush1.msra.mxu0 0.0
  %1638 = vmatprep.subr.mxu0 0.0
  %1639 = vmatpush1.msra.mxu0 0.0
  %1640 = vmatprep.subr.mxu0 0.0
  %1641 = vmatpush1.msra.mxu0 0.0
  %1642 = vmatprep.subr.mxu0 0.0
  %1643 = vmatpush1.msra.mxu0 0.0
  %1644 = vmatprep.subr.mxu0 0.0
  %1645 = vmatpush1.msra.mxu0 0.0
  %1646 = vmatprep.subr.mxu0 0.0
  %1647 = vmatpush1.msra.mxu0 0.0
  %1648 = vmatprep.subr.mxu0 0.0
  %1649 = vmatpush1.msra.mxu0 0.0
  %1650 = vmatprep.subr.mxu0 0.0
  %1651 = vmatpush1.msra.mxu0 0.0
  %1652 = vmatprep.subr.mxu0 0.0
  %1653 = vmatpush1.msra.mxu0 0.0
  %1654 = vmatprep.subr.mxu0 0.0
  %1655 = vmatpush1.msra.mxu0 0.0
  %1656 = vmatprep.subr.mxu0 0.0
  %1657 = vmatpush1.msra.mxu0 0.0
  %1658 = vmatprep.subr.mxu0 0.0
  %1659 = vmatpush1.msra.mxu0 0.0
  %1660 = vmatprep.subr.mxu0 0.0
  %1661 = vmatpush1.msra.mxu0 0.0
  %1662 = vmatprep.subr.mxu0 0.0
  %1663 = vmatpush1.msra.mxu0 0.0
  %1664 = vmatprep.subr.mxu0 0.0
  %1665 = vmatpush1.msra.mxu0 0.0
  %1666 = vmatprep.subr.mxu0 0.0
  %1667 = vmatpush1.msra.mxu0 0.0
  %1668 = vmatprep.subr.mxu0 0.0
  %1669 = vmatpush1.msra.mxu0 0.0
  %1670 = vmatprep.subr.mxu0 0.0
  %1671 = vmatpush1.msra.mxu0 0.0
  %1672 = vmatprep.subr.mxu0 0.0
  %1673 = vmatpush1.msra.mxu0 0.0
  %1674 = vmatprep.subr.mxu0 0.0
  %1675 = vmatpush1.msra.mxu0 0.0
  %1676 = vmatprep.subr.mxu0 0.0
  %1677 = vmatpush1.msra.mxu0 0.0
  %1678 = vmatprep.mubr.f32.mxu0 0.0
  %1679 = vmatmul.mubr.f32.gmra.mrb[0].mxu0 %v1514
  %v1680 = vpop.f32.mrb[0].mxu0
  %v1681 = vadd.f32 %v1052, %v1680
  %v1682 = vpop.f32.mrb[0].mxu0
  %1683 = vdwg.mxu0
  %v1684 = vsel %vm71, %v1508, 0
  %1686 = vmatprep.subr.mxu0 0.0
  %1687 = vmatpush1.msra.mxu0 %v831
  %1688 = vmatprep.subr.mxu0 0.0
  %1689 = vmatpush1.msra.mxu0 %v832
  %1690 = vmatprep.subr.mxu0 0.0
  %1691 = vmatpush1.msra.mxu0 %v833
  %1692 = vmatprep.subr.mxu0 0.0
  %1693 = vmatpush1.msra.mxu0 %v834
  %1694 = vmatprep.subr.mxu0 0.0
  %1695 = vmatpush1.msra.mxu0 0.0
  %1696 = vmatprep.subr.mxu0 0.0
  %1697 = vmatpush1.msra.mxu0 0.0
  %1698 = vmatprep.subr.mxu0 0.0
  %1699 = vmatpush1.msra.mxu0 0.0
  %1700 = vmatprep.subr.mxu0 0.0
  %1701 = vmatpush1.msra.mxu0 0.0
  %1702 = vmatprep.subr.mxu0 0.0
  %1703 = vmatpush1.msra.mxu0 0.0
  %1704 = vmatprep.subr.mxu0 0.0
  %1705 = vmatpush1.msra.mxu0 0.0
  %1706 = vmatprep.subr.mxu0 0.0
  %1707 = vmatpush1.msra.mxu0 0.0
  %1708 = vmatprep.subr.mxu0 0.0
  %1709 = vmatpush1.msra.mxu0 0.0
  %1710 = vmatprep.subr.mxu0 0.0
  %1711 = vmatpush1.msra.mxu0 0.0
  %1712 = vmatprep.subr.mxu0 0.0
  %1713 = vmatpush1.msra.mxu0 0.0
  %1714 = vmatprep.subr.mxu0 0.0
  %1715 = vmatpush1.msra.mxu0 0.0
  %1716 = vmatprep.subr.mxu0 0.0
  %1717 = vmatpush1.msra.mxu0 0.0
  %1718 = vmatprep.subr.mxu0 0.0
  %1719 = vmatpush1.msra.mxu0 0.0
  %1720 = vmatprep.subr.mxu0 0.0
  %1721 = vmatpush1.msra.mxu0 0.0
  %1722 = vmatprep.subr.mxu0 0.0
  %1723 = vmatpush1.msra.mxu0 0.0
  %1724 = vmatprep.subr.mxu0 0.0
  %1725 = vmatpush1.msra.mxu0 0.0
  %1726 = vmatprep.subr.mxu0 0.0
  %1727 = vmatpush1.msra.mxu0 0.0
  %1728 = vmatprep.subr.mxu0 0.0
  %1729 = vmatpush1.msra.mxu0 0.0
  %1730 = vmatprep.subr.mxu0 0.0
  %1731 = vmatpush1.msra.mxu0 0.0
  %1732 = vmatprep.subr.mxu0 0.0
  %1733 = vmatpush1.msra.mxu0 0.0
  %1734 = vmatprep.subr.mxu0 0.0
  %1735 = vmatpush1.msra.mxu0 0.0
  %1736 = vmatprep.subr.mxu0 0.0
  %1737 = vmatpush1.msra.mxu0 0.0
  %1738 = vmatprep.subr.mxu0 0.0
  %1739 = vmatpush1.msra.mxu0 0.0
  %1740 = vmatprep.subr.mxu0 0.0
  %1741 = vmatpush1.msra.mxu0 0.0
  %1742 = vmatprep.subr.mxu0 0.0
  %1743 = vmatpush1.msra.mxu0 0.0
  %1744 = vmatprep.subr.mxu0 0.0
  %1745 = vmatpush1.msra.mxu0 0.0
  %1746 = vmatprep.subr.mxu0 0.0
  %1747 = vmatpush1.msra.mxu0 0.0
  %1748 = vmatprep.subr.mxu0 0.0
  %1749 = vmatpush1.msra.mxu0 0.0
  %1750 = vmatprep.mubr.f32.mxu0 0.0
  %1751 = vmatmul.mubr.f32.gmra.mrb[0].mxu0 %v1684
  %v1752 = vpop.f32.mrb[0].mxu0
  %v1753 = vadd.f32 0.0, %v1752
  %v1754 = vpop.f32.mrb[0].mxu0
  %1755 = vdwg.mxu0
  %v1756 = vadd.f32 %v1681, %v1753
  %v1757 = vxor.u32 %v1756, 2147483648
  %v1758 = vmul.f32 %v1757, 1.442695
  %v1759 = vpow.pop %v1758
  %v1760 = vadd.f32 %v1759, 1.0
  %v1761 = vrcp.pop %v1760
  %v1762 = vmul.f32 1.0, %v1761
  %v1763 = vadd.f32 %v1753, %v1207
  %1765 = vrot.lane.b32.xlu0 %v1763, 64
  %v1766 = vpop.permute.xlu0 %1765
  %v1768 = vmul.f32 %v1762, %v1766
  %1770 = vrot.lane.b32.xlu0 %v1768, 64
  %v1771 = vpop.permute.xlu0 %1770
  %v1773 = vadd.f32 %v1681, %v1771
  %v1774 = vtanh.pop %v1773
  %v1775 = vsub.f32 1.0, %v1762
  %1777 = vrot.lane.b32.xlu0 %v1774, 96
  %v1778 = vpop.permute.xlu0 %1777
  %v1780 = vmul.f32 %v1775, %v1778
  %v1781 = vmul.f32 %v1762, %v1505
  %v1782 = vadd.f32 %v1780, %v1781
  %1784 = vrot.lane.b32.xlu0 %v1782, 96
  %v1785 = vpop.permute.xlu0 %1784
  %1787 = vst.msk [vmem:[#allocation5 + $0x10] sm:$0xff] %vm71, %v1785
  %1789 = vrot.lane.b32.xlu0 %v1613, 96
  %v1790 = vpop.permute.xlu0 %1789
  %v1791 = vsel %vm71, %v1790, 0
  %1793 = vmatprep.subr.mxu0 0.0
  %1794 = vmatpush1.msra.mxu0 %v821
  %1795 = vmatprep.subr.mxu0 0.0
  %1796 = vmatpush1.msra.mxu0 %v822
  %1797 = vmatprep.subr.mxu0 0.0
  %1798 = vmatpush1.msra.mxu0 %v823
  %1799 = vmatprep.subr.mxu0 0.0
  %1800 = vmatpush1.msra.mxu0 %v824
  %1801 = vmatprep.subr.mxu0 0.0
  %1802 = vmatpush1.msra.mxu0 0.0
  %1803 = vmatprep.subr.mxu0 0.0
  %1804 = vmatpush1.msra.mxu0 0.0
  %1805 = vmatprep.subr.mxu0 0.0
  %1806 = vmatpush1.msra.mxu0 0.0
  %1807 = vmatprep.subr.mxu0 0.0
  %1808 = vmatpush1.msra.mxu0 0.0
  %1809 = vmatprep.subr.mxu0 0.0
  %1810 = vmatpush1.msra.mxu0 0.0
  %1811 = vmatprep.subr.mxu0 0.0
  %1812 = vmatpush1.msra.mxu0 0.0
  %1813 = vmatprep.subr.mxu0 0.0
  %1814 = vmatpush1.msra.mxu0 0.0
  %1815 = vmatprep.subr.mxu0 0.0
  %1816 = vmatpush1.msra.mxu0 0.0
  %1817 = vmatprep.subr.mxu0 0.0
  %1818 = vmatpush1.msra.mxu0 0.0
  %1819 = vmatprep.subr.mxu0 0.0
  %1820 = vmatpush1.msra.mxu0 0.0
  %1821 = vmatprep.subr.mxu0 0.0
  %1822 = vmatpush1.msra.mxu0 0.0
  %1823 = vmatprep.subr.mxu0 0.0
  %1824 = vmatpush1.msra.mxu0 0.0
  %1825 = vmatprep.subr.mxu0 0.0
  %1826 = vmatpush1.msra.mxu0 0.0
  %1827 = vmatprep.subr.mxu0 0.0
  %1828 = vmatpush1.msra.mxu0 0.0
  %1829 = vmatprep.subr.mxu0 0.0
  %1830 = vmatpush1.msra.mxu0 0.0
  %1831 = vmatprep.subr.mxu0 0.0
  %1832 = vmatpush1.msra.mxu0 0.0
  %1833 = vmatprep.subr.mxu0 0.0
  %1834 = vmatpush1.msra.mxu0 0.0
  %1835 = vmatprep.subr.mxu0 0.0
  %1836 = vmatpush1.msra.mxu0 0.0
  %1837 = vmatprep.subr.mxu0 0.0
  %1838 = vmatpush1.msra.mxu0 0.0
  %1839 = vmatprep.subr.mxu0 0.0
  %1840 = vmatpush1.msra.mxu0 0.0
  %1841 = vmatprep.subr.mxu0 0.0
  %1842 = vmatpush1.msra.mxu0 0.0
  %1843 = vmatprep.subr.mxu0 0.0
  %1844 = vmatpush1.msra.mxu0 0.0
  %1845 = vmatprep.subr.mxu0 0.0
  %1846 = vmatpush1.msra.mxu0 0.0
  %1847 = vmatprep.subr.mxu0 0.0
  %1848 = vmatpush1.msra.mxu0 0.0
  %1849 = vmatprep.subr.mxu0 0.0
  %1850 = vmatpush1.msra.mxu0 0.0
  %1851 = vmatprep.subr.mxu0 0.0
  %1852 = vmatpush1.msra.mxu0 0.0
  %1853 = vmatprep.subr.mxu0 0.0
  %1854 = vmatpush1.msra.mxu0 0.0
  %1855 = vmatprep.subr.mxu0 0.0
  %1856 = vmatpush1.msra.mxu0 0.0
  %1857 = vmatprep.mubr.f32.mxu0 0.0
  %1858 = vmatmul.mubr.f32.gmra.mrb[0].mxu0 %v1791
  %v1859 = vpop.f32.mrb[0].mxu0
  %v1860 = vadd.f32 0.0, %v1859
  %v1861 = vpop.f32.mrb[0].mxu0
  %1862 = vdwg.mxu0
  %v1863 = vld [vmem:[#allocation4 + $0x20] sm:$0xff]
  %v1864 = vadd.f32 %v1863, %v1860
  %v1865 = vxor.u32 %v1864, 2147483648
  %v1866 = vmul.f32 %v1865, 1.442695
  %v1867 = vpow.pop %v1866
  %v1868 = vadd.f32 %v1867, 1.0
  %v1869 = vrcp.pop %v1868
  %v1870 = vmul.f32 1.0, %v1869
  %v1871 = vadd.f32 %v1860, %v923
  %1873 = vrot.lane.b32.xlu0 %v1871, 64
  %v1874 = vpop.permute.xlu0 %1873
  %v1876 = vmul.f32 %v1870, %v1874
  %1878 = vrot.lane.b32.xlu0 %v1876, 64
  %v1879 = vpop.permute.xlu0 %1878
  %v1881 = vadd.f32 %v1863, %v1879
  %v1882 = vtanh.pop %v1881
  %v1883 = vsub.f32 1.0, %v1870
  %1885 = vrot.lane.b32.xlu0 %v1882, 96
  %v1886 = vpop.permute.xlu0 %1885
  %v1888 = vmul.f32 %v1883, %v1886
  %v1889 = vmul.f32 %v1870, %v1613
  %v1890 = vadd.f32 %v1888, %v1889
  %1891 = vmatprep.subr.mxu0 0.0
  %1892 = vmatpush1.msra.mxu0 %v826
  %1893 = vmatprep.subr.mxu0 0.0
  %1894 = vmatpush1.msra.mxu0 %v827
  %1895 = vmatprep.subr.mxu0 0.0
  %1896 = vmatpush1.msra.mxu0 %v828
  %1897 = vmatprep.subr.mxu0 0.0
  %1898 = vmatpush1.msra.mxu0 %v829
  %1899 = vmatprep.subr.mxu0 0.0
  %1900 = vmatpush1.msra.mxu0 0.0
  %1901 = vmatprep.subr.mxu0 0.0
  %1902 = vmatpush1.msra.mxu0 0.0
  %1903 = vmatprep.subr.mxu0 0.0
  %1904 = vmatpush1.msra.mxu0 0.0
  %1905 = vmatprep.subr.mxu0 0.0
  %1906 = vmatpush1.msra.mxu0 0.0
  %1907 = vmatprep.subr.mxu0 0.0
  %1908 = vmatpush1.msra.mxu0 0.0
  %1909 = vmatprep.subr.mxu0 0.0
  %1910 = vmatpush1.msra.mxu0 0.0
  %1911 = vmatprep.subr.mxu0 0.0
  %1912 = vmatpush1.msra.mxu0 0.0
  %1913 = vmatprep.subr.mxu0 0.0
  %1914 = vmatpush1.msra.mxu0 0.0
  %1915 = vmatprep.subr.mxu0 0.0
  %1916 = vmatpush1.msra.mxu0 0.0
  %1917 = vmatprep.subr.mxu0 0.0
  %1918 = vmatpush1.msra.mxu0 0.0
  %1919 = vmatprep.subr.mxu0 0.0
  %1920 = vmatpush1.msra.mxu0 0.0
  %1921 = vmatprep.subr.mxu0 0.0
  %1922 = vmatpush1.msra.mxu0 0.0
  %1923 = vmatprep.subr.mxu0 0.0
  %1924 = vmatpush1.msra.mxu0 0.0
  %1925 = vmatprep.subr.mxu0 0.0
  %1926 = vmatpush1.msra.mxu0 0.0
  %1927 = vmatprep.subr.mxu0 0.0
  %1928 = vmatpush1.msra.mxu0 0.0
  %1929 = vmatprep.subr.mxu0 0.0
  %1930 = vmatpush1.msra.mxu0 0.0
  %1931 = vmatprep.subr.mxu0 0.0
  %1932 = vmatpush1.msra.mxu0 0.0
  %1933 = vmatprep.subr.mxu0 0.0
  %1934 = vmatpush1.msra.mxu0 0.0
  %1935 = vmatprep.subr.mxu0 0.0
  %1936 = vmatpush1.msra.mxu0 0.0
  %1937 = vmatprep.subr.mxu0 0.0
  %1938 = vmatpush1.msra.mxu0 0.0
  %1939 = vmatprep.subr.mxu0 0.0
  %1940 = vmatpush1.msra.mxu0 0.0
  %1941 = vmatprep.subr.mxu0 0.0
  %1942 = vmatpush1.msra.mxu0 0.0
  %1943 = vmatprep.subr.mxu0 0.0
  %1944 = vmatpush1.msra.mxu0 0.0
  %1945 = vmatprep.subr.mxu0 0.0
  %1946 = vmatpush1.msra.mxu0 0.0
  %1947 = vmatprep.subr.mxu0 0.0
  %1948 = vmatpush1.msra.mxu0 0.0
  %1949 = vmatprep.subr.mxu0 0.0
  %1950 = vmatpush1.msra.mxu0 0.0
  %1951 = vmatprep.subr.mxu0 0.0
  %1952 = vmatpush1.msra.mxu0 0.0
  %1953 = vmatprep.subr.mxu0 0.0
  %1954 = vmatpush1.msra.mxu0 0.0
  %1955 = vmatprep.mubr.f32.mxu0 0.0
  %1956 = vmatmul.mubr.f32.gmra.mrb[0].mxu0 %v1791
  %v1957 = vpop.f32.mrb[0].mxu0
  %v1958 = vadd.f32 %v1052, %v1957
  %v1959 = vpop.f32.mrb[0].mxu0
  %1960 = vdwg.mxu0
  %v1961 = vsel %vm71, %v1785, 0
  %1963 = vmatprep.subr.mxu0 0.0
  %1964 = vmatpush1.msra.mxu0 %v831
  %1965 = vmatprep.subr.mxu0 0.0
  %1966 = vmatpush1.msra.mxu0 %v832
  %1967 = vmatprep.subr.mxu0 0.0
  %1968 = vmatpush1.msra.mxu0 %v833
  %1969 = vmatprep.subr.mxu0 0.0
  %1970 = vmatpush1.msra.mxu0 %v834
  %1971 = vmatprep.subr.mxu0 0.0
  %1972 = vmatpush1.msra.mxu0 0.0
  %1973 = vmatprep.subr.mxu0 0.0
  %1974 = vmatpush1.msra.mxu0 0.0
  %1975 = vmatprep.subr.mxu0 0.0
  %1976 = vmatpush1.msra.mxu0 0.0
  %1977 = vmatprep.subr.mxu0 0.0
  %1978 = vmatpush1.msra.mxu0 0.0
  %1979 = vmatprep.subr.mxu0 0.0
  %1980 = vmatpush1.msra.mxu0 0.0
  %1981 = vmatprep.subr.mxu0 0.0
  %1982 = vmatpush1.msra.mxu0 0.0
  %1983 = vmatprep.subr.mxu0 0.0
  %1984 = vmatpush1.msra.mxu0 0.0
  %1985 = vmatprep.subr.mxu0 0.0
  %1986 = vmatpush1.msra.mxu0 0.0
  %1987 = vmatprep.subr.mxu0 0.0
  %1988 = vmatpush1.msra.mxu0 0.0
  %1989 = vmatprep.subr.mxu0 0.0
  %1990 = vmatpush1.msra.mxu0 0.0
  %1991 = vmatprep.subr.mxu0 0.0
  %1992 = vmatpush1.msra.mxu0 0.0
  %1993 = vmatprep.subr.mxu0 0.0
  %1994 = vmatpush1.msra.mxu0 0.0
  %1995 = vmatprep.subr.mxu0 0.0
  %1996 = vmatpush1.msra.mxu0 0.0
  %1997 = vmatprep.subr.mxu0 0.0
  %1998 = vmatpush1.msra.mxu0 0.0
  %1999 = vmatprep.subr.mxu0 0.0
  %2000 = vmatpush1.msra.mxu0 0.0
  %2001 = vmatprep.subr.mxu0 0.0
  %2002 = vmatpush1.msra.mxu0 0.0
  %2003 = vmatprep.subr.mxu0 0.0
  %2004 = vmatpush1.msra.mxu0 0.0
  %2005 = vmatprep.subr.mxu0 0.0
  %2006 = vmatpush1.msra.mxu0 0.0
  %2007 = vmatprep.subr.mxu0 0.0
  %2008 = vmatpush1.msra.mxu0 0.0
  %2009 = vmatprep.subr.mxu0 0.0
  %2010 = vmatpush1.msra.mxu0 0.0
  %2011 = vmatprep.subr.mxu0 0.0
  %2012 = vmatpush1.msra.mxu0 0.0
  %2013 = vmatprep.subr.mxu0 0.0
  %2014 = vmatpush1.msra.mxu0 0.0
  %2015 = vmatprep.subr.mxu0 0.0
  %2016 = vmatpush1.msra.mxu0 0.0
  %2017 = vmatprep.subr.mxu0 0.0
  %2018 = vmatpush1.msra.mxu0 0.0
  %2019 = vmatprep.subr.mxu0 0.0
  %2020 = vmatpush1.msra.mxu0 0.0
  %2021 = vmatprep.subr.mxu0 0.0
  %2022 = vmatpush1.msra.mxu0 0.0
  %2023 = vmatprep.subr.mxu0 0.0
  %2024 = vmatpush1.msra.mxu0 0.0
  %2025 = vmatprep.subr.mxu0 0.0
  %2026 = vmatpush1.msra.mxu0 0.0
  %2027 = vmatprep.mubr.f32.mxu0 0.0
  %2028 = vmatmul.mubr.f32.gmra.mrb[0].mxu0 %v1961
  %v2029 = vpop.f32.mrb[0].mxu0
  %v2030 = vadd.f32 0.0, %v2029
  %v2031 = vpop.f32.mrb[0].mxu0
  %2032 = vdwg.mxu0
  %v2033 = vadd.f32 %v1958, %v2030
  %v2034 = vxor.u32 %v2033, 2147483648
  %v2035 = vmul.f32 %v2034, 1.442695
  %v2036 = vpow.pop %v2035
  %v2037 = vadd.f32 %v2036, 1.0
  %v2038 = vrcp.pop %v2037
  %v2039 = vmul.f32 1.0, %v2038
  %v2040 = vadd.f32 %v2030, %v1207
  %2042 = vrot.lane.b32.xlu0 %v2040, 64
  %v2043 = vpop.permute.xlu0 %2042
  %v2045 = vmul.f32 %v2039, %v2043
  %2047 = vrot.lane.b32.xlu0 %v2045, 64
  %v2048 = vpop.permute.xlu0 %2047
  %v2050 = vadd.f32 %v1958, %v2048
  %v2051 = vtanh.pop %v2050
  %v2052 = vsub.f32 1.0, %v2039
  %2054 = vrot.lane.b32.xlu0 %v2051, 96
  %v2055 = vpop.permute.xlu0 %2054
  %v2057 = vmul.f32 %v2052, %v2055
  %v2058 = vmul.f32 %v2039, %v1782
  %v2059 = vadd.f32 %v2057, %v2058
  %2061 = vrot.lane.b32.xlu0 %v2059, 96
  %v2062 = vpop.permute.xlu0 %2061
  %2064 = vst.msk [vmem:[#allocation5 + $0x18] sm:$0xff] %vm71, %v2062
  %2066 = vrot.lane.b32.xlu0 %v1890, 96
  %v2067 = vpop.permute.xlu0 %2066
  %v2068 = vsel %vm71, %v2067, 0
  %2070 = vmatprep.subr.mxu0 0.0
  %2071 = vmatpush1.msra.mxu0 %v821
  %2072 = vmatprep.subr.mxu0 0.0
  %2073 = vmatpush1.msra.mxu0 %v822
  %2074 = vmatprep.subr.mxu0 0.0
  %2075 = vmatpush1.msra.mxu0 %v823
  %2076 = vmatprep.subr.mxu0 0.0
  %2077 = vmatpush1.msra.mxu0 %v824
  %2078 = vmatprep.subr.mxu0 0.0
  %2079 = vmatpush1.msra.mxu0 0.0
  %2080 = vmatprep.subr.mxu0 0.0
  %2081 = vmatpush1.msra.mxu0 0.0
  %2082 = vmatprep.subr.mxu0 0.0
  %2083 = vmatpush1.msra.mxu0 0.0
  %2084 = vmatprep.subr.mxu0 0.0
  %2085 = vmatpush1.msra.mxu0 0.0
  %2086 = vmatprep.subr.mxu0 0.0
  %2087 = vmatpush1.msra.mxu0 0.0
  %2088 = vmatprep.subr.mxu0 0.0
  %2089 = vmatpush1.msra.mxu0 0.0
  %2090 = vmatprep.subr.mxu0 0.0
  %2091 = vmatpush1.msra.mxu0 0.0
  %2092 = vmatprep.subr.mxu0 0.0
  %2093 = vmatpush1.msra.mxu0 0.0
  %2094 = vmatprep.subr.mxu0 0.0
  %2095 = vmatpush1.msra.mxu0 0.0
  %2096 = vmatprep.subr.mxu0 0.0
  %2097 = vmatpush1.msra.mxu0 0.0
  %2098 = vmatprep.subr.mxu0 0.0
  %2099 = vmatpush1.msra.mxu0 0.0
  %2100 = vmatprep.subr.mxu0 0.0
  %2101 = vmatpush1.msra.mxu0 0.0
  %2102 = vmatprep.subr.mxu0 0.0
  %2103 = vmatpush1.msra.mxu0 0.0
  %2104 = vmatprep.subr.mxu0 0.0
  %2105 = vmatpush1.msra.mxu0 0.0
  %2106 = vmatprep.subr.mxu0 0.0
  %2107 = vmatpush1.msra.mxu0 0.0
  %2108 = vmatprep.subr.mxu0 0.0
  %2109 = vmatpush1.msra.mxu0 0.0
  %2110 = vmatprep.subr.mxu0 0.0
  %2111 = vmatpush1.msra.mxu0 0.0
  %2112 = vmatprep.subr.mxu0 0.0
  %2113 = vmatpush1.msra.mxu0 0.0
  %2114 = vmatprep.subr.mxu0 0.0
  %2115 = vmatpush1.msra.mxu0 0.0
  %2116 = vmatprep.subr.mxu0 0.0
  %2117 = vmatpush1.msra.mxu0 0.0
  %2118 = vmatprep.subr.mxu0 0.0
  %2119 = vmatpush1.msra.mxu0 0.0
  %2120 = vmatprep.subr.mxu0 0.0
  %2121 = vmatpush1.msra.mxu0 0.0
  %2122 = vmatprep.subr.mxu0 0.0
  %2123 = vmatpush1.msra.mxu0 0.0
  %2124 = vmatprep.subr.mxu0 0.0
  %2125 = vmatpush1.msra.mxu0 0.0
  %2126 = vmatprep.subr.mxu0 0.0
  %2127 = vmatpush1.msra.mxu0 0.0
  %2128 = vmatprep.subr.mxu0 0.0
  %2129 = vmatpush1.msra.mxu0 0.0
  %2130 = vmatprep.subr.mxu0 0.0
  %2131 = vmatpush1.msra.mxu0 0.0
  %2132 = vmatprep.subr.mxu0 0.0
  %2133 = vmatpush1.msra.mxu0 0.0
  %2134 = vmatprep.mubr.f32.mxu0 0.0
  %2135 = vmatmul.mubr.f32.gmra.mrb[0].mxu0 %v2068
  %v2136 = vpop.f32.mrb[0].mxu0
  %v2137 = vadd.f32 0.0, %v2136
  %v2138 = vpop.f32.mrb[0].mxu0
  %2139 = vdwg.mxu0
  %v2140 = vld [vmem:[#allocation4 + $0x28] sm:$0xff]
  %v2141 = vadd.f32 %v2140, %v2137
  %v2142 = vxor.u32 %v2141, 2147483648
  %v2143 = vmul.f32 %v2142, 1.442695
  %v2144 = vpow.pop %v2143
  %v2145 = vadd.f32 %v2144, 1.0
  %v2146 = vrcp.pop %v2145
  %v2147 = vmul.f32 1.0, %v2146
  %v2148 = vadd.f32 %v2137, %v923
  %2150 = vrot.lane.b32.xlu0 %v2148, 64
  %v2151 = vpop.permute.xlu0 %2150
  %v2153 = vmul.f32 %v2147, %v2151
  %2155 = vrot.lane.b32.xlu0 %v2153, 64
  %v2156 = vpop.permute.xlu0 %2155
  %v2158 = vadd.f32 %v2140, %v2156
  %v2159 = vtanh.pop %v2158
  %v2160 = vsub.f32 1.0, %v2147
  %2162 = vrot.lane.b32.xlu0 %v2159, 96
  %v2163 = vpop.permute.xlu0 %2162
  %v2165 = vmul.f32 %v2160, %v2163
  %v2166 = vmul.f32 %v2147, %v1890
  %v2167 = vadd.f32 %v2165, %v2166
  %2168 = vmatprep.subr.mxu0 0.0
  %2169 = vmatpush1.msra.mxu0 %v826
  %2170 = vmatprep.subr.mxu0 0.0
  %2171 = vmatpush1.msra.mxu0 %v827
  %2172 = vmatprep.subr.mxu0 0.0
  %2173 = vmatpush1.msra.mxu0 %v828
  %2174 = vmatprep.subr.mxu0 0.0
  %2175 = vmatpush1.msra.mxu0 %v829
  %2176 = vmatprep.subr.mxu0 0.0
  %2177 = vmatpush1.msra.mxu0 0.0
  %2178 = vmatprep.subr.mxu0 0.0
  %2179 = vmatpush1.msra.mxu0 0.0
  %2180 = vmatprep.subr.mxu0 0.0
  %2181 = vmatpush1.msra.mxu0 0.0
  %2182 = vmatprep.subr.mxu0 0.0
  %2183 = vmatpush1.msra.mxu0 0.0
  %2184 = vmatprep.subr.mxu0 0.0
  %2185 = vmatpush1.msra.mxu0 0.0
  %2186 = vmatprep.subr.mxu0 0.0
  %2187 = vmatpush1.msra.mxu0 0.0
  %2188 = vmatprep.subr.mxu0 0.0
  %2189 = vmatpush1.msra.mxu0 0.0
  %2190 = vmatprep.subr.mxu0 0.0
  %2191 = vmatpush1.msra.mxu0 0.0
  %2192 = vmatprep.subr.mxu0 0.0
  %2193 = vmatpush1.msra.mxu0 0.0
  %2194 = vmatprep.subr.mxu0 0.0
  %2195 = vmatpush1.msra.mxu0 0.0
  %2196 = vmatprep.subr.mxu0 0.0
  %2197 = vmatpush1.msra.mxu0 0.0
  %2198 = vmatprep.subr.mxu0 0.0
  %2199 = vmatpush1.msra.mxu0 0.0
  %2200 = vmatprep.subr.mxu0 0.0
  %2201 = vmatpush1.msra.mxu0 0.0
  %2202 = vmatprep.subr.mxu0 0.0
  %2203 = vmatpush1.msra.mxu0 0.0
  %2204 = vmatprep.subr.mxu0 0.0
  %2205 = vmatpush1.msra.mxu0 0.0
  %2206 = vmatprep.subr.mxu0 0.0
  %2207 = vmatpush1.msra.mxu0 0.0
  %2208 = vmatprep.subr.mxu0 0.0
  %2209 = vmatpush1.msra.mxu0 0.0
  %2210 = vmatprep.subr.mxu0 0.0
  %2211 = vmatpush1.msra.mxu0 0.0
  %2212 = vmatprep.subr.mxu0 0.0
  %2213 = vmatpush1.msra.mxu0 0.0
  %2214 = vmatprep.subr.mxu0 0.0
  %2215 = vmatpush1.msra.mxu0 0.0
  %2216 = vmatprep.subr.mxu0 0.0
  %2217 = vmatpush1.msra.mxu0 0.0
  %2218 = vmatprep.subr.mxu0 0.0
  %2219 = vmatpush1.msra.mxu0 0.0
  %2220 = vmatprep.subr.mxu0 0.0
  %2221 = vmatpush1.msra.mxu0 0.0
  %2222 = vmatprep.subr.mxu0 0.0
  %2223 = vmatpush1.msra.mxu0 0.0
  %2224 = vmatprep.subr.mxu0 0.0
  %2225 = vmatpush1.msra.mxu0 0.0
  %2226 = vmatprep.subr.mxu0 0.0
  %2227 = vmatpush1.msra.mxu0 0.0
  %2228 = vmatprep.subr.mxu0 0.0
  %2229 = vmatpush1.msra.mxu0 0.0
  %2230 = vmatprep.subr.mxu0 0.0
  %2231 = vmatpush1.msra.mxu0 0.0
  %2232 = vmatprep.mubr.f32.mxu0 0.0
  %2233 = vmatmul.mubr.f32.gmra.mrb[0].mxu0 %v2068
  %v2234 = vpop.f32.mrb[0].mxu0
  %v2235 = vadd.f32 %v1052, %v2234
  %v2236 = vpop.f32.mrb[0].mxu0
  %2237 = vdwg.mxu0
  %v2238 = vsel %vm71, %v2062, 0
  %2240 = vmatprep.subr.mxu0 0.0
  %2241 = vmatpush1.msra.mxu0 %v831
  %2242 = vmatprep.subr.mxu0 0.0
  %2243 = vmatpush1.msra.mxu0 %v832
  %2244 = vmatprep.subr.mxu0 0.0
  %2245 = vmatpush1.msra.mxu0 %v833
  %2246 = vmatprep.subr.mxu0 0.0
  %2247 = vmatpush1.msra.mxu0 %v834
  %2248 = vmatprep.subr.mxu0 0.0
  %2249 = vmatpush1.msra.mxu0 0.0
  %2250 = vmatprep.subr.mxu0 0.0
  %2251 = vmatpush1.msra.mxu0 0.0
  %2252 = vmatprep.subr.mxu0 0.0
  %2253 = vmatpush1.msra.mxu0 0.0
  %2254 = vmatprep.subr.mxu0 0.0
  %2255 = vmatpush1.msra.mxu0 0.0
  %2256 = vmatprep.subr.mxu0 0.0
  %2257 = vmatpush1.msra.mxu0 0.0
  %2258 = vmatprep.subr.mxu0 0.0
  %2259 = vmatpush1.msra.mxu0 0.0
  %2260 = vmatprep.subr.mxu0 0.0
  %2261 = vmatpush1.msra.mxu0 0.0
  %2262 = vmatprep.subr.mxu0 0.0
  %2263 = vmatpush1.msra.mxu0 0.0
  %2264 = vmatprep.subr.mxu0 0.0
  %2265 = vmatpush1.msra.mxu0 0.0
  %2266 = vmatprep.subr.mxu0 0.0
  %2267 = vmatpush1.msra.mxu0 0.0
  %2268 = vmatprep.subr.mxu0 0.0
  %2269 = vmatpush1.msra.mxu0 0.0
  %2270 = vmatprep.subr.mxu0 0.0
  %2271 = vmatpush1.msra.mxu0 0.0
  %2272 = vmatprep.subr.mxu0 0.0
  %2273 = vmatpush1.msra.mxu0 0.0
  %2274 = vmatprep.subr.mxu0 0.0
  %2275 = vmatpush1.msra.mxu0 0.0
  %2276 = vmatprep.subr.mxu0 0.0
  %2277 = vmatpush1.msra.mxu0 0.0
  %2278 = vmatprep.subr.mxu0 0.0
  %2279 = vmatpush1.msra.mxu0 0.0
  %2280 = vmatprep.subr.mxu0 0.0
  %2281 = vmatpush1.msra.mxu0 0.0
  %2282 = vmatprep.subr.mxu0 0.0
  %2283 = vmatpush1.msra.mxu0 0.0
  %2284 = vmatprep.subr.mxu0 0.0
  %2285 = vmatpush1.msra.mxu0 0.0
  %2286 = vmatprep.subr.mxu0 0.0
  %2287 = vmatpush1.msra.mxu0 0.0
  %2288 = vmatprep.subr.mxu0 0.0
  %2289 = vmatpush1.msra.mxu0 0.0
  %2290 = vmatprep.subr.mxu0 0.0
  %2291 = vmatpush1.msra.mxu0 0.0
  %2292 = vmatprep.subr.mxu0 0.0
  %2293 = vmatpush1.msra.mxu0 0.0
  %2294 = vmatprep.subr.mxu0 0.0
  %2295 = vmatpush1.msra.mxu0 0.0
  %2296 = vmatprep.subr.mxu0 0.0
  %2297 = vmatpush1.msra.mxu0 0.0
  %2298 = vmatprep.subr.mxu0 0.0
  %2299 = vmatpush1.msra.mxu0 0.0
  %2300 = vmatprep.subr.mxu0 0.0
  %2301 = vmatpush1.msra.mxu0 0.0
  %2302 = vmatprep.subr.mxu0 0.0
  %2303 = vmatpush1.msra.mxu0 0.0
  %2304 = vmatprep.mubr.f32.mxu0 0.0
  %2305 = vmatmul.mubr.f32.gmra.mrb[0].mxu0 %v2238
  %v2306 = vpop.f32.mrb[0].mxu0
  %v2307 = vadd.f32 0.0, %v2306
  %v2308 = vpop.f32.mrb[0].mxu0
  %2309 = vdwg.mxu0
  %v2310 = vadd.f32 %v2235, %v2307
  %v2311 = vxor.u32 %v2310, 2147483648
  %v2312 = vmul.f32 %v2311, 1.442695
  %v2313 = vpow.pop %v2312
  %v2314 = vadd.f32 %v2313, 1.0
  %v2315 = vrcp.pop %v2314
  %v2316 = vmul.f32 1.0, %v2315
  %v2317 = vadd.f32 %v2307, %v1207
  %2319 = vrot.lane.b32.xlu0 %v2317, 64
  %v2320 = vpop.permute.xlu0 %2319
  %v2322 = vmul.f32 %v2316, %v2320
  %2324 = vrot.lane.b32.xlu0 %v2322, 64
  %v2325 = vpop.permute.xlu0 %2324
  %v2327 = vadd.f32 %v2235, %v2325
  %v2328 = vtanh.pop %v2327
  %v2329 = vsub.f32 1.0, %v2316
  %2331 = vrot.lane.b32.xlu0 %v2328, 96
  %v2332 = vpop.permute.xlu0 %2331
  %v2334 = vmul.f32 %v2329, %v2332
  %v2335 = vmul.f32 %v2316, %v2059
  %v2336 = vadd.f32 %v2334, %v2335
  %2338 = vrot.lane.b32.xlu0 %v2336, 96
  %v2339 = vpop.permute.xlu0 %2338
  %2341 = vst.msk [vmem:[#allocation5 + $0x20] sm:$0xff] %vm71, %v2339
  %2343 = vrot.lane.b32.xlu0 %v2167, 96
  %v2344 = vpop.permute.xlu0 %2343
  %v2345 = vsel %vm71, %v2344, 0
  %2347 = vmatprep.subr.mxu0 0.0
  %2348 = vmatpush1.msra.mxu0 %v821
  %2349 = vmatprep.subr.mxu0 0.0
  %2350 = vmatpush1.msra.mxu0 %v822
  %2351 = vmatprep.subr.mxu0 0.0
  %2352 = vmatpush1.msra.mxu0 %v823
  %2353 = vmatprep.subr.mxu0 0.0
  %2354 = vmatpush1.msra.mxu0 %v824
  %2355 = vmatprep.subr.mxu0 0.0
  %2356 = vmatpush1.msra.mxu0 0.0
  %2357 = vmatprep.subr.mxu0 0.0
  %2358 = vmatpush1.msra.mxu0 0.0
  %2359 = vmatprep.subr.mxu0 0.0
  %2360 = vmatpush1.msra.mxu0 0.0
  %2361 = vmatprep.subr.mxu0 0.0
  %2362 = vmatpush1.msra.mxu0 0.0
  %2363 = vmatprep.subr.mxu0 0.0
  %2364 = vmatpush1.msra.mxu0 0.0
  %2365 = vmatprep.subr.mxu0 0.0
  %2366 = vmatpush1.msra.mxu0 0.0
  %2367 = vmatprep.subr.mxu0 0.0
  %2368 = vmatpush1.msra.mxu0 0.0
  %2369 = vmatprep.subr.mxu0 0.0
  %2370 = vmatpush1.msra.mxu0 0.0
  %2371 = vmatprep.subr.mxu0 0.0
  %2372 = vmatpush1.msra.mxu0 0.0
  %2373 = vmatprep.subr.mxu0 0.0
  %2374 = vmatpush1.msra.mxu0 0.0
  %2375 = vmatprep.subr.mxu0 0.0
  %2376 = vmatpush1.msra.mxu0 0.0
  %2377 = vmatprep.subr.mxu0 0.0
  %2378 = vmatpush1.msra.mxu0 0.0
  %2379 = vmatprep.subr.mxu0 0.0
  %2380 = vmatpush1.msra.mxu0 0.0
  %2381 = vmatprep.subr.mxu0 0.0
  %2382 = vmatpush1.msra.mxu0 0.0
  %2383 = vmatprep.subr.mxu0 0.0
  %2384 = vmatpush1.msra.mxu0 0.0
  %2385 = vmatprep.subr.mxu0 0.0
  %2386 = vmatpush1.msra.mxu0 0.0
  %2387 = vmatprep.subr.mxu0 0.0
  %2388 = vmatpush1.msra.mxu0 0.0
  %2389 = vmatprep.subr.mxu0 0.0
  %2390 = vmatpush1.msra.mxu0 0.0
  %2391 = vmatprep.subr.mxu0 0.0
  %2392 = vmatpush1.msra.mxu0 0.0
  %2393 = vmatprep.subr.mxu0 0.0
  %2394 = vmatpush1.msra.mxu0 0.0
  %2395 = vmatprep.subr.mxu0 0.0
  %2396 = vmatpush1.msra.mxu0 0.0
  %2397 = vmatprep.subr.mxu0 0.0
  %2398 = vmatpush1.msra.mxu0 0.0
  %2399 = vmatprep.subr.mxu0 0.0
  %2400 = vmatpush1.msra.mxu0 0.0
  %2401 = vmatprep.subr.mxu0 0.0
  %2402 = vmatpush1.msra.mxu0 0.0
  %2403 = vmatprep.subr.mxu0 0.0
  %2404 = vmatpush1.msra.mxu0 0.0
  %2405 = vmatprep.subr.mxu0 0.0
  %2406 = vmatpush1.msra.mxu0 0.0
  %2407 = vmatprep.subr.mxu0 0.0
  %2408 = vmatpush1.msra.mxu0 0.0
  %2409 = vmatprep.subr.mxu0 0.0
  %2410 = vmatpush1.msra.mxu0 0.0
  %2411 = vmatprep.mubr.f32.mxu0 0.0
  %2412 = vmatmul.mubr.f32.gmra.mrb[0].mxu0 %v2345
  %v2413 = vpop.f32.mrb[0].mxu0
  %v2414 = vadd.f32 0.0, %v2413
  %v2415 = vpop.f32.mrb[0].mxu0
  %2416 = vdwg.mxu0
  %v2417 = vld [vmem:[#allocation4 + $0x30] sm:$0xff]
  %v2418 = vadd.f32 %v2417, %v2414
  %v2419 = vxor.u32 %v2418, 2147483648
  %v2420 = vmul.f32 %v2419, 1.442695
  %v2421 = vpow.pop %v2420
  %v2422 = vadd.f32 %v2421, 1.0
  %v2423 = vrcp.pop %v2422
  %v2424 = vmul.f32 1.0, %v2423
  %v2425 = vadd.f32 %v2414, %v923
  %2427 = vrot.lane.b32.xlu0 %v2425, 64
  %v2428 = vpop.permute.xlu0 %2427
  %v2430 = vmul.f32 %v2424, %v2428
  %2432 = vrot.lane.b32.xlu0 %v2430, 64
  %v2433 = vpop.permute.xlu0 %2432
  %v2435 = vadd.f32 %v2417, %v2433
  %v2436 = vtanh.pop %v2435
  %v2437 = vsub.f32 1.0, %v2424
  %2439 = vrot.lane.b32.xlu0 %v2436, 96
  %v2440 = vpop.permute.xlu0 %2439
  %v2442 = vmul.f32 %v2437, %v2440
  %v2443 = vmul.f32 %v2424, %v2167
  %v2444 = vadd.f32 %v2442, %v2443
  %2445 = vmatprep.subr.mxu0 0.0
  %2446 = vmatpush1.msra.mxu0 %v826
  %2447 = vmatprep.subr.mxu0 0.0
  %2448 = vmatpush1.msra.mxu0 %v827
  %2449 = vmatprep.subr.mxu0 0.0
  %2450 = vmatpush1.msra.mxu0 %v828
  %2451 = vmatprep.subr.mxu0 0.0
  %2452 = vmatpush1.msra.mxu0 %v829
  %2453 = vmatprep.subr.mxu0 0.0
  %2454 = vmatpush1.msra.mxu0 0.0
  %2455 = vmatprep.subr.mxu0 0.0
  %2456 = vmatpush1.msra.mxu0 0.0
  %2457 = vmatprep.subr.mxu0 0.0
  %2458 = vmatpush1.msra.mxu0 0.0
  %2459 = vmatprep.subr.mxu0 0.0
  %2460 = vmatpush1.msra.mxu0 0.0
  %2461 = vmatprep.subr.mxu0 0.0
  %2462 = vmatpush1.msra.mxu0 0.0
  %2463 = vmatprep.subr.mxu0 0.0
  %2464 = vmatpush1.msra.mxu0 0.0
  %2465 = vmatprep.subr.mxu0 0.0
  %2466 = vmatpush1.msra.mxu0 0.0
  %2467 = vmatprep.subr.mxu0 0.0
  %2468 = vmatpush1.msra.mxu0 0.0
  %2469 = vmatprep.subr.mxu0 0.0
  %2470 = vmatpush1.msra.mxu0 0.0
  %2471 = vmatprep.subr.mxu0 0.0
  %2472 = vmatpush1.msra.mxu0 0.0
  %2473 = vmatprep.subr.mxu0 0.0
  %2474 = vmatpush1.msra.mxu0 0.0
  %2475 = vmatprep.subr.mxu0 0.0
  %2476 = vmatpush1.msra.mxu0 0.0
  %2477 = vmatprep.subr.mxu0 0.0
  %2478 = vmatpush1.msra.mxu0 0.0
  %2479 = vmatprep.subr.mxu0 0.0
  %2480 = vmatpush1.msra.mxu0 0.0
  %2481 = vmatprep.subr.mxu0 0.0
  %2482 = vmatpush1.msra.mxu0 0.0
  %2483 = vmatprep.subr.mxu0 0.0
  %2484 = vmatpush1.msra.mxu0 0.0
  %2485 = vmatprep.subr.mxu0 0.0
  %2486 = vmatpush1.msra.mxu0 0.0
  %2487 = vmatprep.subr.mxu0 0.0
  %2488 = vmatpush1.msra.mxu0 0.0
  %2489 = vmatprep.subr.mxu0 0.0
  %2490 = vmatpush1.msra.mxu0 0.0
  %2491 = vmatprep.subr.mxu0 0.0
  %2492 = vmatpush1.msra.mxu0 0.0
  %2493 = vmatprep.subr.mxu0 0.0
  %2494 = vmatpush1.msra.mxu0 0.0
  %2495 = vmatprep.subr.mxu0 0.0
  %2496 = vmatpush1.msra.mxu0 0.0
  %2497 = vmatprep.subr.mxu0 0.0
  %2498 = vmatpush1.msra.mxu0 0.0
  %2499 = vmatprep.subr.mxu0 0.0
  %2500 = vmatpush1.msra.mxu0 0.0
  %2501 = vmatprep.subr.mxu0 0.0
  %2502 = vmatpush1.msra.mxu0 0.0
  %2503 = vmatprep.subr.mxu0 0.0
  %2504 = vmatpush1.msra.mxu0 0.0
  %2505 = vmatprep.subr.mxu0 0.0
  %2506 = vmatpush1.msra.mxu0 0.0
  %2507 = vmatprep.subr.mxu0 0.0
  %2508 = vmatpush1.msra.mxu0 0.0
  %2509 = vmatprep.mubr.f32.mxu0 0.0
  %2510 = vmatmul.mubr.f32.gmra.mrb[0].mxu0 %v2345
  %v2511 = vpop.f32.mrb[0].mxu0
  %v2512 = vadd.f32 %v1052, %v2511
  %v2513 = vpop.f32.mrb[0].mxu0
  %2514 = vdwg.mxu0
  %v2515 = vsel %vm71, %v2339, 0
  %2517 = vmatprep.subr.mxu0 0.0
  %2518 = vmatpush1.msra.mxu0 %v831
  %2519 = vmatprep.subr.mxu0 0.0
  %2520 = vmatpush1.msra.mxu0 %v832
  %2521 = vmatprep.subr.mxu0 0.0
  %2522 = vmatpush1.msra.mxu0 %v833
  %2523 = vmatprep.subr.mxu0 0.0
  %2524 = vmatpush1.msra.mxu0 %v834
  %2525 = vmatprep.subr.mxu0 0.0
  %2526 = vmatpush1.msra.mxu0 0.0
  %2527 = vmatprep.subr.mxu0 0.0
  %2528 = vmatpush1.msra.mxu0 0.0
  %2529 = vmatprep.subr.mxu0 0.0
  %2530 = vmatpush1.msra.mxu0 0.0
  %2531 = vmatprep.subr.mxu0 0.0
  %2532 = vmatpush1.msra.mxu0 0.0
  %2533 = vmatprep.subr.mxu0 0.0
  %2534 = vmatpush1.msra.mxu0 0.0
  %2535 = vmatprep.subr.mxu0 0.0
  %2536 = vmatpush1.msra.mxu0 0.0
  %2537 = vmatprep.subr.mxu0 0.0
  %2538 = vmatpush1.msra.mxu0 0.0
  %2539 = vmatprep.subr.mxu0 0.0
  %2540 = vmatpush1.msra.mxu0 0.0
  %2541 = vmatprep.subr.mxu0 0.0
  %2542 = vmatpush1.msra.mxu0 0.0
  %2543 = vmatprep.subr.mxu0 0.0
  %2544 = vmatpush1.msra.mxu0 0.0
  %2545 = vmatprep.subr.mxu0 0.0
  %2546 = vmatpush1.msra.mxu0 0.0
  %2547 = vmatprep.subr.mxu0 0.0
  %2548 = vmatpush1.msra.mxu0 0.0
  %2549 = vmatprep.subr.mxu0 0.0
  %2550 = vmatpush1.msra.mxu0 0.0
  %2551 = vmatprep.subr.mxu0 0.0
  %2552 = vmatpush1.msra.mxu0 0.0
  %2553 = vmatprep.subr.mxu0 0.0
  %2554 = vmatpush1.msra.mxu0 0.0
  %2555 = vmatprep.subr.mxu0 0.0
  %2556 = vmatpush1.msra.mxu0 0.0
  %2557 = vmatprep.subr.mxu0 0.0
  %2558 = vmatpush1.msra.mxu0 0.0
  %2559 = vmatprep.subr.mxu0 0.0
  %2560 = vmatpush1.msra.mxu0 0.0
  %2561 = vmatprep.subr.mxu0 0.0
  %2562 = vmatpush1.msra.mxu0 0.0
  %2563 = vmatprep.subr.mxu0 0.0
  %2564 = vmatpush1.msra.mxu0 0.0
  %2565 = vmatprep.subr.mxu0 0.0
  %2566 = vmatpush1.msra.mxu0 0.0
  %2567 = vmatprep.subr.mxu0 0.0
  %2568 = vmatpush1.msra.mxu0 0.0
  %2569 = vmatprep.subr.mxu0 0.0
  %2570 = vmatpush1.msra.mxu0 0.0
  %2571 = vmatprep.subr.mxu0 0.0
  %2572 = vmatpush1.msra.mxu0 0.0
  %2573 = vmatprep.subr.mxu0 0.0
  %2574 = vmatpush1.msra.mxu0 0.0
  %2575 = vmatprep.subr.mxu0 0.0
  %2576 = vmatpush1.msra.mxu0 0.0
  %2577 = vmatprep.subr.mxu0 0.0
  %2578 = vmatpush1.msra.mxu0 0.0
  %2579 = vmatprep.subr.mxu0 0.0
  %2580 = vmatpush1.msra.mxu0 0.0
  %2581 = vmatprep.mubr.f32.mxu0 0.0
  %2582 = vmatmul.mubr.f32.gmra.mrb[0].mxu0 %v2515
  %v2583 = vpop.f32.mrb[0].mxu0
  %v2584 = vadd.f32 0.0, %v2583
  %v2585 = vpop.f32.mrb[0].mxu0
  %2586 = vdwg.mxu0
  %v2587 = vadd.f32 %v2512, %v2584
  %v2588 = vxor.u32 %v2587, 2147483648
  %v2589 = vmul.f32 %v2588, 1.442695
  %v2590 = vpow.pop %v2589
  %v2591 = vadd.f32 %v2590, 1.0
  %v2592 = vrcp.pop %v2591
  %v2593 = vmul.f32 1.0, %v2592
  %v2594 = vadd.f32 %v2584, %v1207
  %2596 = vrot.lane.b32.xlu0 %v2594, 64
  %v2597 = vpop.permute.xlu0 %2596
  %v2599 = vmul.f32 %v2593, %v2597
  %2601 = vrot.lane.b32.xlu0 %v2599, 64
  %v2602 = vpop.permute.xlu0 %2601
  %v2604 = vadd.f32 %v2512, %v2602
  %v2605 = vtanh.pop %v2604
  %v2606 = vsub.f32 1.0, %v2593
  %2608 = vrot.lane.b32.xlu0 %v2605, 96
  %v2609 = vpop.permute.xlu0 %2608
  %v2611 = vmul.f32 %v2606, %v2609
  %v2612 = vmul.f32 %v2593, %v2336
  %v2613 = vadd.f32 %v2611, %v2612
  %2615 = vrot.lane.b32.xlu0 %v2613, 96
  %v2616 = vpop.permute.xlu0 %2615
  %2618 = vst.msk [vmem:[#allocation5 + $0x28] sm:$0xff] %vm71, %v2616
  %2620 = vrot.lane.b32.xlu0 %v2444, 96
  %v2621 = vpop.permute.xlu0 %2620
  %v2622 = vsel %vm71, %v2621, 0
  %2624 = vmatprep.subr.mxu0 0.0
  %2625 = vmatpush1.msra.mxu0 %v821
  %2626 = vmatprep.subr.mxu0 0.0
  %2627 = vmatpush1.msra.mxu0 %v822
  %2628 = vmatprep.subr.mxu0 0.0
  %2629 = vmatpush1.msra.mxu0 %v823
  %2630 = vmatprep.subr.mxu0 0.0
  %2631 = vmatpush1.msra.mxu0 %v824
  %2632 = vmatprep.subr.mxu0 0.0
  %2633 = vmatpush1.msra.mxu0 0.0
  %2634 = vmatprep.subr.mxu0 0.0
  %2635 = vmatpush1.msra.mxu0 0.0
  %2636 = vmatprep.subr.mxu0 0.0
  %2637 = vmatpush1.msra.mxu0 0.0
  %2638 = vmatprep.subr.mxu0 0.0
  %2639 = vmatpush1.msra.mxu0 0.0
  %2640 = vmatprep.subr.mxu0 0.0
  %2641 = vmatpush1.msra.mxu0 0.0
  %2642 = vmatprep.subr.mxu0 0.0
  %2643 = vmatpush1.msra.mxu0 0.0
  %2644 = vmatprep.subr.mxu0 0.0
  %2645 = vmatpush1.msra.mxu0 0.0
  %2646 = vmatprep.subr.mxu0 0.0
  %2647 = vmatpush1.msra.mxu0 0.0
  %2648 = vmatprep.subr.mxu0 0.0
  %2649 = vmatpush1.msra.mxu0 0.0
  %2650 = vmatprep.subr.mxu0 0.0
  %2651 = vmatpush1.msra.mxu0 0.0
  %2652 = vmatprep.subr.mxu0 0.0
  %2653 = vmatpush1.msra.mxu0 0.0
  %2654 = vmatprep.subr.mxu0 0.0
  %2655 = vmatpush1.msra.mxu0 0.0
  %2656 = vmatprep.subr.mxu0 0.0
  %2657 = vmatpush1.msra.mxu0 0.0
  %2658 = vmatprep.subr.mxu0 0.0
  %2659 = vmatpush1.msra.mxu0 0.0
  %2660 = vmatprep.subr.mxu0 0.0
  %2661 = vmatpush1.msra.mxu0 0.0
  %2662 = vmatprep.subr.mxu0 0.0
  %2663 = vmatpush1.msra.mxu0 0.0
  %2664 = vmatprep.subr.mxu0 0.0
  %2665 = vmatpush1.msra.mxu0 0.0
  %2666 = vmatprep.subr.mxu0 0.0
  %2667 = vmatpush1.msra.mxu0 0.0
  %2668 = vmatprep.subr.mxu0 0.0
  %2669 = vmatpush1.msra.mxu0 0.0
  %2670 = vmatprep.subr.mxu0 0.0
  %2671 = vmatpush1.msra.mxu0 0.0
  %2672 = vmatprep.subr.mxu0 0.0
  %2673 = vmatpush1.msra.mxu0 0.0
  %2674 = vmatprep.subr.mxu0 0.0
  %2675 = vmatpush1.msra.mxu0 0.0
  %2676 = vmatprep.subr.mxu0 0.0
  %2677 = vmatpush1.msra.mxu0 0.0
  %2678 = vmatprep.subr.mxu0 0.0
  %2679 = vmatpush1.msra.mxu0 0.0
  %2680 = vmatprep.subr.mxu0 0.0
  %2681 = vmatpush1.msra.mxu0 0.0
  %2682 = vmatprep.subr.mxu0 0.0
  %2683 = vmatpush1.msra.mxu0 0.0
  %2684 = vmatprep.subr.mxu0 0.0
  %2685 = vmatpush1.msra.mxu0 0.0
  %2686 = vmatprep.subr.mxu0 0.0
  %2687 = vmatpush1.msra.mxu0 0.0
  %2688 = vmatprep.mubr.f32.mxu0 0.0
  %2689 = vmatmul.mubr.f32.gmra.mrb[0].mxu0 %v2622
  %v2690 = vpop.f32.mrb[0].mxu0
  %v2691 = vadd.f32 0.0, %v2690
  %v2692 = vpop.f32.mrb[0].mxu0
  %2693 = vdwg.mxu0
  %v2694 = vld [vmem:[#allocation4 + $0x38] sm:$0xff]
  %v2695 = vadd.f32 %v2694, %v2691
  %v2696 = vxor.u32 %v2695, 2147483648
  %v2697 = vmul.f32 %v2696, 1.442695
  %v2698 = vpow.pop %v2697
  %v2699 = vadd.f32 %v2698, 1.0
  %v2700 = vrcp.pop %v2699
  %v2701 = vmul.f32 1.0, %v2700
  %v2702 = vadd.f32 %v2691, %v923
  %2704 = vrot.lane.b32.xlu0 %v2702, 64
  %v2705 = vpop.permute.xlu0 %2704
  %v2707 = vmul.f32 %v2701, %v2705
  %2709 = vrot.lane.b32.xlu0 %v2707, 64
  %v2710 = vpop.permute.xlu0 %2709
  %v2712 = vadd.f32 %v2694, %v2710
  %v2713 = vtanh.pop %v2712
  %v2714 = vsub.f32 1.0, %v2701
  %2716 = vrot.lane.b32.xlu0 %v2713, 96
  %v2717 = vpop.permute.xlu0 %2716
  %v2719 = vmul.f32 %v2714, %v2717
  %v2720 = vmul.f32 %v2701, %v2444
  %v2721 = vadd.f32 %v2719, %v2720
  %2722 = vmatprep.subr.mxu0 0.0
  %2723 = vmatpush1.msra.mxu0 %v826
  %2724 = vmatprep.subr.mxu0 0.0
  %2725 = vmatpush1.msra.mxu0 %v827
  %2726 = vmatprep.subr.mxu0 0.0
  %2727 = vmatpush1.msra.mxu0 %v828
  %2728 = vmatprep.subr.mxu0 0.0
  %2729 = vmatpush1.msra.mxu0 %v829
  %2730 = vmatprep.subr.mxu0 0.0
  %2731 = vmatpush1.msra.mxu0 0.0
  %2732 = vmatprep.subr.mxu0 0.0
  %2733 = vmatpush1.msra.mxu0 0.0
  %2734 = vmatprep.subr.mxu0 0.0
  %2735 = vmatpush1.msra.mxu0 0.0
  %2736 = vmatprep.subr.mxu0 0.0
  %2737 = vmatpush1.msra.mxu0 0.0
  %2738 = vmatprep.subr.mxu0 0.0
  %2739 = vmatpush1.msra.mxu0 0.0
  %2740 = vmatprep.subr.mxu0 0.0
  %2741 = vmatpush1.msra.mxu0 0.0
  %2742 = vmatprep.subr.mxu0 0.0
  %2743 = vmatpush1.msra.mxu0 0.0
  %2744 = vmatprep.subr.mxu0 0.0
  %2745 = vmatpush1.msra.mxu0 0.0
  %2746 = vmatprep.subr.mxu0 0.0
  %2747 = vmatpush1.msra.mxu0 0.0
  %2748 = vmatprep.subr.mxu0 0.0
  %2749 = vmatpush1.msra.mxu0 0.0
  %2750 = vmatprep.subr.mxu0 0.0
  %2751 = vmatpush1.msra.mxu0 0.0
  %2752 = vmatprep.subr.mxu0 0.0
  %2753 = vmatpush1.msra.mxu0 0.0
  %2754 = vmatprep.subr.mxu0 0.0
  %2755 = vmatpush1.msra.mxu0 0.0
  %2756 = vmatprep.subr.mxu0 0.0
  %2757 = vmatpush1.msra.mxu0 0.0
  %2758 = vmatprep.subr.mxu0 0.0
  %2759 = vmatpush1.msra.mxu0 0.0
  %2760 = vmatprep.subr.mxu0 0.0
  %2761 = vmatpush1.msra.mxu0 0.0
  %2762 = vmatprep.subr.mxu0 0.0
  %2763 = vmatpush1.msra.mxu0 0.0
  %2764 = vmatprep.subr.mxu0 0.0
  %2765 = vmatpush1.msra.mxu0 0.0
  %2766 = vmatprep.subr.mxu0 0.0
  %2767 = vmatpush1.msra.mxu0 0.0
  %2768 = vmatprep.subr.mxu0 0.0
  %2769 = vmatpush1.msra.mxu0 0.0
  %2770 = vmatprep.subr.mxu0 0.0
  %2771 = vmatpush1.msra.mxu0 0.0
  %2772 = vmatprep.subr.mxu0 0.0
  %2773 = vmatpush1.msra.mxu0 0.0
  %2774 = vmatprep.subr.mxu0 0.0
  %2775 = vmatpush1.msra.mxu0 0.0
  %2776 = vmatprep.subr.mxu0 0.0
  %2777 = vmatpush1.msra.mxu0 0.0
  %2778 = vmatprep.subr.mxu0 0.0
  %2779 = vmatpush1.msra.mxu0 0.0
  %2780 = vmatprep.subr.mxu0 0.0
  %2781 = vmatpush1.msra.mxu0 0.0
  %2782 = vmatprep.subr.mxu0 0.0
  %2783 = vmatpush1.msra.mxu0 0.0
  %2784 = vmatprep.subr.mxu0 0.0
  %2785 = vmatpush1.msra.mxu0 0.0
  %2786 = vmatprep.mubr.f32.mxu0 0.0
  %2787 = vmatmul.mubr.f32.gmra.mrb[0].mxu0 %v2622
  %v2788 = vpop.f32.mrb[0].mxu0
  %v2789 = vadd.f32 %v1052, %v2788
  %v2790 = vpop.f32.mrb[0].mxu0
  %2791 = vdwg.mxu0
  %v2792 = vsel %vm71, %v2616, 0
  %2794 = vmatprep.subr.mxu0 0.0
  %2795 = vmatpush1.msra.mxu0 %v831
  %2796 = vmatprep.subr.mxu0 0.0
  %2797 = vmatpush1.msra.mxu0 %v832
  %2798 = vmatprep.subr.mxu0 0.0
  %2799 = vmatpush1.msra.mxu0 %v833
  %2800 = vmatprep.subr.mxu0 0.0
  %2801 = vmatpush1.msra.mxu0 %v834
  %2802 = vmatprep.subr.mxu0 0.0
  %2803 = vmatpush1.msra.mxu0 0.0
  %2804 = vmatprep.subr.mxu0 0.0
  %2805 = vmatpush1.msra.mxu0 0.0
  %2806 = vmatprep.subr.mxu0 0.0
  %2807 = vmatpush1.msra.mxu0 0.0
  %2808 = vmatprep.subr.mxu0 0.0
  %2809 = vmatpush1.msra.mxu0 0.0
  %2810 = vmatprep.subr.mxu0 0.0
  %2811 = vmatpush1.msra.mxu0 0.0
  %2812 = vmatprep.subr.mxu0 0.0
  %2813 = vmatpush1.msra.mxu0 0.0
  %2814 = vmatprep.subr.mxu0 0.0
  %2815 = vmatpush1.msra.mxu0 0.0
  %2816 = vmatprep.subr.mxu0 0.0
  %2817 = vmatpush1.msra.mxu0 0.0
  %2818 = vmatprep.subr.mxu0 0.0
  %2819 = vmatpush1.msra.mxu0 0.0
  %2820 = vmatprep.subr.mxu0 0.0
  %2821 = vmatpush1.msra.mxu0 0.0
  %2822 = vmatprep.subr.mxu0 0.0
  %2823 = vmatpush1.msra.mxu0 0.0
  %2824 = vmatprep.subr.mxu0 0.0
  %2825 = vmatpush1.msra.mxu0 0.0
  %2826 = vmatprep.subr.mxu0 0.0
  %2827 = vmatpush1.msra.mxu0 0.0
  %2828 = vmatprep.subr.mxu0 0.0
  %2829 = vmatpush1.msra.mxu0 0.0
  %2830 = vmatprep.subr.mxu0 0.0
  %2831 = vmatpush1.msra.mxu0 0.0
  %2832 = vmatprep.subr.mxu0 0.0
  %2833 = vmatpush1.msra.mxu0 0.0
  %2834 = vmatprep.subr.mxu0 0.0
  %2835 = vmatpush1.msra.mxu0 0.0
  %2836 = vmatprep.subr.mxu0 0.0
  %2837 = vmatpush1.msra.mxu0 0.0
  %2838 = vmatprep.subr.mxu0 0.0
  %2839 = vmatpush1.msra.mxu0 0.0
  %2840 = vmatprep.subr.mxu0 0.0
  %2841 = vmatpush1.msra.mxu0 0.0
  %2842 = vmatprep.subr.mxu0 0.0
  %2843 = vmatpush1.msra.mxu0 0.0
  %2844 = vmatprep.subr.mxu0 0.0
  %2845 = vmatpush1.msra.mxu0 0.0
  %2846 = vmatprep.subr.mxu0 0.0
  %2847 = vmatpush1.msra.mxu0 0.0
  %2848 = vmatprep.subr.mxu0 0.0
  %2849 = vmatpush1.msra.mxu0 0.0
  %2850 = vmatprep.subr.mxu0 0.0
  %2851 = vmatpush1.msra.mxu0 0.0
  %2852 = vmatprep.subr.mxu0 0.0
  %2853 = vmatpush1.msra.mxu0 0.0
  %2854 = vmatprep.subr.mxu0 0.0
  %2855 = vmatpush1.msra.mxu0 0.0
  %2856 = vmatprep.subr.mxu0 0.0
  %2857 = vmatpush1.msra.mxu0 0.0
  %2858 = vmatprep.mubr.f32.mxu0 0.0
  %2859 = vmatmul.mubr.f32.gmra.mrb[0].mxu0 %v2792
  %v2860 = vpop.f32.mrb[0].mxu0
  %v2861 = vadd.f32 0.0, %v2860
  %v2862 = vpop.f32.mrb[0].mxu0
  %2863 = vdwg.mxu0
  %v2864 = vadd.f32 %v2789, %v2861
  %v2865 = vxor.u32 %v2864, 2147483648
  %v2866 = vmul.f32 %v2865, 1.442695
  %v2867 = vpow.pop %v2866
  %v2868 = vadd.f32 %v2867, 1.0
  %v2869 = vrcp.pop %v2868
  %v2870 = vmul.f32 1.0, %v2869
  %v2871 = vadd.f32 %v2861, %v1207
  %2873 = vrot.lane.b32.xlu0 %v2871, 64
  %v2874 = vpop.permute.xlu0 %2873
  %v2876 = vmul.f32 %v2870, %v2874
  %2878 = vrot.lane.b32.xlu0 %v2876, 64
  %v2879 = vpop.permute.xlu0 %2878
  %v2881 = vadd.f32 %v2789, %v2879
  %v2882 = vtanh.pop %v2881
  %v2883 = vsub.f32 1.0, %v2870
  %2885 = vrot.lane.b32.xlu0 %v2882, 96
  %v2886 = vpop.permute.xlu0 %2885
  %v2888 = vmul.f32 %v2883, %v2886
  %v2889 = vmul.f32 %v2870, %v2613
  %v2890 = vadd.f32 %v2888, %v2889
  %2892 = vrot.lane.b32.xlu0 %v2890, 96
  %v2893 = vpop.permute.xlu0 %2892
  %2895 = vst.msk [vmem:[#allocation5 + $0x30] sm:$0xff] %vm71, %v2893
  %2897 = vrot.lane.b32.xlu0 %v2721, 96
  %v2898 = vpop.permute.xlu0 %2897
  %v2899 = vsel %vm71, %v2898, 0
  %2901 = vmatprep.subr.mxu0 0.0
  %2902 = vmatpush1.msra.mxu0 %v821
  %2903 = vmatprep.subr.mxu0 0.0
  %2904 = vmatpush1.msra.mxu0 %v822
  %2905 = vmatprep.subr.mxu0 0.0
  %2906 = vmatpush1.msra.mxu0 %v823
  %2907 = vmatprep.subr.mxu0 0.0
  %2908 = vmatpush1.msra.mxu0 %v824
  %2909 = vmatprep.subr.mxu0 0.0
  %2910 = vmatpush1.msra.mxu0 0.0
  %2911 = vmatprep.subr.mxu0 0.0
  %2912 = vmatpush1.msra.mxu0 0.0
  %2913 = vmatprep.subr.mxu0 0.0
  %2914 = vmatpush1.msra.mxu0 0.0
  %2915 = vmatprep.subr.mxu0 0.0
  %2916 = vmatpush1.msra.mxu0 0.0
  %2917 = vmatprep.subr.mxu0 0.0
  %2918 = vmatpush1.msra.mxu0 0.0
  %2919 = vmatprep.subr.mxu0 0.0
  %2920 = vmatpush1.msra.mxu0 0.0
  %2921 = vmatprep.subr.mxu0 0.0
  %2922 = vmatpush1.msra.mxu0 0.0
  %2923 = vmatprep.subr.mxu0 0.0
  %2924 = vmatpush1.msra.mxu0 0.0
  %2925 = vmatprep.subr.mxu0 0.0
  %2926 = vmatpush1.msra.mxu0 0.0
  %2927 = vmatprep.subr.mxu0 0.0
  %2928 = vmatpush1.msra.mxu0 0.0
  %2929 = vmatprep.subr.mxu0 0.0
  %2930 = vmatpush1.msra.mxu0 0.0
  %2931 = vmatprep.subr.mxu0 0.0
  %2932 = vmatpush1.msra.mxu0 0.0
  %2933 = vmatprep.subr.mxu0 0.0
  %2934 = vmatpush1.msra.mxu0 0.0
  %2935 = vmatprep.subr.mxu0 0.0
  %2936 = vmatpush1.msra.mxu0 0.0
  %2937 = vmatprep.subr.mxu0 0.0
  %2938 = vmatpush1.msra.mxu0 0.0
  %2939 = vmatprep.subr.mxu0 0.0
  %2940 = vmatpush1.msra.mxu0 0.0
  %2941 = vmatprep.subr.mxu0 0.0
  %2942 = vmatpush1.msra.mxu0 0.0
  %2943 = vmatprep.subr.mxu0 0.0
  %2944 = vmatpush1.msra.mxu0 0.0
  %2945 = vmatprep.subr.mxu0 0.0
  %2946 = vmatpush1.msra.mxu0 0.0
  %2947 = vmatprep.subr.mxu0 0.0
  %2948 = vmatpush1.msra.mxu0 0.0
  %2949 = vmatprep.subr.mxu0 0.0
  %2950 = vmatpush1.msra.mxu0 0.0
  %2951 = vmatprep.subr.mxu0 0.0
  %2952 = vmatpush1.msra.mxu0 0.0
  %2953 = vmatprep.subr.mxu0 0.0
  %2954 = vmatpush1.msra.mxu0 0.0
  %2955 = vmatprep.subr.mxu0 0.0
  %2956 = vmatpush1.msra.mxu0 0.0
  %2957 = vmatprep.subr.mxu0 0.0
  %2958 = vmatpush1.msra.mxu0 0.0
  %2959 = vmatprep.subr.mxu0 0.0
  %2960 = vmatpush1.msra.mxu0 0.0
  %2961 = vmatprep.subr.mxu0 0.0
  %2962 = vmatpush1.msra.mxu0 0.0
  %2963 = vmatprep.subr.mxu0 0.0
  %2964 = vmatpush1.msra.mxu0 0.0
  %2965 = vmatprep.mubr.f32.mxu0 0.0
  %2966 = vmatmul.mubr.f32.gmra.mrb[0].mxu0 %v2899
  %v2967 = vpop.f32.mrb[0].mxu0
  %v2968 = vadd.f32 0.0, %v2967
  %v2969 = vpop.f32.mrb[0].mxu0
  %2970 = vdwg.mxu0
  %v2971 = vld [vmem:[#allocation4 + $0x40] sm:$0xff]
  %v2972 = vadd.f32 %v2971, %v2968
  %v2973 = vxor.u32 %v2972, 2147483648
  %v2974 = vmul.f32 %v2973, 1.442695
  %v2975 = vpow.pop %v2974
  %v2976 = vadd.f32 %v2975, 1.0
  %v2977 = vrcp.pop %v2976
  %v2978 = vmul.f32 1.0, %v2977
  %v2979 = vadd.f32 %v2968, %v923
  %2981 = vrot.lane.b32.xlu0 %v2979, 64
  %v2982 = vpop.permute.xlu0 %2981
  %v2984 = vmul.f32 %v2978, %v2982
  %2986 = vrot.lane.b32.xlu0 %v2984, 64
  %v2987 = vpop.permute.xlu0 %2986
  %v2989 = vadd.f32 %v2971, %v2987
  %v2990 = vtanh.pop %v2989
  %v2991 = vsub.f32 1.0, %v2978
  %2993 = vrot.lane.b32.xlu0 %v2990, 96
  %v2994 = vpop.permute.xlu0 %2993
  %v2996 = vmul.f32 %v2991, %v2994
  %v2997 = vmul.f32 %v2978, %v2721
  %v2998 = vadd.f32 %v2996, %v2997
  %2999 = vmatprep.subr.mxu0 0.0
  %3000 = vmatpush1.msra.mxu0 %v826
  %3001 = vmatprep.subr.mxu0 0.0
  %3002 = vmatpush1.msra.mxu0 %v827
  %3003 = vmatprep.subr.mxu0 0.0
  %3004 = vmatpush1.msra.mxu0 %v828
  %3005 = vmatprep.subr.mxu0 0.0
  %3006 = vmatpush1.msra.mxu0 %v829
  %3007 = vmatprep.subr.mxu0 0.0
  %3008 = vmatpush1.msra.mxu0 0.0
  %3009 = vmatprep.subr.mxu0 0.0
  %3010 = vmatpush1.msra.mxu0 0.0
  %3011 = vmatprep.subr.mxu0 0.0
  %3012 = vmatpush1.msra.mxu0 0.0
  %3013 = vmatprep.subr.mxu0 0.0
  %3014 = vmatpush1.msra.mxu0 0.0
  %3015 = vmatprep.subr.mxu0 0.0
  %3016 = vmatpush1.msra.mxu0 0.0
  %3017 = vmatprep.subr.mxu0 0.0
  %3018 = vmatpush1.msra.mxu0 0.0
  %3019 = vmatprep.subr.mxu0 0.0
  %3020 = vmatpush1.msra.mxu0 0.0
  %3021 = vmatprep.subr.mxu0 0.0
  %3022 = vmatpush1.msra.mxu0 0.0
  %3023 = vmatprep.subr.mxu0 0.0
  %3024 = vmatpush1.msra.mxu0 0.0
  %3025 = vmatprep.subr.mxu0 0.0
  %3026 = vmatpush1.msra.mxu0 0.0
  %3027 = vmatprep.subr.mxu0 0.0
  %3028 = vmatpush1.msra.mxu0 0.0
  %3029 = vmatprep.subr.mxu0 0.0
  %3030 = vmatpush1.msra.mxu0 0.0
  %3031 = vmatprep.subr.mxu0 0.0
  %3032 = vmatpush1.msra.mxu0 0.0
  %3033 = vmatprep.subr.mxu0 0.0
  %3034 = vmatpush1.msra.mxu0 0.0
  %3035 = vmatprep.subr.mxu0 0.0
  %3036 = vmatpush1.msra.mxu0 0.0
  %3037 = vmatprep.subr.mxu0 0.0
  %3038 = vmatpush1.msra.mxu0 0.0
  %3039 = vmatprep.subr.mxu0 0.0
  %3040 = vmatpush1.msra.mxu0 0.0
  %3041 = vmatprep.subr.mxu0 0.0
  %3042 = vmatpush1.msra.mxu0 0.0
  %3043 = vmatprep.subr.mxu0 0.0
  %3044 = vmatpush1.msra.mxu0 0.0
  %3045 = vmatprep.subr.mxu0 0.0
  %3046 = vmatpush1.msra.mxu0 0.0
  %3047 = vmatprep.subr.mxu0 0.0
  %3048 = vmatpush1.msra.mxu0 0.0
  %3049 = vmatprep.subr.mxu0 0.0
  %3050 = vmatpush1.msra.mxu0 0.0
  %3051 = vmatprep.subr.mxu0 0.0
  %3052 = vmatpush1.msra.mxu0 0.0
  %3053 = vmatprep.subr.mxu0 0.0
  %3054 = vmatpush1.msra.mxu0 0.0
  %3055 = vmatprep.subr.mxu0 0.0
  %3056 = vmatpush1.msra.mxu0 0.0
  %3057 = vmatprep.subr.mxu0 0.0
  %3058 = vmatpush1.msra.mxu0 0.0
  %3059 = vmatprep.subr.mxu0 0.0
  %3060 = vmatpush1.msra.mxu0 0.0
  %3061 = vmatprep.subr.mxu0 0.0
  %3062 = vmatpush1.msra.mxu0 0.0
  %3063 = vmatprep.mubr.f32.mxu0 0.0
  %3064 = vmatmul.mubr.f32.gmra.mrb[0].mxu0 %v2899
  %v3065 = vpop.f32.mrb[0].mxu0
  %v3066 = vadd.f32 %v1052, %v3065
  %v3067 = vpop.f32.mrb[0].mxu0
  %3068 = vdwg.mxu0
  %v3069 = vsel %vm71, %v2893, 0
  %3071 = vmatprep.subr.mxu0 0.0
  %3072 = vmatpush1.msra.mxu0 %v831
  %3073 = vmatprep.subr.mxu0 0.0
  %3074 = vmatpush1.msra.mxu0 %v832
  %3075 = vmatprep.subr.mxu0 0.0
  %3076 = vmatpush1.msra.mxu0 %v833
  %3077 = vmatprep.subr.mxu0 0.0
  %3078 = vmatpush1.msra.mxu0 %v834
  %3079 = vmatprep.subr.mxu0 0.0
  %3080 = vmatpush1.msra.mxu0 0.0
  %3081 = vmatprep.subr.mxu0 0.0
  %3082 = vmatpush1.msra.mxu0 0.0
  %3083 = vmatprep.subr.mxu0 0.0
  %3084 = vmatpush1.msra.mxu0 0.0
  %3085 = vmatprep.subr.mxu0 0.0
  %3086 = vmatpush1.msra.mxu0 0.0
  %3087 = vmatprep.subr.mxu0 0.0
  %3088 = vmatpush1.msra.mxu0 0.0
  %3089 = vmatprep.subr.mxu0 0.0
  %3090 = vmatpush1.msra.mxu0 0.0
  %3091 = vmatprep.subr.mxu0 0.0
  %3092 = vmatpush1.msra.mxu0 0.0
  %3093 = vmatprep.subr.mxu0 0.0
  %3094 = vmatpush1.msra.mxu0 0.0
  %3095 = vmatprep.subr.mxu0 0.0
  %3096 = vmatpush1.msra.mxu0 0.0
  %3097 = vmatprep.subr.mxu0 0.0
  %3098 = vmatpush1.msra.mxu0 0.0
  %3099 = vmatprep.subr.mxu0 0.0
  %3100 = vmatpush1.msra.mxu0 0.0
  %3101 = vmatprep.subr.mxu0 0.0
  %3102 = vmatpush1.msra.mxu0 0.0
  %3103 = vmatprep.subr.mxu0 0.0
  %3104 = vmatpush1.msra.mxu0 0.0
  %3105 = vmatprep.subr.mxu0 0.0
  %3106 = vmatpush1.msra.mxu0 0.0
  %3107 = vmatprep.subr.mxu0 0.0
  %3108 = vmatpush1.msra.mxu0 0.0
  %3109 = vmatprep.subr.mxu0 0.0
  %3110 = vmatpush1.msra.mxu0 0.0
  %3111 = vmatprep.subr.mxu0 0.0
  %3112 = vmatpush1.msra.mxu0 0.0
  %3113 = vmatprep.subr.mxu0 0.0
  %3114 = vmatpush1.msra.mxu0 0.0
  %3115 = vmatprep.subr.mxu0 0.0
  %3116 = vmatpush1.msra.mxu0 0.0
  %3117 = vmatprep.subr.mxu0 0.0
  %3118 = vmatpush1.msra.mxu0 0.0
  %3119 = vmatprep.subr.mxu0 0.0
  %3120 = vmatpush1.msra.mxu0 0.0
  %3121 = vmatprep.subr.mxu0 0.0
  %3122 = vmatpush1.msra.mxu0 0.0
  %3123 = vmatprep.subr.mxu0 0.0
  %3124 = vmatpush1.msra.mxu0 0.0
  %3125 = vmatprep.subr.mxu0 0.0
  %3126 = vmatpush1.msra.mxu0 0.0
  %3127 = vmatprep.subr.mxu0 0.0
  %3128 = vmatpush1.msra.mxu0 0.0
  %3129 = vmatprep.subr.mxu0 0.0
  %3130 = vmatpush1.msra.mxu0 0.0
  %3131 = vmatprep.subr.mxu0 0.0
  %3132 = vmatpush1.msra.mxu0 0.0
  %3133 = vmatprep.subr.mxu0 0.0
  %3134 = vmatpush1.msra.mxu0 0.0
  %3135 = vmatprep.mubr.f32.mxu0 0.0
  %3136 = vmatmul.mubr.f32.gmra.mrb[0].mxu0 %v3069
  %v3137 = vpop.f32.mrb[0].mxu0
  %v3138 = vadd.f32 0.0, %v3137
  %v3139 = vpop.f32.mrb[0].mxu0
  %3140 = vdwg.mxu0
  %v3141 = vadd.f32 %v3066, %v3138
  %v3142 = vxor.u32 %v3141, 2147483648
  %v3143 = vmul.f32 %v3142, 1.442695
  %v3144 = vpow.pop %v3143
  %v3145 = vadd.f32 %v3144, 1.0
  %v3146 = vrcp.pop %v3145
  %v3147 = vmul.f32 1.0, %v3146
  %v3148 = vadd.f32 %v3138, %v1207
  %3150 = vrot.lane.b32.xlu0 %v3148, 64
  %v3151 = vpop.permute.xlu0 %3150
  %v3153 = vmul.f32 %v3147, %v3151
  %3155 = vrot.lane.b32.xlu0 %v3153, 64
  %v3156 = vpop.permute.xlu0 %3155
  %v3158 = vadd.f32 %v3066, %v3156
  %v3159 = vtanh.pop %v3158
  %v3160 = vsub.f32 1.0, %v3147
  %3162 = vrot.lane.b32.xlu0 %v3159, 96
  %v3163 = vpop.permute.xlu0 %3162
  %v3165 = vmul.f32 %v3160, %v3163
  %v3166 = vmul.f32 %v3147, %v2890
  %v3167 = vadd.f32 %v3165, %v3166
  %3169 = vrot.lane.b32.xlu0 %v3167, 96
  %v3170 = vpop.permute.xlu0 %3169
  %3172 = vst.msk [vmem:[#allocation5 + $0x38] sm:$0xff] %vm71, %v3170
  %3174 = vrot.lane.b32.xlu0 %v2998, 96
  %v3175 = vpop.permute.xlu0 %3174
  %v3176 = vsel %vm71, %v3175, 0
  %3178 = vmatprep.subr.mxu0 0.0
  %3179 = vmatpush1.msra.mxu0 %v821
  %3180 = vmatprep.subr.mxu0 0.0
  %3181 = vmatpush1.msra.mxu0 %v822
  %3182 = vmatprep.subr.mxu0 0.0
  %3183 = vmatpush1.msra.mxu0 %v823
  %3184 = vmatprep.subr.mxu0 0.0
  %3185 = vmatpush1.msra.mxu0 %v824
  %3186 = vmatprep.subr.mxu0 0.0
  %3187 = vmatpush1.msra.mxu0 0.0
  %3188 = vmatprep.subr.mxu0 0.0
  %3189 = vmatpush1.msra.mxu0 0.0
  %3190 = vmatprep.subr.mxu0 0.0
  %3191 = vmatpush1.msra.mxu0 0.0
  %3192 = vmatprep.subr.mxu0 0.0
  %3193 = vmatpush1.msra.mxu0 0.0
  %3194 = vmatprep.subr.mxu0 0.0
  %3195 = vmatpush1.msra.mxu0 0.0
  %3196 = vmatprep.subr.mxu0 0.0
  %3197 = vmatpush1.msra.mxu0 0.0
  %3198 = vmatprep.subr.mxu0 0.0
  %3199 = vmatpush1.msra.mxu0 0.0
  %3200 = vmatprep.subr.mxu0 0.0
  %3201 = vmatpush1.msra.mxu0 0.0
  %3202 = vmatprep.subr.mxu0 0.0
  %3203 = vmatpush1.msra.mxu0 0.0
  %3204 = vmatprep.subr.mxu0 0.0
  %3205 = vmatpush1.msra.mxu0 0.0
  %3206 = vmatprep.subr.mxu0 0.0
  %3207 = vmatpush1.msra.mxu0 0.0
  %3208 = vmatprep.subr.mxu0 0.0
  %3209 = vmatpush1.msra.mxu0 0.0
  %3210 = vmatprep.subr.mxu0 0.0
  %3211 = vmatpush1.msra.mxu0 0.0
  %3212 = vmatprep.subr.mxu0 0.0
  %3213 = vmatpush1.msra.mxu0 0.0
  %3214 = vmatprep.subr.mxu0 0.0
  %3215 = vmatpush1.msra.mxu0 0.0
  %3216 = vmatprep.subr.mxu0 0.0
  %3217 = vmatpush1.msra.mxu0 0.0
  %3218 = vmatprep.subr.mxu0 0.0
  %3219 = vmatpush1.msra.mxu0 0.0
  %3220 = vmatprep.subr.mxu0 0.0
  %3221 = vmatpush1.msra.mxu0 0.0
  %3222 = vmatprep.subr.mxu0 0.0
  %3223 = vmatpush1.msra.mxu0 0.0
  %3224 = vmatprep.subr.mxu0 0.0
  %3225 = vmatpush1.msra.mxu0 0.0
  %3226 = vmatprep.subr.mxu0 0.0
  %3227 = vmatpush1.msra.mxu0 0.0
  %3228 = vmatprep.subr.mxu0 0.0
  %3229 = vmatpush1.msra.mxu0 0.0
  %3230 = vmatprep.subr.mxu0 0.0
  %3231 = vmatpush1.msra.mxu0 0.0
  %3232 = vmatprep.subr.mxu0 0.0
  %3233 = vmatpush1.msra.mxu0 0.0
  %3234 = vmatprep.subr.mxu0 0.0
  %3235 = vmatpush1.msra.mxu0 0.0
  %3236 = vmatprep.subr.mxu0 0.0
  %3237 = vmatpush1.msra.mxu0 0.0
  %3238 = vmatprep.subr.mxu0 0.0
  %3239 = vmatpush1.msra.mxu0 0.0
  %3240 = vmatprep.subr.mxu0 0.0
  %3241 = vmatpush1.msra.mxu0 0.0
  %3242 = vmatprep.mubr.f32.mxu0 0.0
  %3243 = vmatmul.mubr.f32.gmra.mrb[0].mxu0 %v3176
  %v3244 = vpop.f32.mrb[0].mxu0
  %v3245 = vadd.f32 0.0, %v3244
  %v3246 = vpop.f32.mrb[0].mxu0
  %3247 = vdwg.mxu0
  %v3248 = vld [vmem:[#allocation4 + $0x48] sm:$0xff]
  %v3249 = vadd.f32 %v3248, %v3245
  %v3250 = vxor.u32 %v3249, 2147483648
  %v3251 = vmul.f32 %v3250, 1.442695
  %v3252 = vpow.pop %v3251
  %v3253 = vadd.f32 %v3252, 1.0
  %v3254 = vrcp.pop %v3253
  %v3255 = vmul.f32 1.0, %v3254
  %v3256 = vadd.f32 %v3245, %v923
  %3258 = vrot.lane.b32.xlu0 %v3256, 64
  %v3259 = vpop.permute.xlu0 %3258
  %v3261 = vmul.f32 %v3255, %v3259
  %3263 = vrot.lane.b32.xlu0 %v3261, 64
  %v3264 = vpop.permute.xlu0 %3263
  %v3266 = vadd.f32 %v3248, %v3264
  %v3267 = vtanh.pop %v3266
  %v3268 = vsub.f32 1.0, %v3255
  %3270 = vrot.lane.b32.xlu0 %v3267, 96
  %v3271 = vpop.permute.xlu0 %3270
  %v3273 = vmul.f32 %v3268, %v3271
  %v3274 = vmul.f32 %v3255, %v2998
  %v3275 = vadd.f32 %v3273, %v3274
  %3276 = vmatprep.subr.mxu0 0.0
  %3277 = vmatpush1.msra.mxu0 %v826
  %3278 = vmatprep.subr.mxu0 0.0
  %3279 = vmatpush1.msra.mxu0 %v827
  %3280 = vmatprep.subr.mxu0 0.0
  %3281 = vmatpush1.msra.mxu0 %v828
  %3282 = vmatprep.subr.mxu0 0.0
  %3283 = vmatpush1.msra.mxu0 %v829
  %3284 = vmatprep.subr.mxu0 0.0
  %3285 = vmatpush1.msra.mxu0 0.0
  %3286 = vmatprep.subr.mxu0 0.0
  %3287 = vmatpush1.msra.mxu0 0.0
  %3288 = vmatprep.subr.mxu0 0.0
  %3289 = vmatpush1.msra.mxu0 0.0
  %3290 = vmatprep.subr.mxu0 0.0
  %3291 = vmatpush1.msra.mxu0 0.0
  %3292 = vmatprep.subr.mxu0 0.0
  %3293 = vmatpush1.msra.mxu0 0.0
  %3294 = vmatprep.subr.mxu0 0.0
  %3295 = vmatpush1.msra.mxu0 0.0
  %3296 = vmatprep.subr.mxu0 0.0
  %3297 = vmatpush1.msra.mxu0 0.0
  %3298 = vmatprep.subr.mxu0 0.0
  %3299 = vmatpush1.msra.mxu0 0.0
  %3300 = vmatprep.subr.mxu0 0.0
  %3301 = vmatpush1.msra.mxu0 0.0
  %3302 = vmatprep.subr.mxu0 0.0
  %3303 = vmatpush1.msra.mxu0 0.0
  %3304 = vmatprep.subr.mxu0 0.0
  %3305 = vmatpush1.msra.mxu0 0.0
  %3306 = vmatprep.subr.mxu0 0.0
  %3307 = vmatpush1.msra.mxu0 0.0
  %3308 = vmatprep.subr.mxu0 0.0
  %3309 = vmatpush1.msra.mxu0 0.0
  %3310 = vmatprep.subr.mxu0 0.0
  %3311 = vmatpush1.msra.mxu0 0.0
  %3312 = vmatprep.subr.mxu0 0.0
  %3313 = vmatpush1.msra.mxu0 0.0
  %3314 = vmatprep.subr.mxu0 0.0
  %3315 = vmatpush1.msra.mxu0 0.0
  %3316 = vmatprep.subr.mxu0 0.0
  %3317 = vmatpush1.msra.mxu0 0.0
  %3318 = vmatprep.subr.mxu0 0.0
  %3319 = vmatpush1.msra.mxu0 0.0
  %3320 = vmatprep.subr.mxu0 0.0
  %3321 = vmatpush1.msra.mxu0 0.0
  %3322 = vmatprep.subr.mxu0 0.0
  %3323 = vmatpush1.msra.mxu0 0.0
  %3324 = vmatprep.subr.mxu0 0.0
  %3325 = vmatpush1.msra.mxu0 0.0
  %3326 = vmatprep.subr.mxu0 0.0
  %3327 = vmatpush1.msra.mxu0 0.0
  %3328 = vmatprep.subr.mxu0 0.0
  %3329 = vmatpush1.msra.mxu0 0.0
  %3330 = vmatprep.subr.mxu0 0.0
  %3331 = vmatpush1.msra.mxu0 0.0
  %3332 = vmatprep.subr.mxu0 0.0
  %3333 = vmatpush1.msra.mxu0 0.0
  %3334 = vmatprep.subr.mxu0 0.0
  %3335 = vmatpush1.msra.mxu0 0.0
  %3336 = vmatprep.subr.mxu0 0.0
  %3337 = vmatpush1.msra.mxu0 0.0
  %3338 = vmatprep.subr.mxu0 0.0
  %3339 = vmatpush1.msra.mxu0 0.0
  %3340 = vmatprep.mubr.f32.mxu0 0.0
  %3341 = vmatmul.mubr.f32.gmra.mrb[0].mxu0 %v3176
  %v3342 = vpop.f32.mrb[0].mxu0
  %v3343 = vadd.f32 %v1052, %v3342
  %v3344 = vpop.f32.mrb[0].mxu0
  %3345 = vdwg.mxu0
  %v3346 = vsel %vm71, %v3170, 0
  %3348 = vmatprep.subr.mxu0 0.0
  %3349 = vmatpush1.msra.mxu0 %v831
  %3350 = vmatprep.subr.mxu0 0.0
  %3351 = vmatpush1.msra.mxu0 %v832
  %3352 = vmatprep.subr.mxu0 0.0
  %3353 = vmatpush1.msra.mxu0 %v833
  %3354 = vmatprep.subr.mxu0 0.0
  %3355 = vmatpush1.msra.mxu0 %v834
  %3356 = vmatprep.subr.mxu0 0.0
  %3357 = vmatpush1.msra.mxu0 0.0
  %3358 = vmatprep.subr.mxu0 0.0
  %3359 = vmatpush1.msra.mxu0 0.0
  %3360 = vmatprep.subr.mxu0 0.0
  %3361 = vmatpush1.msra.mxu0 0.0
  %3362 = vmatprep.subr.mxu0 0.0
  %3363 = vmatpush1.msra.mxu0 0.0
  %3364 = vmatprep.subr.mxu0 0.0
  %3365 = vmatpush1.msra.mxu0 0.0
  %3366 = vmatprep.subr.mxu0 0.0
  %3367 = vmatpush1.msra.mxu0 0.0
  %3368 = vmatprep.subr.mxu0 0.0
  %3369 = vmatpush1.msra.mxu0 0.0
  %3370 = vmatprep.subr.mxu0 0.0
  %3371 = vmatpush1.msra.mxu0 0.0
  %3372 = vmatprep.subr.mxu0 0.0
  %3373 = vmatpush1.msra.mxu0 0.0
  %3374 = vmatprep.subr.mxu0 0.0
  %3375 = vmatpush1.msra.mxu0 0.0
  %3376 = vmatprep.subr.mxu0 0.0
  %3377 = vmatpush1.msra.mxu0 0.0
  %3378 = vmatprep.subr.mxu0 0.0
  %3379 = vmatpush1.msra.mxu0 0.0
  %3380 = vmatprep.subr.mxu0 0.0
  %3381 = vmatpush1.msra.mxu0 0.0
  %3382 = vmatprep.subr.mxu0 0.0
  %3383 = vmatpush1.msra.mxu0 0.0
  %3384 = vmatprep.subr.mxu0 0.0
  %3385 = vmatpush1.msra.mxu0 0.0
  %3386 = vmatprep.subr.mxu0 0.0
  %3387 = vmatpush1.msra.mxu0 0.0
  %3388 = vmatprep.subr.mxu0 0.0
  %3389 = vmatpush1.msra.mxu0 0.0
  %3390 = vmatprep.subr.mxu0 0.0
  %3391 = vmatpush1.msra.mxu0 0.0
  %3392 = vmatprep.subr.mxu0 0.0
  %3393 = vmatpush1.msra.mxu0 0.0
  %3394 = vmatprep.subr.mxu0 0.0
  %3395 = vmatpush1.msra.mxu0 0.0
  %3396 = vmatprep.subr.mxu0 0.0
  %3397 = vmatpush1.msra.mxu0 0.0
  %3398 = vmatprep.subr.mxu0 0.0
  %3399 = vmatpush1.msra.mxu0 0.0
  %3400 = vmatprep.subr.mxu0 0.0
  %3401 = vmatpush1.msra.mxu0 0.0
  %3402 = vmatprep.subr.mxu0 0.0
  %3403 = vmatpush1.msra.mxu0 0.0
  %3404 = vmatprep.subr.mxu0 0.0
  %3405 = vmatpush1.msra.mxu0 0.0
  %3406 = vmatprep.subr.mxu0 0.0
  %3407 = vmatpush1.msra.mxu0 0.0
  %3408 = vmatprep.subr.mxu0 0.0
  %3409 = vmatpush1.msra.mxu0 0.0
  %3410 = vmatprep.subr.mxu0 0.0
  %3411 = vmatpush1.msra.mxu0 0.0
  %3412 = vmatprep.mubr.f32.mxu0 0.0
  %3413 = vmatmul.mubr.f32.gmra.mrb[0].mxu0 %v3346
  %v3414 = vpop.f32.mrb[0].mxu0
  %v3415 = vadd.f32 0.0, %v3414
  %v3416 = vpop.f32.mrb[0].mxu0
  %3417 = vdwg.mxu0
  %v3418 = vadd.f32 %v3343, %v3415
  %v3419 = vxor.u32 %v3418, 2147483648
  %v3420 = vmul.f32 %v3419, 1.442695
  %v3421 = vpow.pop %v3420
  %v3422 = vadd.f32 %v3421, 1.0
  %v3423 = vrcp.pop %v3422
  %v3424 = vmul.f32 1.0, %v3423
  %v3425 = vadd.f32 %v3415, %v1207
  %3427 = vrot.lane.b32.xlu0 %v3425, 64
  %v3428 = vpop.permute.xlu0 %3427
  %v3430 = vmul.f32 %v3424, %v3428
  %3432 = vrot.lane.b32.xlu0 %v3430, 64
  %v3433 = vpop.permute.xlu0 %3432
  %v3435 = vadd.f32 %v3343, %v3433
  %v3436 = vtanh.pop %v3435
  %v3437 = vsub.f32 1.0, %v3424
  %3439 = vrot.lane.b32.xlu0 %v3436, 96
  %v3440 = vpop.permute.xlu0 %3439
  %v3442 = vmul.f32 %v3437, %v3440
  %v3443 = vmul.f32 %v3424, %v3167
  %v3444 = vadd.f32 %v3442, %v3443
  %3446 = vrot.lane.b32.xlu0 %v3444, 96
  %v3447 = vpop.permute.xlu0 %3446
  %3449 = vst.msk [vmem:[#allocation5 + $0x40] sm:$0xff] %vm71, %v3447
  %3451 = vrot.lane.b32.xlu0 %v3275, 96
  %v3452 = vpop.permute.xlu0 %3451
  %v3453 = vsel %vm71, %v3452, 0
  %3455 = vmatprep.subr.mxu0 0.0
  %3456 = vmatpush1.msra.mxu0 %v821
  %3457 = vmatprep.subr.mxu0 0.0
  %3458 = vmatpush1.msra.mxu0 %v822
  %3459 = vmatprep.subr.mxu0 0.0
  %3460 = vmatpush1.msra.mxu0 %v823
  %3461 = vmatprep.subr.mxu0 0.0
  %3462 = vmatpush1.msra.mxu0 %v824
  %3463 = vmatprep.subr.mxu0 0.0
  %3464 = vmatpush1.msra.mxu0 0.0
  %3465 = vmatprep.subr.mxu0 0.0
  %3466 = vmatpush1.msra.mxu0 0.0
  %3467 = vmatprep.subr.mxu0 0.0
  %3468 = vmatpush1.msra.mxu0 0.0
  %3469 = vmatprep.subr.mxu0 0.0
  %3470 = vmatpush1.msra.mxu0 0.0
  %3471 = vmatprep.subr.mxu0 0.0
  %3472 = vmatpush1.msra.mxu0 0.0
  %3473 = vmatprep.subr.mxu0 0.0
  %3474 = vmatpush1.msra.mxu0 0.0
  %3475 = vmatprep.subr.mxu0 0.0
  %3476 = vmatpush1.msra.mxu0 0.0
  %3477 = vmatprep.subr.mxu0 0.0
  %3478 = vmatpush1.msra.mxu0 0.0
  %3479 = vmatprep.subr.mxu0 0.0
  %3480 = vmatpush1.msra.mxu0 0.0
  %3481 = vmatprep.subr.mxu0 0.0
  %3482 = vmatpush1.msra.mxu0 0.0
  %3483 = vmatprep.subr.mxu0 0.0
  %3484 = vmatpush1.msra.mxu0 0.0
  %3485 = vmatprep.subr.mxu0 0.0
  %3486 = vmatpush1.msra.mxu0 0.0
  %3487 = vmatprep.subr.mxu0 0.0
  %3488 = vmatpush1.msra.mxu0 0.0
  %3489 = vmatprep.subr.mxu0 0.0
  %3490 = vmatpush1.msra.mxu0 0.0
  %3491 = vmatprep.subr.mxu0 0.0
  %3492 = vmatpush1.msra.mxu0 0.0
  %3493 = vmatprep.subr.mxu0 0.0
  %3494 = vmatpush1.msra.mxu0 0.0
  %3495 = vmatprep.subr.mxu0 0.0
  %3496 = vmatpush1.msra.mxu0 0.0
  %3497 = vmatprep.subr.mxu0 0.0
  %3498 = vmatpush1.msra.mxu0 0.0
  %3499 = vmatprep.subr.mxu0 0.0
  %3500 = vmatpush1.msra.mxu0 0.0
  %3501 = vmatprep.subr.mxu0 0.0
  %3502 = vmatpush1.msra.mxu0 0.0
  %3503 = vmatprep.subr.mxu0 0.0
  %3504 = vmatpush1.msra.mxu0 0.0
  %3505 = vmatprep.subr.mxu0 0.0
  %3506 = vmatpush1.msra.mxu0 0.0
  %3507 = vmatprep.subr.mxu0 0.0
  %3508 = vmatpush1.msra.mxu0 0.0
  %3509 = vmatprep.subr.mxu0 0.0
  %3510 = vmatpush1.msra.mxu0 0.0
  %3511 = vmatprep.subr.mxu0 0.0
  %3512 = vmatpush1.msra.mxu0 0.0
  %3513 = vmatprep.subr.mxu0 0.0
  %3514 = vmatpush1.msra.mxu0 0.0
  %3515 = vmatprep.subr.mxu0 0.0
  %3516 = vmatpush1.msra.mxu0 0.0
  %3517 = vmatprep.subr.mxu0 0.0
  %3518 = vmatpush1.msra.mxu0 0.0
  %3519 = vmatprep.mubr.f32.mxu0 0.0
  %3520 = vmatmul.mubr.f32.gmra.mrb[0].mxu0 %v3453
  %v3521 = vpop.f32.mrb[0].mxu0
  %v3522 = vadd.f32 0.0, %v3521
  %v3523 = vpop.f32.mrb[0].mxu0
  %3524 = vdwg.mxu0
  %v3525 = vld [vmem:[#allocation4 + $0x50] sm:$0xff]
  %v3526 = vadd.f32 %v3525, %v3522
  %v3527 = vxor.u32 %v3526, 2147483648
  %v3528 = vmul.f32 %v3527, 1.442695
  %v3529 = vpow.pop %v3528
  %v3530 = vadd.f32 %v3529, 1.0
  %v3531 = vrcp.pop %v3530
  %v3532 = vmul.f32 1.0, %v3531
  %v3533 = vadd.f32 %v3522, %v923
  %3535 = vrot.lane.b32.xlu0 %v3533, 64
  %v3536 = vpop.permute.xlu0 %3535
  %v3538 = vmul.f32 %v3532, %v3536
  %3540 = vrot.lane.b32.xlu0 %v3538, 64
  %v3541 = vpop.permute.xlu0 %3540
  %v3543 = vadd.f32 %v3525, %v3541
  %v3544 = vtanh.pop %v3543
  %v3545 = vsub.f32 1.0, %v3532
  %3547 = vrot.lane.b32.xlu0 %v3544, 96
  %v3548 = vpop.permute.xlu0 %3547
  %v3550 = vmul.f32 %v3545, %v3548
  %v3551 = vmul.f32 %v3532, %v3275
  %v3552 = vadd.f32 %v3550, %v3551
  %3553 = vmatprep.subr.mxu0 0.0
  %3554 = vmatpush1.msra.mxu0 %v826
  %3555 = vmatprep.subr.mxu0 0.0
  %3556 = vmatpush1.msra.mxu0 %v827
  %3557 = vmatprep.subr.mxu0 0.0
  %3558 = vmatpush1.msra.mxu0 %v828
  %3559 = vmatprep.subr.mxu0 0.0
  %3560 = vmatpush1.msra.mxu0 %v829
  %3561 = vmatprep.subr.mxu0 0.0
  %3562 = vmatpush1.msra.mxu0 0.0
  %3563 = vmatprep.subr.mxu0 0.0
  %3564 = vmatpush1.msra.mxu0 0.0
  %3565 = vmatprep.subr.mxu0 0.0
  %3566 = vmatpush1.msra.mxu0 0.0
  %3567 = vmatprep.subr.mxu0 0.0
  %3568 = vmatpush1.msra.mxu0 0.0
  %3569 = vmatprep.subr.mxu0 0.0
  %3570 = vmatpush1.msra.mxu0 0.0
  %3571 = vmatprep.subr.mxu0 0.0
  %3572 = vmatpush1.msra.mxu0 0.0
  %3573 = vmatprep.subr.mxu0 0.0
  %3574 = vmatpush1.msra.mxu0 0.0
  %3575 = vmatprep.subr.mxu0 0.0
  %3576 = vmatpush1.msra.mxu0 0.0
  %3577 = vmatprep.subr.mxu0 0.0
  %3578 = vmatpush1.msra.mxu0 0.0
  %3579 = vmatprep.subr.mxu0 0.0
  %3580 = vmatpush1.msra.mxu0 0.0
  %3581 = vmatprep.subr.mxu0 0.0
  %3582 = vmatpush1.msra.mxu0 0.0
  %3583 = vmatprep.subr.mxu0 0.0
  %3584 = vmatpush1.msra.mxu0 0.0
  %3585 = vmatprep.subr.mxu0 0.0
  %3586 = vmatpush1.msra.mxu0 0.0
  %3587 = vmatprep.subr.mxu0 0.0
  %3588 = vmatpush1.msra.mxu0 0.0
  %3589 = vmatprep.subr.mxu0 0.0
  %3590 = vmatpush1.msra.mxu0 0.0
  %3591 = vmatprep.subr.mxu0 0.0
  %3592 = vmatpush1.msra.mxu0 0.0
  %3593 = vmatprep.subr.mxu0 0.0
  %3594 = vmatpush1.msra.mxu0 0.0
  %3595 = vmatprep.subr.mxu0 0.0
  %3596 = vmatpush1.msra.mxu0 0.0
  %3597 = vmatprep.subr.mxu0 0.0
  %3598 = vmatpush1.msra.mxu0 0.0
  %3599 = vmatprep.subr.mxu0 0.0
  %3600 = vmatpush1.msra.mxu0 0.0
  %3601 = vmatprep.subr.mxu0 0.0
  %3602 = vmatpush1.msra.mxu0 0.0
  %3603 = vmatprep.subr.mxu0 0.0
  %3604 = vmatpush1.msra.mxu0 0.0
  %3605 = vmatprep.subr.mxu0 0.0
  %3606 = vmatpush1.msra.mxu0 0.0
  %3607 = vmatprep.subr.mxu0 0.0
  %3608 = vmatpush1.msra.mxu0 0.0
  %3609 = vmatprep.subr.mxu0 0.0
  %3610 = vmatpush1.msra.mxu0 0.0
  %3611 = vmatprep.subr.mxu0 0.0
  %3612 = vmatpush1.msra.mxu0 0.0
  %3613 = vmatprep.subr.mxu0 0.0
  %3614 = vmatpush1.msra.mxu0 0.0
  %3615 = vmatprep.subr.mxu0 0.0
  %3616 = vmatpush1.msra.mxu0 0.0
  %3617 = vmatprep.mubr.f32.mxu0 0.0
  %3618 = vmatmul.mubr.f32.gmra.mrb[0].mxu0 %v3453
  %v3619 = vpop.f32.mrb[0].mxu0
  %v3620 = vadd.f32 %v1052, %v3619
  %v3621 = vpop.f32.mrb[0].mxu0
  %3622 = vdwg.mxu0
  %v3623 = vsel %vm71, %v3447, 0
  %3625 = vmatprep.subr.mxu0 0.0
  %3626 = vmatpush1.msra.mxu0 %v831
  %3627 = vmatprep.subr.mxu0 0.0
  %3628 = vmatpush1.msra.mxu0 %v832
  %3629 = vmatprep.subr.mxu0 0.0
  %3630 = vmatpush1.msra.mxu0 %v833
  %3631 = vmatprep.subr.mxu0 0.0
  %3632 = vmatpush1.msra.mxu0 %v834
  %3633 = vmatprep.subr.mxu0 0.0
  %3634 = vmatpush1.msra.mxu0 0.0
  %3635 = vmatprep.subr.mxu0 0.0
  %3636 = vmatpush1.msra.mxu0 0.0
  %3637 = vmatprep.subr.mxu0 0.0
  %3638 = vmatpush1.msra.mxu0 0.0
  %3639 = vmatprep.subr.mxu0 0.0
  %3640 = vmatpush1.msra.mxu0 0.0
  %3641 = vmatprep.subr.mxu0 0.0
  %3642 = vmatpush1.msra.mxu0 0.0
  %3643 = vmatprep.subr.mxu0 0.0
  %3644 = vmatpush1.msra.mxu0 0.0
  %3645 = vmatprep.subr.mxu0 0.0
  %3646 = vmatpush1.msra.mxu0 0.0
  %3647 = vmatprep.subr.mxu0 0.0
  %3648 = vmatpush1.msra.mxu0 0.0
  %3649 = vmatprep.subr.mxu0 0.0
  %3650 = vmatpush1.msra.mxu0 0.0
  %3651 = vmatprep.subr.mxu0 0.0
  %3652 = vmatpush1.msra.mxu0 0.0
  %3653 = vmatprep.subr.mxu0 0.0
  %3654 = vmatpush1.msra.mxu0 0.0
  %3655 = vmatprep.subr.mxu0 0.0
  %3656 = vmatpush1.msra.mxu0 0.0
  %3657 = vmatprep.subr.mxu0 0.0
  %3658 = vmatpush1.msra.mxu0 0.0
  %3659 = vmatprep.subr.mxu0 0.0
  %3660 = vmatpush1.msra.mxu0 0.0
  %3661 = vmatprep.subr.mxu0 0.0
  %3662 = vmatpush1.msra.mxu0 0.0
  %3663 = vmatprep.subr.mxu0 0.0
  %3664 = vmatpush1.msra.mxu0 0.0
  %3665 = vmatprep.subr.mxu0 0.0
  %3666 = vmatpush1.msra.mxu0 0.0
  %3667 = vmatprep.subr.mxu0 0.0
  %3668 = vmatpush1.msra.mxu0 0.0
  %3669 = vmatprep.subr.mxu0 0.0
  %3670 = vmatpush1.msra.mxu0 0.0
  %3671 = vmatprep.subr.mxu0 0.0
  %3672 = vmatpush1.msra.mxu0 0.0
  %3673 = vmatprep.subr.mxu0 0.0
  %3674 = vmatpush1.msra.mxu0 0.0
  %3675 = vmatprep.subr.mxu0 0.0
  %3676 = vmatpush1.msra.mxu0 0.0
  %3677 = vmatprep.subr.mxu0 0.0
  %3678 = vmatpush1.msra.mxu0 0.0
  %3679 = vmatprep.subr.mxu0 0.0
  %3680 = vmatpush1.msra.mxu0 0.0
  %3681 = vmatprep.subr.mxu0 0.0
  %3682 = vmatpush1.msra.mxu0 0.0
  %3683 = vmatprep.subr.mxu0 0.0
  %3684 = vmatpush1.msra.mxu0 0.0
  %3685 = vmatprep.subr.mxu0 0.0
  %3686 = vmatpush1.msra.mxu0 0.0
  %3687 = vmatprep.subr.mxu0 0.0
  %3688 = vmatpush1.msra.mxu0 0.0
  %3689 = vmatprep.mubr.f32.mxu0 0.0
  %3690 = vmatmul.mubr.f32.gmra.mrb[0].mxu0 %v3623
  %v3691 = vpop.f32.mrb[0].mxu0
  %v3692 = vadd.f32 0.0, %v3691
  %v3693 = vpop.f32.mrb[0].mxu0
  %3694 = vdwg.mxu0
  %v3695 = vadd.f32 %v3620, %v3692
  %v3696 = vxor.u32 %v3695, 2147483648
  %v3697 = vmul.f32 %v3696, 1.442695
  %v3698 = vpow.pop %v3697
  %v3699 = vadd.f32 %v3698, 1.0
  %v3700 = vrcp.pop %v3699
  %v3701 = vmul.f32 1.0, %v3700
  %v3702 = vadd.f32 %v3692, %v1207
  %3704 = vrot.lane.b32.xlu0 %v3702, 64
  %v3705 = vpop.permute.xlu0 %3704
  %v3707 = vmul.f32 %v3701, %v3705
  %3709 = vrot.lane.b32.xlu0 %v3707, 64
  %v3710 = vpop.permute.xlu0 %3709
  %v3712 = vadd.f32 %v3620, %v3710
  %v3713 = vtanh.pop %v3712
  %v3714 = vsub.f32 1.0, %v3701
  %3716 = vrot.lane.b32.xlu0 %v3713, 96
  %v3717 = vpop.permute.xlu0 %3716
  %v3719 = vmul.f32 %v3714, %v3717
  %v3720 = vmul.f32 %v3701, %v3444
  %v3721 = vadd.f32 %v3719, %v3720
  %3723 = vrot.lane.b32.xlu0 %v3721, 96
  %v3724 = vpop.permute.xlu0 %3723
  %3726 = vst.msk [vmem:[#allocation5 + $0x48] sm:$0xff] %vm71, %v3724
  %3728 = vrot.lane.b32.xlu0 %v3552, 96
  %v3729 = vpop.permute.xlu0 %3728
  %v3730 = vsel %vm71, %v3729, 0
  %3732 = vmatprep.subr.mxu0 0.0
  %3733 = vmatpush1.msra.mxu0 %v821
  %3734 = vmatprep.subr.mxu0 0.0
  %3735 = vmatpush1.msra.mxu0 %v822
  %3736 = vmatprep.subr.mxu0 0.0
  %3737 = vmatpush1.msra.mxu0 %v823
  %3738 = vmatprep.subr.mxu0 0.0
  %3739 = vmatpush1.msra.mxu0 %v824
  %3740 = vmatprep.subr.mxu0 0.0
  %3741 = vmatpush1.msra.mxu0 0.0
  %3742 = vmatprep.subr.mxu0 0.0
  %3743 = vmatpush1.msra.mxu0 0.0
  %3744 = vmatprep.subr.mxu0 0.0
  %3745 = vmatpush1.msra.mxu0 0.0
  %3746 = vmatprep.subr.mxu0 0.0
  %3747 = vmatpush1.msra.mxu0 0.0
  %3748 = vmatprep.subr.mxu0 0.0
  %3749 = vmatpush1.msra.mxu0 0.0
  %3750 = vmatprep.subr.mxu0 0.0
  %3751 = vmatpush1.msra.mxu0 0.0
  %3752 = vmatprep.subr.mxu0 0.0
  %3753 = vmatpush1.msra.mxu0 0.0
  %3754 = vmatprep.subr.mxu0 0.0
  %3755 = vmatpush1.msra.mxu0 0.0
  %3756 = vmatprep.subr.mxu0 0.0
  %3757 = vmatpush1.msra.mxu0 0.0
  %3758 = vmatprep.subr.mxu0 0.0
  %3759 = vmatpush1.msra.mxu0 0.0
  %3760 = vmatprep.subr.mxu0 0.0
  %3761 = vmatpush1.msra.mxu0 0.0
  %3762 = vmatprep.subr.mxu0 0.0
  %3763 = vmatpush1.msra.mxu0 0.0
  %3764 = vmatprep.subr.mxu0 0.0
  %3765 = vmatpush1.msra.mxu0 0.0
  %3766 = vmatprep.subr.mxu0 0.0
  %3767 = vmatpush1.msra.mxu0 0.0
  %3768 = vmatprep.subr.mxu0 0.0
  %3769 = vmatpush1.msra.mxu0 0.0
  %3770 = vmatprep.subr.mxu0 0.0
  %3771 = vmatpush1.msra.mxu0 0.0
  %3772 = vmatprep.subr.mxu0 0.0
  %3773 = vmatpush1.msra.mxu0 0.0
  %3774 = vmatprep.subr.mxu0 0.0
  %3775 = vmatpush1.msra.mxu0 0.0
  %3776 = vmatprep.subr.mxu0 0.0
  %3777 = vmatpush1.msra.mxu0 0.0
  %3778 = vmatprep.subr.mxu0 0.0
  %3779 = vmatpush1.msra.mxu0 0.0
  %3780 = vmatprep.subr.mxu0 0.0
  %3781 = vmatpush1.msra.mxu0 0.0
  %3782 = vmatprep.subr.mxu0 0.0
  %3783 = vmatpush1.msra.mxu0 0.0
  %3784 = vmatprep.subr.mxu0 0.0
  %3785 = vmatpush1.msra.mxu0 0.0
  %3786 = vmatprep.subr.mxu0 0.0
  %3787 = vmatpush1.msra.mxu0 0.0
  %3788 = vmatprep.subr.mxu0 0.0
  %3789 = vmatpush1.msra.mxu0 0.0
  %3790 = vmatprep.subr.mxu0 0.0
  %3791 = vmatpush1.msra.mxu0 0.0
  %3792 = vmatprep.subr.mxu0 0.0
  %3793 = vmatpush1.msra.mxu0 0.0
  %3794 = vmatprep.subr.mxu0 0.0
  %3795 = vmatpush1.msra.mxu0 0.0
  %3796 = vmatprep.mubr.f32.mxu0 0.0
  %3797 = vmatmul.mubr.f32.gmra.mrb[0].mxu0 %v3730
  %v3798 = vpop.f32.mrb[0].mxu0
  %v3799 = vadd.f32 0.0, %v3798
  %v3800 = vpop.f32.mrb[0].mxu0
  %3801 = vdwg.mxu0
  %v3802 = vld [vmem:[#allocation4 + $0x58] sm:$0xff]
  %v3803 = vadd.f32 %v3802, %v3799
  %v3804 = vxor.u32 %v3803, 2147483648
  %v3805 = vmul.f32 %v3804, 1.442695
  %v3806 = vpow.pop %v3805
  %v3807 = vadd.f32 %v3806, 1.0
  %v3808 = vrcp.pop %v3807
  %v3809 = vmul.f32 1.0, %v3808
  %v3810 = vadd.f32 %v3799, %v923
  %3812 = vrot.lane.b32.xlu0 %v3810, 64
  %v3813 = vpop.permute.xlu0 %3812
  %v3815 = vmul.f32 %v3809, %v3813
  %3817 = vrot.lane.b32.xlu0 %v3815, 64
  %v3818 = vpop.permute.xlu0 %3817
  %v3820 = vadd.f32 %v3802, %v3818
  %v3821 = vtanh.pop %v3820
  %v3822 = vsub.f32 1.0, %v3809
  %3824 = vrot.lane.b32.xlu0 %v3821, 96
  %v3825 = vpop.permute.xlu0 %3824
  %v3827 = vmul.f32 %v3822, %v3825
  %v3828 = vmul.f32 %v3809, %v3552
  %v3829 = vadd.f32 %v3827, %v3828
  %3830 = vmatprep.subr.mxu0 0.0
  %3831 = vmatpush1.msra.mxu0 %v826
  %3832 = vmatprep.subr.mxu0 0.0
  %3833 = vmatpush1.msra.mxu0 %v827
  %3834 = vmatprep.subr.mxu0 0.0
  %3835 = vmatpush1.msra.mxu0 %v828
  %3836 = vmatprep.subr.mxu0 0.0
  %3837 = vmatpush1.msra.mxu0 %v829
  %3838 = vmatprep.subr.mxu0 0.0
  %3839 = vmatpush1.msra.mxu0 0.0
  %3840 = vmatprep.subr.mxu0 0.0
  %3841 = vmatpush1.msra.mxu0 0.0
  %3842 = vmatprep.subr.mxu0 0.0
  %3843 = vmatpush1.msra.mxu0 0.0
  %3844 = vmatprep.subr.mxu0 0.0
  %3845 = vmatpush1.msra.mxu0 0.0
  %3846 = vmatprep.subr.mxu0 0.0
  %3847 = vmatpush1.msra.mxu0 0.0
  %3848 = vmatprep.subr.mxu0 0.0
  %3849 = vmatpush1.msra.mxu0 0.0
  %3850 = vmatprep.subr.mxu0 0.0
  %3851 = vmatpush1.msra.mxu0 0.0
  %3852 = vmatprep.subr.mxu0 0.0
  %3853 = vmatpush1.msra.mxu0 0.0
  %3854 = vmatprep.subr.mxu0 0.0
  %3855 = vmatpush1.msra.mxu0 0.0
  %3856 = vmatprep.subr.mxu0 0.0
  %3857 = vmatpush1.msra.mxu0 0.0
  %3858 = vmatprep.subr.mxu0 0.0
  %3859 = vmatpush1.msra.mxu0 0.0
  %3860 = vmatprep.subr.mxu0 0.0
  %3861 = vmatpush1.msra.mxu0 0.0
  %3862 = vmatprep.subr.mxu0 0.0
  %3863 = vmatpush1.msra.mxu0 0.0
  %3864 = vmatprep.subr.mxu0 0.0
  %3865 = vmatpush1.msra.mxu0 0.0
  %3866 = vmatprep.subr.mxu0 0.0
  %3867 = vmatpush1.msra.mxu0 0.0
  %3868 = vmatprep.subr.mxu0 0.0
  %3869 = vmatpush1.msra.mxu0 0.0
  %3870 = vmatprep.subr.mxu0 0.0
  %3871 = vmatpush1.msra.mxu0 0.0
  %3872 = vmatprep.subr.mxu0 0.0
  %3873 = vmatpush1.msra.mxu0 0.0
  %3874 = vmatprep.subr.mxu0 0.0
  %3875 = vmatpush1.msra.mxu0 0.0
  %3876 = vmatprep.subr.mxu0 0.0
  %3877 = vmatpush1.msra.mxu0 0.0
  %3878 = vmatprep.subr.mxu0 0.0
  %3879 = vmatpush1.msra.mxu0 0.0
  %3880 = vmatprep.subr.mxu0 0.0
  %3881 = vmatpush1.msra.mxu0 0.0
  %3882 = vmatprep.subr.mxu0 0.0
  %3883 = vmatpush1.msra.mxu0 0.0
  %3884 = vmatprep.subr.mxu0 0.0
  %3885 = vmatpush1.msra.mxu0 0.0
  %3886 = vmatprep.subr.mxu0 0.0
  %3887 = vmatpush1.msra.mxu0 0.0
  %3888 = vmatprep.subr.mxu0 0.0
  %3889 = vmatpush1.msra.mxu0 0.0
  %3890 = vmatprep.subr.mxu0 0.0
  %3891 = vmatpush1.msra.mxu0 0.0
  %3892 = vmatprep.subr.mxu0 0.0
  %3893 = vmatpush1.msra.mxu0 0.0
  %3894 = vmatprep.mubr.f32.mxu0 0.0
  %3895 = vmatmul.mubr.f32.gmra.mrb[0].mxu0 %v3730
  %v3896 = vpop.f32.mrb[0].mxu0
  %v3897 = vadd.f32 %v1052, %v3896
  %v3898 = vpop.f32.mrb[0].mxu0
  %3899 = vdwg.mxu0
  %v3900 = vsel %vm71, %v3724, 0
  %3902 = vmatprep.subr.mxu0 0.0
  %3903 = vmatpush1.msra.mxu0 %v831
  %3904 = vmatprep.subr.mxu0 0.0
  %3905 = vmatpush1.msra.mxu0 %v832
  %3906 = vmatprep.subr.mxu0 0.0
  %3907 = vmatpush1.msra.mxu0 %v833
  %3908 = vmatprep.subr.mxu0 0.0
  %3909 = vmatpush1.msra.mxu0 %v834
  %3910 = vmatprep.subr.mxu0 0.0
  %3911 = vmatpush1.msra.mxu0 0.0
  %3912 = vmatprep.subr.mxu0 0.0
  %3913 = vmatpush1.msra.mxu0 0.0
  %3914 = vmatprep.subr.mxu0 0.0
  %3915 = vmatpush1.msra.mxu0 0.0
  %3916 = vmatprep.subr.mxu0 0.0
  %3917 = vmatpush1.msra.mxu0 0.0
  %3918 = vmatprep.subr.mxu0 0.0
  %3919 = vmatpush1.msra.mxu0 0.0
  %3920 = vmatprep.subr.mxu0 0.0
  %3921 = vmatpush1.msra.mxu0 0.0
  %3922 = vmatprep.subr.mxu0 0.0
  %3923 = vmatpush1.msra.mxu0 0.0
  %3924 = vmatprep.subr.mxu0 0.0
  %3925 = vmatpush1.msra.mxu0 0.0
  %3926 = vmatprep.subr.mxu0 0.0
  %3927 = vmatpush1.msra.mxu0 0.0
  %3928 = vmatprep.subr.mxu0 0.0
  %3929 = vmatpush1.msra.mxu0 0.0
  %3930 = vmatprep.subr.mxu0 0.0
  %3931 = vmatpush1.msra.mxu0 0.0
  %3932 = vmatprep.subr.mxu0 0.0
  %3933 = vmatpush1.msra.mxu0 0.0
  %3934 = vmatprep.subr.mxu0 0.0
  %3935 = vmatpush1.msra.mxu0 0.0
  %3936 = vmatprep.subr.mxu0 0.0
  %3937 = vmatpush1.msra.mxu0 0.0
  %3938 = vmatprep.subr.mxu0 0.0
  %3939 = vmatpush1.msra.mxu0 0.0
  %3940 = vmatprep.subr.mxu0 0.0
  %3941 = vmatpush1.msra.mxu0 0.0
  %3942 = vmatprep.subr.mxu0 0.0
  %3943 = vmatpush1.msra.mxu0 0.0
  %3944 = vmatprep.subr.mxu0 0.0
  %3945 = vmatpush1.msra.mxu0 0.0
  %3946 = vmatprep.subr.mxu0 0.0
  %3947 = vmatpush1.msra.mxu0 0.0
  %3948 = vmatprep.subr.mxu0 0.0
  %3949 = vmatpush1.msra.mxu0 0.0
  %3950 = vmatprep.subr.mxu0 0.0
  %3951 = vmatpush1.msra.mxu0 0.0
  %3952 = vmatprep.subr.mxu0 0.0
  %3953 = vmatpush1.msra.mxu0 0.0
  %3954 = vmatprep.subr.mxu0 0.0
  %3955 = vmatpush1.msra.mxu0 0.0
  %3956 = vmatprep.subr.mxu0 0.0
  %3957 = vmatpush1.msra.mxu0 0.0
  %3958 = vmatprep.subr.mxu0 0.0
  %3959 = vmatpush1.msra.mxu0 0.0
  %3960 = vmatprep.subr.mxu0 0.0
  %3961 = vmatpush1.msra.mxu0 0.0
  %3962 = vmatprep.subr.mxu0 0.0
  %3963 = vmatpush1.msra.mxu0 0.0
  %3964 = vmatprep.subr.mxu0 0.0
  %3965 = vmatpush1.msra.mxu0 0.0
  %3966 = vmatprep.mubr.f32.mxu0 0.0
  %3967 = vmatmul.mubr.f32.gmra.mrb[0].mxu0 %v3900
  %v3968 = vpop.f32.mrb[0].mxu0
  %v3969 = vadd.f32 0.0, %v3968
  %v3970 = vpop.f32.mrb[0].mxu0
  %3971 = vdwg.mxu0
  %v3972 = vadd.f32 %v3897, %v3969
  %v3973 = vxor.u32 %v3972, 2147483648
  %v3974 = vmul.f32 %v3973, 1.442695
  %v3975 = vpow.pop %v3974
  %v3976 = vadd.f32 %v3975, 1.0
  %v3977 = vrcp.pop %v3976
  %v3978 = vmul.f32 1.0, %v3977
  %v3979 = vadd.f32 %v3969, %v1207
  %3981 = vrot.lane.b32.xlu0 %v3979, 64
  %v3982 = vpop.permute.xlu0 %3981
  %v3984 = vmul.f32 %v3978, %v3982
  %3986 = vrot.lane.b32.xlu0 %v3984, 64
  %v3987 = vpop.permute.xlu0 %3986
  %v3989 = vadd.f32 %v3897, %v3987
  %v3990 = vtanh.pop %v3989
  %v3991 = vsub.f32 1.0, %v3978
  %3993 = vrot.lane.b32.xlu0 %v3990, 96
  %v3994 = vpop.permute.xlu0 %3993
  %v3996 = vmul.f32 %v3991, %v3994
  %v3997 = vmul.f32 %v3978, %v3721
  %v3998 = vadd.f32 %v3996, %v3997
  %4000 = vrot.lane.b32.xlu0 %v3998, 96
  %v4001 = vpop.permute.xlu0 %4000
  %4003 = vst.msk [vmem:[#allocation5 + $0x50] sm:$0xff] %vm71, %v4001
  %4005 = vrot.lane.b32.xlu0 %v3829, 96
  %v4006 = vpop.permute.xlu0 %4005
  %v4007 = vsel %vm71, %v4006, 0
  %4009 = vmatprep.subr.mxu0 0.0
  %4010 = vmatpush1.msra.mxu0 %v821
  %4011 = vmatprep.subr.mxu0 0.0
  %4012 = vmatpush1.msra.mxu0 %v822
  %4013 = vmatprep.subr.mxu0 0.0
  %4014 = vmatpush1.msra.mxu0 %v823
  %4015 = vmatprep.subr.mxu0 0.0
  %4016 = vmatpush1.msra.mxu0 %v824
  %4017 = vmatprep.subr.mxu0 0.0
  %4018 = vmatpush1.msra.mxu0 0.0
  %4019 = vmatprep.subr.mxu0 0.0
  %4020 = vmatpush1.msra.mxu0 0.0
  %4021 = vmatprep.subr.mxu0 0.0
  %4022 = vmatpush1.msra.mxu0 0.0
  %4023 = vmatprep.subr.mxu0 0.0
  %4024 = vmatpush1.msra.mxu0 0.0
  %4025 = vmatprep.subr.mxu0 0.0
  %4026 = vmatpush1.msra.mxu0 0.0
  %4027 = vmatprep.subr.mxu0 0.0
  %4028 = vmatpush1.msra.mxu0 0.0
  %4029 = vmatprep.subr.mxu0 0.0
  %4030 = vmatpush1.msra.mxu0 0.0
  %4031 = vmatprep.subr.mxu0 0.0
  %4032 = vmatpush1.msra.mxu0 0.0
  %4033 = vmatprep.subr.mxu0 0.0
  %4034 = vmatpush1.msra.mxu0 0.0
  %4035 = vmatprep.subr.mxu0 0.0
  %4036 = vmatpush1.msra.mxu0 0.0
  %4037 = vmatprep.subr.mxu0 0.0
  %4038 = vmatpush1.msra.mxu0 0.0
  %4039 = vmatprep.subr.mxu0 0.0
  %4040 = vmatpush1.msra.mxu0 0.0
  %4041 = vmatprep.subr.mxu0 0.0
  %4042 = vmatpush1.msra.mxu0 0.0
  %4043 = vmatprep.subr.mxu0 0.0
  %4044 = vmatpush1.msra.mxu0 0.0
  %4045 = vmatprep.subr.mxu0 0.0
  %4046 = vmatpush1.msra.mxu0 0.0
  %4047 = vmatprep.subr.mxu0 0.0
  %4048 = vmatpush1.msra.mxu0 0.0
  %4049 = vmatprep.subr.mxu0 0.0
  %4050 = vmatpush1.msra.mxu0 0.0
  %4051 = vmatprep.subr.mxu0 0.0
  %4052 = vmatpush1.msra.mxu0 0.0
  %4053 = vmatprep.subr.mxu0 0.0
  %4054 = vmatpush1.msra.mxu0 0.0
  %4055 = vmatprep.subr.mxu0 0.0
  %4056 = vmatpush1.msra.mxu0 0.0
  %4057 = vmatprep.subr.mxu0 0.0
  %4058 = vmatpush1.msra.mxu0 0.0
  %4059 = vmatprep.subr.mxu0 0.0
  %4060 = vmatpush1.msra.mxu0 0.0
  %4061 = vmatprep.subr.mxu0 0.0
  %4062 = vmatpush1.msra.mxu0 0.0
  %4063 = vmatprep.subr.mxu0 0.0
  %4064 = vmatpush1.msra.mxu0 0.0
  %4065 = vmatprep.subr.mxu0 0.0
  %4066 = vmatpush1.msra.mxu0 0.0
  %4067 = vmatprep.subr.mxu0 0.0
  %4068 = vmatpush1.msra.mxu0 0.0
  %4069 = vmatprep.subr.mxu0 0.0
  %4070 = vmatpush1.msra.mxu0 0.0
  %4071 = vmatprep.subr.mxu0 0.0
  %4072 = vmatpush1.msra.mxu0 0.0
  %4073 = vmatprep.mubr.f32.mxu0 0.0
  %4074 = vmatmul.mubr.f32.gmra.mrb[0].mxu0 %v4007
  %v4075 = vpop.f32.mrb[0].mxu0
  %v4076 = vadd.f32 0.0, %v4075
  %v4077 = vpop.f32.mrb[0].mxu0
  %4078 = vdwg.mxu0
  %v4079 = vld [vmem:[#allocation4 + $0x60] sm:$0xff]
  %v4080 = vadd.f32 %v4079, %v4076
  %v4081 = vxor.u32 %v4080, 2147483648
  %v4082 = vmul.f32 %v4081, 1.442695
  %v4083 = vpow.pop %v4082
  %v4084 = vadd.f32 %v4083, 1.0
  %v4085 = vrcp.pop %v4084
  %v4086 = vmul.f32 1.0, %v4085
  %v4087 = vadd.f32 %v4076, %v923
  %4089 = vrot.lane.b32.xlu0 %v4087, 64
  %v4090 = vpop.permute.xlu0 %4089
  %v4092 = vmul.f32 %v4086, %v4090
  %4094 = vrot.lane.b32.xlu0 %v4092, 64
  %v4095 = vpop.permute.xlu0 %4094
  %v4097 = vadd.f32 %v4079, %v4095
  %v4098 = vtanh.pop %v4097
  %v4099 = vsub.f32 1.0, %v4086
  %4101 = vrot.lane.b32.xlu0 %v4098, 96
  %v4102 = vpop.permute.xlu0 %4101
  %v4104 = vmul.f32 %v4099, %v4102
  %v4105 = vmul.f32 %v4086, %v3829
  %v4106 = vadd.f32 %v4104, %v4105
  %4107 = vmatprep.subr.mxu0 0.0
  %4108 = vmatpush1.msra.mxu0 %v826
  %4109 = vmatprep.subr.mxu0 0.0
  %4110 = vmatpush1.msra.mxu0 %v827
  %4111 = vmatprep.subr.mxu0 0.0
  %4112 = vmatpush1.msra.mxu0 %v828
  %4113 = vmatprep.subr.mxu0 0.0
  %4114 = vmatpush1.msra.mxu0 %v829
  %4115 = vmatprep.subr.mxu0 0.0
  %4116 = vmatpush1.msra.mxu0 0.0
  %4117 = vmatprep.subr.mxu0 0.0
  %4118 = vmatpush1.msra.mxu0 0.0
  %4119 = vmatprep.subr.mxu0 0.0
  %4120 = vmatpush1.msra.mxu0 0.0
  %4121 = vmatprep.subr.mxu0 0.0
  %4122 = vmatpush1.msra.mxu0 0.0
  %4123 = vmatprep.subr.mxu0 0.0
  %4124 = vmatpush1.msra.mxu0 0.0
  %4125 = vmatprep.subr.mxu0 0.0
  %4126 = vmatpush1.msra.mxu0 0.0
  %4127 = vmatprep.subr.mxu0 0.0
  %4128 = vmatpush1.msra.mxu0 0.0
  %4129 = vmatprep.subr.mxu0 0.0
  %4130 = vmatpush1.msra.mxu0 0.0
  %4131 = vmatprep.subr.mxu0 0.0
  %4132 = vmatpush1.msra.mxu0 0.0
  %4133 = vmatprep.subr.mxu0 0.0
  %4134 = vmatpush1.msra.mxu0 0.0
  %4135 = vmatprep.subr.mxu0 0.0
  %4136 = vmatpush1.msra.mxu0 0.0
  %4137 = vmatprep.subr.mxu0 0.0
  %4138 = vmatpush1.msra.mxu0 0.0
  %4139 = vmatprep.subr.mxu0 0.0
  %4140 = vmatpush1.msra.mxu0 0.0
  %4141 = vmatprep.subr.mxu0 0.0
  %4142 = vmatpush1.msra.mxu0 0.0
  %4143 = vmatprep.subr.mxu0 0.0
  %4144 = vmatpush1.msra.mxu0 0.0
  %4145 = vmatprep.subr.mxu0 0.0
  %4146 = vmatpush1.msra.mxu0 0.0
  %4147 = vmatprep.subr.mxu0 0.0
  %4148 = vmatpush1.msra.mxu0 0.0
  %4149 = vmatprep.subr.mxu0 0.0
  %4150 = vmatpush1.msra.mxu0 0.0
  %4151 = vmatprep.subr.mxu0 0.0
  %4152 = vmatpush1.msra.mxu0 0.0
  %4153 = vmatprep.subr.mxu0 0.0
  %4154 = vmatpush1.msra.mxu0 0.0
  %4155 = vmatprep.subr.mxu0 0.0
  %4156 = vmatpush1.msra.mxu0 0.0
  %4157 = vmatprep.subr.mxu0 0.0
  %4158 = vmatpush1.msra.mxu0 0.0
  %4159 = vmatprep.subr.mxu0 0.0
  %4160 = vmatpush1.msra.mxu0 0.0
  %4161 = vmatprep.subr.mxu0 0.0
  %4162 = vmatpush1.msra.mxu0 0.0
  %4163 = vmatprep.subr.mxu0 0.0
  %4164 = vmatpush1.msra.mxu0 0.0
  %4165 = vmatprep.subr.mxu0 0.0
  %4166 = vmatpush1.msra.mxu0 0.0
  %4167 = vmatprep.subr.mxu0 0.0
  %4168 = vmatpush1.msra.mxu0 0.0
  %4169 = vmatprep.subr.mxu0 0.0
  %4170 = vmatpush1.msra.mxu0 0.0
  %4171 = vmatprep.mubr.f32.mxu0 0.0
  %4172 = vmatmul.mubr.f32.gmra.mrb[0].mxu0 %v4007
  %v4173 = vpop.f32.mrb[0].mxu0
  %v4174 = vadd.f32 %v1052, %v4173
  %v4175 = vpop.f32.mrb[0].mxu0
  %4176 = vdwg.mxu0
  %v4177 = vsel %vm71, %v4001, 0
  %4179 = vmatprep.subr.mxu0 0.0
  %4180 = vmatpush1.msra.mxu0 %v831
  %4181 = vmatprep.subr.mxu0 0.0
  %4182 = vmatpush1.msra.mxu0 %v832
  %4183 = vmatprep.subr.mxu0 0.0
  %4184 = vmatpush1.msra.mxu0 %v833
  %4185 = vmatprep.subr.mxu0 0.0
  %4186 = vmatpush1.msra.mxu0 %v834
  %4187 = vmatprep.subr.mxu0 0.0
  %4188 = vmatpush1.msra.mxu0 0.0
  %4189 = vmatprep.subr.mxu0 0.0
  %4190 = vmatpush1.msra.mxu0 0.0
  %4191 = vmatprep.subr.mxu0 0.0
  %4192 = vmatpush1.msra.mxu0 0.0
  %4193 = vmatprep.subr.mxu0 0.0
  %4194 = vmatpush1.msra.mxu0 0.0
  %4195 = vmatprep.subr.mxu0 0.0
  %4196 = vmatpush1.msra.mxu0 0.0
  %4197 = vmatprep.subr.mxu0 0.0
  %4198 = vmatpush1.msra.mxu0 0.0
  %4199 = vmatprep.subr.mxu0 0.0
  %4200 = vmatpush1.msra.mxu0 0.0
  %4201 = vmatprep.subr.mxu0 0.0
  %4202 = vmatpush1.msra.mxu0 0.0
  %4203 = vmatprep.subr.mxu0 0.0
  %4204 = vmatpush1.msra.mxu0 0.0
  %4205 = vmatprep.subr.mxu0 0.0
  %4206 = vmatpush1.msra.mxu0 0.0
  %4207 = vmatprep.subr.mxu0 0.0
  %4208 = vmatpush1.msra.mxu0 0.0
  %4209 = vmatprep.subr.mxu0 0.0
  %4210 = vmatpush1.msra.mxu0 0.0
  %4211 = vmatprep.subr.mxu0 0.0
  %4212 = vmatpush1.msra.mxu0 0.0
  %4213 = vmatprep.subr.mxu0 0.0
  %4214 = vmatpush1.msra.mxu0 0.0
  %4215 = vmatprep.subr.mxu0 0.0
  %4216 = vmatpush1.msra.mxu0 0.0
  %4217 = vmatprep.subr.mxu0 0.0
  %4218 = vmatpush1.msra.mxu0 0.0
  %4219 = vmatprep.subr.mxu0 0.0
  %4220 = vmatpush1.msra.mxu0 0.0
  %4221 = vmatprep.subr.mxu0 0.0
  %4222 = vmatpush1.msra.mxu0 0.0
  %4223 = vmatprep.subr.mxu0 0.0
  %4224 = vmatpush1.msra.mxu0 0.0
  %4225 = vmatprep.subr.mxu0 0.0
  %4226 = vmatpush1.msra.mxu0 0.0
  %4227 = vmatprep.subr.mxu0 0.0
  %4228 = vmatpush1.msra.mxu0 0.0
  %4229 = vmatprep.subr.mxu0 0.0
  %4230 = vmatpush1.msra.mxu0 0.0
  %4231 = vmatprep.subr.mxu0 0.0
  %4232 = vmatpush1.msra.mxu0 0.0
  %4233 = vmatprep.subr.mxu0 0.0
  %4234 = vmatpush1.msra.mxu0 0.0
  %4235 = vmatprep.subr.mxu0 0.0
  %4236 = vmatpush1.msra.mxu0 0.0
  %4237 = vmatprep.subr.mxu0 0.0
  %4238 = vmatpush1.msra.mxu0 0.0
  %4239 = vmatprep.subr.mxu0 0.0
  %4240 = vmatpush1.msra.mxu0 0.0
  %4241 = vmatprep.subr.mxu0 0.0
  %4242 = vmatpush1.msra.mxu0 0.0
  %4243 = vmatprep.mubr.f32.mxu0 0.0
  %4244 = vmatmul.mubr.f32.gmra.mrb[0].mxu0 %v4177
  %v4245 = vpop.f32.mrb[0].mxu0
  %v4246 = vadd.f32 0.0, %v4245
  %v4247 = vpop.f32.mrb[0].mxu0
  %4248 = vdwg.mxu0
  %v4249 = vadd.f32 %v4174, %v4246
  %v4250 = vxor.u32 %v4249, 2147483648
  %v4251 = vmul.f32 %v4250, 1.442695
  %v4252 = vpow.pop %v4251
  %v4253 = vadd.f32 %v4252, 1.0
  %v4254 = vrcp.pop %v4253
  %v4255 = vmul.f32 1.0, %v4254
  %v4256 = vadd.f32 %v4246, %v1207
  %4258 = vrot.lane.b32.xlu0 %v4256, 64
  %v4259 = vpop.permute.xlu0 %4258
  %v4261 = vmul.f32 %v4255, %v4259
  %4263 = vrot.lane.b32.xlu0 %v4261, 64
  %v4264 = vpop.permute.xlu0 %4263
  %v4266 = vadd.f32 %v4174, %v4264
  %v4267 = vtanh.pop %v4266
  %v4268 = vsub.f32 1.0, %v4255
  %4270 = vrot.lane.b32.xlu0 %v4267, 96
  %v4271 = vpop.permute.xlu0 %4270
  %v4273 = vmul.f32 %v4268, %v4271
  %v4274 = vmul.f32 %v4255, %v3998
  %v4275 = vadd.f32 %v4273, %v4274
  %4277 = vrot.lane.b32.xlu0 %v4275, 96
  %v4278 = vpop.permute.xlu0 %4277
  %4280 = vst.msk [vmem:[#allocation5 + $0x58] sm:$0xff] %vm71, %v4278
  %4282 = vrot.lane.b32.xlu0 %v4106, 96
  %v4283 = vpop.permute.xlu0 %4282
  %v4284 = vsel %vm71, %v4283, 0
  %4286 = vmatprep.subr.mxu0 0.0
  %4287 = vmatpush1.msra.mxu0 %v821
  %4288 = vmatprep.subr.mxu0 0.0
  %4289 = vmatpush1.msra.mxu0 %v822
  %4290 = vmatprep.subr.mxu0 0.0
  %4291 = vmatpush1.msra.mxu0 %v823
  %4292 = vmatprep.subr.mxu0 0.0
  %4293 = vmatpush1.msra.mxu0 %v824
  %4294 = vmatprep.subr.mxu0 0.0
  %4295 = vmatpush1.msra.mxu0 0.0
  %4296 = vmatprep.subr.mxu0 0.0
  %4297 = vmatpush1.msra.mxu0 0.0
  %4298 = vmatprep.subr.mxu0 0.0
  %4299 = vmatpush1.msra.mxu0 0.0
  %4300 = vmatprep.subr.mxu0 0.0
  %4301 = vmatpush1.msra.mxu0 0.0
  %4302 = vmatprep.subr.mxu0 0.0
  %4303 = vmatpush1.msra.mxu0 0.0
  %4304 = vmatprep.subr.mxu0 0.0
  %4305 = vmatpush1.msra.mxu0 0.0
  %4306 = vmatprep.subr.mxu0 0.0
  %4307 = vmatpush1.msra.mxu0 0.0
  %4308 = vmatprep.subr.mxu0 0.0
  %4309 = vmatpush1.msra.mxu0 0.0
  %4310 = vmatprep.subr.mxu0 0.0
  %4311 = vmatpush1.msra.mxu0 0.0
  %4312 = vmatprep.subr.mxu0 0.0
  %4313 = vmatpush1.msra.mxu0 0.0
  %4314 = vmatprep.subr.mxu0 0.0
  %4315 = vmatpush1.msra.mxu0 0.0
  %4316 = vmatprep.subr.mxu0 0.0
  %4317 = vmatpush1.msra.mxu0 0.0
  %4318 = vmatprep.subr.mxu0 0.0
  %4319 = vmatpush1.msra.mxu0 0.0
  %4320 = vmatprep.subr.mxu0 0.0
  %4321 = vmatpush1.msra.mxu0 0.0
  %4322 = vmatprep.subr.mxu0 0.0
  %4323 = vmatpush1.msra.mxu0 0.0
  %4324 = vmatprep.subr.mxu0 0.0
  %4325 = vmatpush1.msra.mxu0 0.0
  %4326 = vmatprep.subr.mxu0 0.0
  %4327 = vmatpush1.msra.mxu0 0.0
  %4328 = vmatprep.subr.mxu0 0.0
  %4329 = vmatpush1.msra.mxu0 0.0
  %4330 = vmatprep.subr.mxu0 0.0
  %4331 = vmatpush1.msra.mxu0 0.0
  %4332 = vmatprep.subr.mxu0 0.0
  %4333 = vmatpush1.msra.mxu0 0.0
  %4334 = vmatprep.subr.mxu0 0.0
  %4335 = vmatpush1.msra.mxu0 0.0
  %4336 = vmatprep.subr.mxu0 0.0
  %4337 = vmatpush1.msra.mxu0 0.0
  %4338 = vmatprep.subr.mxu0 0.0
  %4339 = vmatpush1.msra.mxu0 0.0
  %4340 = vmatprep.subr.mxu0 0.0
  %4341 = vmatpush1.msra.mxu0 0.0
  %4342 = vmatprep.subr.mxu0 0.0
  %4343 = vmatpush1.msra.mxu0 0.0
  %4344 = vmatprep.subr.mxu0 0.0
  %4345 = vmatpush1.msra.mxu0 0.0
  %4346 = vmatprep.subr.mxu0 0.0
  %4347 = vmatpush1.msra.mxu0 0.0
  %4348 = vmatprep.subr.mxu0 0.0
  %4349 = vmatpush1.msra.mxu0 0.0
  %4350 = vmatprep.mubr.f32.mxu0 0.0
  %4351 = vmatmul.mubr.f32.gmra.mrb[0].mxu0 %v4284
  %v4352 = vpop.f32.mrb[0].mxu0
  %v4353 = vadd.f32 0.0, %v4352
  %v4354 = vpop.f32.mrb[0].mxu0
  %4355 = vdwg.mxu0
  %v4356 = vld [vmem:[#allocation4 + $0x68] sm:$0xff]
  %v4357 = vadd.f32 %v4356, %v4353
  %v4358 = vxor.u32 %v4357, 2147483648
  %v4359 = vmul.f32 %v4358, 1.442695
  %v4360 = vpow.pop %v4359
  %v4361 = vadd.f32 %v4360, 1.0
  %v4362 = vrcp.pop %v4361
  %v4363 = vmul.f32 1.0, %v4362
  %v4364 = vadd.f32 %v4353, %v923
  %4366 = vrot.lane.b32.xlu0 %v4364, 64
  %v4367 = vpop.permute.xlu0 %4366
  %v4369 = vmul.f32 %v4363, %v4367
  %4371 = vrot.lane.b32.xlu0 %v4369, 64
  %v4372 = vpop.permute.xlu0 %4371
  %v4374 = vadd.f32 %v4356, %v4372
  %v4375 = vtanh.pop %v4374
  %v4376 = vsub.f32 1.0, %v4363
  %4378 = vrot.lane.b32.xlu0 %v4375, 96
  %v4379 = vpop.permute.xlu0 %4378
  %v4381 = vmul.f32 %v4376, %v4379
  %v4382 = vmul.f32 %v4363, %v4106
  %v4383 = vadd.f32 %v4381, %v4382
  %4384 = vmatprep.subr.mxu0 0.0
  %4385 = vmatpush1.msra.mxu0 %v826
  %4386 = vmatprep.subr.mxu0 0.0
  %4387 = vmatpush1.msra.mxu0 %v827
  %4388 = vmatprep.subr.mxu0 0.0
  %4389 = vmatpush1.msra.mxu0 %v828
  %4390 = vmatprep.subr.mxu0 0.0
  %4391 = vmatpush1.msra.mxu0 %v829
  %4392 = vmatprep.subr.mxu0 0.0
  %4393 = vmatpush1.msra.mxu0 0.0
  %4394 = vmatprep.subr.mxu0 0.0
  %4395 = vmatpush1.msra.mxu0 0.0
  %4396 = vmatprep.subr.mxu0 0.0
  %4397 = vmatpush1.msra.mxu0 0.0
  %4398 = vmatprep.subr.mxu0 0.0
  %4399 = vmatpush1.msra.mxu0 0.0
  %4400 = vmatprep.subr.mxu0 0.0
  %4401 = vmatpush1.msra.mxu0 0.0
  %4402 = vmatprep.subr.mxu0 0.0
  %4403 = vmatpush1.msra.mxu0 0.0
  %4404 = vmatprep.subr.mxu0 0.0
  %4405 = vmatpush1.msra.mxu0 0.0
  %4406 = vmatprep.subr.mxu0 0.0
  %4407 = vmatpush1.msra.mxu0 0.0
  %4408 = vmatprep.subr.mxu0 0.0
  %4409 = vmatpush1.msra.mxu0 0.0
  %4410 = vmatprep.subr.mxu0 0.0
  %4411 = vmatpush1.msra.mxu0 0.0
  %4412 = vmatprep.subr.mxu0 0.0
  %4413 = vmatpush1.msra.mxu0 0.0
  %4414 = vmatprep.subr.mxu0 0.0
  %4415 = vmatpush1.msra.mxu0 0.0
  %4416 = vmatprep.subr.mxu0 0.0
  %4417 = vmatpush1.msra.mxu0 0.0
  %4418 = vmatprep.subr.mxu0 0.0
  %4419 = vmatpush1.msra.mxu0 0.0
  %4420 = vmatprep.subr.mxu0 0.0
  %4421 = vmatpush1.msra.mxu0 0.0
  %4422 = vmatprep.subr.mxu0 0.0
  %4423 = vmatpush1.msra.mxu0 0.0
  %4424 = vmatprep.subr.mxu0 0.0
  %4425 = vmatpush1.msra.mxu0 0.0
  %4426 = vmatprep.subr.mxu0 0.0
  %4427 = vmatpush1.msra.mxu0 0.0
  %4428 = vmatprep.subr.mxu0 0.0
  %4429 = vmatpush1.msra.mxu0 0.0
  %4430 = vmatprep.subr.mxu0 0.0
  %4431 = vmatpush1.msra.mxu0 0.0
  %4432 = vmatprep.subr.mxu0 0.0
  %4433 = vmatpush1.msra.mxu0 0.0
  %4434 = vmatprep.subr.mxu0 0.0
  %4435 = vmatpush1.msra.mxu0 0.0
  %4436 = vmatprep.subr.mxu0 0.0
  %4437 = vmatpush1.msra.mxu0 0.0
  %4438 = vmatprep.subr.mxu0 0.0
  %4439 = vmatpush1.msra.mxu0 0.0
  %4440 = vmatprep.subr.mxu0 0.0
  %4441 = vmatpush1.msra.mxu0 0.0
  %4442 = vmatprep.subr.mxu0 0.0
  %4443 = vmatpush1.msra.mxu0 0.0
  %4444 = vmatprep.subr.mxu0 0.0
  %4445 = vmatpush1.msra.mxu0 0.0
  %4446 = vmatprep.subr.mxu0 0.0
  %4447 = vmatpush1.msra.mxu0 0.0
  %4448 = vmatprep.mubr.f32.mxu0 0.0
  %4449 = vmatmul.mubr.f32.gmra.mrb[0].mxu0 %v4284
  %v4450 = vpop.f32.mrb[0].mxu0
  %v4451 = vadd.f32 %v1052, %v4450
  %v4452 = vpop.f32.mrb[0].mxu0
  %4453 = vdwg.mxu0
  %v4454 = vsel %vm71, %v4278, 0
  %4456 = vmatprep.subr.mxu0 0.0
  %4457 = vmatpush1.msra.mxu0 %v831
  %4458 = vmatprep.subr.mxu0 0.0
  %4459 = vmatpush1.msra.mxu0 %v832
  %4460 = vmatprep.subr.mxu0 0.0
  %4461 = vmatpush1.msra.mxu0 %v833
  %4462 = vmatprep.subr.mxu0 0.0
  %4463 = vmatpush1.msra.mxu0 %v834
  %4464 = vmatprep.subr.mxu0 0.0
  %4465 = vmatpush1.msra.mxu0 0.0
  %4466 = vmatprep.subr.mxu0 0.0
  %4467 = vmatpush1.msra.mxu0 0.0
  %4468 = vmatprep.subr.mxu0 0.0
  %4469 = vmatpush1.msra.mxu0 0.0
  %4470 = vmatprep.subr.mxu0 0.0
  %4471 = vmatpush1.msra.mxu0 0.0
  %4472 = vmatprep.subr.mxu0 0.0
  %4473 = vmatpush1.msra.mxu0 0.0
  %4474 = vmatprep.subr.mxu0 0.0
  %4475 = vmatpush1.msra.mxu0 0.0
  %4476 = vmatprep.subr.mxu0 0.0
  %4477 = vmatpush1.msra.mxu0 0.0
  %4478 = vmatprep.subr.mxu0 0.0
  %4479 = vmatpush1.msra.mxu0 0.0
  %4480 = vmatprep.subr.mxu0 0.0
  %4481 = vmatpush1.msra.mxu0 0.0
  %4482 = vmatprep.subr.mxu0 0.0
  %4483 = vmatpush1.msra.mxu0 0.0
  %4484 = vmatprep.subr.mxu0 0.0
  %4485 = vmatpush1.msra.mxu0 0.0
  %4486 = vmatprep.subr.mxu0 0.0
  %4487 = vmatpush1.msra.mxu0 0.0
  %4488 = vmatprep.subr.mxu0 0.0
  %4489 = vmatpush1.msra.mxu0 0.0
  %4490 = vmatprep.subr.mxu0 0.0
  %4491 = vmatpush1.msra.mxu0 0.0
  %4492 = vmatprep.subr.mxu0 0.0
  %4493 = vmatpush1.msra.mxu0 0.0
  %4494 = vmatprep.subr.mxu0 0.0
  %4495 = vmatpush1.msra.mxu0 0.0
  %4496 = vmatprep.subr.mxu0 0.0
  %4497 = vmatpush1.msra.mxu0 0.0
  %4498 = vmatprep.subr.mxu0 0.0
  %4499 = vmatpush1.msra.mxu0 0.0
  %4500 = vmatprep.subr.mxu0 0.0
  %4501 = vmatpush1.msra.mxu0 0.0
  %4502 = vmatprep.subr.mxu0 0.0
  %4503 = vmatpush1.msra.mxu0 0.0
  %4504 = vmatprep.subr.mxu0 0.0
  %4505 = vmatpush1.msra.mxu0 0.0
  %4506 = vmatprep.subr.mxu0 0.0
  %4507 = vmatpush1.msra.mxu0 0.0
  %4508 = vmatprep.subr.mxu0 0.0
  %4509 = vmatpush1.msra.mxu0 0.0
  %4510 = vmatprep.subr.mxu0 0.0
  %4511 = vmatpush1.msra.mxu0 0.0
  %4512 = vmatprep.subr.mxu0 0.0
  %4513 = vmatpush1.msra.mxu0 0.0
  %4514 = vmatprep.subr.mxu0 0.0
  %4515 = vmatpush1.msra.mxu0 0.0
  %4516 = vmatprep.subr.mxu0 0.0
  %4517 = vmatpush1.msra.mxu0 0.0
  %4518 = vmatprep.subr.mxu0 0.0
  %4519 = vmatpush1.msra.mxu0 0.0
  %4520 = vmatprep.mubr.f32.mxu0 0.0
  %4521 = vmatmul.mubr.f32.gmra.mrb[0].mxu0 %v4454
  %v4522 = vpop.f32.mrb[0].mxu0
  %v4523 = vadd.f32 0.0, %v4522
  %v4524 = vpop.f32.mrb[0].mxu0
  %4525 = vdwg.mxu0
  %v4526 = vadd.f32 %v4451, %v4523
  %v4527 = vxor.u32 %v4526, 2147483648
  %v4528 = vmul.f32 %v4527, 1.442695
  %v4529 = vpow.pop %v4528
  %v4530 = vadd.f32 %v4529, 1.0
  %v4531 = vrcp.pop %v4530
  %v4532 = vmul.f32 1.0, %v4531
  %v4533 = vadd.f32 %v4523, %v1207
  %4535 = vrot.lane.b32.xlu0 %v4533, 64
  %v4536 = vpop.permute.xlu0 %4535
  %v4538 = vmul.f32 %v4532, %v4536
  %4540 = vrot.lane.b32.xlu0 %v4538, 64
  %v4541 = vpop.permute.xlu0 %4540
  %v4543 = vadd.f32 %v4451, %v4541
  %v4544 = vtanh.pop %v4543
  %v4545 = vsub.f32 1.0, %v4532
  %4547 = vrot.lane.b32.xlu0 %v4544, 96
  %v4548 = vpop.permute.xlu0 %4547
  %v4550 = vmul.f32 %v4545, %v4548
  %v4551 = vmul.f32 %v4532, %v4275
  %v4552 = vadd.f32 %v4550, %v4551
  %4554 = vrot.lane.b32.xlu0 %v4552, 96
  %v4555 = vpop.permute.xlu0 %4554
  %4557 = vst.msk [vmem:[#allocation5 + $0x60] sm:$0xff] %vm71, %v4555
  %4559 = vrot.lane.b32.xlu0 %v4383, 96
  %v4560 = vpop.permute.xlu0 %4559
  %v4561 = vsel %vm71, %v4560, 0
  %4563 = vmatprep.subr.mxu0 0.0
  %4564 = vmatpush1.msra.mxu0 %v821
  %4565 = vmatprep.subr.mxu0 0.0
  %4566 = vmatpush1.msra.mxu0 %v822
  %4567 = vmatprep.subr.mxu0 0.0
  %4568 = vmatpush1.msra.mxu0 %v823
  %4569 = vmatprep.subr.mxu0 0.0
  %4570 = vmatpush1.msra.mxu0 %v824
  %4571 = vmatprep.subr.mxu0 0.0
  %4572 = vmatpush1.msra.mxu0 0.0
  %4573 = vmatprep.subr.mxu0 0.0
  %4574 = vmatpush1.msra.mxu0 0.0
  %4575 = vmatprep.subr.mxu0 0.0
  %4576 = vmatpush1.msra.mxu0 0.0
  %4577 = vmatprep.subr.mxu0 0.0
  %4578 = vmatpush1.msra.mxu0 0.0
  %4579 = vmatprep.subr.mxu0 0.0
  %4580 = vmatpush1.msra.mxu0 0.0
  %4581 = vmatprep.subr.mxu0 0.0
  %4582 = vmatpush1.msra.mxu0 0.0
  %4583 = vmatprep.subr.mxu0 0.0
  %4584 = vmatpush1.msra.mxu0 0.0
  %4585 = vmatprep.subr.mxu0 0.0
  %4586 = vmatpush1.msra.mxu0 0.0
  %4587 = vmatprep.subr.mxu0 0.0
  %4588 = vmatpush1.msra.mxu0 0.0
  %4589 = vmatprep.subr.mxu0 0.0
  %4590 = vmatpush1.msra.mxu0 0.0
  %4591 = vmatprep.subr.mxu0 0.0
  %4592 = vmatpush1.msra.mxu0 0.0
  %4593 = vmatprep.subr.mxu0 0.0
  %4594 = vmatpush1.msra.mxu0 0.0
  %4595 = vmatprep.subr.mxu0 0.0
  %4596 = vmatpush1.msra.mxu0 0.0
  %4597 = vmatprep.subr.mxu0 0.0
  %4598 = vmatpush1.msra.mxu0 0.0
  %4599 = vmatprep.subr.mxu0 0.0
  %4600 = vmatpush1.msra.mxu0 0.0
  %4601 = vmatprep.subr.mxu0 0.0
  %4602 = vmatpush1.msra.mxu0 0.0
  %4603 = vmatprep.subr.mxu0 0.0
  %4604 = vmatpush1.msra.mxu0 0.0
  %4605 = vmatprep.subr.mxu0 0.0
  %4606 = vmatpush1.msra.mxu0 0.0
  %4607 = vmatprep.subr.mxu0 0.0
  %4608 = vmatpush1.msra.mxu0 0.0
  %4609 = vmatprep.subr.mxu0 0.0
  %4610 = vmatpush1.msra.mxu0 0.0
  %4611 = vmatprep.subr.mxu0 0.0
  %4612 = vmatpush1.msra.mxu0 0.0
  %4613 = vmatprep.subr.mxu0 0.0
  %4614 = vmatpush1.msra.mxu0 0.0
  %4615 = vmatprep.subr.mxu0 0.0
  %4616 = vmatpush1.msra.mxu0 0.0
  %4617 = vmatprep.subr.mxu0 0.0
  %4618 = vmatpush1.msra.mxu0 0.0
  %4619 = vmatprep.subr.mxu0 0.0
  %4620 = vmatpush1.msra.mxu0 0.0
  %4621 = vmatprep.subr.mxu0 0.0
  %4622 = vmatpush1.msra.mxu0 0.0
  %4623 = vmatprep.subr.mxu0 0.0
  %4624 = vmatpush1.msra.mxu0 0.0
  %4625 = vmatprep.subr.mxu0 0.0
  %4626 = vmatpush1.msra.mxu0 0.0
  %4627 = vmatprep.mubr.f32.mxu0 0.0
  %4628 = vmatmul.mubr.f32.gmra.mrb[0].mxu0 %v4561
  %v4629 = vpop.f32.mrb[0].mxu0
  %v4630 = vadd.f32 0.0, %v4629
  %v4631 = vpop.f32.mrb[0].mxu0
  %4632 = vdwg.mxu0
  %v4633 = vld [vmem:[#allocation4 + $0x70] sm:$0xff]
  %v4634 = vadd.f32 %v4633, %v4630
  %v4635 = vxor.u32 %v4634, 2147483648
  %v4636 = vmul.f32 %v4635, 1.442695
  %v4637 = vpow.pop %v4636
  %v4638 = vadd.f32 %v4637, 1.0
  %v4639 = vrcp.pop %v4638
  %v4640 = vmul.f32 1.0, %v4639
  %v4641 = vadd.f32 %v4630, %v923
  %4643 = vrot.lane.b32.xlu0 %v4641, 64
  %v4644 = vpop.permute.xlu0 %4643
  %v4646 = vmul.f32 %v4640, %v4644
  %4648 = vrot.lane.b32.xlu0 %v4646, 64
  %v4649 = vpop.permute.xlu0 %4648
  %v4651 = vadd.f32 %v4633, %v4649
  %v4652 = vtanh.pop %v4651
  %v4653 = vsub.f32 1.0, %v4640
  %4655 = vrot.lane.b32.xlu0 %v4652, 96
  %v4656 = vpop.permute.xlu0 %4655
  %v4658 = vmul.f32 %v4653, %v4656
  %v4659 = vmul.f32 %v4640, %v4383
  %v4660 = vadd.f32 %v4658, %v4659
  %4661 = vmatprep.subr.mxu0 0.0
  %4662 = vmatpush1.msra.mxu0 %v826
  %4663 = vmatprep.subr.mxu0 0.0
  %4664 = vmatpush1.msra.mxu0 %v827
  %4665 = vmatprep.subr.mxu0 0.0
  %4666 = vmatpush1.msra.mxu0 %v828
  %4667 = vmatprep.subr.mxu0 0.0
  %4668 = vmatpush1.msra.mxu0 %v829
  %4669 = vmatprep.subr.mxu0 0.0
  %4670 = vmatpush1.msra.mxu0 0.0
  %4671 = vmatprep.subr.mxu0 0.0
  %4672 = vmatpush1.msra.mxu0 0.0
  %4673 = vmatprep.subr.mxu0 0.0
  %4674 = vmatpush1.msra.mxu0 0.0
  %4675 = vmatprep.subr.mxu0 0.0
  %4676 = vmatpush1.msra.mxu0 0.0
  %4677 = vmatprep.subr.mxu0 0.0
  %4678 = vmatpush1.msra.mxu0 0.0
  %4679 = vmatprep.subr.mxu0 0.0
  %4680 = vmatpush1.msra.mxu0 0.0
  %4681 = vmatprep.subr.mxu0 0.0
  %4682 = vmatpush1.msra.mxu0 0.0
  %4683 = vmatprep.subr.mxu0 0.0
  %4684 = vmatpush1.msra.mxu0 0.0
  %4685 = vmatprep.subr.mxu0 0.0
  %4686 = vmatpush1.msra.mxu0 0.0
  %4687 = vmatprep.subr.mxu0 0.0
  %4688 = vmatpush1.msra.mxu0 0.0
  %4689 = vmatprep.subr.mxu0 0.0
  %4690 = vmatpush1.msra.mxu0 0.0
  %4691 = vmatprep.subr.mxu0 0.0
  %4692 = vmatpush1.msra.mxu0 0.0
  %4693 = vmatprep.subr.mxu0 0.0
  %4694 = vmatpush1.msra.mxu0 0.0
  %4695 = vmatprep.subr.mxu0 0.0
  %4696 = vmatpush1.msra.mxu0 0.0
  %4697 = vmatprep.subr.mxu0 0.0
  %4698 = vmatpush1.msra.mxu0 0.0
  %4699 = vmatprep.subr.mxu0 0.0
  %4700 = vmatpush1.msra.mxu0 0.0
  %4701 = vmatprep.subr.mxu0 0.0
  %4702 = vmatpush1.msra.mxu0 0.0
  %4703 = vmatprep.subr.mxu0 0.0
  %4704 = vmatpush1.msra.mxu0 0.0
  %4705 = vmatprep.subr.mxu0 0.0
  %4706 = vmatpush1.msra.mxu0 0.0
  %4707 = vmatprep.subr.mxu0 0.0
  %4708 = vmatpush1.msra.mxu0 0.0
  %4709 = vmatprep.subr.mxu0 0.0
  %4710 = vmatpush1.msra.mxu0 0.0
  %4711 = vmatprep.subr.mxu0 0.0
  %4712 = vmatpush1.msra.mxu0 0.0
  %4713 = vmatprep.subr.mxu0 0.0
  %4714 = vmatpush1.msra.mxu0 0.0
  %4715 = vmatprep.subr.mxu0 0.0
  %4716 = vmatpush1.msra.mxu0 0.0
  %4717 = vmatprep.subr.mxu0 0.0
  %4718 = vmatpush1.msra.mxu0 0.0
  %4719 = vmatprep.subr.mxu0 0.0
  %4720 = vmatpush1.msra.mxu0 0.0
  %4721 = vmatprep.subr.mxu0 0.0
  %4722 = vmatpush1.msra.mxu0 0.0
  %4723 = vmatprep.subr.mxu0 0.0
  %4724 = vmatpush1.msra.mxu0 0.0
  %4725 = vmatprep.mubr.f32.mxu0 0.0
  %4726 = vmatmul.mubr.f32.gmra.mrb[0].mxu0 %v4561
  %v4727 = vpop.f32.mrb[0].mxu0
  %v4728 = vadd.f32 %v1052, %v4727
  %v4729 = vpop.f32.mrb[0].mxu0
  %4730 = vdwg.mxu0
  %v4731 = vsel %vm71, %v4555, 0
  %4733 = vmatprep.subr.mxu0 0.0
  %4734 = vmatpush1.msra.mxu0 %v831
  %4735 = vmatprep.subr.mxu0 0.0
  %4736 = vmatpush1.msra.mxu0 %v832
  %4737 = vmatprep.subr.mxu0 0.0
  %4738 = vmatpush1.msra.mxu0 %v833
  %4739 = vmatprep.subr.mxu0 0.0
  %4740 = vmatpush1.msra.mxu0 %v834
  %4741 = vmatprep.subr.mxu0 0.0
  %4742 = vmatpush1.msra.mxu0 0.0
  %4743 = vmatprep.subr.mxu0 0.0
  %4744 = vmatpush1.msra.mxu0 0.0
  %4745 = vmatprep.subr.mxu0 0.0
  %4746 = vmatpush1.msra.mxu0 0.0
  %4747 = vmatprep.subr.mxu0 0.0
  %4748 = vmatpush1.msra.mxu0 0.0
  %4749 = vmatprep.subr.mxu0 0.0
  %4750 = vmatpush1.msra.mxu0 0.0
  %4751 = vmatprep.subr.mxu0 0.0
  %4752 = vmatpush1.msra.mxu0 0.0
  %4753 = vmatprep.subr.mxu0 0.0
  %4754 = vmatpush1.msra.mxu0 0.0
  %4755 = vmatprep.subr.mxu0 0.0
  %4756 = vmatpush1.msra.mxu0 0.0
  %4757 = vmatprep.subr.mxu0 0.0
  %4758 = vmatpush1.msra.mxu0 0.0
  %4759 = vmatprep.subr.mxu0 0.0
  %4760 = vmatpush1.msra.mxu0 0.0
  %4761 = vmatprep.subr.mxu0 0.0
  %4762 = vmatpush1.msra.mxu0 0.0
  %4763 = vmatprep.subr.mxu0 0.0
  %4764 = vmatpush1.msra.mxu0 0.0
  %4765 = vmatprep.subr.mxu0 0.0
  %4766 = vmatpush1.msra.mxu0 0.0
  %4767 = vmatprep.subr.mxu0 0.0
  %4768 = vmatpush1.msra.mxu0 0.0
  %4769 = vmatprep.subr.mxu0 0.0
  %4770 = vmatpush1.msra.mxu0 0.0
  %4771 = vmatprep.subr.mxu0 0.0
  %4772 = vmatpush1.msra.mxu0 0.0
  %4773 = vmatprep.subr.mxu0 0.0
  %4774 = vmatpush1.msra.mxu0 0.0
  %4775 = vmatprep.subr.mxu0 0.0
  %4776 = vmatpush1.msra.mxu0 0.0
  %4777 = vmatprep.subr.mxu0 0.0
  %4778 = vmatpush1.msra.mxu0 0.0
  %4779 = vmatprep.subr.mxu0 0.0
  %4780 = vmatpush1.msra.mxu0 0.0
  %4781 = vmatprep.subr.mxu0 0.0
  %4782 = vmatpush1.msra.mxu0 0.0
  %4783 = vmatprep.subr.mxu0 0.0
  %4784 = vmatpush1.msra.mxu0 0.0
  %4785 = vmatprep.subr.mxu0 0.0
  %4786 = vmatpush1.msra.mxu0 0.0
  %4787 = vmatprep.subr.mxu0 0.0
  %4788 = vmatpush1.msra.mxu0 0.0
  %4789 = vmatprep.subr.mxu0 0.0
  %4790 = vmatpush1.msra.mxu0 0.0
  %4791 = vmatprep.subr.mxu0 0.0
  %4792 = vmatpush1.msra.mxu0 0.0
  %4793 = vmatprep.subr.mxu0 0.0
  %4794 = vmatpush1.msra.mxu0 0.0
  %4795 = vmatprep.subr.mxu0 0.0
  %4796 = vmatpush1.msra.mxu0 0.0
  %4797 = vmatprep.mubr.f32.mxu0 0.0
  %4798 = vmatmul.mubr.f32.gmra.mrb[0].mxu0 %v4731
  %v4799 = vpop.f32.mrb[0].mxu0
  %v4800 = vadd.f32 0.0, %v4799
  %v4801 = vpop.f32.mrb[0].mxu0
  %4802 = vdwg.mxu0
  %v4803 = vadd.f32 %v4728, %v4800
  %v4804 = vxor.u32 %v4803, 2147483648
  %v4805 = vmul.f32 %v4804, 1.442695
  %v4806 = vpow.pop %v4805
  %v4807 = vadd.f32 %v4806, 1.0
  %v4808 = vrcp.pop %v4807
  %v4809 = vmul.f32 1.0, %v4808
  %v4810 = vadd.f32 %v4800, %v1207
  %4812 = vrot.lane.b32.xlu0 %v4810, 64
  %v4813 = vpop.permute.xlu0 %4812
  %v4815 = vmul.f32 %v4809, %v4813
  %4817 = vrot.lane.b32.xlu0 %v4815, 64
  %v4818 = vpop.permute.xlu0 %4817
  %v4820 = vadd.f32 %v4728, %v4818
  %v4821 = vtanh.pop %v4820
  %v4822 = vsub.f32 1.0, %v4809
  %4824 = vrot.lane.b32.xlu0 %v4821, 96
  %v4825 = vpop.permute.xlu0 %4824
  %v4827 = vmul.f32 %v4822, %v4825
  %v4828 = vmul.f32 %v4809, %v4552
  %v4829 = vadd.f32 %v4827, %v4828
  %4831 = vrot.lane.b32.xlu0 %v4829, 96
  %v4832 = vpop.permute.xlu0 %4831
  %4834 = vst.msk [vmem:[#allocation5 + $0x68] sm:$0xff] %vm71, %v4832
  %4836 = vrot.lane.b32.xlu0 %v4660, 96
  %v4837 = vpop.permute.xlu0 %4836
  %v4838 = vsel %vm71, %v4837, 0
  %4840 = vmatprep.subr.mxu0 0.0
  %4841 = vmatpush1.msra.mxu0 %v821
  %4842 = vmatprep.subr.mxu0 0.0
  %4843 = vmatpush1.msra.mxu0 %v822
  %4844 = vmatprep.subr.mxu0 0.0
  %4845 = vmatpush1.msra.mxu0 %v823
  %4846 = vmatprep.subr.mxu0 0.0
  %4847 = vmatpush1.msra.mxu0 %v824
  %4848 = vmatprep.subr.mxu0 0.0
  %4849 = vmatpush1.msra.mxu0 0.0
  %4850 = vmatprep.subr.mxu0 0.0
  %4851 = vmatpush1.msra.mxu0 0.0
  %4852 = vmatprep.subr.mxu0 0.0
  %4853 = vmatpush1.msra.mxu0 0.0
  %4854 = vmatprep.subr.mxu0 0.0
  %4855 = vmatpush1.msra.mxu0 0.0
  %4856 = vmatprep.subr.mxu0 0.0
  %4857 = vmatpush1.msra.mxu0 0.0
  %4858 = vmatprep.subr.mxu0 0.0
  %4859 = vmatpush1.msra.mxu0 0.0
  %4860 = vmatprep.subr.mxu0 0.0
  %4861 = vmatpush1.msra.mxu0 0.0
  %4862 = vmatprep.subr.mxu0 0.0
  %4863 = vmatpush1.msra.mxu0 0.0
  %4864 = vmatprep.subr.mxu0 0.0
  %4865 = vmatpush1.msra.mxu0 0.0
  %4866 = vmatprep.subr.mxu0 0.0
  %4867 = vmatpush1.msra.mxu0 0.0
  %4868 = vmatprep.subr.mxu0 0.0
  %4869 = vmatpush1.msra.mxu0 0.0
  %4870 = vmatprep.subr.mxu0 0.0
  %4871 = vmatpush1.msra.mxu0 0.0
  %4872 = vmatprep.subr.mxu0 0.0
  %4873 = vmatpush1.msra.mxu0 0.0
  %4874 = vmatprep.subr.mxu0 0.0
  %4875 = vmatpush1.msra.mxu0 0.0
  %4876 = vmatprep.subr.mxu0 0.0
  %4877 = vmatpush1.msra.mxu0 0.0
  %4878 = vmatprep.subr.mxu0 0.0
  %4879 = vmatpush1.msra.mxu0 0.0
  %4880 = vmatprep.subr.mxu0 0.0
  %4881 = vmatpush1.msra.mxu0 0.0
  %4882 = vmatprep.subr.mxu0 0.0
  %4883 = vmatpush1.msra.mxu0 0.0
  %4884 = vmatprep.subr.mxu0 0.0
  %4885 = vmatpush1.msra.mxu0 0.0
  %4886 = vmatprep.subr.mxu0 0.0
  %4887 = vmatpush1.msra.mxu0 0.0
  %4888 = vmatprep.subr.mxu0 0.0
  %4889 = vmatpush1.msra.mxu0 0.0
  %4890 = vmatprep.subr.mxu0 0.0
  %4891 = vmatpush1.msra.mxu0 0.0
  %4892 = vmatprep.subr.mxu0 0.0
  %4893 = vmatpush1.msra.mxu0 0.0
  %4894 = vmatprep.subr.mxu0 0.0
  %4895 = vmatpush1.msra.mxu0 0.0
  %4896 = vmatprep.subr.mxu0 0.0
  %4897 = vmatpush1.msra.mxu0 0.0
  %4898 = vmatprep.subr.mxu0 0.0
  %4899 = vmatpush1.msra.mxu0 0.0
  %4900 = vmatprep.subr.mxu0 0.0
  %4901 = vmatpush1.msra.mxu0 0.0
  %4902 = vmatprep.subr.mxu0 0.0
  %4903 = vmatpush1.msra.mxu0 0.0
  %4904 = vmatprep.mubr.f32.mxu0 0.0
  %4905 = vmatmul.mubr.f32.gmra.mrb[0].mxu0 %v4838
  %v4906 = vpop.f32.mrb[0].mxu0
  %v4907 = vadd.f32 0.0, %v4906
  %v4908 = vpop.f32.mrb[0].mxu0
  %4909 = vdwg.mxu0
  %v4910 = vld [vmem:[#allocation4 + $0x78] sm:$0xff]
  %v4911 = vadd.f32 %v4910, %v4907
  %v4912 = vxor.u32 %v4911, 2147483648
  %v4913 = vmul.f32 %v4912, 1.442695
  %v4914 = vpow.pop %v4913
  %v4915 = vadd.f32 %v4914, 1.0
  %v4916 = vrcp.pop %v4915
  %v4917 = vmul.f32 1.0, %v4916
  %v4918 = vadd.f32 %v4907, %v923
  %4920 = vrot.lane.b32.xlu0 %v4918, 64
  %v4921 = vpop.permute.xlu0 %4920
  %v4923 = vmul.f32 %v4917, %v4921
  %4925 = vrot.lane.b32.xlu0 %v4923, 64
  %v4926 = vpop.permute.xlu0 %4925
  %v4928 = vadd.f32 %v4910, %v4926
  %v4929 = vtanh.pop %v4928
  %v4930 = vsub.f32 1.0, %v4917
  %4932 = vrot.lane.b32.xlu0 %v4929, 96
  %v4933 = vpop.permute.xlu0 %4932
  %v4935 = vmul.f32 %v4930, %v4933
  %v4936 = vmul.f32 %v4917, %v4660
  %v4937 = vadd.f32 %v4935, %v4936
  %4938 = vmatprep.subr.mxu0 0.0
  %4939 = vmatpush1.msra.mxu0 %v826
  %4940 = vmatprep.subr.mxu0 0.0
  %4941 = vmatpush1.msra.mxu0 %v827
  %4942 = vmatprep.subr.mxu0 0.0
  %4943 = vmatpush1.msra.mxu0 %v828
  %4944 = vmatprep.subr.mxu0 0.0
  %4945 = vmatpush1.msra.mxu0 %v829
  %4946 = vmatprep.subr.mxu0 0.0
  %4947 = vmatpush1.msra.mxu0 0.0
  %4948 = vmatprep.subr.mxu0 0.0
  %4949 = vmatpush1.msra.mxu0 0.0
  %4950 = vmatprep.subr.mxu0 0.0
  %4951 = vmatpush1.msra.mxu0 0.0
  %4952 = vmatprep.subr.mxu0 0.0
  %4953 = vmatpush1.msra.mxu0 0.0
  %4954 = vmatprep.subr.mxu0 0.0
  %4955 = vmatpush1.msra.mxu0 0.0
  %4956 = vmatprep.subr.mxu0 0.0
  %4957 = vmatpush1.msra.mxu0 0.0
  %4958 = vmatprep.subr.mxu0 0.0
  %4959 = vmatpush1.msra.mxu0 0.0
  %4960 = vmatprep.subr.mxu0 0.0
  %4961 = vmatpush1.msra.mxu0 0.0
  %4962 = vmatprep.subr.mxu0 0.0
  %4963 = vmatpush1.msra.mxu0 0.0
  %4964 = vmatprep.subr.mxu0 0.0
  %4965 = vmatpush1.msra.mxu0 0.0
  %4966 = vmatprep.subr.mxu0 0.0
  %4967 = vmatpush1.msra.mxu0 0.0
  %4968 = vmatprep.subr.mxu0 0.0
  %4969 = vmatpush1.msra.mxu0 0.0
  %4970 = vmatprep.subr.mxu0 0.0
  %4971 = vmatpush1.msra.mxu0 0.0
  %4972 = vmatprep.subr.mxu0 0.0
  %4973 = vmatpush1.msra.mxu0 0.0
  %4974 = vmatprep.subr.mxu0 0.0
  %4975 = vmatpush1.msra.mxu0 0.0
  %4976 = vmatprep.subr.mxu0 0.0
  %4977 = vmatpush1.msra.mxu0 0.0
  %4978 = vmatprep.subr.mxu0 0.0
  %4979 = vmatpush1.msra.mxu0 0.0
  %4980 = vmatprep.subr.mxu0 0.0
  %4981 = vmatpush1.msra.mxu0 0.0
  %4982 = vmatprep.subr.mxu0 0.0
  %4983 = vmatpush1.msra.mxu0 0.0
  %4984 = vmatprep.subr.mxu0 0.0
  %4985 = vmatpush1.msra.mxu0 0.0
  %4986 = vmatprep.subr.mxu0 0.0
  %4987 = vmatpush1.msra.mxu0 0.0
  %4988 = vmatprep.subr.mxu0 0.0
  %4989 = vmatpush1.msra.mxu0 0.0
  %4990 = vmatprep.subr.mxu0 0.0
  %4991 = vmatpush1.msra.mxu0 0.0
  %4992 = vmatprep.subr.mxu0 0.0
  %4993 = vmatpush1.msra.mxu0 0.0
  %4994 = vmatprep.subr.mxu0 0.0
  %4995 = vmatpush1.msra.mxu0 0.0
  %4996 = vmatprep.subr.mxu0 0.0
  %4997 = vmatpush1.msra.mxu0 0.0
  %4998 = vmatprep.subr.mxu0 0.0
  %4999 = vmatpush1.msra.mxu0 0.0
  %5000 = vmatprep.subr.mxu0 0.0
  %5001 = vmatpush1.msra.mxu0 0.0
  %5002 = vmatprep.mubr.f32.mxu0 0.0
  %5003 = vmatmul.mubr.f32.gmra.mrb[0].mxu0 %v4838
  %v5004 = vpop.f32.mrb[0].mxu0
  %v5005 = vadd.f32 %v1052, %v5004
  %v5006 = vpop.f32.mrb[0].mxu0
  %5007 = vdwg.mxu0
  %v5008 = vsel %vm71, %v4832, 0
  %5010 = vmatprep.subr.mxu0 0.0
  %5011 = vmatpush1.msra.mxu0 %v831
  %5012 = vmatprep.subr.mxu0 0.0
  %5013 = vmatpush1.msra.mxu0 %v832
  %5014 = vmatprep.subr.mxu0 0.0
  %5015 = vmatpush1.msra.mxu0 %v833
  %5016 = vmatprep.subr.mxu0 0.0
  %5017 = vmatpush1.msra.mxu0 %v834
  %5018 = vmatprep.subr.mxu0 0.0
  %5019 = vmatpush1.msra.mxu0 0.0
  %5020 = vmatprep.subr.mxu0 0.0
  %5021 = vmatpush1.msra.mxu0 0.0
  %5022 = vmatprep.subr.mxu0 0.0
  %5023 = vmatpush1.msra.mxu0 0.0
  %5024 = vmatprep.subr.mxu0 0.0
  %5025 = vmatpush1.msra.mxu0 0.0
  %5026 = vmatprep.subr.mxu0 0.0
  %5027 = vmatpush1.msra.mxu0 0.0
  %5028 = vmatprep.subr.mxu0 0.0
  %5029 = vmatpush1.msra.mxu0 0.0
  %5030 = vmatprep.subr.mxu0 0.0
  %5031 = vmatpush1.msra.mxu0 0.0
  %5032 = vmatprep.subr.mxu0 0.0
  %5033 = vmatpush1.msra.mxu0 0.0
  %5034 = vmatprep.subr.mxu0 0.0
  %5035 = vmatpush1.msra.mxu0 0.0
  %5036 = vmatprep.subr.mxu0 0.0
  %5037 = vmatpush1.msra.mxu0 0.0
  %5038 = vmatprep.subr.mxu0 0.0
  %5039 = vmatpush1.msra.mxu0 0.0
  %5040 = vmatprep.subr.mxu0 0.0
  %5041 = vmatpush1.msra.mxu0 0.0
  %5042 = vmatprep.subr.mxu0 0.0
  %5043 = vmatpush1.msra.mxu0 0.0
  %5044 = vmatprep.subr.mxu0 0.0
  %5045 = vmatpush1.msra.mxu0 0.0
  %5046 = vmatprep.subr.mxu0 0.0
  %5047 = vmatpush1.msra.mxu0 0.0
  %5048 = vmatprep.subr.mxu0 0.0
  %5049 = vmatpush1.msra.mxu0 0.0
  %5050 = vmatprep.subr.mxu0 0.0
  %5051 = vmatpush1.msra.mxu0 0.0
  %5052 = vmatprep.subr.mxu0 0.0
  %5053 = vmatpush1.msra.mxu0 0.0
  %5054 = vmatprep.subr.mxu0 0.0
  %5055 = vmatpush1.msra.mxu0 0.0
  %5056 = vmatprep.subr.mxu0 0.0
  %5057 = vmatpush1.msra.mxu0 0.0
  %5058 = vmatprep.subr.mxu0 0.0
  %5059 = vmatpush1.msra.mxu0 0.0
  %5060 = vmatprep.subr.mxu0 0.0
  %5061 = vmatpush1.msra.mxu0 0.0
  %5062 = vmatprep.subr.mxu0 0.0
  %5063 = vmatpush1.msra.mxu0 0.0
  %5064 = vmatprep.subr.mxu0 0.0
  %5065 = vmatpush1.msra.mxu0 0.0
  %5066 = vmatprep.subr.mxu0 0.0
  %5067 = vmatpush1.msra.mxu0 0.0
  %5068 = vmatprep.subr.mxu0 0.0
  %5069 = vmatpush1.msra.mxu0 0.0
  %5070 = vmatprep.subr.mxu0 0.0
  %5071 = vmatpush1.msra.mxu0 0.0
  %5072 = vmatprep.subr.mxu0 0.0
  %5073 = vmatpush1.msra.mxu0 0.0
  %5074 = vmatprep.mubr.f32.mxu0 0.0
  %5075 = vmatmul.mubr.f32.gmra.mrb[0].mxu0 %v5008
  %v5076 = vpop.f32.mrb[0].mxu0
  %v5077 = vadd.f32 0.0, %v5076
  %v5078 = vpop.f32.mrb[0].mxu0
  %5079 = vdwg.mxu0
  %v5080 = vadd.f32 %v5005, %v5077
  %v5081 = vxor.u32 %v5080, 2147483648
  %v5082 = vmul.f32 %v5081, 1.442695
  %v5083 = vpow.pop %v5082
  %v5084 = vadd.f32 %v5083, 1.0
  %v5085 = vrcp.pop %v5084
  %v5086 = vmul.f32 1.0, %v5085
  %v5087 = vadd.f32 %v5077, %v1207
  %5089 = vrot.lane.b32.xlu0 %v5087, 64
  %v5090 = vpop.permute.xlu0 %5089
  %v5092 = vmul.f32 %v5086, %v5090
  %5094 = vrot.lane.b32.xlu0 %v5092, 64
  %v5095 = vpop.permute.xlu0 %5094
  %v5097 = vadd.f32 %v5005, %v5095
  %v5098 = vtanh.pop %v5097
  %v5099 = vsub.f32 1.0, %v5086
  %5101 = vrot.lane.b32.xlu0 %v5098, 96
  %v5102 = vpop.permute.xlu0 %5101
  %v5104 = vmul.f32 %v5099, %v5102
  %v5105 = vmul.f32 %v5086, %v4829
  %v5106 = vadd.f32 %v5104, %v5105
  %5108 = vrot.lane.b32.xlu0 %v5106, 96
  %v5109 = vpop.permute.xlu0 %5108
  %5111 = vst.msk [vmem:[#allocation5 + $0x70] sm:$0xff] %vm71, %v5109
  %5113 = vrot.lane.b32.xlu0 %v4937, 96
  %v5114 = vpop.permute.xlu0 %5113
  %v5115 = vsel %vm71, %v5114, 0
  %5117 = vmatprep.subr.mxu0 0.0
  %5118 = vmatpush1.msra.mxu0 %v821
  %5119 = vmatprep.subr.mxu0 0.0
  %5120 = vmatpush1.msra.mxu0 %v822
  %5121 = vmatprep.subr.mxu0 0.0
  %5122 = vmatpush1.msra.mxu0 %v823
  %5123 = vmatprep.subr.mxu0 0.0
  %5124 = vmatpush1.msra.mxu0 %v824
  %5125 = vmatprep.subr.mxu0 0.0
  %5126 = vmatpush1.msra.mxu0 0.0
  %5127 = vmatprep.subr.mxu0 0.0
  %5128 = vmatpush1.msra.mxu0 0.0
  %5129 = vmatprep.subr.mxu0 0.0
  %5130 = vmatpush1.msra.mxu0 0.0
  %5131 = vmatprep.subr.mxu0 0.0
  %5132 = vmatpush1.msra.mxu0 0.0
  %5133 = vmatprep.subr.mxu0 0.0
  %5134 = vmatpush1.msra.mxu0 0.0
  %5135 = vmatprep.subr.mxu0 0.0
  %5136 = vmatpush1.msra.mxu0 0.0
  %5137 = vmatprep.subr.mxu0 0.0
  %5138 = vmatpush1.msra.mxu0 0.0
  %5139 = vmatprep.subr.mxu0 0.0
  %5140 = vmatpush1.msra.mxu0 0.0
  %5141 = vmatprep.subr.mxu0 0.0
  %5142 = vmatpush1.msra.mxu0 0.0
  %5143 = vmatprep.subr.mxu0 0.0
  %5144 = vmatpush1.msra.mxu0 0.0
  %5145 = vmatprep.subr.mxu0 0.0
  %5146 = vmatpush1.msra.mxu0 0.0
  %5147 = vmatprep.subr.mxu0 0.0
  %5148 = vmatpush1.msra.mxu0 0.0
  %5149 = vmatprep.subr.mxu0 0.0
  %5150 = vmatpush1.msra.mxu0 0.0
  %5151 = vmatprep.subr.mxu0 0.0
  %5152 = vmatpush1.msra.mxu0 0.0
  %5153 = vmatprep.subr.mxu0 0.0
  %5154 = vmatpush1.msra.mxu0 0.0
  %5155 = vmatprep.subr.mxu0 0.0
  %5156 = vmatpush1.msra.mxu0 0.0
  %5157 = vmatprep.subr.mxu0 0.0
  %5158 = vmatpush1.msra.mxu0 0.0
  %5159 = vmatprep.subr.mxu0 0.0
  %5160 = vmatpush1.msra.mxu0 0.0
  %5161 = vmatprep.subr.mxu0 0.0
  %5162 = vmatpush1.msra.mxu0 0.0
  %5163 = vmatprep.subr.mxu0 0.0
  %5164 = vmatpush1.msra.mxu0 0.0
  %5165 = vmatprep.subr.mxu0 0.0
  %5166 = vmatpush1.msra.mxu0 0.0
  %5167 = vmatprep.subr.mxu0 0.0
  %5168 = vmatpush1.msra.mxu0 0.0
  %5169 = vmatprep.subr.mxu0 0.0
  %5170 = vmatpush1.msra.mxu0 0.0
  %5171 = vmatprep.subr.mxu0 0.0
  %5172 = vmatpush1.msra.mxu0 0.0
  %5173 = vmatprep.subr.mxu0 0.0
  %5174 = vmatpush1.msra.mxu0 0.0
  %5175 = vmatprep.subr.mxu0 0.0
  %5176 = vmatpush1.msra.mxu0 0.0
  %5177 = vmatprep.subr.mxu0 0.0
  %5178 = vmatpush1.msra.mxu0 0.0
  %5179 = vmatprep.subr.mxu0 0.0
  %5180 = vmatpush1.msra.mxu0 0.0
  %5181 = vmatprep.mubr.f32.mxu0 0.0
  %5182 = vmatmul.mubr.f32.gmra.mrb[0].mxu0 %v5115
  %v5183 = vpop.f32.mrb[0].mxu0
  %v5184 = vadd.f32 0.0, %v5183
  %v5185 = vpop.f32.mrb[0].mxu0
  %5186 = vdwg.mxu0
  %v5187 = vld [vmem:[#allocation4 + $0x80] sm:$0xff]
  %v5188 = vadd.f32 %v5187, %v5184
  %v5189 = vxor.u32 %v5188, 2147483648
  %v5190 = vmul.f32 %v5189, 1.442695
  %v5191 = vpow.pop %v5190
  %v5192 = vadd.f32 %v5191, 1.0
  %v5193 = vrcp.pop %v5192
  %v5194 = vmul.f32 1.0, %v5193
  %v5195 = vadd.f32 %v5184, %v923
  %5197 = vrot.lane.b32.xlu0 %v5195, 64
  %v5198 = vpop.permute.xlu0 %5197
  %v5200 = vmul.f32 %v5194, %v5198
  %5202 = vrot.lane.b32.xlu0 %v5200, 64
  %v5203 = vpop.permute.xlu0 %5202
  %v5205 = vadd.f32 %v5187, %v5203
  %v5206 = vtanh.pop %v5205
  %v5207 = vsub.f32 1.0, %v5194
  %5209 = vrot.lane.b32.xlu0 %v5206, 96
  %v5210 = vpop.permute.xlu0 %5209
  %v5212 = vmul.f32 %v5207, %v5210
  %v5213 = vmul.f32 %v5194, %v4937
  %v5214 = vadd.f32 %v5212, %v5213
  %5215 = vmatprep.subr.mxu0 0.0
  %5216 = vmatpush1.msra.mxu0 %v826
  %5217 = vmatprep.subr.mxu0 0.0
  %5218 = vmatpush1.msra.mxu0 %v827
  %5219 = vmatprep.subr.mxu0 0.0
  %5220 = vmatpush1.msra.mxu0 %v828
  %5221 = vmatprep.subr.mxu0 0.0
  %5222 = vmatpush1.msra.mxu0 %v829
  %5223 = vmatprep.subr.mxu0 0.0
  %5224 = vmatpush1.msra.mxu0 0.0
  %5225 = vmatprep.subr.mxu0 0.0
  %5226 = vmatpush1.msra.mxu0 0.0
  %5227 = vmatprep.subr.mxu0 0.0
  %5228 = vmatpush1.msra.mxu0 0.0
  %5229 = vmatprep.subr.mxu0 0.0
  %5230 = vmatpush1.msra.mxu0 0.0
  %5231 = vmatprep.subr.mxu0 0.0
  %5232 = vmatpush1.msra.mxu0 0.0
  %5233 = vmatprep.subr.mxu0 0.0
  %5234 = vmatpush1.msra.mxu0 0.0
  %5235 = vmatprep.subr.mxu0 0.0
  %5236 = vmatpush1.msra.mxu0 0.0
  %5237 = vmatprep.subr.mxu0 0.0
  %5238 = vmatpush1.msra.mxu0 0.0
  %5239 = vmatprep.subr.mxu0 0.0
  %5240 = vmatpush1.msra.mxu0 0.0
  %5241 = vmatprep.subr.mxu0 0.0
  %5242 = vmatpush1.msra.mxu0 0.0
  %5243 = vmatprep.subr.mxu0 0.0
  %5244 = vmatpush1.msra.mxu0 0.0
  %5245 = vmatprep.subr.mxu0 0.0
  %5246 = vmatpush1.msra.mxu0 0.0
  %5247 = vmatprep.subr.mxu0 0.0
  %5248 = vmatpush1.msra.mxu0 0.0
  %5249 = vmatprep.subr.mxu0 0.0
  %5250 = vmatpush1.msra.mxu0 0.0
  %5251 = vmatprep.subr.mxu0 0.0
  %5252 = vmatpush1.msra.mxu0 0.0
  %5253 = vmatprep.subr.mxu0 0.0
  %5254 = vmatpush1.msra.mxu0 0.0
  %5255 = vmatprep.subr.mxu0 0.0
  %5256 = vmatpush1.msra.mxu0 0.0
  %5257 = vmatprep.subr.mxu0 0.0
  %5258 = vmatpush1.msra.mxu0 0.0
  %5259 = vmatprep.subr.mxu0 0.0
  %5260 = vmatpush1.msra.mxu0 0.0
  %5261 = vmatprep.subr.mxu0 0.0
  %5262 = vmatpush1.msra.mxu0 0.0
  %5263 = vmatprep.subr.mxu0 0.0
  %5264 = vmatpush1.msra.mxu0 0.0
  %5265 = vmatprep.subr.mxu0 0.0
  %5266 = vmatpush1.msra.mxu0 0.0
  %5267 = vmatprep.subr.mxu0 0.0
  %5268 = vmatpush1.msra.mxu0 0.0
  %5269 = vmatprep.subr.mxu0 0.0
  %5270 = vmatpush1.msra.mxu0 0.0
  %5271 = vmatprep.subr.mxu0 0.0
  %5272 = vmatpush1.msra.mxu0 0.0
  %5273 = vmatprep.subr.mxu0 0.0
  %5274 = vmatpush1.msra.mxu0 0.0
  %5275 = vmatprep.subr.mxu0 0.0
  %5276 = vmatpush1.msra.mxu0 0.0
  %5277 = vmatprep.subr.mxu0 0.0
  %5278 = vmatpush1.msra.mxu0 0.0
  %5279 = vmatprep.mubr.f32.mxu0 0.0
  %5280 = vmatmul.mubr.f32.gmra.mrb[0].mxu0 %v5115
  %v5281 = vpop.f32.mrb[0].mxu0
  %v5282 = vadd.f32 %v1052, %v5281
  %v5283 = vpop.f32.mrb[0].mxu0
  %5284 = vdwg.mxu0
  %v5285 = vsel %vm71, %v5109, 0
  %5287 = vmatprep.subr.mxu0 0.0
  %5288 = vmatpush1.msra.mxu0 %v831
  %5289 = vmatprep.subr.mxu0 0.0
  %5290 = vmatpush1.msra.mxu0 %v832
  %5291 = vmatprep.subr.mxu0 0.0
  %5292 = vmatpush1.msra.mxu0 %v833
  %5293 = vmatprep.subr.mxu0 0.0
  %5294 = vmatpush1.msra.mxu0 %v834
  %5295 = vmatprep.subr.mxu0 0.0
  %5296 = vmatpush1.msra.mxu0 0.0
  %5297 = vmatprep.subr.mxu0 0.0
  %5298 = vmatpush1.msra.mxu0 0.0
  %5299 = vmatprep.subr.mxu0 0.0
  %5300 = vmatpush1.msra.mxu0 0.0
  %5301 = vmatprep.subr.mxu0 0.0
  %5302 = vmatpush1.msra.mxu0 0.0
  %5303 = vmatprep.subr.mxu0 0.0
  %5304 = vmatpush1.msra.mxu0 0.0
  %5305 = vmatprep.subr.mxu0 0.0
  %5306 = vmatpush1.msra.mxu0 0.0
  %5307 = vmatprep.subr.mxu0 0.0
  %5308 = vmatpush1.msra.mxu0 0.0
  %5309 = vmatprep.subr.mxu0 0.0
  %5310 = vmatpush1.msra.mxu0 0.0
  %5311 = vmatprep.subr.mxu0 0.0
  %5312 = vmatpush1.msra.mxu0 0.0
  %5313 = vmatprep.subr.mxu0 0.0
  %5314 = vmatpush1.msra.mxu0 0.0
  %5315 = vmatprep.subr.mxu0 0.0
  %5316 = vmatpush1.msra.mxu0 0.0
  %5317 = vmatprep.subr.mxu0 0.0
  %5318 = vmatpush1.msra.mxu0 0.0
  %5319 = vmatprep.subr.mxu0 0.0
  %5320 = vmatpush1.msra.mxu0 0.0
  %5321 = vmatprep.subr.mxu0 0.0
  %5322 = vmatpush1.msra.mxu0 0.0
  %5323 = vmatprep.subr.mxu0 0.0
  %5324 = vmatpush1.msra.mxu0 0.0
  %5325 = vmatprep.subr.mxu0 0.0
  %5326 = vmatpush1.msra.mxu0 0.0
  %5327 = vmatprep.subr.mxu0 0.0
  %5328 = vmatpush1.msra.mxu0 0.0
  %5329 = vmatprep.subr.mxu0 0.0
  %5330 = vmatpush1.msra.mxu0 0.0
  %5331 = vmatprep.subr.mxu0 0.0
  %5332 = vmatpush1.msra.mxu0 0.0
  %5333 = vmatprep.subr.mxu0 0.0
  %5334 = vmatpush1.msra.mxu0 0.0
  %5335 = vmatprep.subr.mxu0 0.0
  %5336 = vmatpush1.msra.mxu0 0.0
  %5337 = vmatprep.subr.mxu0 0.0
  %5338 = vmatpush1.msra.mxu0 0.0
  %5339 = vmatprep.subr.mxu0 0.0
  %5340 = vmatpush1.msra.mxu0 0.0
  %5341 = vmatprep.subr.mxu0 0.0
  %5342 = vmatpush1.msra.mxu0 0.0
  %5343 = vmatprep.subr.mxu0 0.0
  %5344 = vmatpush1.msra.mxu0 0.0
  %5345 = vmatprep.subr.mxu0 0.0
  %5346 = vmatpush1.msra.mxu0 0.0
  %5347 = vmatprep.subr.mxu0 0.0
  %5348 = vmatpush1.msra.mxu0 0.0
  %5349 = vmatprep.subr.mxu0 0.0
  %5350 = vmatpush1.msra.mxu0 0.0
  %5351 = vmatprep.mubr.f32.mxu0 0.0
  %5352 = vmatmul.mubr.f32.gmra.mrb[0].mxu0 %v5285
  %v5353 = vpop.f32.mrb[0].mxu0
  %v5354 = vadd.f32 0.0, %v5353
  %v5355 = vpop.f32.mrb[0].mxu0
  %5356 = vdwg.mxu0
  %v5357 = vadd.f32 %v5282, %v5354
  %v5358 = vxor.u32 %v5357, 2147483648
  %v5359 = vmul.f32 %v5358, 1.442695
  %v5360 = vpow.pop %v5359
  %v5361 = vadd.f32 %v5360, 1.0
  %v5362 = vrcp.pop %v5361
  %v5363 = vmul.f32 1.0, %v5362
  %v5364 = vadd.f32 %v5354, %v1207
  %5366 = vrot.lane.b32.xlu0 %v5364, 64
  %v5367 = vpop.permute.xlu0 %5366
  %v5369 = vmul.f32 %v5363, %v5367
  %5371 = vrot.lane.b32.xlu0 %v5369, 64
  %v5372 = vpop.permute.xlu0 %5371
  %v5374 = vadd.f32 %v5282, %v5372
  %v5375 = vtanh.pop %v5374
  %v5376 = vsub.f32 1.0, %v5363
  %5378 = vrot.lane.b32.xlu0 %v5375, 96
  %v5379 = vpop.permute.xlu0 %5378
  %v5381 = vmul.f32 %v5376, %v5379
  %v5382 = vmul.f32 %v5363, %v5106
  %v5383 = vadd.f32 %v5381, %v5382
  %5385 = vrot.lane.b32.xlu0 %v5383, 96
  %v5386 = vpop.permute.xlu0 %5385
  %5388 = vst.msk [vmem:[#allocation5 + $0x78] sm:$0xff] %vm71, %v5386
  %5390 = vrot.lane.b32.xlu0 %v5214, 96
  %v5391 = vpop.permute.xlu0 %5390
  %v5392 = vsel %vm71, %v5391, 0
  %5394 = vmatprep.subr.mxu0 0.0
  %5395 = vmatpush1.msra.mxu0 %v826
  %5396 = vmatprep.subr.mxu0 0.0
  %5397 = vmatpush1.msra.mxu0 %v827
  %5398 = vmatprep.subr.mxu0 0.0
  %5399 = vmatpush1.msra.mxu0 %v828
  %5400 = vmatprep.subr.mxu0 0.0
  %5401 = vmatpush1.msra.mxu0 %v829
  %5402 = vmatprep.subr.mxu0 0.0
  %5403 = vmatpush1.msra.mxu0 0.0
  %5404 = vmatprep.subr.mxu0 0.0
  %5405 = vmatpush1.msra.mxu0 0.0
  %5406 = vmatprep.subr.mxu0 0.0
  %5407 = vmatpush1.msra.mxu0 0.0
  %5408 = vmatprep.subr.mxu0 0.0
  %5409 = vmatpush1.msra.mxu0 0.0
  %5410 = vmatprep.subr.mxu0 0.0
  %5411 = vmatpush1.msra.mxu0 0.0
  %5412 = vmatprep.subr.mxu0 0.0
  %5413 = vmatpush1.msra.mxu0 0.0
  %5414 = vmatprep.subr.mxu0 0.0
  %5415 = vmatpush1.msra.mxu0 0.0
  %5416 = vmatprep.subr.mxu0 0.0
  %5417 = vmatpush1.msra.mxu0 0.0
  %5418 = vmatprep.subr.mxu0 0.0
  %5419 = vmatpush1.msra.mxu0 0.0
  %5420 = vmatprep.subr.mxu0 0.0
  %5421 = vmatpush1.msra.mxu0 0.0
  %5422 = vmatprep.subr.mxu0 0.0
  %5423 = vmatpush1.msra.mxu0 0.0
  %5424 = vmatprep.subr.mxu0 0.0
  %5425 = vmatpush1.msra.mxu0 0.0
  %5426 = vmatprep.subr.mxu0 0.0
  %5427 = vmatpush1.msra.mxu0 0.0
  %5428 = vmatprep.subr.mxu0 0.0
  %5429 = vmatpush1.msra.mxu0 0.0
  %5430 = vmatprep.subr.mxu0 0.0
  %5431 = vmatpush1.msra.mxu0 0.0
  %5432 = vmatprep.subr.mxu0 0.0
  %5433 = vmatpush1.msra.mxu0 0.0
  %5434 = vmatprep.subr.mxu0 0.0
  %5435 = vmatpush1.msra.mxu0 0.0
  %5436 = vmatprep.subr.mxu0 0.0
  %5437 = vmatpush1.msra.mxu0 0.0
  %5438 = vmatprep.subr.mxu0 0.0
  %5439 = vmatpush1.msra.mxu0 0.0
  %5440 = vmatprep.subr.mxu0 0.0
  %5441 = vmatpush1.msra.mxu0 0.0
  %5442 = vmatprep.subr.mxu0 0.0
  %5443 = vmatpush1.msra.mxu0 0.0
  %5444 = vmatprep.subr.mxu0 0.0
  %5445 = vmatpush1.msra.mxu0 0.0
  %5446 = vmatprep.subr.mxu0 0.0
  %5447 = vmatpush1.msra.mxu0 0.0
  %5448 = vmatprep.subr.mxu0 0.0
  %5449 = vmatpush1.msra.mxu0 0.0
  %5450 = vmatprep.subr.mxu0 0.0
  %5451 = vmatpush1.msra.mxu0 0.0
  %5452 = vmatprep.subr.mxu0 0.0
  %5453 = vmatpush1.msra.mxu0 0.0
  %5454 = vmatprep.subr.mxu0 0.0
  %5455 = vmatpush1.msra.mxu0 0.0
  %5456 = vmatprep.subr.mxu0 0.0
  %5457 = vmatpush1.msra.mxu0 0.0
  %5458 = vmatprep.mubr.f32.mxu0 0.0
  %5459 = vmatmul.mubr.f32.gmra.mrb[0].mxu0 %v5392
  %v5460 = vpop.f32.mrb[0].mxu0
  %v5461 = vadd.f32 %v1052, %v5460
  %v5462 = vpop.f32.mrb[0].mxu0
  %5463 = vdwg.mxu0
  %v5464 = vsel %vm71, %v5386, 0
  %5466 = vmatprep.subr.mxu0 0.0
  %5467 = vmatpush1.msra.mxu0 %v831
  %5468 = vmatprep.subr.mxu0 0.0
  %5469 = vmatpush1.msra.mxu0 %v832
  %5470 = vmatprep.subr.mxu0 0.0
  %5471 = vmatpush1.msra.mxu0 %v833
  %5472 = vmatprep.subr.mxu0 0.0
  %5473 = vmatpush1.msra.mxu0 %v834
  %5474 = vmatprep.subr.mxu0 0.0
  %5475 = vmatpush1.msra.mxu0 0.0
  %5476 = vmatprep.subr.mxu0 0.0
  %5477 = vmatpush1.msra.mxu0 0.0
  %5478 = vmatprep.subr.mxu0 0.0
  %5479 = vmatpush1.msra.mxu0 0.0
  %5480 = vmatprep.subr.mxu0 0.0
  %5481 = vmatpush1.msra.mxu0 0.0
  %5482 = vmatprep.subr.mxu0 0.0
  %5483 = vmatpush1.msra.mxu0 0.0
  %5484 = vmatprep.subr.mxu0 0.0
  %5485 = vmatpush1.msra.mxu0 0.0
  %5486 = vmatprep.subr.mxu0 0.0
  %5487 = vmatpush1.msra.mxu0 0.0
  %5488 = vmatprep.subr.mxu0 0.0
  %5489 = vmatpush1.msra.mxu0 0.0
  %5490 = vmatprep.subr.mxu0 0.0
  %5491 = vmatpush1.msra.mxu0 0.0
  %5492 = vmatprep.subr.mxu0 0.0
  %5493 = vmatpush1.msra.mxu0 0.0
  %5494 = vmatprep.subr.mxu0 0.0
  %5495 = vmatpush1.msra.mxu0 0.0
  %5496 = vmatprep.subr.mxu0 0.0
  %5497 = vmatpush1.msra.mxu0 0.0
  %5498 = vmatprep.subr.mxu0 0.0
  %5499 = vmatpush1.msra.mxu0 0.0
  %5500 = vmatprep.subr.mxu0 0.0
  %5501 = vmatpush1.msra.mxu0 0.0
  %5502 = vmatprep.subr.mxu0 0.0
  %5503 = vmatpush1.msra.mxu0 0.0
  %5504 = vmatprep.subr.mxu0 0.0
  %5505 = vmatpush1.msra.mxu0 0.0
  %5506 = vmatprep.subr.mxu0 0.0
  %5507 = vmatpush1.msra.mxu0 0.0
  %5508 = vmatprep.subr.mxu0 0.0
  %5509 = vmatpush1.msra.mxu0 0.0
  %5510 = vmatprep.subr.mxu0 0.0
  %5511 = vmatpush1.msra.mxu0 0.0
  %5512 = vmatprep.subr.mxu0 0.0
  %5513 = vmatpush1.msra.mxu0 0.0
  %5514 = vmatprep.subr.mxu0 0.0
  %5515 = vmatpush1.msra.mxu0 0.0
  %5516 = vmatprep.subr.mxu0 0.0
  %5517 = vmatpush1.msra.mxu0 0.0
  %5518 = vmatprep.subr.mxu0 0.0
  %5519 = vmatpush1.msra.mxu0 0.0
  %5520 = vmatprep.subr.mxu0 0.0
  %5521 = vmatpush1.msra.mxu0 0.0
  %5522 = vmatprep.subr.mxu0 0.0
  %5523 = vmatpush1.msra.mxu0 0.0
  %5524 = vmatprep.subr.mxu0 0.0
  %5525 = vmatpush1.msra.mxu0 0.0
  %5526 = vmatprep.subr.mxu0 0.0
  %5527 = vmatpush1.msra.mxu0 0.0
  %5528 = vmatprep.subr.mxu0 0.0
  %5529 = vmatpush1.msra.mxu0 0.0
  %5530 = vmatprep.mubr.f32.mxu0 0.0
  %5531 = vmatmul.mubr.f32.gmra.mrb[0].mxu0 %v5464
  %v5532 = vpop.f32.mrb[0].mxu0
  %v5533 = vadd.f32 0.0, %v5532
  %v5534 = vpop.f32.mrb[0].mxu0
  %5535 = vdwg.mxu0
  %v5536 = vadd.f32 %v5461, %v5533
  %v5537 = vxor.u32 %v5536, 2147483648
  %v5538 = vmul.f32 %v5537, 1.442695
  %v5539 = vpow.pop %v5538
  %v5540 = vadd.f32 %v5539, 1.0
  %v5541 = vrcp.pop %v5540
  %v5542 = vmul.f32 1.0, %v5541
  %v5543 = vadd.f32 %v5533, %v1207
  %5545 = vrot.lane.b32.xlu0 %v5543, 64
  %v5546 = vpop.permute.xlu0 %5545
  %v5548 = vmul.f32 %v5542, %v5546
  %5550 = vrot.lane.b32.xlu0 %v5548, 64
  %v5551 = vpop.permute.xlu0 %5550
  %v5553 = vadd.f32 %v5461, %v5551
  %v5554 = vtanh.pop %v5553
  %v5555 = vsub.f32 1.0, %v5542
  %5557 = vrot.lane.b32.xlu0 %v5554, 96
  %v5558 = vpop.permute.xlu0 %5557
  %v5560 = vmul.f32 %v5555, %v5558
  %v5561 = vmul.f32 %v5542, %v5383
  %v5562 = vadd.f32 %v5560, %v5561
  %5564 = vrot.lane.b32.xlu0 %v5562, 96
  %v5565 = vpop.permute.xlu0 %5564
  %5567 = vst.msk [vmem:[#allocation5 + $0x80] sm:$0xff] %vm71, %v5565
  %v5568 = vld [vmem:[#allocation5] sm:$0xff]
  %v5569 = vld [vmem:[#allocation5 + $0x8] sm:$0xff]
  %v5570 = vld [vmem:[#allocation5 + $0x10] sm:$0xff]
  %v5571 = vld [vmem:[#allocation5 + $0x18] sm:$0xff]
  %v5572 = vld [vmem:[#allocation5 + $0x20] sm:$0xff]
  %v5573 = vld [vmem:[#allocation5 + $0x28] sm:$0xff]
  %v5574 = vld [vmem:[#allocation5 + $0x30] sm:$0xff]
  %v5575 = vld [vmem:[#allocation5 + $0x38] sm:$0xff]
  %v5576 = vld [vmem:[#allocation5 + $0x40] sm:$0xff]
  %v5577 = vld [vmem:[#allocation5 + $0x48] sm:$0xff]
  %v5578 = vld [vmem:[#allocation5 + $0x50] sm:$0xff]
  %v5579 = vld [vmem:[#allocation5 + $0x58] sm:$0xff]
  %v5580 = vld [vmem:[#allocation5 + $0x60] sm:$0xff]
  %v5581 = vld [vmem:[#allocation5 + $0x68] sm:$0xff]
  %v5582 = vld [vmem:[#allocation5 + $0x70] sm:$0xff]
  %v5583 = vld [vmem:[#allocation5 + $0x78] sm:$0xff]
  %v5584 = vld [vmem:[#allocation5 + $0x80] sm:$0xff]
  %v5585 = vld [vmem:[%s11] sm:$0xff]
  %v5586 = vld [vmem:[%s11 + $0x8] sm:$0xff]
  %v5587 = vld [vmem:[%s11 + $0x10] sm:$0xff]
  %v5588 = vld [vmem:[%s11 + $0x18] sm:$0xff]
  %v5589 = vld [vmem:[%s12] sm:$0x1]
  %v5591 = vlaneseq
  %v5592 = vshrl.u32 %v5591, 7
  %v5593 = vsub.s32 0, %v5592
  %v5594 = vrot.slane %v5589, %v5593
  %v5597 = vsel %vm71, %v5568, 0
  %v5600 = vsel %vm71, %v5569, 0
  %v5603 = vsel %vm71, %v5570, 0
  %v5606 = vsel %vm71, %v5571, 0
  %v5609 = vsel %vm71, %v5572, 0
  %v5612 = vsel %vm71, %v5573, 0
  %v5615 = vsel %vm71, %v5574, 0
  %v5618 = vsel %vm71, %v5575, 0
  %v5621 = vsel %vm71, %v5576, 0
  %v5624 = vsel %vm71, %v5577, 0
  %v5627 = vsel %vm71, %v5578, 0
  %v5630 = vsel %vm71, %v5579, 0
  %v5633 = vsel %vm71, %v5580, 0
  %v5636 = vsel %vm71, %v5581, 0
  %v5639 = vsel %vm71, %v5582, 0
  %v5642 = vsel %vm71, %v5583, 0
  %v5645 = vsel %vm71, %v5584, 0
  %5647 = vmatprep.subr.mxu0 0.0
  %5648 = vmatpush1.msra.mxu0 %v5585
  %5649 = vmatprep.subr.mxu0 0.0
  %5650 = vmatpush1.msra.mxu0 %v5586
  %5651 = vmatprep.subr.mxu0 0.0
  %5652 = vmatpush1.msra.mxu0 %v5587
  %5653 = vmatprep.subr.mxu0 0.0
  %5654 = vmatpush1.msra.mxu0 %v5588
  %5655 = vmatprep.subr.mxu0 0.0
  %5656 = vmatpush1.msra.mxu0 0.0
  %5657 = vmatprep.subr.mxu0 0.0
  %5658 = vmatpush1.msra.mxu0 0.0
  %5659 = vmatprep.subr.mxu0 0.0
  %5660 = vmatpush1.msra.mxu0 0.0
  %5661 = vmatprep.subr.mxu0 0.0
  %5662 = vmatpush1.msra.mxu0 0.0
  %5663 = vmatprep.subr.mxu0 0.0
  %5664 = vmatpush1.msra.mxu0 0.0
  %5665 = vmatprep.subr.mxu0 0.0
  %5666 = vmatpush1.msra.mxu0 0.0
  %5667 = vmatprep.subr.mxu0 0.0
  %5668 = vmatpush1.msra.mxu0 0.0
  %5669 = vmatprep.subr.mxu0 0.0
  %5670 = vmatpush1.msra.mxu0 0.0
  %5671 = vmatprep.subr.mxu0 0.0
  %5672 = vmatpush1.msra.mxu0 0.0
  %5673 = vmatprep.subr.mxu0 0.0
  %5674 = vmatpush1.msra.mxu0 0.0
  %5675 = vmatprep.subr.mxu0 0.0
  %5676 = vmatpush1.msra.mxu0 0.0
  %5677 = vmatprep.subr.mxu0 0.0
  %5678 = vmatpush1.msra.mxu0 0.0
  %5679 = vmatprep.subr.mxu0 0.0
  %5680 = vmatpush1.msra.mxu0 0.0
  %5681 = vmatprep.subr.mxu0 0.0
  %5682 = vmatpush1.msra.mxu0 0.0
  %5683 = vmatprep.subr.mxu0 0.0
  %5684 = vmatpush1.msra.mxu0 0.0
  %5685 = vmatprep.subr.mxu0 0.0
  %5686 = vmatpush1.msra.mxu0 0.0
  %5687 = vmatprep.subr.mxu0 0.0
  %5688 = vmatpush1.msra.mxu0 0.0
  %5689 = vmatprep.subr.mxu0 0.0
  %5690 = vmatpush1.msra.mxu0 0.0
  %5691 = vmatprep.subr.mxu0 0.0
  %5692 = vmatpush1.msra.mxu0 0.0
  %5693 = vmatprep.subr.mxu0 0.0
  %5694 = vmatpush1.msra.mxu0 0.0
  %5695 = vmatprep.subr.mxu0 0.0
  %5696 = vmatpush1.msra.mxu0 0.0
  %5697 = vmatprep.subr.mxu0 0.0
  %5698 = vmatpush1.msra.mxu0 0.0
  %5699 = vmatprep.subr.mxu0 0.0
  %5700 = vmatpush1.msra.mxu0 0.0
  %5701 = vmatprep.subr.mxu0 0.0
  %5702 = vmatpush1.msra.mxu0 0.0
  %5703 = vmatprep.subr.mxu0 0.0
  %5704 = vmatpush1.msra.mxu0 0.0
  %5705 = vmatprep.subr.mxu0 0.0
  %5706 = vmatpush1.msra.mxu0 0.0
  %5707 = vmatprep.subr.mxu0 0.0
  %5708 = vmatpush1.msra.mxu0 0.0
  %5709 = vmatprep.subr.mxu0 0.0
  %5710 = vmatpush1.msra.mxu0 0.0
  %5711 = vmatprep.mubr.f32.mxu0 0.0
  %5712 = vmatmul.mubr.f32.gmra.mrb[0].mxu0 %v5597
  %v5713 = vpop.f32.mrb[0].mxu0
  %v5714 = vadd.f32 %v5594, %v5713
  %v5715 = vpop.f32.mrb[0].mxu0
  %5716 = vmatprep.mubr.f32.mxu0 0.0
  %5717 = vmatmul.mubr.f32.gmra.mrb[0].mxu0 %v5600
  %v5718 = vpop.f32.mrb[0].mxu0
  %v5719 = vadd.f32 %v5594, %v5718
  %v5720 = vpop.f32.mrb[0].mxu0
  %5721 = vmatprep.mubr.f32.mxu0 0.0
  %5722 = vmatmul.mubr.f32.gmra.mrb[0].mxu0 %v5603
  %v5723 = vpop.f32.mrb[0].mxu0
  %v5724 = vadd.f32 %v5594, %v5723
  %v5725 = vpop.f32.mrb[0].mxu0
  %5726 = vmatprep.mubr.f32.mxu0 0.0
  %5727 = vmatmul.mubr.f32.gmra.mrb[0].mxu0 %v5606
  %v5728 = vpop.f32.mrb[0].mxu0
  %v5729 = vadd.f32 %v5594, %v5728
  %v5730 = vpop.f32.mrb[0].mxu0
  %5731 = vmatprep.mubr.f32.mxu0 0.0
  %5732 = vmatmul.mubr.f32.gmra.mrb[0].mxu0 %v5609
  %v5733 = vpop.f32.mrb[0].mxu0
  %v5734 = vadd.f32 %v5594, %v5733
  %v5735 = vpop.f32.mrb[0].mxu0
  %5736 = vmatprep.mubr.f32.mxu0 0.0
  %5737 = vmatmul.mubr.f32.gmra.mrb[0].mxu0 %v5612
  %v5738 = vpop.f32.mrb[0].mxu0
  %v5739 = vadd.f32 %v5594, %v5738
  %v5740 = vpop.f32.mrb[0].mxu0
  %5741 = vmatprep.mubr.f32.mxu0 0.0
  %5742 = vmatmul.mubr.f32.gmra.mrb[0].mxu0 %v5615
  %v5743 = vpop.f32.mrb[0].mxu0
  %v5744 = vadd.f32 %v5594, %v5743
  %v5745 = vpop.f32.mrb[0].mxu0
  %5746 = vmatprep.mubr.f32.mxu0 0.0
  %5747 = vmatmul.mubr.f32.gmra.mrb[0].mxu0 %v5618
  %v5748 = vpop.f32.mrb[0].mxu0
  %v5749 = vadd.f32 %v5594, %v5748
  %v5750 = vpop.f32.mrb[0].mxu0
  %5751 = vmatprep.mubr.f32.mxu0 0.0
  %5752 = vmatmul.mubr.f32.gmra.mrb[0].mxu0 %v5621
  %v5753 = vpop.f32.mrb[0].mxu0
  %v5754 = vadd.f32 %v5594, %v5753
  %v5755 = vpop.f32.mrb[0].mxu0
  %5756 = vmatprep.mubr.f32.mxu0 0.0
  %5757 = vmatmul.mubr.f32.gmra.mrb[0].mxu0 %v5624
  %v5758 = vpop.f32.mrb[0].mxu0
  %v5759 = vadd.f32 %v5594, %v5758
  %v5760 = vpop.f32.mrb[0].mxu0
  %5761 = vmatprep.mubr.f32.mxu0 0.0
  %5762 = vmatmul.mubr.f32.gmra.mrb[0].mxu0 %v5627
  %v5763 = vpop.f32.mrb[0].mxu0
  %v5764 = vadd.f32 %v5594, %v5763
  %v5765 = vpop.f32.mrb[0].mxu0
  %5766 = vmatprep.mubr.f32.mxu0 0.0
  %5767 = vmatmul.mubr.f32.gmra.mrb[0].mxu0 %v5630
  %v5768 = vpop.f32.mrb[0].mxu0
  %v5769 = vadd.f32 %v5594, %v5768
  %v5770 = vpop.f32.mrb[0].mxu0
  %5771 = vmatprep.mubr.f32.mxu0 0.0
  %5772 = vmatmul.mubr.f32.gmra.mrb[0].mxu0 %v5633
  %v5773 = vpop.f32.mrb[0].mxu0
  %v5774 = vadd.f32 %v5594, %v5773
  %v5775 = vpop.f32.mrb[0].mxu0
  %5776 = vmatprep.mubr.f32.mxu0 0.0
  %5777 = vmatmul.mubr.f32.gmra.mrb[0].mxu0 %v5636
  %v5778 = vpop.f32.mrb[0].mxu0
  %v5779 = vadd.f32 %v5594, %v5778
  %v5780 = vpop.f32.mrb[0].mxu0
  %5781 = vmatprep.mubr.f32.mxu0 0.0
  %5782 = vmatmul.mubr.f32.gmra.mrb[0].mxu0 %v5639
  %v5783 = vpop.f32.mrb[0].mxu0
  %v5784 = vadd.f32 %v5594, %v5783
  %v5785 = vpop.f32.mrb[0].mxu0
  %5786 = vmatprep.mubr.f32.mxu0 0.0
  %5787 = vmatmul.mubr.f32.gmra.mrb[0].mxu0 %v5642
  %v5788 = vpop.f32.mrb[0].mxu0
  %v5789 = vadd.f32 %v5594, %v5788
  %v5790 = vpop.f32.mrb[0].mxu0
  %5791 = vmatprep.mubr.f32.mxu0 0.0
  %5792 = vmatmul.mubr.f32.gmra.mrb[0].mxu0 %v5645
  %v5793 = vpop.f32.mrb[0].mxu0
  %v5794 = vadd.f32 %v5594, %v5793
  %v5795 = vpop.f32.mrb[0].mxu0
  %5796 = vdwg.mxu0
  %v5797 = vxor.u32 %v5714, 2147483648
  %v5798 = vxor.u32 %v5719, 2147483648
  %v5799 = vxor.u32 %v5724, 2147483648
  %v5800 = vxor.u32 %v5729, 2147483648
  %v5801 = vxor.u32 %v5734, 2147483648
  %v5802 = vxor.u32 %v5739, 2147483648
  %v5803 = vxor.u32 %v5744, 2147483648
  %v5804 = vxor.u32 %v5749, 2147483648
  %v5805 = vxor.u32 %v5754, 2147483648
  %v5806 = vxor.u32 %v5759, 2147483648
  %v5807 = vxor.u32 %v5764, 2147483648
  %v5808 = vxor.u32 %v5769, 2147483648
  %v5809 = vxor.u32 %v5774, 2147483648
  %v5810 = vxor.u32 %v5779, 2147483648
  %v5811 = vxor.u32 %v5784, 2147483648
  %v5812 = vxor.u32 %v5789, 2147483648
  %v5813 = vxor.u32 %v5794, 2147483648
  %v5814 = vmul.f32 %v5797, 1.442695
  %v5815 = vpow.pop %v5814
  %v5816 = vmul.f32 %v5798, 1.442695
  %v5817 = vpow.pop %v5816
  %v5818 = vmul.f32 %v5799, 1.442695
  %v5819 = vpow.pop %v5818
  %v5820 = vmul.f32 %v5800, 1.442695
  %v5821 = vpow.pop %v5820
  %v5822 = vmul.f32 %v5801, 1.442695
  %v5823 = vpow.pop %v5822
  %v5824 = vmul.f32 %v5802, 1.442695
  %v5825 = vpow.pop %v5824
  %v5826 = vmul.f32 %v5803, 1.442695
  %v5827 = vpow.pop %v5826
  %v5828 = vmul.f32 %v5804, 1.442695
  %v5829 = vpow.pop %v5828
  %v5830 = vmul.f32 %v5805, 1.442695
  %v5831 = vpow.pop %v5830
  %v5832 = vmul.f32 %v5806, 1.442695
  %v5833 = vpow.pop %v5832
  %v5834 = vmul.f32 %v5807, 1.442695
  %v5835 = vpow.pop %v5834
  %v5836 = vmul.f32 %v5808, 1.442695
  %v5837 = vpow.pop %v5836
  %v5838 = vmul.f32 %v5809, 1.442695
  %v5839 = vpow.pop %v5838
  %v5840 = vmul.f32 %v5810, 1.442695
  %v5841 = vpow.pop %v5840
  %v5842 = vmul.f32 %v5811, 1.442695
  %v5843 = vpow.pop %v5842
  %v5844 = vmul.f32 %v5812, 1.442695
  %v5845 = vpow.pop %v5844
  %v5846 = vmul.f32 %v5813, 1.442695
  %v5847 = vpow.pop %v5846
  %v5848 = vadd.f32 %v5815, 1.0
  %v5849 = vadd.f32 %v5817, 1.0
  %v5850 = vadd.f32 %v5819, 1.0
  %v5851 = vadd.f32 %v5821, 1.0
  %v5852 = vadd.f32 %v5823, 1.0
  %v5853 = vadd.f32 %v5825, 1.0
  %v5854 = vadd.f32 %v5827, 1.0
  %v5855 = vadd.f32 %v5829, 1.0
  %v5856 = vadd.f32 %v5831, 1.0
  %v5857 = vadd.f32 %v5833, 1.0
  %v5858 = vadd.f32 %v5835, 1.0
  %v5859 = vadd.f32 %v5837, 1.0
  %v5860 = vadd.f32 %v5839, 1.0
  %v5861 = vadd.f32 %v5841, 1.0
  %v5862 = vadd.f32 %v5843, 1.0
  %v5863 = vadd.f32 %v5845, 1.0
  %v5864 = vadd.f32 %v5847, 1.0
  %v5865 = vrcp.pop %v5848
  %v5866 = vmul.f32 1.0, %v5865
  %v5867 = vrcp.pop %v5849
  %v5868 = vmul.f32 1.0, %v5867
  %v5869 = vrcp.pop %v5850
  %v5870 = vmul.f32 1.0, %v5869
  %v5871 = vrcp.pop %v5851
  %v5872 = vmul.f32 1.0, %v5871
  %v5873 = vrcp.pop %v5852
  %v5874 = vmul.f32 1.0, %v5873
  %v5875 = vrcp.pop %v5853
  %v5876 = vmul.f32 1.0, %v5875
  %v5877 = vrcp.pop %v5854
  %v5878 = vmul.f32 1.0, %v5877
  %v5879 = vrcp.pop %v5855
  %v5880 = vmul.f32 1.0, %v5879
  %v5881 = vrcp.pop %v5856
  %v5882 = vmul.f32 1.0, %v5881
  %v5883 = vrcp.pop %v5857
  %v5884 = vmul.f32 1.0, %v5883
  %v5885 = vrcp.pop %v5858
  %v5886 = vmul.f32 1.0, %v5885
  %v5887 = vrcp.pop %v5859
  %v5888 = vmul.f32 1.0, %v5887
  %v5889 = vrcp.pop %v5860
  %v5890 = vmul.f32 1.0, %v5889
  %v5891 = vrcp.pop %v5861
  %v5892 = vmul.f32 1.0, %v5891
  %v5893 = vrcp.pop %v5862
  %v5894 = vmul.f32 1.0, %v5893
  %v5895 = vrcp.pop %v5863
  %v5896 = vmul.f32 1.0, %v5895
  %v5897 = vrcp.pop %v5864
  %v5898 = vmul.f32 1.0, %v5897
  %v5899 = vld [vmem:[#allocation2] sm:$0xff]
  %v5900 = vld [vmem:[#allocation2 + $0x8] sm:$0xff]
  %v5901 = vld [vmem:[#allocation2 + $0x10] sm:$0xff]
  %v5902 = vld [vmem:[#allocation2 + $0x18] sm:$0xff]
  %v5903 = vld [vmem:[#allocation2 + $0x20] sm:$0xff]
  %v5904 = vld [vmem:[#allocation2 + $0x28] sm:$0xff]
  %v5905 = vld [vmem:[#allocation2 + $0x30] sm:$0xff]
  %v5906 = vld [vmem:[#allocation2 + $0x38] sm:$0xff]
  %v5907 = vld [vmem:[#allocation2 + $0x40] sm:$0xff]
  %v5908 = vld [vmem:[#allocation2 + $0x48] sm:$0xff]
  %v5909 = vld [vmem:[#allocation2 + $0x50] sm:$0xff]
  %v5910 = vld [vmem:[#allocation2 + $0x58] sm:$0xff]
  %v5911 = vld [vmem:[#allocation2 + $0x60] sm:$0xff]
  %v5912 = vld [vmem:[#allocation2 + $0x68] sm:$0xff]
  %v5913 = vld [vmem:[#allocation2 + $0x70] sm:$0xff]
  %v5914 = vld [vmem:[#allocation2 + $0x78] sm:$0xff]
  %v5915 = vld [vmem:[#allocation2 + $0x80] sm:$0xff]
  %v5916 = vmul.f32 %v5899, %v5866
  %v5917 = vmul.f32 %v5900, %v5868
  %v5918 = vmul.f32 %v5901, %v5870
  %v5919 = vmul.f32 %v5902, %v5872
  %v5920 = vmul.f32 %v5903, %v5874
  %v5921 = vmul.f32 %v5904, %v5876
  %v5922 = vmul.f32 %v5905, %v5878
  %v5923 = vmul.f32 %v5906, %v5880
  %v5924 = vmul.f32 %v5907, %v5882
  %v5925 = vmul.f32 %v5908, %v5884
  %v5926 = vmul.f32 %v5909, %v5886
  %v5927 = vmul.f32 %v5910, %v5888
  %v5928 = vmul.f32 %v5911, %v5890
  %v5929 = vmul.f32 %v5912, %v5892
  %v5930 = vmul.f32 %v5913, %v5894
  %v5931 = vmul.f32 %v5914, %v5896
  %v5932 = vmul.f32 %v5915, %v5898
  %v5933 = vld [vmem:[#allocation3] sm:$0xff]
  %v5934 = vld [vmem:[#allocation3 + $0x8] sm:$0xff]
  %v5935 = vld [vmem:[#allocation3 + $0x10] sm:$0xff]
  %v5936 = vld [vmem:[#allocation3 + $0x18] sm:$0xff]
  %v5937 = vld [vmem:[#allocation3 + $0x20] sm:$0xff]
  %v5938 = vld [vmem:[#allocation3 + $0x28] sm:$0xff]
  %v5939 = vld [vmem:[#allocation3 + $0x30] sm:$0xff]
  %v5940 = vld [vmem:[#allocation3 + $0x38] sm:$0xff]
  %v5941 = vld [vmem:[#allocation3 + $0x40] sm:$0xff]
  %v5942 = vld [vmem:[#allocation3 + $0x48] sm:$0xff]
  %v5943 = vld [vmem:[#allocation3 + $0x50] sm:$0xff]
  %v5944 = vld [vmem:[#allocation3 + $0x58] sm:$0xff]
  %v5945 = vld [vmem:[#allocation3 + $0x60] sm:$0xff]
  %v5946 = vld [vmem:[#allocation3 + $0x68] sm:$0xff]
  %v5947 = vld [vmem:[#allocation3 + $0x70] sm:$0xff]
  %v5948 = vld [vmem:[#allocation3 + $0x78] sm:$0xff]
  %v5949 = vld [vmem:[#allocation3 + $0x80] sm:$0xff]
  %v5950 = vmul.f32 %v5933, %v5866
  %v5951 = vmul.f32 %v5934, %v5868
  %v5952 = vmul.f32 %v5935, %v5870
  %v5953 = vmul.f32 %v5936, %v5872
  %v5954 = vmul.f32 %v5937, %v5874
  %v5955 = vmul.f32 %v5938, %v5876
  %v5956 = vmul.f32 %v5939, %v5878
  %v5957 = vmul.f32 %v5940, %v5880
  %v5958 = vmul.f32 %v5941, %v5882
  %v5959 = vmul.f32 %v5942, %v5884
  %v5960 = vmul.f32 %v5943, %v5886
  %v5961 = vmul.f32 %v5944, %v5888
  %v5962 = vmul.f32 %v5945, %v5890
  %v5963 = vmul.f32 %v5946, %v5892
  %v5964 = vmul.f32 %v5947, %v5894
  %v5965 = vmul.f32 %v5948, %v5896
  %v5966 = vmul.f32 %v5949, %v5898
  %v5967 = vld [vmem:[%s13] sm:$0xff]
  %v5968 = vld [vmem:[%s13 + $0x8] sm:$0xff]
  %v5969 = vld [vmem:[%s13 + $0x10] sm:$0xff]
  %v5970 = vld [vmem:[%s13 + $0x18] sm:$0xff]
  %v5971 = vld [vmem:[%s13 + $0x20] sm:$0xff]
  %v5972 = vld [vmem:[%s13 + $0x28] sm:$0xff]
  %v5973 = vld [vmem:[%s13 + $0x30] sm:$0xff]
  %v5974 = vld [vmem:[%s13 + $0x38] sm:$0xff]
  %v5975 = vld [vmem:[%s13 + $0x40] sm:$0xff]
  %v5976 = vld [vmem:[%s13 + $0x48] sm:$0xff]
  %v5977 = vld [vmem:[%s13 + $0x50] sm:$0xff]
  %v5978 = vld [vmem:[%s13 + $0x58] sm:$0xff]
  %v5979 = vld [vmem:[%s13 + $0x60] sm:$0xff]
  %v5980 = vld [vmem:[%s13 + $0x68] sm:$0xff]
  %v5981 = vld [vmem:[%s13 + $0x70] sm:$0xff]
  %v5982 = vld [vmem:[%s13 + $0x78] sm:$0xff]
  %v5983 = vld [vmem:[%s14] sm:$0xff]
  %v5984 = vld [vmem:[%s14 + $0x8] sm:$0xff]
  %v5985 = vld [vmem:[%s14 + $0x10] sm:$0xff]
  %v5986 = vld [vmem:[%s14 + $0x18] sm:$0xff]
  %v5987 = vld [vmem:[%s14 + $0x20] sm:$0xff]
  %v5988 = vld [vmem:[%s14 + $0x28] sm:$0xff]
  %v5989 = vld [vmem:[%s14 + $0x30] sm:$0xff]
  %v5990 = vld [vmem:[%s14 + $0x38] sm:$0xff]
  %v5991 = vld [vmem:[%s14 + $0x40] sm:$0xff]
  %v5992 = vld [vmem:[%s14 + $0x48] sm:$0xff]
  %v5993 = vld [vmem:[%s14 + $0x50] sm:$0xff]
  %v5994 = vld [vmem:[%s14 + $0x58] sm:$0xff]
  %v5995 = vld [vmem:[%s14 + $0x60] sm:$0xff]
  %v5996 = vld [vmem:[%s14 + $0x68] sm:$0xff]
  %v5997 = vld [vmem:[%s14 + $0x70] sm:$0xff]
  %v5998 = vld [vmem:[%s14 + $0x78] sm:$0xff]
  %5999 = vmatprep.subr.mxu0 0.0
  %6000 = vmatpush1.msra.mxu0 %v5983
  %6001 = vmatprep.subr.mxu0 0.0
  %6002 = vmatpush1.msra.mxu0 %v5984
  %6003 = vmatprep.subr.mxu0 0.0
  %6004 = vmatpush1.msra.mxu0 %v5985
  %6005 = vmatprep.subr.mxu0 0.0
  %6006 = vmatpush1.msra.mxu0 %v5986
  %6007 = vmatprep.subr.mxu0 0.0
  %6008 = vmatpush1.msra.mxu0 %v5987
  %6009 = vmatprep.subr.mxu0 0.0
  %6010 = vmatpush1.msra.mxu0 %v5988
  %6011 = vmatprep.subr.mxu0 0.0
  %6012 = vmatpush1.msra.mxu0 %v5989
  %6013 = vmatprep.subr.mxu0 0.0
  %6014 = vmatpush1.msra.mxu0 %v5990
  %6015 = vmatprep.subr.mxu0 0.0
  %6016 = vmatpush1.msra.mxu0 %v5991
  %6017 = vmatprep.subr.mxu0 0.0
  %6018 = vmatpush1.msra.mxu0 %v5992
  %6019 = vmatprep.subr.mxu0 0.0
  %6020 = vmatpush1.msra.mxu0 %v5993
  %6021 = vmatprep.subr.mxu0 0.0
  %6022 = vmatpush1.msra.mxu0 %v5994
  %6023 = vmatprep.subr.mxu0 0.0
  %6024 = vmatpush1.msra.mxu0 %v5995
  %6025 = vmatprep.subr.mxu0 0.0
  %6026 = vmatpush1.msra.mxu0 %v5996
  %6027 = vmatprep.subr.mxu0 0.0
  %6028 = vmatpush1.msra.mxu0 %v5997
  %6029 = vmatprep.subr.mxu0 0.0
  %6030 = vmatpush1.msra.mxu0 %v5998
  %6031 = vmatprep.subr.mxu0 0.0
  %6032 = vmatpush1.msra.mxu0 0.0
  %6033 = vmatprep.subr.mxu0 0.0
  %6034 = vmatpush1.msra.mxu0 0.0
  %6035 = vmatprep.subr.mxu0 0.0
  %6036 = vmatpush1.msra.mxu0 0.0
  %6037 = vmatprep.subr.mxu0 0.0
  %6038 = vmatpush1.msra.mxu0 0.0
  %6039 = vmatprep.subr.mxu0 0.0
  %6040 = vmatpush1.msra.mxu0 0.0
  %6041 = vmatprep.subr.mxu0 0.0
  %6042 = vmatpush1.msra.mxu0 0.0
  %6043 = vmatprep.subr.mxu0 0.0
  %6044 = vmatpush1.msra.mxu0 0.0
  %6045 = vmatprep.subr.mxu0 0.0
  %6046 = vmatpush1.msra.mxu0 0.0
  %6047 = vmatprep.subr.mxu0 0.0
  %6048 = vmatpush1.msra.mxu0 0.0
  %6049 = vmatprep.subr.mxu0 0.0
  %6050 = vmatpush1.msra.mxu0 0.0
  %6051 = vmatprep.subr.mxu0 0.0
  %6052 = vmatpush1.msra.mxu0 0.0
  %6053 = vmatprep.subr.mxu0 0.0
  %6054 = vmatpush1.msra.mxu0 0.0
  %6055 = vmatprep.subr.mxu0 0.0
  %6056 = vmatpush1.msra.mxu0 0.0
  %6057 = vmatprep.subr.mxu0 0.0
  %6058 = vmatpush1.msra.mxu0 0.0
  %6059 = vmatprep.subr.mxu0 0.0
  %6060 = vmatpush1.msra.mxu0 0.0
  %6061 = vmatprep.subr.mxu0 0.0
  %6062 = vmatpush1.msra.mxu0 0.0
  %6063 = vmatprep.mubr.f32.mxu0 0.0
  %6064 = vmatmul.mubr.f32.gmra.mrb[0].mxu0 %v5950
  %v6065 = vpop.f32.mrb[0].mxu0
  %v6066 = vadd.f32 0.0, %v6065
  %v6067 = vpop.f32.mrb[0].mxu0
  %6068 = vmatprep.mubr.f32.mxu0 0.0
  %6069 = vmatmul.mubr.f32.gmra.mrb[0].mxu0 %v5951
  %v6070 = vpop.f32.mrb[0].mxu0
  %v6071 = vadd.f32 0.0, %v6070
  %v6072 = vpop.f32.mrb[0].mxu0
  %6073 = vmatprep.mubr.f32.mxu0 0.0
  %6074 = vmatmul.mubr.f32.gmra.mrb[0].mxu0 %v5952
  %v6075 = vpop.f32.mrb[0].mxu0
  %v6076 = vadd.f32 0.0, %v6075
  %v6077 = vpop.f32.mrb[0].mxu0
  %6078 = vmatprep.mubr.f32.mxu0 0.0
  %6079 = vmatmul.mubr.f32.gmra.mrb[0].mxu0 %v5953
  %v6080 = vpop.f32.mrb[0].mxu0
  %v6081 = vadd.f32 0.0, %v6080
  %v6082 = vpop.f32.mrb[0].mxu0
  %6083 = vmatprep.mubr.f32.mxu0 0.0
  %6084 = vmatmul.mubr.f32.gmra.mrb[0].mxu0 %v5954
  %v6085 = vpop.f32.mrb[0].mxu0
  %v6086 = vadd.f32 0.0, %v6085
  %v6087 = vpop.f32.mrb[0].mxu0
  %6088 = vmatprep.mubr.f32.mxu0 0.0
  %6089 = vmatmul.mubr.f32.gmra.mrb[0].mxu0 %v5955
  %v6090 = vpop.f32.mrb[0].mxu0
  %v6091 = vadd.f32 0.0, %v6090
  %v6092 = vpop.f32.mrb[0].mxu0
  %6093 = vmatprep.mubr.f32.mxu0 0.0
  %6094 = vmatmul.mubr.f32.gmra.mrb[0].mxu0 %v5956
  %v6095 = vpop.f32.mrb[0].mxu0
  %v6096 = vadd.f32 0.0, %v6095
  %v6097 = vpop.f32.mrb[0].mxu0
  %6098 = vmatprep.mubr.f32.mxu0 0.0
  %6099 = vmatmul.mubr.f32.gmra.mrb[0].mxu0 %v5957
  %v6100 = vpop.f32.mrb[0].mxu0
  %v6101 = vadd.f32 0.0, %v6100
  %v6102 = vpop.f32.mrb[0].mxu0
  %6103 = vmatprep.mubr.f32.mxu0 0.0
  %6104 = vmatmul.mubr.f32.gmra.mrb[0].mxu0 %v5958
  %v6105 = vpop.f32.mrb[0].mxu0
  %v6106 = vadd.f32 0.0, %v6105
  %v6107 = vpop.f32.mrb[0].mxu0
  %6108 = vmatprep.mubr.f32.mxu0 0.0
  %6109 = vmatmul.mubr.f32.gmra.mrb[0].mxu0 %v5959
  %v6110 = vpop.f32.mrb[0].mxu0
  %v6111 = vadd.f32 0.0, %v6110
  %v6112 = vpop.f32.mrb[0].mxu0
  %6113 = vmatprep.mubr.f32.mxu0 0.0
  %6114 = vmatmul.mubr.f32.gmra.mrb[0].mxu0 %v5960
  %v6115 = vpop.f32.mrb[0].mxu0
  %v6116 = vadd.f32 0.0, %v6115
  %v6117 = vpop.f32.mrb[0].mxu0
  %6118 = vmatprep.mubr.f32.mxu0 0.0
  %6119 = vmatmul.mubr.f32.gmra.mrb[0].mxu0 %v5961
  %v6120 = vpop.f32.mrb[0].mxu0
  %v6121 = vadd.f32 0.0, %v6120
  %v6122 = vpop.f32.mrb[0].mxu0
  %6123 = vmatprep.mubr.f32.mxu0 0.0
  %6124 = vmatmul.mubr.f32.gmra.mrb[0].mxu0 %v5962
  %v6125 = vpop.f32.mrb[0].mxu0
  %v6126 = vadd.f32 0.0, %v6125
  %v6127 = vpop.f32.mrb[0].mxu0
  %6128 = vmatprep.mubr.f32.mxu0 0.0
  %6129 = vmatmul.mubr.f32.gmra.mrb[0].mxu0 %v5963
  %v6130 = vpop.f32.mrb[0].mxu0
  %v6131 = vadd.f32 0.0, %v6130
  %v6132 = vpop.f32.mrb[0].mxu0
  %6133 = vmatprep.mubr.f32.mxu0 0.0
  %6134 = vmatmul.mubr.f32.gmra.mrb[0].mxu0 %v5964
  %v6135 = vpop.f32.mrb[0].mxu0
  %v6136 = vadd.f32 0.0, %v6135
  %v6137 = vpop.f32.mrb[0].mxu0
  %6138 = vmatprep.mubr.f32.mxu0 0.0
  %6139 = vmatmul.mubr.f32.gmra.mrb[0].mxu0 %v5965
  %v6140 = vpop.f32.mrb[0].mxu0
  %v6141 = vadd.f32 0.0, %v6140
  %v6142 = vpop.f32.mrb[0].mxu0
  %6143 = vmatprep.mubr.f32.mxu0 0.0
  %6144 = vmatmul.mubr.f32.gmra.mrb[0].mxu0 %v5966
  %v6145 = vpop.f32.mrb[0].mxu0
  %v6146 = vadd.f32 0.0, %v6145
  %v6147 = vpop.f32.mrb[0].mxu0
  %6148 = vdwg.mxu0
  %6149 = vmatprep.subr.mxu0 0.0
  %6150 = vmatpush1.msra.mxu0 %v5967
  %6151 = vmatprep.subr.mxu0 0.0
  %6152 = vmatpush1.msra.mxu0 %v5968
  %6153 = vmatprep.subr.mxu0 0.0
  %6154 = vmatpush1.msra.mxu0 %v5969
  %6155 = vmatprep.subr.mxu0 0.0
  %6156 = vmatpush1.msra.mxu0 %v5970
  %6157 = vmatprep.subr.mxu0 0.0
  %6158 = vmatpush1.msra.mxu0 %v5971
  %6159 = vmatprep.subr.mxu0 0.0
  %6160 = vmatpush1.msra.mxu0 %v5972
  %6161 = vmatprep.subr.mxu0 0.0
  %6162 = vmatpush1.msra.mxu0 %v5973
  %6163 = vmatprep.subr.mxu0 0.0
  %6164 = vmatpush1.msra.mxu0 %v5974
  %6165 = vmatprep.subr.mxu0 0.0
  %6166 = vmatpush1.msra.mxu0 %v5975
  %6167 = vmatprep.subr.mxu0 0.0
  %6168 = vmatpush1.msra.mxu0 %v5976
  %6169 = vmatprep.subr.mxu0 0.0
  %6170 = vmatpush1.msra.mxu0 %v5977
  %6171 = vmatprep.subr.mxu0 0.0
  %6172 = vmatpush1.msra.mxu0 %v5978
  %6173 = vmatprep.subr.mxu0 0.0
  %6174 = vmatpush1.msra.mxu0 %v5979
  %6175 = vmatprep.subr.mxu0 0.0
  %6176 = vmatpush1.msra.mxu0 %v5980
  %6177 = vmatprep.subr.mxu0 0.0
  %6178 = vmatpush1.msra.mxu0 %v5981
  %6179 = vmatprep.subr.mxu0 0.0
  %6180 = vmatpush1.msra.mxu0 %v5982
  %6181 = vmatprep.subr.mxu0 0.0
  %6182 = vmatpush1.msra.mxu0 0.0
  %6183 = vmatprep.subr.mxu0 0.0
  %6184 = vmatpush1.msra.mxu0 0.0
  %6185 = vmatprep.subr.mxu0 0.0
  %6186 = vmatpush1.msra.mxu0 0.0
  %6187 = vmatprep.subr.mxu0 0.0
  %6188 = vmatpush1.msra.mxu0 0.0
  %6189 = vmatprep.subr.mxu0 0.0
  %6190 = vmatpush1.msra.mxu0 0.0
  %6191 = vmatprep.subr.mxu0 0.0
  %6192 = vmatpush1.msra.mxu0 0.0
  %6193 = vmatprep.subr.mxu0 0.0
  %6194 = vmatpush1.msra.mxu0 0.0
  %6195 = vmatprep.subr.mxu0 0.0
  %6196 = vmatpush1.msra.mxu0 0.0
  %6197 = vmatprep.subr.mxu0 0.0
  %6198 = vmatpush1.msra.mxu0 0.0
  %6199 = vmatprep.subr.mxu0 0.0
  %6200 = vmatpush1.msra.mxu0 0.0
  %6201 = vmatprep.subr.mxu0 0.0
  %6202 = vmatpush1.msra.mxu0 0.0
  %6203 = vmatprep.subr.mxu0 0.0
  %6204 = vmatpush1.msra.mxu0 0.0
  %6205 = vmatprep.subr.mxu0 0.0
  %6206 = vmatpush1.msra.mxu0 0.0
  %6207 = vmatprep.subr.mxu0 0.0
  %6208 = vmatpush1.msra.mxu0 0.0
  %6209 = vmatprep.subr.mxu0 0.0
  %6210 = vmatpush1.msra.mxu0 0.0
  %6211 = vmatprep.subr.mxu0 0.0
  %6212 = vmatpush1.msra.mxu0 0.0
  %6213 = vmatprep.mubr.f32.mxu0 0.0
  %6214 = vmatmul.mubr.f32.gmra.mrb[0].mxu0 %v5916
  %v6215 = vpop.f32.mrb[0].mxu0
  %v6216 = vadd.f32 %v6066, %v6215
  %v6217 = vpop.f32.mrb[0].mxu0
  %6218 = vmatprep.mubr.f32.mxu0 0.0
  %6219 = vmatmul.mubr.f32.gmra.mrb[0].mxu0 %v5917
  %v6220 = vpop.f32.mrb[0].mxu0
  %v6221 = vadd.f32 %v6071, %v6220
  %v6222 = vpop.f32.mrb[0].mxu0
  %6223 = vmatprep.mubr.f32.mxu0 0.0
  %6224 = vmatmul.mubr.f32.gmra.mrb[0].mxu0 %v5918
  %v6225 = vpop.f32.mrb[0].mxu0
  %v6226 = vadd.f32 %v6076, %v6225
  %v6227 = vpop.f32.mrb[0].mxu0
  %6228 = vmatprep.mubr.f32.mxu0 0.0
  %6229 = vmatmul.mubr.f32.gmra.mrb[0].mxu0 %v5919
  %v6230 = vpop.f32.mrb[0].mxu0
  %v6231 = vadd.f32 %v6081, %v6230
  %v6232 = vpop.f32.mrb[0].mxu0
  %6233 = vmatprep.mubr.f32.mxu0 0.0
  %6234 = vmatmul.mubr.f32.gmra.mrb[0].mxu0 %v5920
  %v6235 = vpop.f32.mrb[0].mxu0
  %v6236 = vadd.f32 %v6086, %v6235
  %v6237 = vpop.f32.mrb[0].mxu0
  %6238 = vmatprep.mubr.f32.mxu0 0.0
  %6239 = vmatmul.mubr.f32.gmra.mrb[0].mxu0 %v5921
  %v6240 = vpop.f32.mrb[0].mxu0
  %v6241 = vadd.f32 %v6091, %v6240
  %v6242 = vpop.f32.mrb[0].mxu0
  %6243 = vmatprep.mubr.f32.mxu0 0.0
  %6244 = vmatmul.mubr.f32.gmra.mrb[0].mxu0 %v5922
  %v6245 = vpop.f32.mrb[0].mxu0
  %v6246 = vadd.f32 %v6096, %v6245
  %v6247 = vpop.f32.mrb[0].mxu0
  %6248 = vmatprep.mubr.f32.mxu0 0.0
  %6249 = vmatmul.mubr.f32.gmra.mrb[0].mxu0 %v5923
  %v6250 = vpop.f32.mrb[0].mxu0
  %v6251 = vadd.f32 %v6101, %v6250
  %v6252 = vpop.f32.mrb[0].mxu0
  %6253 = vmatprep.mubr.f32.mxu0 0.0
  %6254 = vmatmul.mubr.f32.gmra.mrb[0].mxu0 %v5924
  %v6255 = vpop.f32.mrb[0].mxu0
  %v6256 = vadd.f32 %v6106, %v6255
  %v6257 = vpop.f32.mrb[0].mxu0
  %6258 = vmatprep.mubr.f32.mxu0 0.0
  %6259 = vmatmul.mubr.f32.gmra.mrb[0].mxu0 %v5925
  %v6260 = vpop.f32.mrb[0].mxu0
  %v6261 = vadd.f32 %v6111, %v6260
  %v6262 = vpop.f32.mrb[0].mxu0
  %6263 = vmatprep.mubr.f32.mxu0 0.0
  %6264 = vmatmul.mubr.f32.gmra.mrb[0].mxu0 %v5926
  %v6265 = vpop.f32.mrb[0].mxu0
  %v6266 = vadd.f32 %v6116, %v6265
  %v6267 = vpop.f32.mrb[0].mxu0
  %6268 = vmatprep.mubr.f32.mxu0 0.0
  %6269 = vmatmul.mubr.f32.gmra.mrb[0].mxu0 %v5927
  %v6270 = vpop.f32.mrb[0].mxu0
  %v6271 = vadd.f32 %v6121, %v6270
  %v6272 = vpop.f32.mrb[0].mxu0
  %6273 = vmatprep.mubr.f32.mxu0 0.0
  %6274 = vmatmul.mubr.f32.gmra.mrb[0].mxu0 %v5928
  %v6275 = vpop.f32.mrb[0].mxu0
  %v6276 = vadd.f32 %v6126, %v6275
  %v6277 = vpop.f32.mrb[0].mxu0
  %6278 = vmatprep.mubr.f32.mxu0 0.0
  %6279 = vmatmul.mubr.f32.gmra.mrb[0].mxu0 %v5929
  %v6280 = vpop.f32.mrb[0].mxu0
  %v6281 = vadd.f32 %v6131, %v6280
  %v6282 = vpop.f32.mrb[0].mxu0
  %6283 = vmatprep.mubr.f32.mxu0 0.0
  %6284 = vmatmul.mubr.f32.gmra.mrb[0].mxu0 %v5930
  %v6285 = vpop.f32.mrb[0].mxu0
  %v6286 = vadd.f32 %v6136, %v6285
  %v6287 = vpop.f32.mrb[0].mxu0
  %6288 = vmatprep.mubr.f32.mxu0 0.0
  %6289 = vmatmul.mubr.f32.gmra.mrb[0].mxu0 %v5931
  %v6290 = vpop.f32.mrb[0].mxu0
  %v6291 = vadd.f32 %v6141, %v6290
  %v6292 = vpop.f32.mrb[0].mxu0
  %6293 = vmatprep.mubr.f32.mxu0 0.0
  %6294 = vmatmul.mubr.f32.gmra.mrb[0].mxu0 %v5932
  %v6295 = vpop.f32.mrb[0].mxu0
  %v6296 = vadd.f32 %v6146, %v6295
  %v6297 = vpop.f32.mrb[0].mxu0
  %6298 = vdwg.mxu0
  %6299 = vst [vmem:[%s15] sm:$0xff] %v6216
  %6300 = vst [vmem:[%s15 + $0x8] sm:$0xff] %v6221
  %6301 = vst [vmem:[%s15 + $0x10] sm:$0xff] %v6226
  %6302 = vst [vmem:[%s15 + $0x18] sm:$0xff] %v6231
  %6303 = vst [vmem:[%s15 + $0x20] sm:$0xff] %v6236
  %6304 = vst [vmem:[%s15 + $0x28] sm:$0xff] %v6241
  %6305 = vst [vmem:[%s15 + $0x30] sm:$0xff] %v6246
  %6306 = vst [vmem:[%s15 + $0x38] sm:$0xff] %v6251
  %6307 = vst [vmem:[%s15 + $0x40] sm:$0xff] %v6256
  %6308 = vst [vmem:[%s15 + $0x48] sm:$0xff] %v6261
  %6309 = vst [vmem:[%s15 + $0x50] sm:$0xff] %v6266
  %6310 = vst [vmem:[%s15 + $0x58] sm:$0xff] %v6271
  %6311 = vst [vmem:[%s15 + $0x60] sm:$0xff] %v6276
  %6312 = vst [vmem:[%s15 + $0x68] sm:$0xff] %v6281
  %6313 = vst [vmem:[%s15 + $0x70] sm:$0xff] %v6286
  %6314 = vst [vmem:[%s15 + $0x78] sm:$0xff] %v6291
  %6315 = vst [vmem:[%s15 + $0x80] sm:$0xff] %v6296
  // Predicated region
  $region62: #{grunet_forward.1} parent=0 // pred_check
    _
  $region63: #{grunet_forward.1} parent=0 // pred_check_branch
    %6317 = sbr.rel (0) target = $region65
  $region64: #{grunet_forward.1} parent=0 // pred_region
    _
  $region65: #{grunet_forward.1} parent=0 // pred_fallthru
    _
  // Predicated region
  $region66: #{grunet_forward.1} parent=0 // pred_check
    _
  $region67: #{grunet_forward.1} parent=0 // pred_check_branch
    %6319 = sbr.rel (0) target = $region69
  $region68: #{grunet_forward.1} parent=0 // pred_region
    _
  $region69: #{grunet_forward.1} parent=0 // pred_fallthru
    _

</llo_original>
